<compile_context>
chip_gen: v7x
topology: tpu7x:2x2x1
jax: 0.10.0
libtpu: 0.0.40
codegen_flags: <defaults>
</compile_context>

<pallas_src>
import jax
import jax.numpy as jnp
from jax import lax
from jax.experimental import pallas as pl
from jax.experimental.pallas import tpu as pltpu

EXPANSION = 4
BN_EPS = 1e-5
COL_OFF = 8          # interior of the padded scratch starts at this (aligned) column


def _padded_width(W):
    # columns [COL_OFF-1, COL_OFF+W+1) are used; round the allocation up to 8.
    return ((W + COL_OFF + 1 + 7) // 8) * 8


def _make_bottleneck_kernel(H, W, Cin, P, stride, has_projection):
    """Whole-block kernel: 1x1 conv -> 3x3 conv (im2col) -> 1x1 conv -> +shortcut -> relu."""
    Cexp = EXPANSION * P
    Hout = (H - 1) // stride + 1   # 3x3, pad=1 => same-size / stride
    Wout = (W - 1) // stride + 1
    W_pad = _padded_width(W)

    def kernel(*refs):
        if has_projection:
            (x_ref, w1_ref, b1_ref, w2_ref, b2_ref, w3_ref, b3_ref,
             wsc_ref, bsc_ref, out_ref, hpad_ref, col_ref) = refs
        else:
            (x_ref, w1_ref, b1_ref, w2_ref, b2_ref, w3_ref, b3_ref,
             out_ref, hpad_ref, col_ref) = refs

        xb = x_ref[0]                                      # (H, W, Cin) bf16

        # ---- stage 1: 1x1 conv (BN scale pre-folded into w1) + bias + ReLU ----
        h1 = jnp.dot(xb.reshape(H * W, Cin), w1_ref[...],
                     preferred_element_type=jnp.float32)          # (H*W, P) f32
        h1 = jnp.maximum(h1 + b1_ref[...], 0.0)

        # ---- stage 2: 3x3 conv (pad=1, stride) via padded bf16 scratch + im2col ----
        # Re-zero only the 1-pixel border each step (cheap strips; must stay
        # per-step — a program_id==0 guard breaks under the "parallel" batch
        # axis on v7x megacore where each core has its own scratch).
        zrow = jnp.zeros((1, W_pad, P), jnp.bfloat16)
        zcol = jnp.zeros((H, 1, P), jnp.bfloat16)
        hpad_ref[0:1, :, :] = zrow
        hpad_ref[H + 1:H + 2, :, :] = zrow
        hpad_ref[1:H + 1, COL_OFF - 1:COL_OFF, :] = zcol
        hpad_ref[1:H + 1, COL_OFF + W:COL_OFF + W + 1, :] = zcol
        # interior store at a sublane-aligned column offset (no rotate of h1)
        hpad_ref[1:H + 1, COL_OFF:COL_OFF + W, :] = (
            h1.reshape(H, W, P).astype(jnp.bfloat16))

        # Build the im2col operand (M, 9P) once, then a single MXU contraction.
        if stride == 1:
            for dy in range(3):
                for dx in range(3):
                    t = 3 * dy + dx
                    patch = hpad_ref[dy:dy + Hout,
                                     COL_OFF - 1 + dx:COL_OFF - 1 + dx + Wout, :]
                    col_ref[:, t * P:(t + 1) * P] = patch.reshape(Hout * Wout, P)
        else:
            hp = hpad_ref[...]
            for dy in range(3):
                for dx in range(3):
                    t = 3 * dy + dx
                    patch = lax.slice(
                        hp,
                        (dy, COL_OFF - 1 + dx, 0),
                        (dy + (Hout - 1) * stride + 1,
                         COL_OFF - 1 + dx + (Wout - 1) * stride + 1, P),
                        (stride, stride, 1))
                    col_ref[:, t * P:(t + 1) * P] = patch.reshape(Hout * Wout, P)

        h2 = jnp.dot(col_ref[...], w2_ref[...],
                     preferred_element_type=jnp.float32)          # (M, P) f32
        h2 = jnp.maximum(h2 + b2_ref[...], 0.0).astype(jnp.bfloat16)

        # ---- stage 3: 1x1 conv (scale folded) + bias ----
        h3 = jnp.dot(h2, w3_ref[...], preferred_element_type=jnp.float32)
        h3 = h3 + b3_ref[...]                              # (Hout*Wout, Cexp) f32

        # ---- shortcut ----
        if has_projection:
            if stride == 1:
                xs = xb.reshape(H * W, Cin)
            else:
                xs = lax.slice(
                    xb, (0, 0, 0),
                    ((Hout - 1) * stride + 1, (Wout - 1) * stride + 1, Cin),
                    (stride, stride, 1)).reshape(Hout * Wout, Cin)
            sc = jnp.dot(xs, wsc_ref[...],
                         preferred_element_type=jnp.float32) + bsc_ref[...]
        else:
            # identity shortcut (stride==1, Cin==Cexp): no matmul, bf16 -> f32 add
            sc = xb.reshape(H * W, Cexp).astype(jnp.float32)

        out = jnp.maximum(h3 + sc, 0.0)
        out_ref[0] = out.reshape(Hout, Wout, Cexp).astype(out_ref.dtype)

    return kernel, Hout, Wout, W_pad


def _fold_params(params, has_projection):
    """Host-side prep: fold BN scale into conv weights, cast matmul weights to
    bf16, reshape the 3x3 weight to (9P, P) for the im2col contraction."""
    P = params["w1"].shape[1]
    w1 = (params["w1"] * params["s1"]).astype(jnp.bfloat16)              # (Cin, P)
    w2 = params["w2"] * params["s2"].reshape(1, 1, 1, -1)                # HWIO scale on O
    w2 = w2.reshape(9 * P, P).astype(jnp.bfloat16)                       # (9P, P)
    w3 = (params["w3"] * params["s3"]).astype(jnp.bfloat16)              # (P, 4P)
    ordered = [w1, params["b1"], w2, params["b2"], w3, params["b3"]]
    if has_projection:
        wsc = (params["wsc"] * params["ssc"]).astype(jnp.bfloat16)       # (Cin, 4P)
        ordered += [wsc, params["bsc"]]
    return ordered


def _vmem_limit_bytes():
    """Generation-aware scoped-VMEM limit (leave headroom for compiler scratch)."""
    try:
        cap = int(pltpu.get_tpu_info().vmem_capacity_bytes)
    except Exception:
        return 64 * 1024 * 1024
    return min((cap * 3) // 4, 100 * 1024 * 1024)


def bottleneck_forward_nhwc(x_nhwc, params, stride=1):
    """NHWC-native entry point. x_nhwc: (N, H, W, Cin) -> (N, Hout, Wout, 4*planes) bf16."""
    N, H, W, Cin = x_nhwc.shape
    P = params["w1"].shape[1]
    Cexp = EXPANSION * P
    has_projection = (stride != 1) or (Cin != Cexp)

    x = x_nhwc.astype(jnp.bfloat16)
    kernel, Hout, Wout, W_pad = _make_bottleneck_kernel(
        H, W, Cin, P, stride, has_projection)
    ordered = _fold_params(params, has_projection)

    def run(single_buffer_weights):
        def wspec(arr):
            nd = arr.ndim
            idx = lambda n, _nd=nd: (0,) * _nd
            if single_buffer_weights:
                # weights/biases never change block across the grid -> no double buffer
                return pl.BlockSpec(arr.shape, idx, pipeline_mode=pl.Buffered(1))
            return pl.BlockSpec(arr.shape, idx)

        in_specs = [pl.BlockSpec((1, H, W, Cin), lambda n: (n, 0, 0, 0))]
        in_specs += [wspec(a) for a in ordered]
        out_specs = pl.BlockSpec((1, Hout, Wout, Cexp), lambda n: (n, 0, 0, 0))

        return pl.pallas_call(
            kernel,
            out_shape=jax.ShapeDtypeStruct((N, Hout, Wout, Cexp), jnp.bfloat16),
            grid=(N,),
            in_specs=in_specs,
            out_specs=out_specs,
            scratch_shapes=[
                pltpu.VMEM((H + 2, W_pad, P), jnp.bfloat16),       # padded h1
                pltpu.VMEM((Hout * Wout, 9 * P), jnp.bfloat16),    # im2col operand
            ],
            compiler_params=pltpu.CompilerParams(
                # batch images are independent -> shard across TCs on v7x megacore
                dimension_semantics=("parallel",),
                vmem_limit_bytes=_vmem_limit_bytes()),
        )(x, *ordered)

    try:
        return run(True)
    except Exception:
        # TODO(synk): drop fallback once single-buffered (pl.Buffered(1)) inputs
        # are supported on all deployed jax versions.
        return run(False)


def bottleneck_forward(x_nchw, params, stride=1):
    """PyTorch-layout wrapper: (N, Cin, H, W) -> (N, 4*planes, Hout, Wout).
    For multi-block networks prefer `bottleneck_forward_nhwc` and keep NHWC
    residency (transpose only once at model input/output)."""
    x = jnp.transpose(x_nchw, (0, 2, 3, 1))
    out = bottleneck_forward_nhwc(x, params, stride=stride)
    return jnp.transpose(out, (0, 3, 1, 2))


def init_params(key, in_planes, planes, stride=1):
    """Deterministic synthetic weights in matmul-friendly layouts:
       w1: (Cin, P), w2: (3,3,P,P) HWIO, w3: (P, 4P), wsc: (Cin, 4P) (if projection).
       BN folded to (scale, bias) per channel, stored as (1, C) f32."""
    Cexp = EXPANSION * planes
    keys = jax.random.split(key, 16)

    def bn_fold(kg, kb, km, kv, c):
        gamma = jax.random.uniform(kg, (c,), minval=0.5, maxval=1.5)
        beta = jax.random.normal(kb, (c,)) * 0.1
        mean = jax.random.normal(km, (c,)) * 0.1
        var = jax.random.uniform(kv, (c,), minval=0.5, maxval=1.5)
        scale = gamma / jnp.sqrt(var + BN_EPS)
        bias = beta - mean * scale
        return (scale.reshape(1, c).astype(jnp.float32),
                bias.reshape(1, c).astype(jnp.float32))

    params = {}
    params["w1"] = (jax.random.normal(keys[0], (in_planes, planes)) * 0.1).astype(jnp.float32)
    params["s1"], params["b1"] = bn_fold(keys[1], keys[2], keys[3], keys[4], planes)
    params["w2"] = (jax.random.normal(keys[5], (3, 3, planes, planes)) * 0.1).astype(jnp.float32)
    params["s2"], params["b2"] = bn_fold(keys[6], keys[7], keys[8], keys[9], planes)
    params["w3"] = (jax.random.normal(keys[10], (planes, Cexp)) * 0.1).astype(jnp.float32)
    params["s3"], params["b3"] = bn_fold(keys[11], keys[12], keys[13], keys[14], Cexp)

    if stride != 1 or in_planes != Cexp:
        ks = jax.random.split(keys[15], 5)
        params["wsc"] = (jax.random.normal(ks[0], (in_planes, Cexp)) * 0.1).astype(jnp.float32)
        params["ssc"], params["bsc"] = bn_fold(ks[1], ks[2], ks[3], ks[4], Cexp)
    # identity shortcut: no parameters at all (kernel skips the projection)
    return params


def reference_forward(x_nchw, params, stride=1):
    """Pure-JAX reference (lax convolutions, full f32) for validation."""
    x = jnp.transpose(x_nchw, (0, 2, 3, 1)).astype(jnp.float32)
    Cin = x.shape[-1]
    P = params["w1"].shape[1]
    Cexp = EXPANSION * P
    dn = ("NHWC", "HWIO", "NHWC")

    def bn(y, s, b):
        return y * s.reshape(1, 1, 1, -1) + b.reshape(1, 1, 1, -1)

    h = lax.conv_general_dilated(x, params["w1"].reshape(1, 1, Cin, P),
                                 (1, 1), "VALID", dimension_numbers=dn)
    h = jnp.maximum(bn(h, params["s1"], params["b1"]), 0.0)
    h = lax.conv_general_dilated(h, params["w2"], (stride, stride),
                                 ((1, 1), (1, 1)), dimension_numbers=dn)
    h = jnp.maximum(bn(h, params["s2"], params["b2"]), 0.0)
    h = lax.conv_general_dilated(h, params["w3"].reshape(1, 1, P, Cexp),
                                 (1, 1), "VALID", dimension_numbers=dn)
    h = bn(h, params["s3"], params["b3"])
    if "wsc" in params:
        sc = lax.conv_general_dilated(x, params["wsc"].reshape(1, 1, Cin, Cexp),
                                      (stride, stride), "VALID", dimension_numbers=dn)
        sc = bn(sc, params["ssc"], params["bsc"])
    else:
        sc = x
    out = jnp.maximum(h + sc, 0.0)
    return jnp.transpose(out, (0, 3, 1, 2))


if __name__ == "__main__":
    key = jax.random.PRNGKey(0)

    def check(in_planes, planes, stride, N=2, H=16, W=16):
        kx, kp = jax.random.split(jax.random.fold_in(key, in_planes * 100 + stride))
        x = jax.random.normal(kx, (N, in_planes, H, W), dtype=jnp.float32)
        params = init_params(kp, in_planes, planes, stride)
        out = jax.block_until_ready(bottleneck_forward(x, params, stride=stride))
        ref = jax.block_until_ready(reference_forward(x, params, stride=stride))
        Hout = (H - 1) // stride + 1
        Wout = (W - 1) // stride + 1
        assert out.shape == (N, EXPANSION * planes, Hout, Wout), out.shape
        outf = out.astype(jnp.float32)
        err = float(jnp.max(jnp.abs(outf - ref)))
        # bf16 activations/weights (f32 MXU accumulation) + bf16 output vs f32 reference
        assert jnp.allclose(outf, ref, atol=5e-2, rtol=5e-2), err

    check(16, 8, 1)   # projection shortcut (Cin != 4*planes), stride 1
    check(32, 8, 1)   # identity shortcut  (Cin == 4*planes): shortcut matmul skipped
    check(16, 8, 2)   # projection shortcut with stride 2

    print("KERNEL_OK")
</pallas_src>

<mosaic_0001>
module attributes {stable_mosaic.version = 11 : i64} {
  func.func @kernel(%arg0: i32, %arg1: memref<1x16x16x16xbf16, #tpu.memory_space<vmem>>, %arg2: memref<16x8xbf16, #tpu.memory_space<vmem>>, %arg3: memref<1x8xf32, #tpu.memory_space<vmem>>, %arg4: memref<72x8xbf16, #tpu.memory_space<vmem>>, %arg5: memref<1x8xf32, #tpu.memory_space<vmem>>, %arg6: memref<8x32xbf16, #tpu.memory_space<vmem>>, %arg7: memref<1x32xf32, #tpu.memory_space<vmem>>, %arg8: memref<16x32xbf16, #tpu.memory_space<vmem>>, %arg9: memref<1x32xf32, #tpu.memory_space<vmem>>, %arg10: memref<1x16x16x32xbf16, #tpu.memory_space<vmem>>, %arg11: memref<18x32x8xbf16, #tpu.memory_space<vmem>>, %arg12: memref<256x72xbf16, #tpu.memory_space<vmem>>) attributes {dimension_semantics = [#tpu.dimension_semantics<parallel>], iteration_bounds = array<i64: 2>, scalar_prefetch = 0 : i64, scratch_operands = 2 : i64, tpu.core_type = #tpu.core_type<tc>, window_params = [{transform_indices = @transform_0, window_bounds = array<i64: 1, 16, 16, 16>}, {pipeline_mode = #tpu.pipeline_mode<synchronous>, transform_indices = @transform_1, window_bounds = array<i64: 16, 8>}, {pipeline_mode = #tpu.pipeline_mode<synchronous>, transform_indices = @transform_2, window_bounds = array<i64: 1, 8>}, {pipeline_mode = #tpu.pipeline_mode<synchronous>, transform_indices = @transform_3, window_bounds = array<i64: 72, 8>}, {pipeline_mode = #tpu.pipeline_mode<synchronous>, transform_indices = @transform_4, window_bounds = array<i64: 1, 8>}, {pipeline_mode = #tpu.pipeline_mode<synchronous>, transform_indices = @transform_5, window_bounds = array<i64: 8, 32>}, {pipeline_mode = #tpu.pipeline_mode<synchronous>, transform_indices = @transform_6, window_bounds = array<i64: 1, 32>}, {pipeline_mode = #tpu.pipeline_mode<synchronous>, transform_indices = @transform_7, window_bounds = array<i64: 16, 32>}, {pipeline_mode = #tpu.pipeline_mode<synchronous>, transform_indices = @transform_8, window_bounds = array<i64: 1, 32>}, {transform_indices = @transform_9, window_bounds = array<i64: 1, 16, 16, 32>}]} {
    %c0 = arith.constant 0 : index
    %c0_0 = arith.constant 0 : index
    %c0_1 = arith.constant 0 : index
    %c0_2 = arith.constant 0 : index
    %0 = vector.load %arg1[%c0, %c0_0, %c0_1, %c0_2] : memref<1x16x16x16xbf16, #tpu.memory_space<vmem>>, vector<1x16x16x16xbf16>
    %1 = vector.shape_cast %0 : vector<1x16x16x16xbf16> to vector<16x16x16xbf16>
    %2 = vector.shape_cast %1 : vector<16x16x16xbf16> to vector<256x16xbf16>
    %c0_3 = arith.constant 0 : index
    %c0_4 = arith.constant 0 : index
    %3 = vector.load %arg2[%c0_3, %c0_4] : memref<16x8xbf16, #tpu.memory_space<vmem>>, vector<16x8xbf16>
    %cst = arith.constant dense<0.000000e+00> : vector<256x8xf32>
    %4 = tpu.matmul %2, %3, %cst {dimension_numbers = #tpu.dot_dimension_numbers<[1], [0], [0], [1], [0, 0, 1, 1], [], []>} : vector<256x16xbf16>, vector<16x8xbf16>, vector<256x8xf32> -> vector<256x8xf32>
    %c0_5 = arith.constant 0 : index
    %c0_6 = arith.constant 0 : index
    %5 = vector.load %arg3[%c0_5, %c0_6] : memref<1x8xf32, #tpu.memory_space<vmem>>, vector<1x8xf32>
    %6 = vector.broadcast %5 : vector<1x8xf32> to vector<256x8xf32>
    %7 = arith.addf %4, %6 : vector<256x8xf32>
    %cst_7 = arith.constant 0.000000e+00 : f32
    %8 = vector.broadcast %cst_7 : f32 to vector<256x8xf32>
    %9 = arith.maximumf %7, %8 : vector<256x8xf32>
    %cst_8 = arith.constant 0.000000e+00 : bf16
    %10 = vector.broadcast %cst_8 : bf16 to vector<1x32x8xbf16>
    %cst_9 = arith.constant 0.000000e+00 : bf16
    %11 = vector.broadcast %cst_9 : bf16 to vector<16x1x8xbf16>
    %c0_10 = arith.constant 0 : index
    %c0_11 = arith.constant 0 : index
    %c0_12 = arith.constant 0 : index
    %12 = vector.load %arg11[%c0_10, %c0_11, %c0_12] : memref<18x32x8xbf16, #tpu.memory_space<vmem>>, vector<1x32x8xbf16>
    tpu.vector_store %arg11[%c0_10, %c0_11, %c0_12], %10 {strides = array<i32>} : memref<18x32x8xbf16, #tpu.memory_space<vmem>>, vector<1x32x8xbf16>,
    %c17 = arith.constant 17 : index
    %c0_13 = arith.constant 0 : index
    %c0_14 = arith.constant 0 : index
    %13 = vector.load %arg11[%c17, %c0_13, %c0_14] : memref<18x32x8xbf16, #tpu.memory_space<vmem>>, vector<1x32x8xbf16>
    tpu.vector_store %arg11[%c17, %c0_13, %c0_14], %10 {strides = array<i32>} : memref<18x32x8xbf16, #tpu.memory_space<vmem>>, vector<1x32x8xbf16>,
    %c1 = arith.constant 1 : index
    %c7 = arith.constant 7 : index
    %c0_15 = arith.constant 0 : index
    %14 = vector.load %arg11[%c1, %c7, %c0_15] : memref<18x32x8xbf16, #tpu.memory_space<vmem>>, vector<16x1x8xbf16>
    tpu.vector_store %arg11[%c1, %c7, %c0_15], %11 {strides = array<i32>} : memref<18x32x8xbf16, #tpu.memory_space<vmem>>, vector<16x1x8xbf16>,
    %c1_16 = arith.constant 1 : index
    %c24 = arith.constant 24 : index
    %c0_17 = arith.constant 0 : index
    %15 = vector.load %arg11[%c1_16, %c24, %c0_17] : memref<18x32x8xbf16, #tpu.memory_space<vmem>>, vector<16x1x8xbf16>
    tpu.vector_store %arg11[%c1_16, %c24, %c0_17], %11 {strides = array<i32>} : memref<18x32x8xbf16, #tpu.memory_space<vmem>>, vector<16x1x8xbf16>,
    %16 = vector.shape_cast %9 : vector<256x8xf32> to vector<16x16x8xf32>
    %17 = arith.truncf %16 : vector<16x16x8xf32> to vector<16x16x8xbf16>
    %c1_18 = arith.constant 1 : index
    %c8 = arith.constant 8 : index
    %c0_19 = arith.constant 0 : index
    %18 = vector.load %arg11[%c1_18, %c8, %c0_19] : memref<18x32x8xbf16, #tpu.memory_space<vmem>>, vector<16x16x8xbf16>
    tpu.vector_store %arg11[%c1_18, %c8, %c0_19], %17 {strides = array<i32>} : memref<18x32x8xbf16, #tpu.memory_space<vmem>>, vector<16x16x8xbf16>,
    %c0_20 = arith.constant 0 : index
    %c7_21 = arith.constant 7 : index
    %c0_22 = arith.constant 0 : index
    %19 = vector.load %arg11[%c0_20, %c7_21, %c0_22] : memref<18x32x8xbf16, #tpu.memory_space<vmem>>, vector<16x16x8xbf16>
    %20 = vector.shape_cast %19 : vector<16x16x8xbf16> to vector<256x8xbf16>
    %c0_23 = arith.constant 0 : index
    %c0_24 = arith.constant 0 : index
    %21 = vector.load %arg12[%c0_23, %c0_24] : memref<256x72xbf16, #tpu.memory_space<vmem>>, vector<256x8xbf16>
    tpu.vector_store %arg12[%c0_23, %c0_24], %20 {strides = array<i32>} : memref<256x72xbf16, #tpu.memory_space<vmem>>, vector<256x8xbf16>,
    %c0_25 = arith.constant 0 : index
    %c8_26 = arith.constant 8 : index
    %c0_27 = arith.constant 0 : index
    %22 = vector.load %arg11[%c0_25, %c8_26, %c0_27] : memref<18x32x8xbf16, #tpu.memory_space<vmem>>, vector<16x16x8xbf16>
    %23 = vector.shape_cast %22 : vector<16x16x8xbf16> to vector<256x8xbf16>
    %c0_28 = arith.constant 0 : index
    %c8_29 = arith.constant 8 : index
    %24 = vector.load %arg12[%c0_28, %c8_29] : memref<256x72xbf16, #tpu.memory_space<vmem>>, vector<256x8xbf16>
    tpu.vector_store %arg12[%c0_28, %c8_29], %23 {strides = array<i32>} : memref<256x72xbf16, #tpu.memory_space<vmem>>, vector<256x8xbf16>,
    %c0_30 = arith.constant 0 : index
    %c9 = arith.constant 9 : index
    %c0_31 = arith.constant 0 : index
    %25 = vector.load %arg11[%c0_30, %c9, %c0_31] : memref<18x32x8xbf16, #tpu.memory_space<vmem>>, vector<16x16x8xbf16>
    %26 = vector.shape_cast %25 : vector<16x16x8xbf16> to vector<256x8xbf16>
    %c0_32 = arith.constant 0 : index
    %c16 = arith.constant 16 : index
    %27 = vector.load %arg12[%c0_32, %c16] : memref<256x72xbf16, #tpu.memory_space<vmem>>, vector<256x8xbf16>
    tpu.vector_store %arg12[%c0_32, %c16], %26 {strides = array<i32>} : memref<256x72xbf16, #tpu.memory_space<vmem>>, vector<256x8xbf16>,
    %c1_33 = arith.constant 1 : index
    %c7_34 = arith.constant 7 : index
    %c0_35 = arith.constant 0 : index
    %28 = vector.load %arg11[%c1_33, %c7_34, %c0_35] : memref<18x32x8xbf16, #tpu.memory_space<vmem>>, vector<16x16x8xbf16>
    %29 = vector.shape_cast %28 : vector<16x16x8xbf16> to vector<256x8xbf16>
    %c0_36 = arith.constant 0 : index
    %c24_37 = arith.constant 24 : index
    %30 = vector.load %arg12[%c0_36, %c24_37] : memref<256x72xbf16, #tpu.memory_space<vmem>>, vector<256x8xbf16>
    tpu.vector_store %arg12[%c0_36, %c24_37], %29 {strides = array<i32>} : memref<256x72xbf16, #tpu.memory_space<vmem>>, vector<256x8xbf16>,
    %c1_38 = arith.constant 1 : index
    %c8_39 = arith.constant 8 : index
    %c0_40 = arith.constant 0 : index
    %31 = vector.load %arg11[%c1_38, %c8_39, %c0_40] : memref<18x32x8xbf16, #tpu.memory_space<vmem>>, vector<16x16x8xbf16>
    %32 = vector.shape_cast %31 : vector<16x16x8xbf16> to vector<256x8xbf16>
    %c0_41 = arith.constant 0 : index
    %c32 = arith.constant 32 : index
    %33 = vector.load %arg12[%c0_41, %c32] : memref<256x72xbf16, #tpu.memory_space<vmem>>, vector<256x8xbf16>
    tpu.vector_store %arg12[%c0_41, %c32], %32 {strides = array<i32>} : memref<256x72xbf16, #tpu.memory_space<vmem>>, vector<256x8xbf16>,
    %c1_42 = arith.constant 1 : index
    %c9_43 = arith.constant 9 : index
    %c0_44 = arith.constant 0 : index
    %34 = vector.load %arg11[%c1_42, %c9_43, %c0_44] : memref<18x32x8xbf16, #tpu.memory_space<vmem>>, vector<16x16x8xbf16>
    %35 = vector.shape_cast %34 : vector<16x16x8xbf16> to vector<256x8xbf16>
    %c0_45 = arith.constant 0 : index
    %c40 = arith.constant 40 : index
    %36 = vector.load %arg12[%c0_45, %c40] : memref<256x72xbf16, #tpu.memory_space<vmem>>, vector<256x8xbf16>
    tpu.vector_store %arg12[%c0_45, %c40], %35 {strides = array<i32>} : memref<256x72xbf16, #tpu.memory_space<vmem>>, vector<256x8xbf16>,
    %c2 = arith.constant 2 : index
    %c7_46 = arith.constant 7 : index
    %c0_47 = arith.constant 0 : index
    %37 = vector.load %arg11[%c2, %c7_46, %c0_47] : memref<18x32x8xbf16, #tpu.memory_space<vmem>>, vector<16x16x8xbf16>
    %38 = vector.shape_cast %37 : vector<16x16x8xbf16> to vector<256x8xbf16>
    %c0_48 = arith.constant 0 : index
    %c48 = arith.constant 48 : index
    %39 = vector.load %arg12[%c0_48, %c48] : memref<256x72xbf16, #tpu.memory_space<vmem>>, vector<256x8xbf16>
    tpu.vector_store %arg12[%c0_48, %c48], %38 {strides = array<i32>} : memref<256x72xbf16, #tpu.memory_space<vmem>>, vector<256x8xbf16>,
    %c2_49 = arith.constant 2 : index
    %c8_50 = arith.constant 8 : index
    %c0_51 = arith.constant 0 : index
    %40 = vector.load %arg11[%c2_49, %c8_50, %c0_51] : memref<18x32x8xbf16, #tpu.memory_space<vmem>>, vector<16x16x8xbf16>
    %41 = vector.shape_cast %40 : vector<16x16x8xbf16> to vector<256x8xbf16>
    %c0_52 = arith.constant 0 : index
    %c56 = arith.constant 56 : index
    %42 = vector.load %arg12[%c0_52, %c56] : memref<256x72xbf16, #tpu.memory_space<vmem>>, vector<256x8xbf16>
    tpu.vector_store %arg12[%c0_52, %c56], %41 {strides = array<i32>} : memref<256x72xbf16, #tpu.memory_space<vmem>>, vector<256x8xbf16>,
    %c2_53 = arith.constant 2 : index
    %c9_54 = arith.constant 9 : index
    %c0_55 = arith.constant 0 : index
    %43 = vector.load %arg11[%c2_53, %c9_54, %c0_55] : memref<18x32x8xbf16, #tpu.memory_space<vmem>>, vector<16x16x8xbf16>
    %44 = vector.shape_cast %43 : vector<16x16x8xbf16> to vector<256x8xbf16>
    %c0_56 = arith.constant 0 : index
    %c64 = arith.constant 64 : index
    %45 = vector.load %arg12[%c0_56, %c64] : memref<256x72xbf16, #tpu.memory_space<vmem>>, vector<256x8xbf16>
    tpu.vector_store %arg12[%c0_56, %c64], %44 {strides = array<i32>} : memref<256x72xbf16, #tpu.memory_space<vmem>>, vector<256x8xbf16>,
    %c0_57 = arith.constant 0 : index
    %c0_58 = arith.constant 0 : index
    %46 = vector.load %arg12[%c0_57, %c0_58] : memref<256x72xbf16, #tpu.memory_space<vmem>>, vector<256x72xbf16>
    %c0_59 = arith.constant 0 : index
    %c0_60 = arith.constant 0 : index
    %47 = vector.load %arg4[%c0_59, %c0_60] : memref<72x8xbf16, #tpu.memory_space<vmem>>, vector<72x8xbf16>
    %cst_61 = arith.constant dense<0.000000e+00> : vector<256x8xf32>
    %48 = tpu.matmul %46, %47, %cst_61 {dimension_numbers = #tpu.dot_dimension_numbers<[1], [0], [0], [1], [0, 0, 1, 1], [], []>} : vector<256x72xbf16>, vector<72x8xbf16>, vector<256x8xf32> -> vector<256x8xf32>
    %c0_62 = arith.constant 0 : index
    %c0_63 = arith.constant 0 : index
    %49 = vector.load %arg5[%c0_62, %c0_63] : memref<1x8xf32, #tpu.memory_space<vmem>>, vector<1x8xf32>
    %50 = vector.broadcast %49 : vector<1x8xf32> to vector<256x8xf32>
    %51 = arith.addf %48, %50 : vector<256x8xf32>
    %cst_64 = arith.constant 0.000000e+00 : f32
    %52 = vector.broadcast %cst_64 : f32 to vector<256x8xf32>
    %53 = arith.maximumf %51, %52 : vector<256x8xf32>
    %54 = arith.truncf %53 : vector<256x8xf32> to vector<256x8xbf16>
    %c0_65 = arith.constant 0 : index
    %c0_66 = arith.constant 0 : index
    %55 = vector.load %arg6[%c0_65, %c0_66] : memref<8x32xbf16, #tpu.memory_space<vmem>>, vector<8x32xbf16>
    %cst_67 = arith.constant dense<0.000000e+00> : vector<256x32xf32>
    %56 = tpu.matmul %54, %55, %cst_67 {dimension_numbers = #tpu.dot_dimension_numbers<[1], [0], [0], [1], [0, 0, 1, 1], [], []>} : vector<256x8xbf16>, vector<8x32xbf16>, vector<256x32xf32> -> vector<256x32xf32>
    %c0_68 = arith.constant 0 : index
    %c0_69 = arith.constant 0 : index
    %57 = vector.load %arg7[%c0_68, %c0_69] : memref<1x32xf32, #tpu.memory_space<vmem>>, vector<1x32xf32>
    %58 = vector.broadcast %57 : vector<1x32xf32> to vector<256x32xf32>
    %59 = arith.addf %56, %58 : vector<256x32xf32>
    %60 = vector.shape_cast %1 : vector<16x16x16xbf16> to vector<256x16xbf16>
    %c0_70 = arith.constant 0 : index
    %c0_71 = arith.constant 0 : index
    %61 = vector.load %arg8[%c0_70, %c0_71] : memref<16x32xbf16, #tpu.memory_space<vmem>>, vector<16x32xbf16>
    %cst_72 = arith.constant dense<0.000000e+00> : vector<256x32xf32>
    %62 = tpu.matmul %60, %61, %cst_72 {dimension_numbers = #tpu.dot_dimension_numbers<[1], [0], [0], [1], [0, 0, 1, 1], [], []>} : vector<256x16xbf16>, vector<16x32xbf16>, vector<256x32xf32> -> vector<256x32xf32>
    %c0_73 = arith.constant 0 : index
    %c0_74 = arith.constant 0 : index
    %63 = vector.load %arg9[%c0_73, %c0_74] : memref<1x32xf32, #tpu.memory_space<vmem>>, vector<1x32xf32>
    %64 = vector.broadcast %63 : vector<1x32xf32> to vector<256x32xf32>
    %65 = arith.addf %62, %64 : vector<256x32xf32>
    %66 = arith.addf %59, %65 : vector<256x32xf32>
    %cst_75 = arith.constant 0.000000e+00 : f32
    %67 = vector.broadcast %cst_75 : f32 to vector<256x32xf32>
    %68 = arith.maximumf %66, %67 : vector<256x32xf32>
    %69 = vector.shape_cast %68 : vector<256x32xf32> to vector<16x16x32xf32>
    %70 = arith.truncf %69 : vector<16x16x32xf32> to vector<16x16x32xbf16>
    %c0_76 = arith.constant 0 : index
    %c0_77 = arith.constant 0 : index
    %c0_78 = arith.constant 0 : index
    %c0_79 = arith.constant 0 : index
    %71 = vector.load %arg10[%c0_76, %c0_77, %c0_78, %c0_79] : memref<1x16x16x32xbf16, #tpu.memory_space<vmem>>, vector<1x16x16x32xbf16>
    %72 = vector.shape_cast %71 : vector<1x16x16x32xbf16> to vector<16x16x32xbf16>
    %73 = vector.shape_cast %70 : vector<16x16x32xbf16> to vector<1x16x16x32xbf16>
    tpu.vector_store %arg10[%c0_76, %c0_77, %c0_78, %c0_79], %73 {strides = array<i32>} : memref<1x16x16x32xbf16, #tpu.memory_space<vmem>>, vector<1x16x16x32xbf16>,
    return
  }
  func.func @transform_0(%arg0: i32) -> (i32, i32, i32, i32) {
    %c0_i32 = arith.constant 0 : i32
    %c0_i32_0 = arith.constant 0 : i32
    %c0_i32_1 = arith.constant 0 : i32
    %c0_i32_2 = arith.constant 0 : i32
    return %arg0, %c0_i32, %c0_i32_0, %c0_i32_1 : i32, i32, i32, i32
  }
  func.func @transform_1(%arg0: i32) -> (i32, i32) {
    %c0_i32 = arith.constant 0 : i32
    %c0_i32_0 = arith.constant 0 : i32
    %c0_i32_1 = arith.constant 0 : i32
    return %c0_i32, %c0_i32_0 : i32, i32
  }
  func.func @transform_2(%arg0: i32) -> (i32, i32) {
    %c0_i32 = arith.constant 0 : i32
    %c0_i32_0 = arith.constant 0 : i32
    %c0_i32_1 = arith.constant 0 : i32
    return %c0_i32, %c0_i32_0 : i32, i32
  }
  func.func @transform_3(%arg0: i32) -> (i32, i32) {
    %c0_i32 = arith.constant 0 : i32
    %c0_i32_0 = arith.constant 0 : i32
    %c0_i32_1 = arith.constant 0 : i32
    return %c0_i32, %c0_i32_0 : i32, i32
  }
  func.func @transform_4(%arg0: i32) -> (i32, i32) {
    %c0_i32 = arith.constant 0 : i32
    %c0_i32_0 = arith.constant 0 : i32
    %c0_i32_1 = arith.constant 0 : i32
    return %c0_i32, %c0_i32_0 : i32, i32
  }
  func.func @transform_5(%arg0: i32) -> (i32, i32) {
    %c0_i32 = arith.constant 0 : i32
    %c0_i32_0 = arith.constant 0 : i32
    %c0_i32_1 = arith.constant 0 : i32
    return %c0_i32, %c0_i32_0 : i32, i32
  }
  func.func @transform_6(%arg0: i32) -> (i32, i32) {
    %c0_i32 = arith.constant 0 : i32
    %c0_i32_0 = arith.constant 0 : i32
    %c0_i32_1 = arith.constant 0 : i32
    return %c0_i32, %c0_i32_0 : i32, i32
  }
  func.func @transform_7(%arg0: i32) -> (i32, i32) {
    %c0_i32 = arith.constant 0 : i32
    %c0_i32_0 = arith.constant 0 : i32
    %c0_i32_1 = arith.constant 0 : i32
    return %c0_i32, %c0_i32_0 : i32, i32
  }
  func.func @transform_8(%arg0: i32) -> (i32, i32) {
    %c0_i32 = arith.constant 0 : i32
    %c0_i32_0 = arith.constant 0 : i32
    %c0_i32_1 = arith.constant 0 : i32
    return %c0_i32, %c0_i32_0 : i32, i32
  }
  func.func @transform_9(%arg0: i32) -> (i32, i32, i32, i32) {
    %c0_i32 = arith.constant 0 : i32
    %c0_i32_0 = arith.constant 0 : i32
    %c0_i32_1 = arith.constant 0 : i32
    %c0_i32_2 = arith.constant 0 : i32
    return %arg0, %c0_i32, %c0_i32_0, %c0_i32_1 : i32, i32, i32, i32
  }
}

module attributes {stable_mosaic.version = 11 : i64} {
  func.func @kernel(%arg0: i32, %arg1: memref<1x16x16x16xbf16, #tpu.memory_space<vmem>>, %arg2: memref<16x8xbf16, #tpu.memory_space<vmem>>, %arg3: memref<1x8xf32, #tpu.memory_space<vmem>>, %arg4: memref<72x8xbf16, #tpu.memory_space<vmem>>, %arg5: memref<1x8xf32, #tpu.memory_space<vmem>>, %arg6: memref<8x32xbf16, #tpu.memory_space<vmem>>, %arg7: memref<1x32xf32, #tpu.memory_space<vmem>>, %arg8: memref<16x32xbf16, #tpu.memory_space<vmem>>, %arg9: memref<1x32xf32, #tpu.memory_space<vmem>>, %arg10: memref<1x16x16x32xbf16, #tpu.memory_space<vmem>>, %arg11: memref<18x32x8xbf16, #tpu.memory_space<vmem>>, %arg12: memref<256x72xbf16, #tpu.memory_space<vmem>>) attributes {dimension_semantics = [#tpu.dimension_semantics<parallel>], iteration_bounds = array<i64: 2>, scalar_prefetch = 0 : i64, scratch_operands = 2 : i64, tpu.core_type = #tpu.core_type<tc>, window_params = [{transform_indices = @transform_0, window_bounds = array<i64: 1, 16, 16, 16>}, {pipeline_mode = #tpu.pipeline_mode<synchronous>, transform_indices = @transform_1, window_bounds = array<i64: 16, 8>}, {pipeline_mode = #tpu.pipeline_mode<synchronous>, transform_indices = @transform_2, window_bounds = array<i64: 1, 8>}, {pipeline_mode = #tpu.pipeline_mode<synchronous>, transform_indices = @transform_3, window_bounds = array<i64: 72, 8>}, {pipeline_mode = #tpu.pipeline_mode<synchronous>, transform_indices = @transform_4, window_bounds = array<i64: 1, 8>}, {pipeline_mode = #tpu.pipeline_mode<synchronous>, transform_indices = @transform_5, window_bounds = array<i64: 8, 32>}, {pipeline_mode = #tpu.pipeline_mode<synchronous>, transform_indices = @transform_6, window_bounds = array<i64: 1, 32>}, {pipeline_mode = #tpu.pipeline_mode<synchronous>, transform_indices = @transform_7, window_bounds = array<i64: 16, 32>}, {pipeline_mode = #tpu.pipeline_mode<synchronous>, transform_indices = @transform_8, window_bounds = array<i64: 1, 32>}, {transform_indices = @transform_9, window_bounds = array<i64: 1, 16, 16, 32>}]} {
    %c0 = arith.constant 0 : index
    %c0_0 = arith.constant 0 : index
    %c0_1 = arith.constant 0 : index
    %c0_2 = arith.constant 0 : index
    %0 = vector.load %arg1[%c0, %c0_0, %c0_1, %c0_2] : memref<1x16x16x16xbf16, #tpu.memory_space<vmem>>, vector<1x16x16x16xbf16>
    %1 = vector.shape_cast %0 : vector<1x16x16x16xbf16> to vector<16x16x16xbf16>
    %2 = vector.shape_cast %1 : vector<16x16x16xbf16> to vector<256x16xbf16>
    %c0_3 = arith.constant 0 : index
    %c0_4 = arith.constant 0 : index
    %3 = vector.load %arg2[%c0_3, %c0_4] : memref<16x8xbf16, #tpu.memory_space<vmem>>, vector<16x8xbf16>
    %cst = arith.constant dense<0.000000e+00> : vector<256x8xf32>
    %4 = tpu.matmul %2, %3, %cst {dimension_numbers = #tpu.dot_dimension_numbers<[1], [0], [0], [1], [0, 0, 1, 1], [], []>} : vector<256x16xbf16>, vector<16x8xbf16>, vector<256x8xf32> -> vector<256x8xf32>
    %c0_5 = arith.constant 0 : index
    %c0_6 = arith.constant 0 : index
    %5 = vector.load %arg3[%c0_5, %c0_6] : memref<1x8xf32, #tpu.memory_space<vmem>>, vector<1x8xf32>
    %6 = vector.broadcast %5 : vector<1x8xf32> to vector<256x8xf32>
    %7 = arith.addf %4, %6 : vector<256x8xf32>
    %cst_7 = arith.constant 0.000000e+00 : f32
    %8 = vector.broadcast %cst_7 : f32 to vector<256x8xf32>
    %9 = arith.maximumf %7, %8 : vector<256x8xf32>
    %cst_8 = arith.constant 0.000000e+00 : bf16
    %10 = vector.broadcast %cst_8 : bf16 to vector<1x32x8xbf16>
    %cst_9 = arith.constant 0.000000e+00 : bf16
    %11 = vector.broadcast %cst_9 : bf16 to vector<16x1x8xbf16>
    %c0_10 = arith.constant 0 : index
    %c0_11 = arith.constant 0 : index
    %c0_12 = arith.constant 0 : index
    %12 = vector.load %arg11[%c0_10, %c0_11, %c0_12] : memref<18x32x8xbf16, #tpu.memory_space<vmem>>, vector<1x32x8xbf16>
    tpu.vector_store %arg11[%c0_10, %c0_11, %c0_12], %10 {strides = array<i32>} : memref<18x32x8xbf16, #tpu.memory_space<vmem>>, vector<1x32x8xbf16>,
    %c17 = arith.constant 17 : index
    %c0_13 = arith.constant 0 : index
    %c0_14 = arith.constant 0 : index
    %13 = vector.load %arg11[%c17, %c0_13, %c0_14] : memref<18x32x8xbf16, #tpu.memory_space<vmem>>, vector<1x32x8xbf16>
    tpu.vector_store %arg11[%c17, %c0_13, %c0_14], %10 {strides = array<i32>} : memref<18x32x8xbf16, #tpu.memory_space<vmem>>, vector<1x32x8xbf16>,
    %c1 = arith.constant 1 : index
    %c7 = arith.constant 7 : index
    %c0_15 = arith.constant 0 : index
    %14 = vector.load %arg11[%c1, %c7, %c0_15] : memref<18x32x8xbf16, #tpu.memory_space<vmem>>, vector<16x1x8xbf16>
    tpu.vector_store %arg11[%c1, %c7, %c0_15], %11 {strides = array<i32>} : memref<18x32x8xbf16, #tpu.memory_space<vmem>>, vector<16x1x8xbf16>,
    %c1_16 = arith.constant 1 : index
    %c24 = arith.constant 24 : index
    %c0_17 = arith.constant 0 : index
    %15 = vector.load %arg11[%c1_16, %c24, %c0_17] : memref<18x32x8xbf16, #tpu.memory_space<vmem>>, vector<16x1x8xbf16>
    tpu.vector_store %arg11[%c1_16, %c24, %c0_17], %11 {strides = array<i32>} : memref<18x32x8xbf16, #tpu.memory_space<vmem>>, vector<16x1x8xbf16>,
    %16 = vector.shape_cast %9 : vector<256x8xf32> to vector<16x16x8xf32>
    %17 = arith.truncf %16 : vector<16x16x8xf32> to vector<16x16x8xbf16>
    %c1_18 = arith.constant 1 : index
    %c8 = arith.constant 8 : index
    %c0_19 = arith.constant 0 : index
    %18 = vector.load %arg11[%c1_18, %c8, %c0_19] : memref<18x32x8xbf16, #tpu.memory_space<vmem>>, vector<16x16x8xbf16>
    tpu.vector_store %arg11[%c1_18, %c8, %c0_19], %17 {strides = array<i32>} : memref<18x32x8xbf16, #tpu.memory_space<vmem>>, vector<16x16x8xbf16>,
    %c0_20 = arith.constant 0 : index
    %c7_21 = arith.constant 7 : index
    %c0_22 = arith.constant 0 : index
    %19 = vector.load %arg11[%c0_20, %c7_21, %c0_22] : memref<18x32x8xbf16, #tpu.memory_space<vmem>>, vector<16x16x8xbf16>
    %20 = vector.shape_cast %19 : vector<16x16x8xbf16> to vector<256x8xbf16>
    %c0_23 = arith.constant 0 : index
    %c0_24 = arith.constant 0 : index
    %21 = vector.load %arg12[%c0_23, %c0_24] : memref<256x72xbf16, #tpu.memory_space<vmem>>, vector<256x8xbf16>
    tpu.vector_store %arg12[%c0_23, %c0_24], %20 {strides = array<i32>} : memref<256x72xbf16, #tpu.memory_space<vmem>>, vector<256x8xbf16>,
    %c0_25 = arith.constant 0 : index
    %c8_26 = arith.constant 8 : index
    %c0_27 = arith.constant 0 : index
    %22 = vector.load %arg11[%c0_25, %c8_26, %c0_27] : memref<18x32x8xbf16, #tpu.memory_space<vmem>>, vector<16x16x8xbf16>
    %23 = vector.shape_cast %22 : vector<16x16x8xbf16> to vector<256x8xbf16>
    %c0_28 = arith.constant 0 : index
    %c8_29 = arith.constant 8 : index
    %24 = vector.load %arg12[%c0_28, %c8_29] : memref<256x72xbf16, #tpu.memory_space<vmem>>, vector<256x8xbf16>
    tpu.vector_store %arg12[%c0_28, %c8_29], %23 {strides = array<i32>} : memref<256x72xbf16, #tpu.memory_space<vmem>>, vector<256x8xbf16>,
    %c0_30 = arith.constant 0 : index
    %c9 = arith.constant 9 : index
    %c0_31 = arith.constant 0 : index
    %25 = vector.load %arg11[%c0_30, %c9, %c0_31] : memref<18x32x8xbf16, #tpu.memory_space<vmem>>, vector<16x16x8xbf16>
    %26 = vector.shape_cast %25 : vector<16x16x8xbf16> to vector<256x8xbf16>
    %c0_32 = arith.constant 0 : index
    %c16 = arith.constant 16 : index
    %27 = vector.load %arg12[%c0_32, %c16] : memref<256x72xbf16, #tpu.memory_space<vmem>>, vector<256x8xbf16>
    tpu.vector_store %arg12[%c0_32, %c16], %26 {strides = array<i32>} : memref<256x72xbf16, #tpu.memory_space<vmem>>, vector<256x8xbf16>,
    %c1_33 = arith.constant 1 : index
    %c7_34 = arith.constant 7 : index
    %c0_35 = arith.constant 0 : index
    %28 = vector.load %arg11[%c1_33, %c7_34, %c0_35] : memref<18x32x8xbf16, #tpu.memory_space<vmem>>, vector<16x16x8xbf16>
    %29 = vector.shape_cast %28 : vector<16x16x8xbf16> to vector<256x8xbf16>
    %c0_36 = arith.constant 0 : index
    %c24_37 = arith.constant 24 : index
    %30 = vector.load %arg12[%c0_36, %c24_37] : memref<256x72xbf16, #tpu.memory_space<vmem>>, vector<256x8xbf16>
    tpu.vector_store %arg12[%c0_36, %c24_37], %29 {strides = array<i32>} : memref<256x72xbf16, #tpu.memory_space<vmem>>, vector<256x8xbf16>,
    %c1_38 = arith.constant 1 : index
    %c8_39 = arith.constant 8 : index
    %c0_40 = arith.constant 0 : index
    %31 = vector.load %arg11[%c1_38, %c8_39, %c0_40] : memref<18x32x8xbf16, #tpu.memory_space<vmem>>, vector<16x16x8xbf16>
    %32 = vector.shape_cast %31 : vector<16x16x8xbf16> to vector<256x8xbf16>
    %c0_41 = arith.constant 0 : index
    %c32 = arith.constant 32 : index
    %33 = vector.load %arg12[%c0_41, %c32] : memref<256x72xbf16, #tpu.memory_space<vmem>>, vector<256x8xbf16>
    tpu.vector_store %arg12[%c0_41, %c32], %32 {strides = array<i32>} : memref<256x72xbf16, #tpu.memory_space<vmem>>, vector<256x8xbf16>,
    %c1_42 = arith.constant 1 : index
    %c9_43 = arith.constant 9 : index
    %c0_44 = arith.constant 0 : index
    %34 = vector.load %arg11[%c1_42, %c9_43, %c0_44] : memref<18x32x8xbf16, #tpu.memory_space<vmem>>, vector<16x16x8xbf16>
    %35 = vector.shape_cast %34 : vector<16x16x8xbf16> to vector<256x8xbf16>
    %c0_45 = arith.constant 0 : index
    %c40 = arith.constant 40 : index
    %36 = vector.load %arg12[%c0_45, %c40] : memref<256x72xbf16, #tpu.memory_space<vmem>>, vector<256x8xbf16>
    tpu.vector_store %arg12[%c0_45, %c40], %35 {strides = array<i32>} : memref<256x72xbf16, #tpu.memory_space<vmem>>, vector<256x8xbf16>,
    %c2 = arith.constant 2 : index
    %c7_46 = arith.constant 7 : index
    %c0_47 = arith.constant 0 : index
    %37 = vector.load %arg11[%c2, %c7_46, %c0_47] : memref<18x32x8xbf16, #tpu.memory_space<vmem>>, vector<16x16x8xbf16>
    %38 = vector.shape_cast %37 : vector<16x16x8xbf16> to vector<256x8xbf16>
    %c0_48 = arith.constant 0 : index
    %c48 = arith.constant 48 : index
    %39 = vector.load %arg12[%c0_48, %c48] : memref<256x72xbf16, #tpu.memory_space<vmem>>, vector<256x8xbf16>
    tpu.vector_store %arg12[%c0_48, %c48], %38 {strides = array<i32>} : memref<256x72xbf16, #tpu.memory_space<vmem>>, vector<256x8xbf16>,
    %c2_49 = arith.constant 2 : index
    %c8_50 = arith.constant 8 : index
    %c0_51 = arith.constant 0 : index
    %40 = vector.load %arg11[%c2_49, %c8_50, %c0_51] : memref<18x32x8xbf16, #tpu.memory_space<vmem>>, vector<16x16x8xbf16>
    %41 = vector.shape_cast %40 : vector<16x16x8xbf16> to vector<256x8xbf16>
    %c0_52 = arith.constant 0 : index
    %c56 = arith.constant 56 : index
    %42 = vector.load %arg12[%c0_52, %c56] : memref<256x72xbf16, #tpu.memory_space<vmem>>, vector<256x8xbf16>
    tpu.vector_store %arg12[%c0_52, %c56], %41 {strides = array<i32>} : memref<256x72xbf16, #tpu.memory_space<vmem>>, vector<256x8xbf16>,
    %c2_53 = arith.constant 2 : index
    %c9_54 = arith.constant 9 : index
    %c0_55 = arith.constant 0 : index
    %43 = vector.load %arg11[%c2_53, %c9_54, %c0_55] : memref<18x32x8xbf16, #tpu.memory_space<vmem>>, vector<16x16x8xbf16>
    %44 = vector.shape_cast %43 : vector<16x16x8xbf16> to vector<256x8xbf16>
    %c0_56 = arith.constant 0 : index
    %c64 = arith.constant 64 : index
    %45 = vector.load %arg12[%c0_56, %c64] : memref<256x72xbf16, #tpu.memory_space<vmem>>, vector<256x8xbf16>
    tpu.vector_store %arg12[%c0_56, %c64], %44 {strides = array<i32>} : memref<256x72xbf16, #tpu.memory_space<vmem>>, vector<256x8xbf16>,
    %c0_57 = arith.constant 0 : index
    %c0_58 = arith.constant 0 : index
    %46 = vector.load %arg12[%c0_57, %c0_58] : memref<256x72xbf16, #tpu.memory_space<vmem>>, vector<256x72xbf16>
    %c0_59 = arith.constant 0 : index
    %c0_60 = arith.constant 0 : index
    %47 = vector.load %arg4[%c0_59, %c0_60] : memref<72x8xbf16, #tpu.memory_space<vmem>>, vector<72x8xbf16>
    %cst_61 = arith.constant dense<0.000000e+00> : vector<256x8xf32>
    %48 = tpu.matmul %46, %47, %cst_61 {dimension_numbers = #tpu.dot_dimension_numbers<[1], [0], [0], [1], [0, 0, 1, 1], [], []>} : vector<256x72xbf16>, vector<72x8xbf16>, vector<256x8xf32> -> vector<256x8xf32>
    %c0_62 = arith.constant 0 : index
    %c0_63 = arith.constant 0 : index
    %49 = vector.load %arg5[%c0_62, %c0_63] : memref<1x8xf32, #tpu.memory_space<vmem>>, vector<1x8xf32>
    %50 = vector.broadcast %49 : vector<1x8xf32> to vector<256x8xf32>
    %51 = arith.addf %48, %50 : vector<256x8xf32>
    %cst_64 = arith.constant 0.000000e+00 : f32
    %52 = vector.broadcast %cst_64 : f32 to vector<256x8xf32>
    %53 = arith.maximumf %51, %52 : vector<256x8xf32>
    %54 = arith.truncf %53 : vector<256x8xf32> to vector<256x8xbf16>
    %c0_65 = arith.constant 0 : index
    %c0_66 = arith.constant 0 : index
    %55 = vector.load %arg6[%c0_65, %c0_66] : memref<8x32xbf16, #tpu.memory_space<vmem>>, vector<8x32xbf16>
    %cst_67 = arith.constant dense<0.000000e+00> : vector<256x32xf32>
    %56 = tpu.matmul %54, %55, %cst_67 {dimension_numbers = #tpu.dot_dimension_numbers<[1], [0], [0], [1], [0, 0, 1, 1], [], []>} : vector<256x8xbf16>, vector<8x32xbf16>, vector<256x32xf32> -> vector<256x32xf32>
    %c0_68 = arith.constant 0 : index
    %c0_69 = arith.constant 0 : index
    %57 = vector.load %arg7[%c0_68, %c0_69] : memref<1x32xf32, #tpu.memory_space<vmem>>, vector<1x32xf32>
    %58 = vector.broadcast %57 : vector<1x32xf32> to vector<256x32xf32>
    %59 = arith.addf %56, %58 : vector<256x32xf32>
    %60 = vector.shape_cast %1 : vector<16x16x16xbf16> to vector<256x16xbf16>
    %c0_70 = arith.constant 0 : index
    %c0_71 = arith.constant 0 : index
    %61 = vector.load %arg8[%c0_70, %c0_71] : memref<16x32xbf16, #tpu.memory_space<vmem>>, vector<16x32xbf16>
    %cst_72 = arith.constant dense<0.000000e+00> : vector<256x32xf32>
    %62 = tpu.matmul %60, %61, %cst_72 {dimension_numbers = #tpu.dot_dimension_numbers<[1], [0], [0], [1], [0, 0, 1, 1], [], []>} : vector<256x16xbf16>, vector<16x32xbf16>, vector<256x32xf32> -> vector<256x32xf32>
    %c0_73 = arith.constant 0 : index
    %c0_74 = arith.constant 0 : index
    %63 = vector.load %arg9[%c0_73, %c0_74] : memref<1x32xf32, #tpu.memory_space<vmem>>, vector<1x32xf32>
    %64 = vector.broadcast %63 : vector<1x32xf32> to vector<256x32xf32>
    %65 = arith.addf %62, %64 : vector<256x32xf32>
    %66 = arith.addf %59, %65 : vector<256x32xf32>
    %cst_75 = arith.constant 0.000000e+00 : f32
    %67 = vector.broadcast %cst_75 : f32 to vector<256x32xf32>
    %68 = arith.maximumf %66, %67 : vector<256x32xf32>
    %69 = vector.shape_cast %68 : vector<256x32xf32> to vector<16x16x32xf32>
    %70 = arith.truncf %69 : vector<16x16x32xf32> to vector<16x16x32xbf16>
    %c0_76 = arith.constant 0 : index
    %c0_77 = arith.constant 0 : index
    %c0_78 = arith.constant 0 : index
    %c0_79 = arith.constant 0 : index
    %71 = vector.load %arg10[%c0_76, %c0_77, %c0_78, %c0_79] : memref<1x16x16x32xbf16, #tpu.memory_space<vmem>>, vector<1x16x16x32xbf16>
    %72 = vector.shape_cast %71 : vector<1x16x16x32xbf16> to vector<16x16x32xbf16>
    %73 = vector.shape_cast %70 : vector<16x16x32xbf16> to vector<1x16x16x32xbf16>
    tpu.vector_store %arg10[%c0_76, %c0_77, %c0_78, %c0_79], %73 {strides = array<i32>} : memref<1x16x16x32xbf16, #tpu.memory_space<vmem>>, vector<1x16x16x32xbf16>,
    return
  }
  func.func @transform_0(%arg0: i32) -> (i32, i32, i32, i32) {
    %c0_i32 = arith.constant 0 : i32
    %c0_i32_0 = arith.constant 0 : i32
    %c0_i32_1 = arith.constant 0 : i32
    %c0_i32_2 = arith.constant 0 : i32
    return %arg0, %c0_i32, %c0_i32_0, %c0_i32_1 : i32, i32, i32, i32
  }
  func.func @transform_1(%arg0: i32) -> (i32, i32) {
    %c0_i32 = arith.constant 0 : i32
    %c0_i32_0 = arith.constant 0 : i32
    %c0_i32_1 = arith.constant 0 : i32
    return %c0_i32, %c0_i32_0 : i32, i32
  }
  func.func @transform_2(%arg0: i32) -> (i32, i32) {
    %c0_i32 = arith.constant 0 : i32
    %c0_i32_0 = arith.constant 0 : i32
    %c0_i32_1 = arith.constant 0 : i32
    return %c0_i32, %c0_i32_0 : i32, i32
  }
  func.func @transform_3(%arg0: i32) -> (i32, i32) {
    %c0_i32 = arith.constant 0 : i32
    %c0_i32_0 = arith.constant 0 : i32
    %c0_i32_1 = arith.constant 0 : i32
    return %c0_i32, %c0_i32_0 : i32, i32
  }
  func.func @transform_4(%arg0: i32) -> (i32, i32) {
    %c0_i32 = arith.constant 0 : i32
    %c0_i32_0 = arith.constant 0 : i32
    %c0_i32_1 = arith.constant 0 : i32
    return %c0_i32, %c0_i32_0 : i32, i32
  }
  func.func @transform_5(%arg0: i32) -> (i32, i32) {
    %c0_i32 = arith.constant 0 : i32
    %c0_i32_0 = arith.constant 0 : i32
    %c0_i32_1 = arith.constant 0 : i32
    return %c0_i32, %c0_i32_0 : i32, i32
  }
  func.func @transform_6(%arg0: i32) -> (i32, i32) {
    %c0_i32 = arith.constant 0 : i32
    %c0_i32_0 = arith.constant 0 : i32
    %c0_i32_1 = arith.constant 0 : i32
    return %c0_i32, %c0_i32_0 : i32, i32
  }
  func.func @transform_7(%arg0: i32) -> (i32, i32) {
    %c0_i32 = arith.constant 0 : i32
    %c0_i32_0 = arith.constant 0 : i32
    %c0_i32_1 = arith.constant 0 : i32
    return %c0_i32, %c0_i32_0 : i32, i32
  }
  func.func @transform_8(%arg0: i32) -> (i32, i32) {
    %c0_i32 = arith.constant 0 : i32
    %c0_i32_0 = arith.constant 0 : i32
    %c0_i32_1 = arith.constant 0 : i32
    return %c0_i32, %c0_i32_0 : i32, i32
  }
  func.func @transform_9(%arg0: i32) -> (i32, i32, i32, i32) {
    %c0_i32 = arith.constant 0 : i32
    %c0_i32_0 = arith.constant 0 : i32
    %c0_i32_1 = arith.constant 0 : i32
    %c0_i32_2 = arith.constant 0 : i32
    return %arg0, %c0_i32, %c0_i32_0, %c0_i32_1 : i32, i32, i32, i32
  }
}

</mosaic_0001>

<llo_original>
// kernel: tpu_custom_call.1
$region0: #{tpu_custom_call.1}
  #allocation0 [shape = 'u32[]', space=smem, size = 0x4, offset = 0x4, fixed_abs, tag = 'smem constant byte address 0x4 - core index']
  #allocation1 [shape = 'u32[144,128]{1,0:T(1,128)}', space=vmem, size = 0x12000, scoped, tag = 'internal scratch']
  #allocation2 [shape = 'bf16[18,32,8]{2,1,0:T(16,128)(2,1)}', space=vmem, size = 0x24000, scoped, tag = 'scratch operand']
  #allocation3 [shape = 'bf16[256,72]{1,0:T(16,128)(2,1)}', space=vmem, size = 0x10000, scoped, tag = 'scratch operand']
  %s0 = inlined_call_operand.hbm [shape: bf16[2,16,16,16], index: 0, kind: input, shape index: {}]
  %s1 = inlined_call_operand.hbm [shape: bf16[16,8], index: 1, kind: input, shape index: {}]
  %s2 = inlined_call_operand.hbm [shape: f32[1,8], index: 2, kind: input, shape index: {}]
  %s3 = inlined_call_operand.hbm [shape: bf16[72,8], index: 3, kind: input, shape index: {}]
  %s4 = inlined_call_operand.hbm [shape: f32[1,8], index: 4, kind: input, shape index: {}]
  %s5 = inlined_call_operand.hbm [shape: bf16[8,32], index: 5, kind: input, shape index: {}]
  %s6 = inlined_call_operand.hbm [shape: f32[1,32], index: 6, kind: input, shape index: {}]
  %s7 = inlined_call_operand.hbm [shape: bf16[16,32], index: 7, kind: input, shape index: {}]
  %s8 = inlined_call_operand.hbm [shape: f32[1,32], index: 8, kind: input, shape index: {}]
  %s9 = inlined_call_operand.hbm [shape: bf16[2,16,16,32], index: 9, kind: output, shape index: {}]
  %s10 = sld [smem:[#allocation0]]
  $region105: #{tpu_custom_call.1} parent=0
    _
  %s12 = ssub.s32 1, %s10
  %s13 = scalar_select 0, %s12, %s10
  $region1: #{tpu_custom_call.1} parent=0
    #allocation4 [shape = 'u8[131072]{0}', space=vmem, size = 0x20000, scoped, tag = 'input window, operand 0']
    #allocation5 [shape = 's32[2]{0}', space=sflag, size = 0x8, scoped, tag = 'scoped memory for tpu_custom_call.1']
    #allocation6 [shape = 's32[2]{0}', space=sflag, size = 0x8, scoped, tag = 'scoped memory for tpu_custom_call.1']
    #allocation7 [shape = 'u8[4096]{0}', space=vmem, size = 0x1000, scoped, tag = 'input window, operand 1, single buffered']
    #allocation8 [shape = 's32[1]{0}', space=sflag, size = 0x4, scoped, tag = 'scoped memory for tpu_custom_call.1']
    #allocation9 [shape = 'u8[512]{0}', space=vmem, size = 0x400, scoped, tag = 'input window, operand 2, single buffered']
    #allocation10 [shape = 'u8[18432]{0}', space=vmem, size = 0x4800, scoped, tag = 'input window, operand 3, single buffered']
    #allocation11 [shape = 's32[1]{0}', space=sflag, size = 0x4, scoped, tag = 'scoped memory for tpu_custom_call.1']
    #allocation12 [shape = 'u8[512]{0}', space=vmem, size = 0x400, scoped, tag = 'input window, operand 4, single buffered']
    #allocation13 [shape = 'u8[2048]{0}', space=vmem, size = 0x800, scoped, tag = 'input window, operand 5, single buffered']
    #allocation14 [shape = 's32[1]{0}', space=sflag, size = 0x4, scoped, tag = 'scoped memory for tpu_custom_call.1']
    #allocation15 [shape = 'u8[512]{0}', space=vmem, size = 0x400, scoped, tag = 'input window, operand 6, single buffered']
    #allocation16 [shape = 'u8[4096]{0}', space=vmem, size = 0x1000, scoped, tag = 'input window, operand 7, single buffered']
    #allocation17 [shape = 's32[1]{0}', space=sflag, size = 0x4, scoped, tag = 'scoped memory for tpu_custom_call.1']
    #allocation18 [shape = 'u8[512]{0}', space=vmem, size = 0x400, scoped, tag = 'input window, operand 8, single buffered']
    #allocation19 [shape = 'u8[131072]{0}', space=vmem, size = 0x20000, scoped, tag = 'output window, operand 0']
    %14 = vsyncpa [#allocation5], 0
    %s15 = scalar_lea.sflag [#allocation5], 1
    %16 = vsyncpa %s15, 0
    %17 = vsyncpa [#allocation8], 0
    %18 = vsyncpa [#allocation11], 0
    %19 = vsyncpa [#allocation14], 0
    %20 = vsyncpa [#allocation17], 0
    %21 = vsyncpa [#allocation6], 0
    %s22 = scalar_lea.sflag [#allocation6], 1
    %23 = vsyncpa %s22, 0
    loop: start=0, step=1, limit=4
    $region2: #{tpu_custom_call.1} parent=1 // loop_pre_header
      _
    $region3: #{tpu_custom_call.1} parent=1 // loop_header
      %s25 = sphi 0, %s29
      %p26 = scmp.ge.s32.totalorder %s25, 4
      %s35 = sphi 0, %s37
      %s38 = sphi 0, %s35
      %s39 = sphi 0, %s38
      %s55 = sphi 0, %s39
      %s59 = sphi 0, %s59
      %s61 = sphi 0, %s59
      %s62 = sphi 0, %s61
      %s76 = sphi 0, %s62
      %s80 = sphi 0, %s80
      %s82 = sphi 0, %s80
      %s83 = sphi 0, %s82
      %s97 = sphi 0, %s83
      %s101 = sphi 0, %s101
      %s103 = sphi 0, %s101
      %s104 = sphi 0, %s103
      %s118 = sphi 0, %s104
      %s122 = sphi 0, %s122
      %s124 = sphi 0, %s122
      %s125 = sphi 0, %s124
      %s139 = sphi 0, %s125
      %s143 = sphi 0, %s143
      %s145 = sphi 0, %s143
      %s146 = sphi 0, %s145
      %s160 = sphi 0, %s146
      %s164 = sphi 0, %s164
      %s166 = sphi 0, %s164
      %s167 = sphi 0, %s166
      %s181 = sphi 0, %s167
      %s185 = sphi 0, %s185
      %s187 = sphi 0, %s185
      %s188 = sphi 0, %s187
      %s202 = sphi 0, %s188
      %s206 = sphi 0, %s206
      %s208 = sphi 0, %s206
      %s209 = sphi 0, %s208
      %s223 = sphi 0, %s209
      %s229 = sphi 0, %s231
      %s232 = sphi 0, %s229
      %s233 = sphi 0, %s232
      %s249 = sphi 0, %s233
    $region4: #{tpu_custom_call.1} parent=1 // loop_header_branch
      %28 = sbr.rel (%p26) target = $region8
    $region5: #{tpu_custom_call.1} parent=1 // loop_body
      %s30 = ssub.s32 %s25, 1
      %s31 = ssub.s32 %s25, 2
      %s32 = sadd.s32 %s25, 1
      %s33 = ssub.s32 %s25, %s32
      %p34 = scmp.eq.s32.totalorder %s33, 0
      %s36 = sadd.s32 %s35, 1
      %s37 = scalar_select %p34, %s35, %s36
      %p40 = pneg %p34
      %p41 = scmp.eq.s32.totalorder %s25, 1
      %p42 = por %p40, %p41
      %p43 = scmp.ne.s32.totalorder %s35, %s38
      %p44 = scmp.eq.s32.totalorder %s25, 0
      %p45 = por %p43, %p44
      %p46 = scmp.ne.s32.totalorder %s35, %s38
      %p47 = scmp.eq.s32.totalorder %s30, 1
      %p48 = por %p46, %p47
      %p49 = scmp.ne.s32.totalorder %s38, %s39
      %p50 = scmp.eq.s32.totalorder %s30, 0
      %p51 = por %p49, %p50
      %p52 = scmp.ne.s32.totalorder %s38, %s39
      %p53 = scmp.eq.s32.totalorder %s31, 1
      %p54 = por %p52, %p53
      %p56 = scmp.ne.s32.totalorder %s39, %s55
      %p57 = scmp.eq.s32.totalorder %s31, 0
      %p58 = por %p56, %p57
      %s60 = sadd.s32 %s59, 1
      %p63 = scmp.eq.s32.totalorder %s25, 1
      %p64 = scmp.ne.s32.totalorder %s59, %s61
      %p65 = scmp.eq.s32.totalorder %s25, 0
      %p66 = por %p64, %p65
      %p67 = scmp.ne.s32.totalorder %s59, %s61
      %p68 = scmp.eq.s32.totalorder %s30, 1
      %p69 = por %p67, %p68
      %p70 = scmp.ne.s32.totalorder %s61, %s62
      %p71 = scmp.eq.s32.totalorder %s30, 0
      %p72 = por %p70, %p71
      %p73 = scmp.ne.s32.totalorder %s61, %s62
      %p74 = scmp.eq.s32.totalorder %s31, 1
      %p75 = por %p73, %p74
      %p77 = scmp.ne.s32.totalorder %s62, %s76
      %p78 = scmp.eq.s32.totalorder %s31, 0
      %p79 = por %p77, %p78
      %s81 = sadd.s32 %s80, 1
      %p84 = scmp.eq.s32.totalorder %s25, 1
      %p85 = scmp.ne.s32.totalorder %s80, %s82
      %p86 = scmp.eq.s32.totalorder %s25, 0
      %p87 = por %p85, %p86
      %p88 = scmp.ne.s32.totalorder %s80, %s82
      %p89 = scmp.eq.s32.totalorder %s30, 1
      %p90 = por %p88, %p89
      %p91 = scmp.ne.s32.totalorder %s82, %s83
      %p92 = scmp.eq.s32.totalorder %s30, 0
      %p93 = por %p91, %p92
      %p94 = scmp.ne.s32.totalorder %s82, %s83
      %p95 = scmp.eq.s32.totalorder %s31, 1
      %p96 = por %p94, %p95
      %p98 = scmp.ne.s32.totalorder %s83, %s97
      %p99 = scmp.eq.s32.totalorder %s31, 0
      %p100 = por %p98, %p99
      %s102 = sadd.s32 %s101, 1
      %p105 = scmp.eq.s32.totalorder %s25, 1
      %p106 = scmp.ne.s32.totalorder %s101, %s103
      %p107 = scmp.eq.s32.totalorder %s25, 0
      %p108 = por %p106, %p107
      %p109 = scmp.ne.s32.totalorder %s101, %s103
      %p110 = scmp.eq.s32.totalorder %s30, 1
      %p111 = por %p109, %p110
      %p112 = scmp.ne.s32.totalorder %s103, %s104
      %p113 = scmp.eq.s32.totalorder %s30, 0
      %p114 = por %p112, %p113
      %p115 = scmp.ne.s32.totalorder %s103, %s104
      %p116 = scmp.eq.s32.totalorder %s31, 1
      %p117 = por %p115, %p116
      %p119 = scmp.ne.s32.totalorder %s104, %s118
      %p120 = scmp.eq.s32.totalorder %s31, 0
      %p121 = por %p119, %p120
      %s123 = sadd.s32 %s122, 1
      %p126 = scmp.eq.s32.totalorder %s25, 1
      %p127 = scmp.ne.s32.totalorder %s122, %s124
      %p128 = scmp.eq.s32.totalorder %s25, 0
      %p129 = por %p127, %p128
      %p130 = scmp.ne.s32.totalorder %s122, %s124
      %p131 = scmp.eq.s32.totalorder %s30, 1
      %p132 = por %p130, %p131
      %p133 = scmp.ne.s32.totalorder %s124, %s125
      %p134 = scmp.eq.s32.totalorder %s30, 0
      %p135 = por %p133, %p134
      %p136 = scmp.ne.s32.totalorder %s124, %s125
      %p137 = scmp.eq.s32.totalorder %s31, 1
      %p138 = por %p136, %p137
      %p140 = scmp.ne.s32.totalorder %s125, %s139
      %p141 = scmp.eq.s32.totalorder %s31, 0
      %p142 = por %p140, %p141
      %s144 = sadd.s32 %s143, 1
      %p147 = scmp.eq.s32.totalorder %s25, 1
      %p148 = scmp.ne.s32.totalorder %s143, %s145
      %p149 = scmp.eq.s32.totalorder %s25, 0
      %p150 = por %p148, %p149
      %p151 = scmp.ne.s32.totalorder %s143, %s145
      %p152 = scmp.eq.s32.totalorder %s30, 1
      %p153 = por %p151, %p152
      %p154 = scmp.ne.s32.totalorder %s145, %s146
      %p155 = scmp.eq.s32.totalorder %s30, 0
      %p156 = por %p154, %p155
      %p157 = scmp.ne.s32.totalorder %s145, %s146
      %p158 = scmp.eq.s32.totalorder %s31, 1
      %p159 = por %p157, %p158
      %p161 = scmp.ne.s32.totalorder %s146, %s160
      %p162 = scmp.eq.s32.totalorder %s31, 0
      %p163 = por %p161, %p162
      %s165 = sadd.s32 %s164, 1
      %p168 = scmp.eq.s32.totalorder %s25, 1
      %p169 = scmp.ne.s32.totalorder %s164, %s166
      %p170 = scmp.eq.s32.totalorder %s25, 0
      %p171 = por %p169, %p170
      %p172 = scmp.ne.s32.totalorder %s164, %s166
      %p173 = scmp.eq.s32.totalorder %s30, 1
      %p174 = por %p172, %p173
      %p175 = scmp.ne.s32.totalorder %s166, %s167
      %p176 = scmp.eq.s32.totalorder %s30, 0
      %p177 = por %p175, %p176
      %p178 = scmp.ne.s32.totalorder %s166, %s167
      %p179 = scmp.eq.s32.totalorder %s31, 1
      %p180 = por %p178, %p179
      %p182 = scmp.ne.s32.totalorder %s167, %s181
      %p183 = scmp.eq.s32.totalorder %s31, 0
      %p184 = por %p182, %p183
      %s186 = sadd.s32 %s185, 1
      %p189 = scmp.eq.s32.totalorder %s25, 1
      %p190 = scmp.ne.s32.totalorder %s185, %s187
      %p191 = scmp.eq.s32.totalorder %s25, 0
      %p192 = por %p190, %p191
      %p193 = scmp.ne.s32.totalorder %s185, %s187
      %p194 = scmp.eq.s32.totalorder %s30, 1
      %p195 = por %p193, %p194
      %p196 = scmp.ne.s32.totalorder %s187, %s188
      %p197 = scmp.eq.s32.totalorder %s30, 0
      %p198 = por %p196, %p197
      %p199 = scmp.ne.s32.totalorder %s187, %s188
      %p200 = scmp.eq.s32.totalorder %s31, 1
      %p201 = por %p199, %p200
      %p203 = scmp.ne.s32.totalorder %s188, %s202
      %p204 = scmp.eq.s32.totalorder %s31, 0
      %p205 = por %p203, %p204
      %s207 = sadd.s32 %s206, 1
      %p210 = scmp.eq.s32.totalorder %s25, 1
      %p211 = scmp.ne.s32.totalorder %s206, %s208
      %p212 = scmp.eq.s32.totalorder %s25, 0
      %p213 = por %p211, %p212
      %p214 = scmp.ne.s32.totalorder %s206, %s208
      %p215 = scmp.eq.s32.totalorder %s30, 1
      %p216 = por %p214, %p215
      %p217 = scmp.ne.s32.totalorder %s208, %s209
      %p218 = scmp.eq.s32.totalorder %s30, 0
      %p219 = por %p217, %p218
      %p220 = scmp.ne.s32.totalorder %s208, %s209
      %p221 = scmp.eq.s32.totalorder %s31, 1
      %p222 = por %p220, %p221
      %p224 = scmp.ne.s32.totalorder %s209, %s223
      %p225 = scmp.eq.s32.totalorder %s31, 0
      %p226 = por %p224, %p225
      %s227 = ssub.s32 %s25, %s32
      %p228 = scmp.eq.s32.totalorder %s227, 0
      %s230 = sadd.s32 %s229, 1
      %s231 = scalar_select %p228, %s229, %s230
      %p234 = pneg %p228
      %p235 = scmp.eq.s32.totalorder %s25, 1
      %p236 = por %p234, %p235
      %p237 = scmp.ne.s32.totalorder %s229, %s232
      %p238 = scmp.eq.s32.totalorder %s25, 0
      %p239 = por %p237, %p238
      %p240 = scmp.ne.s32.totalorder %s229, %s232
      %p241 = scmp.eq.s32.totalorder %s30, 1
      %p242 = por %p240, %p241
      %p243 = scmp.ne.s32.totalorder %s232, %s233
      %p244 = scmp.eq.s32.totalorder %s30, 0
      %p245 = por %p243, %p244
      %p246 = scmp.ne.s32.totalorder %s232, %s233
      %p247 = scmp.eq.s32.totalorder %s31, 1
      %p248 = por %p246, %p247
      %p250 = scmp.ne.s32.totalorder %s233, %s249
      %p251 = scmp.eq.s32.totalorder %s31, 0
      %p252 = por %p250, %p251
      %p253 = scmp.le.s32.totalorder 1, %s25
      %p254 = scmp.lt.s32.totalorder %s25, 3
      %p255 = pnand %p253, %p254
      %p256 = pneg %p255
      // Predicated region
      $region9: #{tpu_custom_call.1} parent=5 // pred_check
        _
      $region10: #{tpu_custom_call.1} parent=5 // pred_check_branch
        %258 = sbr.rel (%p255) target = $region12
      $region11: #{tpu_custom_call.1} parent=5 // pred_region
        %s259 = ssub.s32 %s25, 1
        // Predicated region
        $region13: #{tpu_custom_call.1} parent=11 // pred_check
          %p260 = pneg %p72
        $region14: #{tpu_custom_call.1} parent=11 // pred_check_branch
          %262 = sbr.rel (%p260) target = $region16
        $region15: #{tpu_custom_call.1} parent=11 // pred_region
          %s264 = ssub.s32 128, 128
          %265 = vsyncadd [#allocation8], %s264
          %s266 = sshll.u32 [#allocation7], 4
          %s267 = int_to_ptr.vmem [resolvable:$true] %s266
          %272 = dma.hbm_to_vmem [thread:$0]  %s1, 128, %s267, [#allocation8], 64, 64, 4
        $region16: #{tpu_custom_call.1} parent=11 // pred_fallthru
          _
        // Predicated region
        $region17: #{tpu_custom_call.1} parent=11 // pred_check
          %p273 = pneg %p93
        $region18: #{tpu_custom_call.1} parent=11 // pred_check_branch
          %275 = sbr.rel (%p273) target = $region20
        $region19: #{tpu_custom_call.1} parent=11 // pred_region
          %s277 = ssub.s32 16, 16
          %278 = vsyncadd [#allocation8], %s277
          %s280 = sshll.u32 [#allocation9], 4
          %s281 = int_to_ptr.vmem [resolvable:$true] %s280
          %283 = dma.hbm_to_vmem [thread:$0]  %s2, 16, %s281, [#allocation8]
        $region20: #{tpu_custom_call.1} parent=11 // pred_fallthru
          _
        // Predicated region
        $region21: #{tpu_custom_call.1} parent=11 // pred_check
          %p284 = pneg %p114
        $region22: #{tpu_custom_call.1} parent=11 // pred_check_branch
          %286 = sbr.rel (%p284) target = $region24
        $region23: #{tpu_custom_call.1} parent=11 // pred_region
          %s288 = ssub.s32 576, 576
          %289 = vsyncadd [#allocation11], %s288
          %s290 = sshll.u32 [#allocation10], 4
          %s291 = int_to_ptr.vmem [resolvable:$true] %s290
          %296 = dma.hbm_to_vmem [thread:$0]  %s3, 576, %s291, [#allocation11], 64, 64, 4
        $region24: #{tpu_custom_call.1} parent=11 // pred_fallthru
          _
        // Predicated region
        $region25: #{tpu_custom_call.1} parent=11 // pred_check
          %p297 = pneg %p135
        $region26: #{tpu_custom_call.1} parent=11 // pred_check_branch
          %299 = sbr.rel (%p297) target = $region28
        $region27: #{tpu_custom_call.1} parent=11 // pred_region
          %s301 = ssub.s32 16, 16
          %302 = vsyncadd [#allocation11], %s301
          %s304 = sshll.u32 [#allocation12], 4
          %s305 = int_to_ptr.vmem [resolvable:$true] %s304
          %307 = dma.hbm_to_vmem [thread:$0]  %s4, 16, %s305, [#allocation11]
        $region28: #{tpu_custom_call.1} parent=11 // pred_fallthru
          _
        // Predicated region
        $region29: #{tpu_custom_call.1} parent=11 // pred_check
          %p308 = pneg %p156
        $region30: #{tpu_custom_call.1} parent=11 // pred_check_branch
          %310 = sbr.rel (%p308) target = $region32
        $region31: #{tpu_custom_call.1} parent=11 // pred_region
          %s312 = ssub.s32 64, 64
          %313 = vsyncadd [#allocation14], %s312
          %s315 = sshll.u32 [#allocation13], 4
          %s316 = int_to_ptr.vmem [resolvable:$true] %s315
          %318 = dma.hbm_to_vmem [thread:$0]  %s5, 64, %s316, [#allocation14]
        $region32: #{tpu_custom_call.1} parent=11 // pred_fallthru
          _
        // Predicated region
        $region33: #{tpu_custom_call.1} parent=11 // pred_check
          %p319 = pneg %p177
        $region34: #{tpu_custom_call.1} parent=11 // pred_check_branch
          %321 = sbr.rel (%p319) target = $region36
        $region35: #{tpu_custom_call.1} parent=11 // pred_region
          %s323 = ssub.s32 16, 16
          %324 = vsyncadd [#allocation14], %s323
          %s326 = sshll.u32 [#allocation15], 4
          %s327 = int_to_ptr.vmem [resolvable:$true] %s326
          %329 = dma.hbm_to_vmem [thread:$0]  %s6, 16, %s327, [#allocation14]
        $region36: #{tpu_custom_call.1} parent=11 // pred_fallthru
          _
        // Predicated region
        $region37: #{tpu_custom_call.1} parent=11 // pred_check
          %p330 = pneg %p198
        $region38: #{tpu_custom_call.1} parent=11 // pred_check_branch
          %332 = sbr.rel (%p330) target = $region40
        $region39: #{tpu_custom_call.1} parent=11 // pred_region
          %s334 = ssub.s32 128, 128
          %335 = vsyncadd [#allocation17], %s334
          %s336 = sshll.u32 [#allocation16], 4
          %s337 = int_to_ptr.vmem [resolvable:$true] %s336
          %342 = dma.hbm_to_vmem [thread:$0]  %s7, 128, %s337, [#allocation17], 64, 64, 4
        $region40: #{tpu_custom_call.1} parent=11 // pred_fallthru
          _
        // Predicated region
        $region41: #{tpu_custom_call.1} parent=11 // pred_check
          %p343 = pneg %p219
        $region42: #{tpu_custom_call.1} parent=11 // pred_check_branch
          %345 = sbr.rel (%p343) target = $region44
        $region43: #{tpu_custom_call.1} parent=11 // pred_region
          %s347 = ssub.s32 16, 16
          %348 = vsyncadd [#allocation17], %s347
          %s350 = sshll.u32 [#allocation18], 4
          %s351 = int_to_ptr.vmem [resolvable:$true] %s350
          %353 = dma.hbm_to_vmem [thread:$0]  %s8, 16, %s351, [#allocation17]
        $region44: #{tpu_custom_call.1} parent=11 // pred_fallthru
          _
      $region12: #{tpu_custom_call.1} parent=5 // pred_fallthru
        _
      %p354 = scmp.lt.s32.totalorder %s25, 2
      // Predicated region
      $region45: #{tpu_custom_call.1} parent=5 // pred_check
        %p355 = pneg %p354
      $region46: #{tpu_custom_call.1} parent=5 // pred_check_branch
        %357 = sbr.rel (%p355) target = $region48
      $region47: #{tpu_custom_call.1} parent=5 // pred_region
        // Predicated region
        $region49: #{tpu_custom_call.1} parent=47 // pred_check
          %p358 = pneg %p45
        $region50: #{tpu_custom_call.1} parent=47 // pred_check_branch
          %360 = sbr.rel (%p358) target = $region52
        $region51: #{tpu_custom_call.1} parent=47 // pred_region
          %s361 = sand.u32 %s35, 1
          %s362 = scalar_lea.sflag [#allocation5], %s361
          %s363 = sand.u32 %s35, 1
          %s364 = smul.addr %s363, 128
          %s365 = scalar_lea.vmem [#allocation4], %s364
          %s367 = ssub.s32 2048, 2048
          %368 = vsyncadd %s362, %s367
          %s369 = smul.addr %s25, 32
          %s370 = smul.addr %s369, 64
          %s371 = scalar_lea.hbm %s0, %s370
          %s372 = sshll.u32 %s365, 4
          %s373 = int_to_ptr.vmem [resolvable:$true] %s372
          %378 = dma.hbm_to_vmem [thread:$0]  %s371, 2048, %s373, %s362, 64, 64, 4
        $region52: #{tpu_custom_call.1} parent=47 // pred_fallthru
          _
      $region48: #{tpu_custom_call.1} parent=5 // pred_fallthru
        _
      %p379 = scmp.le.s32.totalorder 1, %s25
      %p380 = scmp.lt.s32.totalorder %s25, 3
      %p381 = pnand %p379, %p380
      %p382 = pneg %p381
      // Predicated region
      $region53: #{tpu_custom_call.1} parent=5 // pred_check
        _
      $region54: #{tpu_custom_call.1} parent=5 // pred_check_branch
        %384 = sbr.rel (%p381) target = $region56
      $region55: #{tpu_custom_call.1} parent=5 // pred_region
        %s385 = ssub.s32 %s25, 1
        %s386 = sand.u32 %s38, 1
        %s387 = scalar_lea.sflag [#allocation5], %s386
        %s388 = sand.u32 %s38, 1
        %s389 = smul.addr %s388, 128
        %s390 = scalar_lea.vmem [#allocation4], %s389
        // Predicated region
        $region57: #{tpu_custom_call.1} parent=55 // pred_check
          %p391 = pneg %p51
        $region58: #{tpu_custom_call.1} parent=55 // pred_check_branch
          %393 = sbr.rel (%p391) target = $region60
        $region59: #{tpu_custom_call.1} parent=55 // pred_region
          %394 = dma.done %s387, 2048
        $region60: #{tpu_custom_call.1} parent=55 // pred_fallthru
          _
        // Predicated region
        $region61: #{tpu_custom_call.1} parent=55 // pred_check
          %p395 = pneg %p72
        $region62: #{tpu_custom_call.1} parent=55 // pred_check_branch
          %397 = sbr.rel (%p395) target = $region64
        $region63: #{tpu_custom_call.1} parent=55 // pred_region
          %398 = dma.done [#allocation8], 128
        $region64: #{tpu_custom_call.1} parent=55 // pred_fallthru
          _
        // Predicated region
        $region65: #{tpu_custom_call.1} parent=55 // pred_check
          %p399 = pneg %p93
        $region66: #{tpu_custom_call.1} parent=55 // pred_check_branch
          %401 = sbr.rel (%p399) target = $region68
        $region67: #{tpu_custom_call.1} parent=55 // pred_region
          %402 = dma.done [#allocation8], 16
        $region68: #{tpu_custom_call.1} parent=55 // pred_fallthru
          _
        // Predicated region
        $region69: #{tpu_custom_call.1} parent=55 // pred_check
          %p403 = pneg %p114
        $region70: #{tpu_custom_call.1} parent=55 // pred_check_branch
          %405 = sbr.rel (%p403) target = $region72
        $region71: #{tpu_custom_call.1} parent=55 // pred_region
          %406 = dma.done [#allocation11], 576
        $region72: #{tpu_custom_call.1} parent=55 // pred_fallthru
          _
        // Predicated region
        $region73: #{tpu_custom_call.1} parent=55 // pred_check
          %p407 = pneg %p135
        $region74: #{tpu_custom_call.1} parent=55 // pred_check_branch
          %409 = sbr.rel (%p407) target = $region76
        $region75: #{tpu_custom_call.1} parent=55 // pred_region
          %410 = dma.done [#allocation11], 16
        $region76: #{tpu_custom_call.1} parent=55 // pred_fallthru
          _
        // Predicated region
        $region77: #{tpu_custom_call.1} parent=55 // pred_check
          %p411 = pneg %p156
        $region78: #{tpu_custom_call.1} parent=55 // pred_check_branch
          %413 = sbr.rel (%p411) target = $region80
        $region79: #{tpu_custom_call.1} parent=55 // pred_region
          %414 = dma.done [#allocation14], 64
        $region80: #{tpu_custom_call.1} parent=55 // pred_fallthru
          _
        // Predicated region
        $region81: #{tpu_custom_call.1} parent=55 // pred_check
          %p415 = pneg %p177
        $region82: #{tpu_custom_call.1} parent=55 // pred_check_branch
          %417 = sbr.rel (%p415) target = $region84
        $region83: #{tpu_custom_call.1} parent=55 // pred_region
          %418 = dma.done [#allocation14], 16
        $region84: #{tpu_custom_call.1} parent=55 // pred_fallthru
          _
        // Predicated region
        $region85: #{tpu_custom_call.1} parent=55 // pred_check
          %p419 = pneg %p198
        $region86: #{tpu_custom_call.1} parent=55 // pred_check_branch
          %421 = sbr.rel (%p419) target = $region88
        $region87: #{tpu_custom_call.1} parent=55 // pred_region
          %422 = dma.done [#allocation17], 128
        $region88: #{tpu_custom_call.1} parent=55 // pred_fallthru
          _
        // Predicated region
        $region89: #{tpu_custom_call.1} parent=55 // pred_check
          %p423 = pneg %p219
        $region90: #{tpu_custom_call.1} parent=55 // pred_check_branch
          %425 = sbr.rel (%p423) target = $region92
        $region91: #{tpu_custom_call.1} parent=55 // pred_region
          %426 = dma.done [#allocation17], 16
        $region92: #{tpu_custom_call.1} parent=55 // pred_fallthru
          _
        %s427 = sand.u32 %s38, 1
        %s428 = scalar_lea.sflag [#allocation5], %s427
        %s429 = sand.u32 %s38, 1
        %s430 = smul.addr %s429, 128
        %s431 = scalar_lea.vmem [#allocation4], %s430
        %p432 = pneg %p51
        %p433 = pneg %p48
        %p434 = pneg %p72
        %p435 = pneg %p69
        %p436 = pneg %p93
        %p437 = pneg %p90
        %p438 = pneg %p114
        %p439 = pneg %p111
        %p440 = pneg %p135
        %p441 = pneg %p132
        %p442 = pneg %p156
        %p443 = pneg %p153
        %p444 = pneg %p177
        %p445 = pneg %p174
        %p446 = pneg %p198
        %p447 = pneg %p195
        %p448 = pneg %p219
        %p449 = pneg %p216
        %p450 = pneg %p245
        %p451 = pneg %p242
        %s452 = sand.u32 %s232, 1
        %s453 = scalar_lea.sflag [#allocation6], %s452
        %s454 = sand.u32 %s232, 1
        %s455 = smul.addr %s454, 128
        %s456 = scalar_lea.vmem [#allocation19], %s455
        %v458 = vld [vmem:[%s390] sm:$0xf]
        %v459 = vld [vmem:[%s390 + $0x4] sm:$0xf]
        %v460 = vld [vmem:[%s390 + $0x8] sm:$0xf]
        %v461 = vld [vmem:[%s390 + $0xc] sm:$0xf]
        %v462 = vld [vmem:[%s390 + $0x10] sm:$0xf]
        %v463 = vld [vmem:[%s390 + $0x14] sm:$0xf]
        %v464 = vld [vmem:[%s390 + $0x18] sm:$0xf]
        %v465 = vld [vmem:[%s390 + $0x1c] sm:$0xf]
        %v466 = vld [vmem:[%s390 + $0x20] sm:$0xf]
        %v467 = vld [vmem:[%s390 + $0x24] sm:$0xf]
        %v468 = vld [vmem:[%s390 + $0x28] sm:$0xf]
        %v469 = vld [vmem:[%s390 + $0x2c] sm:$0xf]
        %v470 = vld [vmem:[%s390 + $0x30] sm:$0xf]
        %v471 = vld [vmem:[%s390 + $0x34] sm:$0xf]
        %v472 = vld [vmem:[%s390 + $0x38] sm:$0xf]
        %v473 = vld [vmem:[%s390 + $0x3c] sm:$0xf]
        %v474 = vld [vmem:[%s390 + $0x40] sm:$0xf]
        %v475 = vld [vmem:[%s390 + $0x44] sm:$0xf]
        %v476 = vld [vmem:[%s390 + $0x48] sm:$0xf]
        %v477 = vld [vmem:[%s390 + $0x4c] sm:$0xf]
        %v478 = vld [vmem:[%s390 + $0x50] sm:$0xf]
        %v479 = vld [vmem:[%s390 + $0x54] sm:$0xf]
        %v480 = vld [vmem:[%s390 + $0x58] sm:$0xf]
        %v481 = vld [vmem:[%s390 + $0x5c] sm:$0xf]
        %v482 = vld [vmem:[%s390 + $0x60] sm:$0xf]
        %v483 = vld [vmem:[%s390 + $0x64] sm:$0xf]
        %v484 = vld [vmem:[%s390 + $0x68] sm:$0xf]
        %v485 = vld [vmem:[%s390 + $0x6c] sm:$0xf]
        %v486 = vld [vmem:[%s390 + $0x70] sm:$0xf]
        %v487 = vld [vmem:[%s390 + $0x74] sm:$0xf]
        %v488 = vld [vmem:[%s390 + $0x78] sm:$0xf]
        %v489 = vld [vmem:[%s390 + $0x7c] sm:$0xf]
        %v490 = vld [vmem:[#allocation7] sm:$0xf]
        %v491 = vld [vmem:[#allocation7 + $0x4] sm:$0xf]
        %v492 = vld [vmem:[#allocation9] sm:$0x1]
        %v494 = vlaneseq
        %v495 = vshrl.u32 %v494, 7
        %v496 = vsub.s32 0, %v495
        %v497 = vrot.slane %v492, %v496
        %v531 = vunpack.c.l.b16 %v458
        %v532 = vunpack.c.l.b16 %v459
        %v533 = vunpack.c.l.b16 %v460
        %v534 = vunpack.c.l.b16 %v461
        %v535 = vunpack.c.l.b16 %v462
        %v536 = vunpack.c.l.b16 %v463
        %v537 = vunpack.c.l.b16 %v464
        %v538 = vunpack.c.l.b16 %v465
        %v539 = vunpack.c.l.b16 %v466
        %v540 = vunpack.c.l.b16 %v467
        %v541 = vunpack.c.l.b16 %v468
        %v542 = vunpack.c.l.b16 %v469
        %v543 = vunpack.c.l.b16 %v470
        %v544 = vunpack.c.l.b16 %v471
        %v545 = vunpack.c.l.b16 %v472
        %v546 = vunpack.c.l.b16 %v473
        %v547 = vunpack.c.l.b16 %v474
        %v548 = vunpack.c.l.b16 %v475
        %v549 = vunpack.c.l.b16 %v476
        %v550 = vunpack.c.l.b16 %v477
        %v551 = vunpack.c.l.b16 %v478
        %v552 = vunpack.c.l.b16 %v479
        %v553 = vunpack.c.l.b16 %v480
        %v554 = vunpack.c.l.b16 %v481
        %v555 = vunpack.c.l.b16 %v482
        %v556 = vunpack.c.l.b16 %v483
        %v557 = vunpack.c.l.b16 %v484
        %v558 = vunpack.c.l.b16 %v485
        %v559 = vunpack.c.l.b16 %v486
        %v560 = vunpack.c.l.b16 %v487
        %v561 = vunpack.c.l.b16 %v488
        %v562 = vunpack.c.l.b16 %v489
        %v563 = vpack.c.b16 %v532, %v531
        %v564 = vpack.c.b16 %v534, %v533
        %v565 = vpack.c.b16 %v536, %v535
        %v566 = vpack.c.b16 %v538, %v537
        %v567 = vpack.c.b16 %v540, %v539
        %v568 = vpack.c.b16 %v542, %v541
        %v569 = vpack.c.b16 %v544, %v543
        %v570 = vpack.c.b16 %v546, %v545
        %v571 = vpack.c.b16 %v548, %v547
        %v572 = vpack.c.b16 %v550, %v549
        %v573 = vpack.c.b16 %v552, %v551
        %v574 = vpack.c.b16 %v554, %v553
        %v575 = vpack.c.b16 %v556, %v555
        %v576 = vpack.c.b16 %v558, %v557
        %v577 = vpack.c.b16 %v560, %v559
        %v578 = vpack.c.b16 %v562, %v561
        %v581 = vunpack.c.l.b16 %v490
        %v582 = vunpack.c.l.b16 %v491
        %v583 = vpack.c.b16 %v582, %v581
        %vm585 = vcmask 130048
        %v587 = vsel %vm585, %v563, 0
        %v590 = vsel %vm585, %v564, 0
        %v593 = vsel %vm585, %v565, 0
        %v596 = vsel %vm585, %v566, 0
        %v599 = vsel %vm585, %v567, 0
        %v602 = vsel %vm585, %v568, 0
        %v605 = vsel %vm585, %v569, 0
        %v608 = vsel %vm585, %v570, 0
        %v611 = vsel %vm585, %v571, 0
        %v614 = vsel %vm585, %v572, 0
        %v617 = vsel %vm585, %v573, 0
        %v620 = vsel %vm585, %v574, 0
        %v623 = vsel %vm585, %v575, 0
        %v626 = vsel %vm585, %v576, 0
        %v629 = vsel %vm585, %v577, 0
        %v632 = vsel %vm585, %v578, 0
        %634 = vmatprep.subr.bf16.mxu0 0
        %635 = vmatpush1.bf16.msra.mxu0 %v583
        %636 = vmatprep.subr.bf16.mxu0 0
        %637 = vmatpush1.bf16.msra.mxu0 0
        %638 = vmatprep.subr.bf16.mxu0 0
        %639 = vmatpush1.bf16.msra.mxu0 0
        %640 = vmatprep.subr.bf16.mxu0 0
        %641 = vmatpush1.bf16.msra.mxu0 0
        %642 = vmatprep.subr.bf16.mxu0 0
        %643 = vmatpush1.bf16.msra.mxu0 0
        %644 = vmatprep.subr.bf16.mxu0 0
        %645 = vmatpush1.bf16.msra.mxu0 0
        %646 = vmatprep.subr.bf16.mxu0 0
        %647 = vmatpush1.bf16.msra.mxu0 0
        %648 = vmatprep.subr.bf16.mxu0 0
        %649 = vmatpush1.bf16.msra.mxu0 0
        %650 = vmatprep.subr.bf16.mxu0 0
        %651 = vmatpush1.bf16.msra.mxu0 0
        %652 = vmatprep.subr.bf16.mxu0 0
        %653 = vmatpush1.bf16.msra.mxu0 0
        %654 = vmatprep.subr.bf16.mxu0 0
        %655 = vmatpush1.bf16.msra.mxu0 0
        %656 = vmatprep.subr.bf16.mxu0 0
        %657 = vmatpush1.bf16.msra.mxu0 0
        %658 = vmatprep.subr.bf16.mxu0 0
        %659 = vmatpush1.bf16.msra.mxu0 0
        %660 = vmatprep.subr.bf16.mxu0 0
        %661 = vmatpush1.bf16.msra.mxu0 0
        %662 = vmatprep.subr.bf16.mxu0 0
        %663 = vmatpush1.bf16.msra.mxu0 0
        %664 = vmatprep.subr.bf16.mxu0 0
        %665 = vmatpush1.bf16.msra.mxu0 0
        %666 = vmatprep.mubr.bf16.mxu0 0
        %667 = vmatmul.mubr.bf16.gmra.mrb[0].mxu0 %v587
        %v668 = vpop.f32.mrb[0].mxu0
        %v669 = vadd.f32 %v497, %v668
        %v670 = vpop.f32.mrb[0].mxu0
        %v671 = vpop.f32.mrb[0].mxu0
        %v672 = vadd.f32 %v497, %v671
        %v673 = vpop.f32.mrb[0].mxu0
        %674 = vmatprep.mubr.bf16.mxu0 0
        %675 = vmatmul.mubr.bf16.gmra.mrb[0].mxu0 %v590
        %v676 = vpop.f32.mrb[0].mxu0
        %v677 = vadd.f32 %v497, %v676
        %v678 = vpop.f32.mrb[0].mxu0
        %v679 = vpop.f32.mrb[0].mxu0
        %v680 = vadd.f32 %v497, %v679
        %v681 = vpop.f32.mrb[0].mxu0
        %682 = vmatprep.mubr.bf16.mxu0 0
        %683 = vmatmul.mubr.bf16.gmra.mrb[0].mxu0 %v593
        %v684 = vpop.f32.mrb[0].mxu0
        %v685 = vadd.f32 %v497, %v684
        %v686 = vpop.f32.mrb[0].mxu0
        %v687 = vpop.f32.mrb[0].mxu0
        %v688 = vadd.f32 %v497, %v687
        %v689 = vpop.f32.mrb[0].mxu0
        %690 = vmatprep.mubr.bf16.mxu0 0
        %691 = vmatmul.mubr.bf16.gmra.mrb[0].mxu0 %v596
        %v692 = vpop.f32.mrb[0].mxu0
        %v693 = vadd.f32 %v497, %v692
        %v694 = vpop.f32.mrb[0].mxu0
        %v695 = vpop.f32.mrb[0].mxu0
        %v696 = vadd.f32 %v497, %v695
        %v697 = vpop.f32.mrb[0].mxu0
        %698 = vmatprep.mubr.bf16.mxu0 0
        %699 = vmatmul.mubr.bf16.gmra.mrb[0].mxu0 %v599
        %v700 = vpop.f32.mrb[0].mxu0
        %v701 = vadd.f32 %v497, %v700
        %v702 = vpop.f32.mrb[0].mxu0
        %v703 = vpop.f32.mrb[0].mxu0
        %v704 = vadd.f32 %v497, %v703
        %v705 = vpop.f32.mrb[0].mxu0
        %706 = vmatprep.mubr.bf16.mxu0 0
        %707 = vmatmul.mubr.bf16.gmra.mrb[0].mxu0 %v602
        %v708 = vpop.f32.mrb[0].mxu0
        %v709 = vadd.f32 %v497, %v708
        %v710 = vpop.f32.mrb[0].mxu0
        %v711 = vpop.f32.mrb[0].mxu0
        %v712 = vadd.f32 %v497, %v711
        %v713 = vpop.f32.mrb[0].mxu0
        %714 = vmatprep.mubr.bf16.mxu0 0
        %715 = vmatmul.mubr.bf16.gmra.mrb[0].mxu0 %v605
        %v716 = vpop.f32.mrb[0].mxu0
        %v717 = vadd.f32 %v497, %v716
        %v718 = vpop.f32.mrb[0].mxu0
        %v719 = vpop.f32.mrb[0].mxu0
        %v720 = vadd.f32 %v497, %v719
        %v721 = vpop.f32.mrb[0].mxu0
        %722 = vmatprep.mubr.bf16.mxu0 0
        %723 = vmatmul.mubr.bf16.gmra.mrb[0].mxu0 %v608
        %v724 = vpop.f32.mrb[0].mxu0
        %v725 = vadd.f32 %v497, %v724
        %v726 = vpop.f32.mrb[0].mxu0
        %v727 = vpop.f32.mrb[0].mxu0
        %v728 = vadd.f32 %v497, %v727
        %v729 = vpop.f32.mrb[0].mxu0
        %730 = vmatprep.mubr.bf16.mxu0 0
        %731 = vmatmul.mubr.bf16.gmra.mrb[0].mxu0 %v611
        %v732 = vpop.f32.mrb[0].mxu0
        %v733 = vadd.f32 %v497, %v732
        %v734 = vpop.f32.mrb[0].mxu0
        %v735 = vpop.f32.mrb[0].mxu0
        %v736 = vadd.f32 %v497, %v735
        %v737 = vpop.f32.mrb[0].mxu0
        %738 = vmatprep.mubr.bf16.mxu0 0
        %739 = vmatmul.mubr.bf16.gmra.mrb[0].mxu0 %v614
        %v740 = vpop.f32.mrb[0].mxu0
        %v741 = vadd.f32 %v497, %v740
        %v742 = vpop.f32.mrb[0].mxu0
        %v743 = vpop.f32.mrb[0].mxu0
        %v744 = vadd.f32 %v497, %v743
        %v745 = vpop.f32.mrb[0].mxu0
        %746 = vmatprep.mubr.bf16.mxu0 0
        %747 = vmatmul.mubr.bf16.gmra.mrb[0].mxu0 %v617
        %v748 = vpop.f32.mrb[0].mxu0
        %v749 = vadd.f32 %v497, %v748
        %v750 = vpop.f32.mrb[0].mxu0
        %v751 = vpop.f32.mrb[0].mxu0
        %v752 = vadd.f32 %v497, %v751
        %v753 = vpop.f32.mrb[0].mxu0
        %754 = vmatprep.mubr.bf16.mxu0 0
        %755 = vmatmul.mubr.bf16.gmra.mrb[0].mxu0 %v620
        %v756 = vpop.f32.mrb[0].mxu0
        %v757 = vadd.f32 %v497, %v756
        %v758 = vpop.f32.mrb[0].mxu0
        %v759 = vpop.f32.mrb[0].mxu0
        %v760 = vadd.f32 %v497, %v759
        %v761 = vpop.f32.mrb[0].mxu0
        %762 = vmatprep.mubr.bf16.mxu0 0
        %763 = vmatmul.mubr.bf16.gmra.mrb[0].mxu0 %v623
        %v764 = vpop.f32.mrb[0].mxu0
        %v765 = vadd.f32 %v497, %v764
        %v766 = vpop.f32.mrb[0].mxu0
        %v767 = vpop.f32.mrb[0].mxu0
        %v768 = vadd.f32 %v497, %v767
        %v769 = vpop.f32.mrb[0].mxu0
        %770 = vmatprep.mubr.bf16.mxu0 0
        %771 = vmatmul.mubr.bf16.gmra.mrb[0].mxu0 %v626
        %v772 = vpop.f32.mrb[0].mxu0
        %v773 = vadd.f32 %v497, %v772
        %v774 = vpop.f32.mrb[0].mxu0
        %v775 = vpop.f32.mrb[0].mxu0
        %v776 = vadd.f32 %v497, %v775
        %v777 = vpop.f32.mrb[0].mxu0
        %778 = vmatprep.mubr.bf16.mxu0 0
        %779 = vmatmul.mubr.bf16.gmra.mrb[0].mxu0 %v629
        %v780 = vpop.f32.mrb[0].mxu0
        %v781 = vadd.f32 %v497, %v780
        %v782 = vpop.f32.mrb[0].mxu0
        %v783 = vpop.f32.mrb[0].mxu0
        %v784 = vadd.f32 %v497, %v783
        %v785 = vpop.f32.mrb[0].mxu0
        %786 = vmatprep.mubr.bf16.mxu0 0
        %787 = vmatmul.mubr.bf16.gmra.mrb[0].mxu0 %v632
        %v788 = vpop.f32.mrb[0].mxu0
        %v789 = vadd.f32 %v497, %v788
        %v790 = vpop.f32.mrb[0].mxu0
        %v791 = vpop.f32.mrb[0].mxu0
        %v792 = vadd.f32 %v497, %v791
        %v793 = vpop.f32.mrb[0].mxu0
        %794 = vdwg.mxu0
        %v795 = vmax.f32 %v669, 0.0
        %v796 = vmax.f32 %v672, 0.0
        %v797 = vmax.f32 %v677, 0.0
        %v798 = vmax.f32 %v680, 0.0
        %v799 = vmax.f32 %v685, 0.0
        %v800 = vmax.f32 %v688, 0.0
        %v801 = vmax.f32 %v693, 0.0
        %v802 = vmax.f32 %v696, 0.0
        %v803 = vmax.f32 %v701, 0.0
        %v804 = vmax.f32 %v704, 0.0
        %v805 = vmax.f32 %v709, 0.0
        %v806 = vmax.f32 %v712, 0.0
        %v807 = vmax.f32 %v717, 0.0
        %v808 = vmax.f32 %v720, 0.0
        %v809 = vmax.f32 %v725, 0.0
        %v810 = vmax.f32 %v728, 0.0
        %v811 = vmax.f32 %v733, 0.0
        %v812 = vmax.f32 %v736, 0.0
        %v813 = vmax.f32 %v741, 0.0
        %v814 = vmax.f32 %v744, 0.0
        %v815 = vmax.f32 %v749, 0.0
        %v816 = vmax.f32 %v752, 0.0
        %v817 = vmax.f32 %v757, 0.0
        %v818 = vmax.f32 %v760, 0.0
        %v819 = vmax.f32 %v765, 0.0
        %v820 = vmax.f32 %v768, 0.0
        %v821 = vmax.f32 %v773, 0.0
        %v822 = vmax.f32 %v776, 0.0
        %v823 = vmax.f32 %v781, 0.0
        %v824 = vmax.f32 %v784, 0.0
        %v825 = vmax.f32 %v789, 0.0
        %v826 = vmax.f32 %v792, 0.0
        %vm827 = vcmask 64512
        %828 = vst.msk [vmem:[#allocation2] sm:$0xff] %vm827, 0
        %829 = vst.msk [vmem:[#allocation2 + $0x8] sm:$0xff] %vm827, 0
        %s830 = scalar_lea.vmem [#allocation2], 272
        %831 = vst.msk [vmem:[%s830] sm:$0xff] %vm827, 0
        %832 = vst.msk [vmem:[%s830 + $0x8] sm:$0xff] %vm827, 0
        %s833 = scalar_lea.vmem [#allocation2], 16
        %vm834 = vcmask 60419
        %vm835 = vsmask.f32 7950
        %vm836 = vmand %vm834, %vm835
        %v837 = vld [vmem:[%s833] sm:$0x8]
        %v838 = vsel %vm836, 0, %v837
        %839 = vst [vmem:[%s833] sm:$0x8] %v838
        %v840 = vld [vmem:[%s833 + $0x10] sm:$0x8]
        %v841 = vsel %vm836, 0, %v840
        %842 = vst [vmem:[%s833 + $0x10] sm:$0x8] %v841
        %v843 = vld [vmem:[%s833 + $0x20] sm:$0x8]
        %v844 = vsel %vm836, 0, %v843
        %845 = vst [vmem:[%s833 + $0x20] sm:$0x8] %v844
        %v846 = vld [vmem:[%s833 + $0x30] sm:$0x8]
        %v847 = vsel %vm836, 0, %v846
        %848 = vst [vmem:[%s833 + $0x30] sm:$0x8] %v847
        %v849 = vld [vmem:[%s833 + $0x40] sm:$0x8]
        %v850 = vsel %vm836, 0, %v849
        %851 = vst [vmem:[%s833 + $0x40] sm:$0x8] %v850
        %v852 = vld [vmem:[%s833 + $0x50] sm:$0x8]
        %v853 = vsel %vm836, 0, %v852
        %854 = vst [vmem:[%s833 + $0x50] sm:$0x8] %v853
        %v855 = vld [vmem:[%s833 + $0x60] sm:$0x8]
        %v856 = vsel %vm836, 0, %v855
        %857 = vst [vmem:[%s833 + $0x60] sm:$0x8] %v856
        %v858 = vld [vmem:[%s833 + $0x70] sm:$0x8]
        %v859 = vsel %vm836, 0, %v858
        %860 = vst [vmem:[%s833 + $0x70] sm:$0x8] %v859
        %v861 = vld [vmem:[%s833 + $0x80] sm:$0x8]
        %v862 = vsel %vm836, 0, %v861
        %863 = vst [vmem:[%s833 + $0x80] sm:$0x8] %v862
        %v864 = vld [vmem:[%s833 + $0x90] sm:$0x8]
        %v865 = vsel %vm836, 0, %v864
        %866 = vst [vmem:[%s833 + $0x90] sm:$0x8] %v865
        %v867 = vld [vmem:[%s833 + $0xa0] sm:$0x8]
        %v868 = vsel %vm836, 0, %v867
        %869 = vst [vmem:[%s833 + $0xa0] sm:$0x8] %v868
        %v870 = vld [vmem:[%s833 + $0xb0] sm:$0x8]
        %v871 = vsel %vm836, 0, %v870
        %872 = vst [vmem:[%s833 + $0xb0] sm:$0x8] %v871
        %v873 = vld [vmem:[%s833 + $0xc0] sm:$0x8]
        %v874 = vsel %vm836, 0, %v873
        %875 = vst [vmem:[%s833 + $0xc0] sm:$0x8] %v874
        %v876 = vld [vmem:[%s833 + $0xd0] sm:$0x8]
        %v877 = vsel %vm836, 0, %v876
        %878 = vst [vmem:[%s833 + $0xd0] sm:$0x8] %v877
        %v879 = vld [vmem:[%s833 + $0xe0] sm:$0x8]
        %v880 = vsel %vm836, 0, %v879
        %881 = vst [vmem:[%s833 + $0xe0] sm:$0x8] %v880
        %v882 = vld [vmem:[%s833 + $0xf0] sm:$0x8]
        %v883 = vsel %vm836, 0, %v882
        %884 = vst [vmem:[%s833 + $0xf0] sm:$0x8] %v883
        %vm885 = vcmask 61444
        %vm886 = vsmask.f32 4352
        %vm887 = vmand %vm885, %vm886
        %v888 = vld [vmem:[%s833 + $0x8] sm:$0x10]
        %v889 = vsel %vm887, 0, %v888
        %890 = vst [vmem:[%s833 + $0x8] sm:$0x10] %v889
        %v891 = vld [vmem:[%s833 + $0x18] sm:$0x10]
        %v892 = vsel %vm887, 0, %v891
        %893 = vst [vmem:[%s833 + $0x18] sm:$0x10] %v892
        %v894 = vld [vmem:[%s833 + $0x28] sm:$0x10]
        %v895 = vsel %vm887, 0, %v894
        %896 = vst [vmem:[%s833 + $0x28] sm:$0x10] %v895
        %v897 = vld [vmem:[%s833 + $0x38] sm:$0x10]
        %v898 = vsel %vm887, 0, %v897
        %899 = vst [vmem:[%s833 + $0x38] sm:$0x10] %v898
        %v900 = vld [vmem:[%s833 + $0x48] sm:$0x10]
        %v901 = vsel %vm887, 0, %v900
        %902 = vst [vmem:[%s833 + $0x48] sm:$0x10] %v901
        %v903 = vld [vmem:[%s833 + $0x58] sm:$0x10]
        %v904 = vsel %vm887, 0, %v903
        %905 = vst [vmem:[%s833 + $0x58] sm:$0x10] %v904
        %v906 = vld [vmem:[%s833 + $0x68] sm:$0x10]
        %v907 = vsel %vm887, 0, %v906
        %908 = vst [vmem:[%s833 + $0x68] sm:$0x10] %v907
        %v909 = vld [vmem:[%s833 + $0x78] sm:$0x10]
        %v910 = vsel %vm887, 0, %v909
        %911 = vst [vmem:[%s833 + $0x78] sm:$0x10] %v910
        %v912 = vld [vmem:[%s833 + $0x88] sm:$0x10]
        %v913 = vsel %vm887, 0, %v912
        %914 = vst [vmem:[%s833 + $0x88] sm:$0x10] %v913
        %v915 = vld [vmem:[%s833 + $0x98] sm:$0x10]
        %v916 = vsel %vm887, 0, %v915
        %917 = vst [vmem:[%s833 + $0x98] sm:$0x10] %v916
        %v918 = vld [vmem:[%s833 + $0xa8] sm:$0x10]
        %v919 = vsel %vm887, 0, %v918
        %920 = vst [vmem:[%s833 + $0xa8] sm:$0x10] %v919
        %v921 = vld [vmem:[%s833 + $0xb8] sm:$0x10]
        %v922 = vsel %vm887, 0, %v921
        %923 = vst [vmem:[%s833 + $0xb8] sm:$0x10] %v922
        %v924 = vld [vmem:[%s833 + $0xc8] sm:$0x10]
        %v925 = vsel %vm887, 0, %v924
        %926 = vst [vmem:[%s833 + $0xc8] sm:$0x10] %v925
        %v927 = vld [vmem:[%s833 + $0xd8] sm:$0x10]
        %v928 = vsel %vm887, 0, %v927
        %929 = vst [vmem:[%s833 + $0xd8] sm:$0x10] %v928
        %v930 = vld [vmem:[%s833 + $0xe8] sm:$0x10]
        %v931 = vsel %vm887, 0, %v930
        %932 = vst [vmem:[%s833 + $0xe8] sm:$0x10] %v931
        %v933 = vld [vmem:[%s833 + $0xf8] sm:$0x10]
        %v934 = vsel %vm887, 0, %v933
        %935 = vst [vmem:[%s833 + $0xf8] sm:$0x10] %v934
        %v936 = vpack.c.bf16 %v796, %v795
        %v937 = vpack.c.bf16 %v798, %v797
        %v938 = vpack.c.bf16 %v800, %v799
        %v939 = vpack.c.bf16 %v802, %v801
        %v940 = vpack.c.bf16 %v804, %v803
        %v941 = vpack.c.bf16 %v806, %v805
        %v942 = vpack.c.bf16 %v808, %v807
        %v943 = vpack.c.bf16 %v810, %v809
        %v944 = vpack.c.bf16 %v812, %v811
        %v945 = vpack.c.bf16 %v814, %v813
        %v946 = vpack.c.bf16 %v816, %v815
        %v947 = vpack.c.bf16 %v818, %v817
        %v948 = vpack.c.bf16 %v820, %v819
        %v949 = vpack.c.bf16 %v822, %v821
        %v950 = vpack.c.bf16 %v824, %v823
        %v951 = vpack.c.bf16 %v826, %v825
        %v968 = vrot.slane %v936, 4
        %v969 = vrot.slane %v937, 4
        %v970 = vrot.slane %v938, 4
        %v971 = vrot.slane %v939, 4
        %v972 = vrot.slane %v940, 4
        %v973 = vrot.slane %v941, 4
        %v974 = vrot.slane %v942, 4
        %v975 = vrot.slane %v943, 4
        %v976 = vrot.slane %v944, 4
        %v977 = vrot.slane %v945, 4
        %v978 = vrot.slane %v946, 4
        %v979 = vrot.slane %v947, 4
        %v980 = vrot.slane %v948, 4
        %v981 = vrot.slane %v949, 4
        %v982 = vrot.slane %v950, 4
        %v983 = vrot.slane %v951, 4
        %vm1000 = vcmask 64516
        %1001 = vst.msk [vmem:[%s833] sm:$0xf0] %vm1000, %v968
        %vm1002 = vcmask 60416
        %1003 = vst.msk [vmem:[%s833 + $0x8] sm:$0xf] %vm1002, %v968
        %1004 = vst.msk [vmem:[%s833 + $0x10] sm:$0xf0] %vm1000, %v969
        %1005 = vst.msk [vmem:[%s833 + $0x18] sm:$0xf] %vm1002, %v969
        %1006 = vst.msk [vmem:[%s833 + $0x20] sm:$0xf0] %vm1000, %v970
        %1007 = vst.msk [vmem:[%s833 + $0x28] sm:$0xf] %vm1002, %v970
        %1008 = vst.msk [vmem:[%s833 + $0x30] sm:$0xf0] %vm1000, %v971
        %1009 = vst.msk [vmem:[%s833 + $0x38] sm:$0xf] %vm1002, %v971
        %1010 = vst.msk [vmem:[%s833 + $0x40] sm:$0xf0] %vm1000, %v972
        %1011 = vst.msk [vmem:[%s833 + $0x48] sm:$0xf] %vm1002, %v972
        %1012 = vst.msk [vmem:[%s833 + $0x50] sm:$0xf0] %vm1000, %v973
        %1013 = vst.msk [vmem:[%s833 + $0x58] sm:$0xf] %vm1002, %v973
        %1014 = vst.msk [vmem:[%s833 + $0x60] sm:$0xf0] %vm1000, %v974
        %1015 = vst.msk [vmem:[%s833 + $0x68] sm:$0xf] %vm1002, %v974
        %1016 = vst.msk [vmem:[%s833 + $0x70] sm:$0xf0] %vm1000, %v975
        %1017 = vst.msk [vmem:[%s833 + $0x78] sm:$0xf] %vm1002, %v975
        %1018 = vst.msk [vmem:[%s833 + $0x80] sm:$0xf0] %vm1000, %v976
        %1019 = vst.msk [vmem:[%s833 + $0x88] sm:$0xf] %vm1002, %v976
        %1020 = vst.msk [vmem:[%s833 + $0x90] sm:$0xf0] %vm1000, %v977
        %1021 = vst.msk [vmem:[%s833 + $0x98] sm:$0xf] %vm1002, %v977
        %1022 = vst.msk [vmem:[%s833 + $0xa0] sm:$0xf0] %vm1000, %v978
        %1023 = vst.msk [vmem:[%s833 + $0xa8] sm:$0xf] %vm1002, %v978
        %1024 = vst.msk [vmem:[%s833 + $0xb0] sm:$0xf0] %vm1000, %v979
        %1025 = vst.msk [vmem:[%s833 + $0xb8] sm:$0xf] %vm1002, %v979
        %1026 = vst.msk [vmem:[%s833 + $0xc0] sm:$0xf0] %vm1000, %v980
        %1027 = vst.msk [vmem:[%s833 + $0xc8] sm:$0xf] %vm1002, %v980
        %1028 = vst.msk [vmem:[%s833 + $0xd0] sm:$0xf0] %vm1000, %v981
        %1029 = vst.msk [vmem:[%s833 + $0xd8] sm:$0xf] %vm1002, %v981
        %1030 = vst.msk [vmem:[%s833 + $0xe0] sm:$0xf0] %vm1000, %v982
        %1031 = vst.msk [vmem:[%s833 + $0xe8] sm:$0xf] %vm1002, %v982
        %1032 = vst.msk [vmem:[%s833 + $0xf0] sm:$0xf0] %vm1000, %v983
        %1033 = vst.msk [vmem:[%s833 + $0xf8] sm:$0xf] %vm1002, %v983
        %v1034 = vld [vmem:[#allocation2] sm:$0xf8]
        %v1035 = vld [vmem:[#allocation2 + $0x8] sm:$0xf]
        %v1036 = vld [vmem:[#allocation2 + $0x10] sm:$0xf8]
        %v1037 = vld [vmem:[#allocation2 + $0x18] sm:$0xf]
        %v1038 = vld [vmem:[#allocation2 + $0x20] sm:$0xf8]
        %v1039 = vld [vmem:[#allocation2 + $0x28] sm:$0xf]
        %v1040 = vld [vmem:[#allocation2 + $0x30] sm:$0xf8]
        %v1041 = vld [vmem:[#allocation2 + $0x38] sm:$0xf]
        %v1042 = vld [vmem:[#allocation2 + $0x40] sm:$0xf8]
        %v1043 = vld [vmem:[#allocation2 + $0x48] sm:$0xf]
        %v1044 = vld [vmem:[#allocation2 + $0x50] sm:$0xf8]
        %v1045 = vld [vmem:[#allocation2 + $0x58] sm:$0xf]
        %v1046 = vld [vmem:[#allocation2 + $0x60] sm:$0xf8]
        %v1047 = vld [vmem:[#allocation2 + $0x68] sm:$0xf]
        %v1048 = vld [vmem:[#allocation2 + $0x70] sm:$0xf8]
        %v1049 = vld [vmem:[#allocation2 + $0x78] sm:$0xf]
        %v1050 = vld [vmem:[#allocation2 + $0x80] sm:$0xf8]
        %v1051 = vld [vmem:[#allocation2 + $0x88] sm:$0xf]
        %v1052 = vld [vmem:[#allocation2 + $0x90] sm:$0xf8]
        %v1053 = vld [vmem:[#allocation2 + $0x98] sm:$0xf]
        %v1054 = vld [vmem:[#allocation2 + $0xa0] sm:$0xf8]
        %v1055 = vld [vmem:[#allocation2 + $0xa8] sm:$0xf]
        %v1056 = vld [vmem:[#allocation2 + $0xb0] sm:$0xf8]
        %v1057 = vld [vmem:[#allocation2 + $0xb8] sm:$0xf]
        %v1058 = vld [vmem:[#allocation2 + $0xc0] sm:$0xf8]
        %v1059 = vld [vmem:[#allocation2 + $0xc8] sm:$0xf]
        %v1060 = vld [vmem:[#allocation2 + $0xd0] sm:$0xf8]
        %v1061 = vld [vmem:[#allocation2 + $0xd8] sm:$0xf]
        %v1062 = vld [vmem:[#allocation2 + $0xe0] sm:$0xf8]
        %v1063 = vld [vmem:[#allocation2 + $0xe8] sm:$0xf]
        %v1064 = vld [vmem:[#allocation2 + $0xf0] sm:$0xf8]
        %v1065 = vld [vmem:[#allocation2 + $0xf8] sm:$0xf]
        %v1067 = vshrl.u32 %v1034, 16
        %v1069 = vrot.slane %v1067, 3
        %v1070 = vshll.u32 %v1034, 16
        %v1072 = vrot.slane %v1070, 4
        %v1073 = vor.u32 %v1069, %v1072
        %v1075 = vshrl.u32 %v1035, 16
        %v1077 = vrot.slane %v1075, 3
        %v1078 = vshll.u32 %v1035, 16
        %v1080 = vrot.slane %v1078, 4
        %v1081 = vor.u32 %v1077, %v1080
        %v1082 = vsel %vm886, %v1073, %v1081
        %v1084 = vshrl.u32 %v1036, 16
        %v1086 = vrot.slane %v1084, 3
        %v1087 = vshll.u32 %v1036, 16
        %v1089 = vrot.slane %v1087, 4
        %v1090 = vor.u32 %v1086, %v1089
        %v1092 = vshrl.u32 %v1037, 16
        %v1094 = vrot.slane %v1092, 3
        %v1095 = vshll.u32 %v1037, 16
        %v1097 = vrot.slane %v1095, 4
        %v1098 = vor.u32 %v1094, %v1097
        %v1099 = vsel %vm886, %v1090, %v1098
        %v1101 = vshrl.u32 %v1038, 16
        %v1103 = vrot.slane %v1101, 3
        %v1104 = vshll.u32 %v1038, 16
        %v1106 = vrot.slane %v1104, 4
        %v1107 = vor.u32 %v1103, %v1106
        %v1109 = vshrl.u32 %v1039, 16
        %v1111 = vrot.slane %v1109, 3
        %v1112 = vshll.u32 %v1039, 16
        %v1114 = vrot.slane %v1112, 4
        %v1115 = vor.u32 %v1111, %v1114
        %v1116 = vsel %vm886, %v1107, %v1115
        %v1118 = vshrl.u32 %v1040, 16
        %v1120 = vrot.slane %v1118, 3
        %v1121 = vshll.u32 %v1040, 16
        %v1123 = vrot.slane %v1121, 4
        %v1124 = vor.u32 %v1120, %v1123
        %v1126 = vshrl.u32 %v1041, 16
        %v1128 = vrot.slane %v1126, 3
        %v1129 = vshll.u32 %v1041, 16
        %v1131 = vrot.slane %v1129, 4
        %v1132 = vor.u32 %v1128, %v1131
        %v1133 = vsel %vm886, %v1124, %v1132
        %v1135 = vshrl.u32 %v1042, 16
        %v1137 = vrot.slane %v1135, 3
        %v1138 = vshll.u32 %v1042, 16
        %v1140 = vrot.slane %v1138, 4
        %v1141 = vor.u32 %v1137, %v1140
        %v1143 = vshrl.u32 %v1043, 16
        %v1145 = vrot.slane %v1143, 3
        %v1146 = vshll.u32 %v1043, 16
        %v1148 = vrot.slane %v1146, 4
        %v1149 = vor.u32 %v1145, %v1148
        %v1150 = vsel %vm886, %v1141, %v1149
        %v1152 = vshrl.u32 %v1044, 16
        %v1154 = vrot.slane %v1152, 3
        %v1155 = vshll.u32 %v1044, 16
        %v1157 = vrot.slane %v1155, 4
        %v1158 = vor.u32 %v1154, %v1157
        %v1160 = vshrl.u32 %v1045, 16
        %v1162 = vrot.slane %v1160, 3
        %v1163 = vshll.u32 %v1045, 16
        %v1165 = vrot.slane %v1163, 4
        %v1166 = vor.u32 %v1162, %v1165
        %v1167 = vsel %vm886, %v1158, %v1166
        %v1169 = vshrl.u32 %v1046, 16
        %v1171 = vrot.slane %v1169, 3
        %v1172 = vshll.u32 %v1046, 16
        %v1174 = vrot.slane %v1172, 4
        %v1175 = vor.u32 %v1171, %v1174
        %v1177 = vshrl.u32 %v1047, 16
        %v1179 = vrot.slane %v1177, 3
        %v1180 = vshll.u32 %v1047, 16
        %v1182 = vrot.slane %v1180, 4
        %v1183 = vor.u32 %v1179, %v1182
        %v1184 = vsel %vm886, %v1175, %v1183
        %v1186 = vshrl.u32 %v1048, 16
        %v1188 = vrot.slane %v1186, 3
        %v1189 = vshll.u32 %v1048, 16
        %v1191 = vrot.slane %v1189, 4
        %v1192 = vor.u32 %v1188, %v1191
        %v1194 = vshrl.u32 %v1049, 16
        %v1196 = vrot.slane %v1194, 3
        %v1197 = vshll.u32 %v1049, 16
        %v1199 = vrot.slane %v1197, 4
        %v1200 = vor.u32 %v1196, %v1199
        %v1201 = vsel %vm886, %v1192, %v1200
        %v1203 = vshrl.u32 %v1050, 16
        %v1205 = vrot.slane %v1203, 3
        %v1206 = vshll.u32 %v1050, 16
        %v1208 = vrot.slane %v1206, 4
        %v1209 = vor.u32 %v1205, %v1208
        %v1211 = vshrl.u32 %v1051, 16
        %v1213 = vrot.slane %v1211, 3
        %v1214 = vshll.u32 %v1051, 16
        %v1216 = vrot.slane %v1214, 4
        %v1217 = vor.u32 %v1213, %v1216
        %v1218 = vsel %vm886, %v1209, %v1217
        %v1220 = vshrl.u32 %v1052, 16
        %v1222 = vrot.slane %v1220, 3
        %v1223 = vshll.u32 %v1052, 16
        %v1225 = vrot.slane %v1223, 4
        %v1226 = vor.u32 %v1222, %v1225
        %v1228 = vshrl.u32 %v1053, 16
        %v1230 = vrot.slane %v1228, 3
        %v1231 = vshll.u32 %v1053, 16
        %v1233 = vrot.slane %v1231, 4
        %v1234 = vor.u32 %v1230, %v1233
        %v1235 = vsel %vm886, %v1226, %v1234
        %v1237 = vshrl.u32 %v1054, 16
        %v1239 = vrot.slane %v1237, 3
        %v1240 = vshll.u32 %v1054, 16
        %v1242 = vrot.slane %v1240, 4
        %v1243 = vor.u32 %v1239, %v1242
        %v1245 = vshrl.u32 %v1055, 16
        %v1247 = vrot.slane %v1245, 3
        %v1248 = vshll.u32 %v1055, 16
        %v1250 = vrot.slane %v1248, 4
        %v1251 = vor.u32 %v1247, %v1250
        %v1252 = vsel %vm886, %v1243, %v1251
        %v1254 = vshrl.u32 %v1056, 16
        %v1256 = vrot.slane %v1254, 3
        %v1257 = vshll.u32 %v1056, 16
        %v1259 = vrot.slane %v1257, 4
        %v1260 = vor.u32 %v1256, %v1259
        %v1262 = vshrl.u32 %v1057, 16
        %v1264 = vrot.slane %v1262, 3
        %v1265 = vshll.u32 %v1057, 16
        %v1267 = vrot.slane %v1265, 4
        %v1268 = vor.u32 %v1264, %v1267
        %v1269 = vsel %vm886, %v1260, %v1268
        %v1271 = vshrl.u32 %v1058, 16
        %v1273 = vrot.slane %v1271, 3
        %v1274 = vshll.u32 %v1058, 16
        %v1276 = vrot.slane %v1274, 4
        %v1277 = vor.u32 %v1273, %v1276
        %v1279 = vshrl.u32 %v1059, 16
        %v1281 = vrot.slane %v1279, 3
        %v1282 = vshll.u32 %v1059, 16
        %v1284 = vrot.slane %v1282, 4
        %v1285 = vor.u32 %v1281, %v1284
        %v1286 = vsel %vm886, %v1277, %v1285
        %v1288 = vshrl.u32 %v1060, 16
        %v1290 = vrot.slane %v1288, 3
        %v1291 = vshll.u32 %v1060, 16
        %v1293 = vrot.slane %v1291, 4
        %v1294 = vor.u32 %v1290, %v1293
        %v1296 = vshrl.u32 %v1061, 16
        %v1298 = vrot.slane %v1296, 3
        %v1299 = vshll.u32 %v1061, 16
        %v1301 = vrot.slane %v1299, 4
        %v1302 = vor.u32 %v1298, %v1301
        %v1303 = vsel %vm886, %v1294, %v1302
        %v1305 = vshrl.u32 %v1062, 16
        %v1307 = vrot.slane %v1305, 3
        %v1308 = vshll.u32 %v1062, 16
        %v1310 = vrot.slane %v1308, 4
        %v1311 = vor.u32 %v1307, %v1310
        %v1313 = vshrl.u32 %v1063, 16
        %v1315 = vrot.slane %v1313, 3
        %v1316 = vshll.u32 %v1063, 16
        %v1318 = vrot.slane %v1316, 4
        %v1319 = vor.u32 %v1315, %v1318
        %v1320 = vsel %vm886, %v1311, %v1319
        %v1322 = vshrl.u32 %v1064, 16
        %v1324 = vrot.slane %v1322, 3
        %v1325 = vshll.u32 %v1064, 16
        %v1327 = vrot.slane %v1325, 4
        %v1328 = vor.u32 %v1324, %v1327
        %v1330 = vshrl.u32 %v1065, 16
        %v1332 = vrot.slane %v1330, 3
        %v1333 = vshll.u32 %v1065, 16
        %v1335 = vrot.slane %v1333, 4
        %v1336 = vor.u32 %v1332, %v1335
        %v1337 = vsel %vm886, %v1328, %v1336
        %1354 = vst.msk [vmem:[#allocation3] sm:$0xff] %vm827, %v1082
        %1355 = vst.msk [vmem:[#allocation3 + $0x8] sm:$0xff] %vm827, %v1099
        %1356 = vst.msk [vmem:[#allocation3 + $0x10] sm:$0xff] %vm827, %v1116
        %1357 = vst.msk [vmem:[#allocation3 + $0x18] sm:$0xff] %vm827, %v1133
        %1358 = vst.msk [vmem:[#allocation3 + $0x20] sm:$0xff] %vm827, %v1150
        %1359 = vst.msk [vmem:[#allocation3 + $0x28] sm:$0xff] %vm827, %v1167
        %1360 = vst.msk [vmem:[#allocation3 + $0x30] sm:$0xff] %vm827, %v1184
        %1361 = vst.msk [vmem:[#allocation3 + $0x38] sm:$0xff] %vm827, %v1201
        %1362 = vst.msk [vmem:[#allocation3 + $0x40] sm:$0xff] %vm827, %v1218
        %1363 = vst.msk [vmem:[#allocation3 + $0x48] sm:$0xff] %vm827, %v1235
        %1364 = vst.msk [vmem:[#allocation3 + $0x50] sm:$0xff] %vm827, %v1252
        %1365 = vst.msk [vmem:[#allocation3 + $0x58] sm:$0xff] %vm827, %v1269
        %1366 = vst.msk [vmem:[#allocation3 + $0x60] sm:$0xff] %vm827, %v1286
        %1367 = vst.msk [vmem:[#allocation3 + $0x68] sm:$0xff] %vm827, %v1303
        %1368 = vst.msk [vmem:[#allocation3 + $0x70] sm:$0xff] %vm827, %v1320
        %1369 = vst.msk [vmem:[#allocation3 + $0x78] sm:$0xff] %vm827, %v1337
        %v1370 = vld [vmem:[#allocation2] sm:$0xf0]
        %v1371 = vld [vmem:[#allocation2 + $0x8] sm:$0xf]
        %v1372 = vld [vmem:[#allocation2 + $0x10] sm:$0xf0]
        %v1373 = vld [vmem:[#allocation2 + $0x18] sm:$0xf]
        %v1374 = vld [vmem:[#allocation2 + $0x20] sm:$0xf0]
        %v1375 = vld [vmem:[#allocation2 + $0x28] sm:$0xf]
        %v1376 = vld [vmem:[#allocation2 + $0x30] sm:$0xf0]
        %v1377 = vld [vmem:[#allocation2 + $0x38] sm:$0xf]
        %v1378 = vld [vmem:[#allocation2 + $0x40] sm:$0xf0]
        %v1379 = vld [vmem:[#allocation2 + $0x48] sm:$0xf]
        %v1380 = vld [vmem:[#allocation2 + $0x50] sm:$0xf0]
        %v1381 = vld [vmem:[#allocation2 + $0x58] sm:$0xf]
        %v1382 = vld [vmem:[#allocation2 + $0x60] sm:$0xf0]
        %v1383 = vld [vmem:[#allocation2 + $0x68] sm:$0xf]
        %v1384 = vld [vmem:[#allocation2 + $0x70] sm:$0xf0]
        %v1385 = vld [vmem:[#allocation2 + $0x78] sm:$0xf]
        %v1386 = vld [vmem:[#allocation2 + $0x80] sm:$0xf0]
        %v1387 = vld [vmem:[#allocation2 + $0x88] sm:$0xf]
        %v1388 = vld [vmem:[#allocation2 + $0x90] sm:$0xf0]
        %v1389 = vld [vmem:[#allocation2 + $0x98] sm:$0xf]
        %v1390 = vld [vmem:[#allocation2 + $0xa0] sm:$0xf0]
        %v1391 = vld [vmem:[#allocation2 + $0xa8] sm:$0xf]
        %v1392 = vld [vmem:[#allocation2 + $0xb0] sm:$0xf0]
        %v1393 = vld [vmem:[#allocation2 + $0xb8] sm:$0xf]
        %v1394 = vld [vmem:[#allocation2 + $0xc0] sm:$0xf0]
        %v1395 = vld [vmem:[#allocation2 + $0xc8] sm:$0xf]
        %v1396 = vld [vmem:[#allocation2 + $0xd0] sm:$0xf0]
        %v1397 = vld [vmem:[#allocation2 + $0xd8] sm:$0xf]
        %v1398 = vld [vmem:[#allocation2 + $0xe0] sm:$0xf0]
        %v1399 = vld [vmem:[#allocation2 + $0xe8] sm:$0xf]
        %v1400 = vld [vmem:[#allocation2 + $0xf0] sm:$0xf0]
        %v1401 = vld [vmem:[#allocation2 + $0xf8] sm:$0xf]
        %vm1434 = vcmask 1043456
        %v1435 = vrot.slane %v1370, 4
        %v1436 = vrot.slane %v1371, 4
        %v1437 = vsel %vm1434, %v1435, %v1436
        %v1438 = vrot.slane %v1372, 4
        %v1439 = vrot.slane %v1373, 4
        %v1440 = vsel %vm1434, %v1438, %v1439
        %v1441 = vrot.slane %v1374, 4
        %v1442 = vrot.slane %v1375, 4
        %v1443 = vsel %vm1434, %v1441, %v1442
        %v1444 = vrot.slane %v1376, 4
        %v1445 = vrot.slane %v1377, 4
        %v1446 = vsel %vm1434, %v1444, %v1445
        %v1447 = vrot.slane %v1378, 4
        %v1448 = vrot.slane %v1379, 4
        %v1449 = vsel %vm1434, %v1447, %v1448
        %v1450 = vrot.slane %v1380, 4
        %v1451 = vrot.slane %v1381, 4
        %v1452 = vsel %vm1434, %v1450, %v1451
        %v1453 = vrot.slane %v1382, 4
        %v1454 = vrot.slane %v1383, 4
        %v1455 = vsel %vm1434, %v1453, %v1454
        %v1456 = vrot.slane %v1384, 4
        %v1457 = vrot.slane %v1385, 4
        %v1458 = vsel %vm1434, %v1456, %v1457
        %v1459 = vrot.slane %v1386, 4
        %v1460 = vrot.slane %v1387, 4
        %v1461 = vsel %vm1434, %v1459, %v1460
        %v1462 = vrot.slane %v1388, 4
        %v1463 = vrot.slane %v1389, 4
        %v1464 = vsel %vm1434, %v1462, %v1463
        %v1465 = vrot.slane %v1390, 4
        %v1466 = vrot.slane %v1391, 4
        %v1467 = vsel %vm1434, %v1465, %v1466
        %v1468 = vrot.slane %v1392, 4
        %v1469 = vrot.slane %v1393, 4
        %v1470 = vsel %vm1434, %v1468, %v1469
        %v1471 = vrot.slane %v1394, 4
        %v1472 = vrot.slane %v1395, 4
        %v1473 = vsel %vm1434, %v1471, %v1472
        %v1474 = vrot.slane %v1396, 4
        %v1475 = vrot.slane %v1397, 4
        %v1476 = vsel %vm1434, %v1474, %v1475
        %v1477 = vrot.slane %v1398, 4
        %v1478 = vrot.slane %v1399, 4
        %v1479 = vsel %vm1434, %v1477, %v1478
        %v1480 = vrot.slane %v1400, 4
        %v1481 = vrot.slane %v1401, 4
        %v1482 = vsel %vm1434, %v1480, %v1481
        %1483 = vrot.lane.b32.xlu0 %v1437, 8
        %v1484 = vpop.permute.xlu0 %1483
        %1485 = vrot.lane.b32.xlu0 %v1440, 8
        %v1486 = vpop.permute.xlu0 %1485
        %1487 = vrot.lane.b32.xlu0 %v1443, 8
        %v1488 = vpop.permute.xlu0 %1487
        %1489 = vrot.lane.b32.xlu0 %v1446, 8
        %v1490 = vpop.permute.xlu0 %1489
        %1491 = vrot.lane.b32.xlu0 %v1449, 8
        %v1492 = vpop.permute.xlu0 %1491
        %1493 = vrot.lane.b32.xlu0 %v1452, 8
        %v1494 = vpop.permute.xlu0 %1493
        %1495 = vrot.lane.b32.xlu0 %v1455, 8
        %v1496 = vpop.permute.xlu0 %1495
        %1497 = vrot.lane.b32.xlu0 %v1458, 8
        %v1498 = vpop.permute.xlu0 %1497
        %1499 = vrot.lane.b32.xlu0 %v1461, 8
        %v1500 = vpop.permute.xlu0 %1499
        %1501 = vrot.lane.b32.xlu0 %v1464, 8
        %v1502 = vpop.permute.xlu0 %1501
        %1503 = vrot.lane.b32.xlu0 %v1467, 8
        %v1504 = vpop.permute.xlu0 %1503
        %1505 = vrot.lane.b32.xlu0 %v1470, 8
        %v1506 = vpop.permute.xlu0 %1505
        %1507 = vrot.lane.b32.xlu0 %v1473, 8
        %v1508 = vpop.permute.xlu0 %1507
        %1509 = vrot.lane.b32.xlu0 %v1476, 8
        %v1510 = vpop.permute.xlu0 %1509
        %1511 = vrot.lane.b32.xlu0 %v1479, 8
        %v1512 = vpop.permute.xlu0 %1511
        %1513 = vrot.lane.b32.xlu0 %v1482, 8
        %v1514 = vpop.permute.xlu0 %1513
        %vm1531 = vcmask 130112
        %1532 = vst.msk [vmem:[#allocation3] sm:$0xff] %vm1531, %v1484
        %1533 = vst.msk [vmem:[#allocation3 + $0x8] sm:$0xff] %vm1531, %v1486
        %1534 = vst.msk [vmem:[#allocation3 + $0x10] sm:$0xff] %vm1531, %v1488
        %1535 = vst.msk [vmem:[#allocation3 + $0x18] sm:$0xff] %vm1531, %v1490
        %1536 = vst.msk [vmem:[#allocation3 + $0x20] sm:$0xff] %vm1531, %v1492
        %1537 = vst.msk [vmem:[#allocation3 + $0x28] sm:$0xff] %vm1531, %v1494
        %1538 = vst.msk [vmem:[#allocation3 + $0x30] sm:$0xff] %vm1531, %v1496
        %1539 = vst.msk [vmem:[#allocation3 + $0x38] sm:$0xff] %vm1531, %v1498
        %1540 = vst.msk [vmem:[#allocation3 + $0x40] sm:$0xff] %vm1531, %v1500
        %1541 = vst.msk [vmem:[#allocation3 + $0x48] sm:$0xff] %vm1531, %v1502
        %1542 = vst.msk [vmem:[#allocation3 + $0x50] sm:$0xff] %vm1531, %v1504
        %1543 = vst.msk [vmem:[#allocation3 + $0x58] sm:$0xff] %vm1531, %v1506
        %1544 = vst.msk [vmem:[#allocation3 + $0x60] sm:$0xff] %vm1531, %v1508
        %1545 = vst.msk [vmem:[#allocation3 + $0x68] sm:$0xff] %vm1531, %v1510
        %1546 = vst.msk [vmem:[#allocation3 + $0x70] sm:$0xff] %vm1531, %v1512
        %1547 = vst.msk [vmem:[#allocation3 + $0x78] sm:$0xff] %vm1531, %v1514
        %v1548 = vld [vmem:[#allocation2] sm:$0xf0]
        %v1549 = vld [vmem:[#allocation2 + $0x8] sm:$0x1f]
        %v1550 = vld [vmem:[#allocation2 + $0x10] sm:$0xf0]
        %v1551 = vld [vmem:[#allocation2 + $0x18] sm:$0x1f]
        %v1552 = vld [vmem:[#allocation2 + $0x20] sm:$0xf0]
        %v1553 = vld [vmem:[#allocation2 + $0x28] sm:$0x1f]
        %v1554 = vld [vmem:[#allocation2 + $0x30] sm:$0xf0]
        %v1555 = vld [vmem:[#allocation2 + $0x38] sm:$0x1f]
        %v1556 = vld [vmem:[#allocation2 + $0x40] sm:$0xf0]
        %v1557 = vld [vmem:[#allocation2 + $0x48] sm:$0x1f]
        %v1558 = vld [vmem:[#allocation2 + $0x50] sm:$0xf0]
        %v1559 = vld [vmem:[#allocation2 + $0x58] sm:$0x1f]
        %v1560 = vld [vmem:[#allocation2 + $0x60] sm:$0xf0]
        %v1561 = vld [vmem:[#allocation2 + $0x68] sm:$0x1f]
        %v1562 = vld [vmem:[#allocation2 + $0x70] sm:$0xf0]
        %v1563 = vld [vmem:[#allocation2 + $0x78] sm:$0x1f]
        %v1564 = vld [vmem:[#allocation2 + $0x80] sm:$0xf0]
        %v1565 = vld [vmem:[#allocation2 + $0x88] sm:$0x1f]
        %v1566 = vld [vmem:[#allocation2 + $0x90] sm:$0xf0]
        %v1567 = vld [vmem:[#allocation2 + $0x98] sm:$0x1f]
        %v1568 = vld [vmem:[#allocation2 + $0xa0] sm:$0xf0]
        %v1569 = vld [vmem:[#allocation2 + $0xa8] sm:$0x1f]
        %v1570 = vld [vmem:[#allocation2 + $0xb0] sm:$0xf0]
        %v1571 = vld [vmem:[#allocation2 + $0xb8] sm:$0x1f]
        %v1572 = vld [vmem:[#allocation2 + $0xc0] sm:$0xf0]
        %v1573 = vld [vmem:[#allocation2 + $0xc8] sm:$0x1f]
        %v1574 = vld [vmem:[#allocation2 + $0xd0] sm:$0xf0]
        %v1575 = vld [vmem:[#allocation2 + $0xd8] sm:$0x1f]
        %v1576 = vld [vmem:[#allocation2 + $0xe0] sm:$0xf0]
        %v1577 = vld [vmem:[#allocation2 + $0xe8] sm:$0x1f]
        %v1578 = vld [vmem:[#allocation2 + $0xf0] sm:$0xf0]
        %v1579 = vld [vmem:[#allocation2 + $0xf8] sm:$0x1f]
        %vm1580 = vsmask.f32 3328
        %v1582 = vshrl.u32 %v1548, 16
        %v1584 = vrot.slane %v1582, 4
        %v1585 = vshll.u32 %v1548, 16
        %v1587 = vrot.slane %v1585, 5
        %v1588 = vor.u32 %v1584, %v1587
        %v1590 = vshrl.u32 %v1549, 16
        %v1592 = vrot.slane %v1590, 4
        %v1593 = vshll.u32 %v1549, 16
        %v1595 = vrot.slane %v1593, 5
        %v1596 = vor.u32 %v1592, %v1595
        %v1597 = vsel %vm1580, %v1588, %v1596
        %v1599 = vshrl.u32 %v1550, 16
        %v1601 = vrot.slane %v1599, 4
        %v1602 = vshll.u32 %v1550, 16
        %v1604 = vrot.slane %v1602, 5
        %v1605 = vor.u32 %v1601, %v1604
        %v1607 = vshrl.u32 %v1551, 16
        %v1609 = vrot.slane %v1607, 4
        %v1610 = vshll.u32 %v1551, 16
        %v1612 = vrot.slane %v1610, 5
        %v1613 = vor.u32 %v1609, %v1612
        %v1614 = vsel %vm1580, %v1605, %v1613
        %v1616 = vshrl.u32 %v1552, 16
        %v1618 = vrot.slane %v1616, 4
        %v1619 = vshll.u32 %v1552, 16
        %v1621 = vrot.slane %v1619, 5
        %v1622 = vor.u32 %v1618, %v1621
        %v1624 = vshrl.u32 %v1553, 16
        %v1626 = vrot.slane %v1624, 4
        %v1627 = vshll.u32 %v1553, 16
        %v1629 = vrot.slane %v1627, 5
        %v1630 = vor.u32 %v1626, %v1629
        %v1631 = vsel %vm1580, %v1622, %v1630
        %v1633 = vshrl.u32 %v1554, 16
        %v1635 = vrot.slane %v1633, 4
        %v1636 = vshll.u32 %v1554, 16
        %v1638 = vrot.slane %v1636, 5
        %v1639 = vor.u32 %v1635, %v1638
        %v1641 = vshrl.u32 %v1555, 16
        %v1643 = vrot.slane %v1641, 4
        %v1644 = vshll.u32 %v1555, 16
        %v1646 = vrot.slane %v1644, 5
        %v1647 = vor.u32 %v1643, %v1646
        %v1648 = vsel %vm1580, %v1639, %v1647
        %v1650 = vshrl.u32 %v1556, 16
        %v1652 = vrot.slane %v1650, 4
        %v1653 = vshll.u32 %v1556, 16
        %v1655 = vrot.slane %v1653, 5
        %v1656 = vor.u32 %v1652, %v1655
        %v1658 = vshrl.u32 %v1557, 16
        %v1660 = vrot.slane %v1658, 4
        %v1661 = vshll.u32 %v1557, 16
        %v1663 = vrot.slane %v1661, 5
        %v1664 = vor.u32 %v1660, %v1663
        %v1665 = vsel %vm1580, %v1656, %v1664
        %v1667 = vshrl.u32 %v1558, 16
        %v1669 = vrot.slane %v1667, 4
        %v1670 = vshll.u32 %v1558, 16
        %v1672 = vrot.slane %v1670, 5
        %v1673 = vor.u32 %v1669, %v1672
        %v1675 = vshrl.u32 %v1559, 16
        %v1677 = vrot.slane %v1675, 4
        %v1678 = vshll.u32 %v1559, 16
        %v1680 = vrot.slane %v1678, 5
        %v1681 = vor.u32 %v1677, %v1680
        %v1682 = vsel %vm1580, %v1673, %v1681
        %v1684 = vshrl.u32 %v1560, 16
        %v1686 = vrot.slane %v1684, 4
        %v1687 = vshll.u32 %v1560, 16
        %v1689 = vrot.slane %v1687, 5
        %v1690 = vor.u32 %v1686, %v1689
        %v1692 = vshrl.u32 %v1561, 16
        %v1694 = vrot.slane %v1692, 4
        %v1695 = vshll.u32 %v1561, 16
        %v1697 = vrot.slane %v1695, 5
        %v1698 = vor.u32 %v1694, %v1697
        %v1699 = vsel %vm1580, %v1690, %v1698
        %v1701 = vshrl.u32 %v1562, 16
        %v1703 = vrot.slane %v1701, 4
        %v1704 = vshll.u32 %v1562, 16
        %v1706 = vrot.slane %v1704, 5
        %v1707 = vor.u32 %v1703, %v1706
        %v1709 = vshrl.u32 %v1563, 16
        %v1711 = vrot.slane %v1709, 4
        %v1712 = vshll.u32 %v1563, 16
        %v1714 = vrot.slane %v1712, 5
        %v1715 = vor.u32 %v1711, %v1714
        %v1716 = vsel %vm1580, %v1707, %v1715
        %v1718 = vshrl.u32 %v1564, 16
        %v1720 = vrot.slane %v1718, 4
        %v1721 = vshll.u32 %v1564, 16
        %v1723 = vrot.slane %v1721, 5
        %v1724 = vor.u32 %v1720, %v1723
        %v1726 = vshrl.u32 %v1565, 16
        %v1728 = vrot.slane %v1726, 4
        %v1729 = vshll.u32 %v1565, 16
        %v1731 = vrot.slane %v1729, 5
        %v1732 = vor.u32 %v1728, %v1731
        %v1733 = vsel %vm1580, %v1724, %v1732
        %v1735 = vshrl.u32 %v1566, 16
        %v1737 = vrot.slane %v1735, 4
        %v1738 = vshll.u32 %v1566, 16
        %v1740 = vrot.slane %v1738, 5
        %v1741 = vor.u32 %v1737, %v1740
        %v1743 = vshrl.u32 %v1567, 16
        %v1745 = vrot.slane %v1743, 4
        %v1746 = vshll.u32 %v1567, 16
        %v1748 = vrot.slane %v1746, 5
        %v1749 = vor.u32 %v1745, %v1748
        %v1750 = vsel %vm1580, %v1741, %v1749
        %v1752 = vshrl.u32 %v1568, 16
        %v1754 = vrot.slane %v1752, 4
        %v1755 = vshll.u32 %v1568, 16
        %v1757 = vrot.slane %v1755, 5
        %v1758 = vor.u32 %v1754, %v1757
        %v1760 = vshrl.u32 %v1569, 16
        %v1762 = vrot.slane %v1760, 4
        %v1763 = vshll.u32 %v1569, 16
        %v1765 = vrot.slane %v1763, 5
        %v1766 = vor.u32 %v1762, %v1765
        %v1767 = vsel %vm1580, %v1758, %v1766
        %v1769 = vshrl.u32 %v1570, 16
        %v1771 = vrot.slane %v1769, 4
        %v1772 = vshll.u32 %v1570, 16
        %v1774 = vrot.slane %v1772, 5
        %v1775 = vor.u32 %v1771, %v1774
        %v1777 = vshrl.u32 %v1571, 16
        %v1779 = vrot.slane %v1777, 4
        %v1780 = vshll.u32 %v1571, 16
        %v1782 = vrot.slane %v1780, 5
        %v1783 = vor.u32 %v1779, %v1782
        %v1784 = vsel %vm1580, %v1775, %v1783
        %v1786 = vshrl.u32 %v1572, 16
        %v1788 = vrot.slane %v1786, 4
        %v1789 = vshll.u32 %v1572, 16
        %v1791 = vrot.slane %v1789, 5
        %v1792 = vor.u32 %v1788, %v1791
        %v1794 = vshrl.u32 %v1573, 16
        %v1796 = vrot.slane %v1794, 4
        %v1797 = vshll.u32 %v1573, 16
        %v1799 = vrot.slane %v1797, 5
        %v1800 = vor.u32 %v1796, %v1799
        %v1801 = vsel %vm1580, %v1792, %v1800
        %v1803 = vshrl.u32 %v1574, 16
        %v1805 = vrot.slane %v1803, 4
        %v1806 = vshll.u32 %v1574, 16
        %v1808 = vrot.slane %v1806, 5
        %v1809 = vor.u32 %v1805, %v1808
        %v1811 = vshrl.u32 %v1575, 16
        %v1813 = vrot.slane %v1811, 4
        %v1814 = vshll.u32 %v1575, 16
        %v1816 = vrot.slane %v1814, 5
        %v1817 = vor.u32 %v1813, %v1816
        %v1818 = vsel %vm1580, %v1809, %v1817
        %v1820 = vshrl.u32 %v1576, 16
        %v1822 = vrot.slane %v1820, 4
        %v1823 = vshll.u32 %v1576, 16
        %v1825 = vrot.slane %v1823, 5
        %v1826 = vor.u32 %v1822, %v1825
        %v1828 = vshrl.u32 %v1577, 16
        %v1830 = vrot.slane %v1828, 4
        %v1831 = vshll.u32 %v1577, 16
        %v1833 = vrot.slane %v1831, 5
        %v1834 = vor.u32 %v1830, %v1833
        %v1835 = vsel %vm1580, %v1826, %v1834
        %v1837 = vshrl.u32 %v1578, 16
        %v1839 = vrot.slane %v1837, 4
        %v1840 = vshll.u32 %v1578, 16
        %v1842 = vrot.slane %v1840, 5
        %v1843 = vor.u32 %v1839, %v1842
        %v1845 = vshrl.u32 %v1579, 16
        %v1847 = vrot.slane %v1845, 4
        %v1848 = vshll.u32 %v1579, 16
        %v1850 = vrot.slane %v1848, 5
        %v1851 = vor.u32 %v1847, %v1850
        %v1852 = vsel %vm1580, %v1843, %v1851
        %1853 = vrot.lane.b32.xlu0 %v1597, 16
        %v1854 = vpop.permute.xlu0 %1853
        %1855 = vrot.lane.b32.xlu0 %v1614, 16
        %v1856 = vpop.permute.xlu0 %1855
        %1857 = vrot.lane.b32.xlu0 %v1631, 16
        %v1858 = vpop.permute.xlu0 %1857
        %1859 = vrot.lane.b32.xlu0 %v1648, 16
        %v1860 = vpop.permute.xlu0 %1859
        %1861 = vrot.lane.b32.xlu0 %v1665, 16
        %v1862 = vpop.permute.xlu0 %1861
        %1863 = vrot.lane.b32.xlu0 %v1682, 16
        %v1864 = vpop.permute.xlu0 %1863
        %1865 = vrot.lane.b32.xlu0 %v1699, 16
        %v1866 = vpop.permute.xlu0 %1865
        %1867 = vrot.lane.b32.xlu0 %v1716, 16
        %v1868 = vpop.permute.xlu0 %1867
        %1869 = vrot.lane.b32.xlu0 %v1733, 16
        %v1870 = vpop.permute.xlu0 %1869
        %1871 = vrot.lane.b32.xlu0 %v1750, 16
        %v1872 = vpop.permute.xlu0 %1871
        %1873 = vrot.lane.b32.xlu0 %v1767, 16
        %v1874 = vpop.permute.xlu0 %1873
        %1875 = vrot.lane.b32.xlu0 %v1784, 16
        %v1876 = vpop.permute.xlu0 %1875
        %1877 = vrot.lane.b32.xlu0 %v1801, 16
        %v1878 = vpop.permute.xlu0 %1877
        %1879 = vrot.lane.b32.xlu0 %v1818, 16
        %v1880 = vpop.permute.xlu0 %1879
        %1881 = vrot.lane.b32.xlu0 %v1835, 16
        %v1882 = vpop.permute.xlu0 %1881
        %1883 = vrot.lane.b32.xlu0 %v1852, 16
        %v1884 = vpop.permute.xlu0 %1883
        %vm1901 = vcmask 195712
        %1902 = vst.msk [vmem:[#allocation3] sm:$0xff] %vm1901, %v1854
        %1903 = vst.msk [vmem:[#allocation3 + $0x8] sm:$0xff] %vm1901, %v1856
        %1904 = vst.msk [vmem:[#allocation3 + $0x10] sm:$0xff] %vm1901, %v1858
        %1905 = vst.msk [vmem:[#allocation3 + $0x18] sm:$0xff] %vm1901, %v1860
        %1906 = vst.msk [vmem:[#allocation3 + $0x20] sm:$0xff] %vm1901, %v1862
        %1907 = vst.msk [vmem:[#allocation3 + $0x28] sm:$0xff] %vm1901, %v1864
        %1908 = vst.msk [vmem:[#allocation3 + $0x30] sm:$0xff] %vm1901, %v1866
        %1909 = vst.msk [vmem:[#allocation3 + $0x38] sm:$0xff] %vm1901, %v1868
        %1910 = vst.msk [vmem:[#allocation3 + $0x40] sm:$0xff] %vm1901, %v1870
        %1911 = vst.msk [vmem:[#allocation3 + $0x48] sm:$0xff] %vm1901, %v1872
        %1912 = vst.msk [vmem:[#allocation3 + $0x50] sm:$0xff] %vm1901, %v1874
        %1913 = vst.msk [vmem:[#allocation3 + $0x58] sm:$0xff] %vm1901, %v1876
        %1914 = vst.msk [vmem:[#allocation3 + $0x60] sm:$0xff] %vm1901, %v1878
        %1915 = vst.msk [vmem:[#allocation3 + $0x68] sm:$0xff] %vm1901, %v1880
        %1916 = vst.msk [vmem:[#allocation3 + $0x70] sm:$0xff] %vm1901, %v1882
        %1917 = vst.msk [vmem:[#allocation3 + $0x78] sm:$0xff] %vm1901, %v1884
        %v1918 = vld [vmem:[%s833] sm:$0xf8]
        %v1919 = vld [vmem:[%s833 + $0x8] sm:$0xf]
        %v1920 = vld [vmem:[%s833 + $0x10] sm:$0xf8]
        %v1921 = vld [vmem:[%s833 + $0x18] sm:$0xf]
        %v1922 = vld [vmem:[%s833 + $0x20] sm:$0xf8]
        %v1923 = vld [vmem:[%s833 + $0x28] sm:$0xf]
        %v1924 = vld [vmem:[%s833 + $0x30] sm:$0xf8]
        %v1925 = vld [vmem:[%s833 + $0x38] sm:$0xf]
        %v1926 = vld [vmem:[%s833 + $0x40] sm:$0xf8]
        %v1927 = vld [vmem:[%s833 + $0x48] sm:$0xf]
        %v1928 = vld [vmem:[%s833 + $0x50] sm:$0xf8]
        %v1929 = vld [vmem:[%s833 + $0x58] sm:$0xf]
        %v1930 = vld [vmem:[%s833 + $0x60] sm:$0xf8]
        %v1931 = vld [vmem:[%s833 + $0x68] sm:$0xf]
        %v1932 = vld [vmem:[%s833 + $0x70] sm:$0xf8]
        %v1933 = vld [vmem:[%s833 + $0x78] sm:$0xf]
        %v1934 = vld [vmem:[%s833 + $0x80] sm:$0xf8]
        %v1935 = vld [vmem:[%s833 + $0x88] sm:$0xf]
        %v1936 = vld [vmem:[%s833 + $0x90] sm:$0xf8]
        %v1937 = vld [vmem:[%s833 + $0x98] sm:$0xf]
        %v1938 = vld [vmem:[%s833 + $0xa0] sm:$0xf8]
        %v1939 = vld [vmem:[%s833 + $0xa8] sm:$0xf]
        %v1940 = vld [vmem:[%s833 + $0xb0] sm:$0xf8]
        %v1941 = vld [vmem:[%s833 + $0xb8] sm:$0xf]
        %v1942 = vld [vmem:[%s833 + $0xc0] sm:$0xf8]
        %v1943 = vld [vmem:[%s833 + $0xc8] sm:$0xf]
        %v1944 = vld [vmem:[%s833 + $0xd0] sm:$0xf8]
        %v1945 = vld [vmem:[%s833 + $0xd8] sm:$0xf]
        %v1946 = vld [vmem:[%s833 + $0xe0] sm:$0xf8]
        %v1947 = vld [vmem:[%s833 + $0xe8] sm:$0xf]
        %v1948 = vld [vmem:[%s833 + $0xf0] sm:$0xf8]
        %v1949 = vld [vmem:[%s833 + $0xf8] sm:$0xf]
        %v1951 = vshrl.u32 %v1918, 16
        %v1953 = vrot.slane %v1951, 3
        %v1954 = vshll.u32 %v1918, 16
        %v1956 = vrot.slane %v1954, 4
        %v1957 = vor.u32 %v1953, %v1956
        %v1959 = vshrl.u32 %v1919, 16
        %v1961 = vrot.slane %v1959, 3
        %v1962 = vshll.u32 %v1919, 16
        %v1964 = vrot.slane %v1962, 4
        %v1965 = vor.u32 %v1961, %v1964
        %v1966 = vsel %vm886, %v1957, %v1965
        %v1968 = vshrl.u32 %v1920, 16
        %v1970 = vrot.slane %v1968, 3
        %v1971 = vshll.u32 %v1920, 16
        %v1973 = vrot.slane %v1971, 4
        %v1974 = vor.u32 %v1970, %v1973
        %v1976 = vshrl.u32 %v1921, 16
        %v1978 = vrot.slane %v1976, 3
        %v1979 = vshll.u32 %v1921, 16
        %v1981 = vrot.slane %v1979, 4
        %v1982 = vor.u32 %v1978, %v1981
        %v1983 = vsel %vm886, %v1974, %v1982
        %v1985 = vshrl.u32 %v1922, 16
        %v1987 = vrot.slane %v1985, 3
        %v1988 = vshll.u32 %v1922, 16
        %v1990 = vrot.slane %v1988, 4
        %v1991 = vor.u32 %v1987, %v1990
        %v1993 = vshrl.u32 %v1923, 16
        %v1995 = vrot.slane %v1993, 3
        %v1996 = vshll.u32 %v1923, 16
        %v1998 = vrot.slane %v1996, 4
        %v1999 = vor.u32 %v1995, %v1998
        %v2000 = vsel %vm886, %v1991, %v1999
        %v2002 = vshrl.u32 %v1924, 16
        %v2004 = vrot.slane %v2002, 3
        %v2005 = vshll.u32 %v1924, 16
        %v2007 = vrot.slane %v2005, 4
        %v2008 = vor.u32 %v2004, %v2007
        %v2010 = vshrl.u32 %v1925, 16
        %v2012 = vrot.slane %v2010, 3
        %v2013 = vshll.u32 %v1925, 16
        %v2015 = vrot.slane %v2013, 4
        %v2016 = vor.u32 %v2012, %v2015
        %v2017 = vsel %vm886, %v2008, %v2016
        %v2019 = vshrl.u32 %v1926, 16
        %v2021 = vrot.slane %v2019, 3
        %v2022 = vshll.u32 %v1926, 16
        %v2024 = vrot.slane %v2022, 4
        %v2025 = vor.u32 %v2021, %v2024
        %v2027 = vshrl.u32 %v1927, 16
        %v2029 = vrot.slane %v2027, 3
        %v2030 = vshll.u32 %v1927, 16
        %v2032 = vrot.slane %v2030, 4
        %v2033 = vor.u32 %v2029, %v2032
        %v2034 = vsel %vm886, %v2025, %v2033
        %v2036 = vshrl.u32 %v1928, 16
        %v2038 = vrot.slane %v2036, 3
        %v2039 = vshll.u32 %v1928, 16
        %v2041 = vrot.slane %v2039, 4
        %v2042 = vor.u32 %v2038, %v2041
        %v2044 = vshrl.u32 %v1929, 16
        %v2046 = vrot.slane %v2044, 3
        %v2047 = vshll.u32 %v1929, 16
        %v2049 = vrot.slane %v2047, 4
        %v2050 = vor.u32 %v2046, %v2049
        %v2051 = vsel %vm886, %v2042, %v2050
        %v2053 = vshrl.u32 %v1930, 16
        %v2055 = vrot.slane %v2053, 3
        %v2056 = vshll.u32 %v1930, 16
        %v2058 = vrot.slane %v2056, 4
        %v2059 = vor.u32 %v2055, %v2058
        %v2061 = vshrl.u32 %v1931, 16
        %v2063 = vrot.slane %v2061, 3
        %v2064 = vshll.u32 %v1931, 16
        %v2066 = vrot.slane %v2064, 4
        %v2067 = vor.u32 %v2063, %v2066
        %v2068 = vsel %vm886, %v2059, %v2067
        %v2070 = vshrl.u32 %v1932, 16
        %v2072 = vrot.slane %v2070, 3
        %v2073 = vshll.u32 %v1932, 16
        %v2075 = vrot.slane %v2073, 4
        %v2076 = vor.u32 %v2072, %v2075
        %v2078 = vshrl.u32 %v1933, 16
        %v2080 = vrot.slane %v2078, 3
        %v2081 = vshll.u32 %v1933, 16
        %v2083 = vrot.slane %v2081, 4
        %v2084 = vor.u32 %v2080, %v2083
        %v2085 = vsel %vm886, %v2076, %v2084
        %v2087 = vshrl.u32 %v1934, 16
        %v2089 = vrot.slane %v2087, 3
        %v2090 = vshll.u32 %v1934, 16
        %v2092 = vrot.slane %v2090, 4
        %v2093 = vor.u32 %v2089, %v2092
        %v2095 = vshrl.u32 %v1935, 16
        %v2097 = vrot.slane %v2095, 3
        %v2098 = vshll.u32 %v1935, 16
        %v2100 = vrot.slane %v2098, 4
        %v2101 = vor.u32 %v2097, %v2100
        %v2102 = vsel %vm886, %v2093, %v2101
        %v2104 = vshrl.u32 %v1936, 16
        %v2106 = vrot.slane %v2104, 3
        %v2107 = vshll.u32 %v1936, 16
        %v2109 = vrot.slane %v2107, 4
        %v2110 = vor.u32 %v2106, %v2109
        %v2112 = vshrl.u32 %v1937, 16
        %v2114 = vrot.slane %v2112, 3
        %v2115 = vshll.u32 %v1937, 16
        %v2117 = vrot.slane %v2115, 4
        %v2118 = vor.u32 %v2114, %v2117
        %v2119 = vsel %vm886, %v2110, %v2118
        %v2121 = vshrl.u32 %v1938, 16
        %v2123 = vrot.slane %v2121, 3
        %v2124 = vshll.u32 %v1938, 16
        %v2126 = vrot.slane %v2124, 4
        %v2127 = vor.u32 %v2123, %v2126
        %v2129 = vshrl.u32 %v1939, 16
        %v2131 = vrot.slane %v2129, 3
        %v2132 = vshll.u32 %v1939, 16
        %v2134 = vrot.slane %v2132, 4
        %v2135 = vor.u32 %v2131, %v2134
        %v2136 = vsel %vm886, %v2127, %v2135
        %v2138 = vshrl.u32 %v1940, 16
        %v2140 = vrot.slane %v2138, 3
        %v2141 = vshll.u32 %v1940, 16
        %v2143 = vrot.slane %v2141, 4
        %v2144 = vor.u32 %v2140, %v2143
        %v2146 = vshrl.u32 %v1941, 16
        %v2148 = vrot.slane %v2146, 3
        %v2149 = vshll.u32 %v1941, 16
        %v2151 = vrot.slane %v2149, 4
        %v2152 = vor.u32 %v2148, %v2151
        %v2153 = vsel %vm886, %v2144, %v2152
        %v2155 = vshrl.u32 %v1942, 16
        %v2157 = vrot.slane %v2155, 3
        %v2158 = vshll.u32 %v1942, 16
        %v2160 = vrot.slane %v2158, 4
        %v2161 = vor.u32 %v2157, %v2160
        %v2163 = vshrl.u32 %v1943, 16
        %v2165 = vrot.slane %v2163, 3
        %v2166 = vshll.u32 %v1943, 16
        %v2168 = vrot.slane %v2166, 4
        %v2169 = vor.u32 %v2165, %v2168
        %v2170 = vsel %vm886, %v2161, %v2169
        %v2172 = vshrl.u32 %v1944, 16
        %v2174 = vrot.slane %v2172, 3
        %v2175 = vshll.u32 %v1944, 16
        %v2177 = vrot.slane %v2175, 4
        %v2178 = vor.u32 %v2174, %v2177
        %v2180 = vshrl.u32 %v1945, 16
        %v2182 = vrot.slane %v2180, 3
        %v2183 = vshll.u32 %v1945, 16
        %v2185 = vrot.slane %v2183, 4
        %v2186 = vor.u32 %v2182, %v2185
        %v2187 = vsel %vm886, %v2178, %v2186
        %v2189 = vshrl.u32 %v1946, 16
        %v2191 = vrot.slane %v2189, 3
        %v2192 = vshll.u32 %v1946, 16
        %v2194 = vrot.slane %v2192, 4
        %v2195 = vor.u32 %v2191, %v2194
        %v2197 = vshrl.u32 %v1947, 16
        %v2199 = vrot.slane %v2197, 3
        %v2200 = vshll.u32 %v1947, 16
        %v2202 = vrot.slane %v2200, 4
        %v2203 = vor.u32 %v2199, %v2202
        %v2204 = vsel %vm886, %v2195, %v2203
        %v2206 = vshrl.u32 %v1948, 16
        %v2208 = vrot.slane %v2206, 3
        %v2209 = vshll.u32 %v1948, 16
        %v2211 = vrot.slane %v2209, 4
        %v2212 = vor.u32 %v2208, %v2211
        %v2214 = vshrl.u32 %v1949, 16
        %v2216 = vrot.slane %v2214, 3
        %v2217 = vshll.u32 %v1949, 16
        %v2219 = vrot.slane %v2217, 4
        %v2220 = vor.u32 %v2216, %v2219
        %v2221 = vsel %vm886, %v2212, %v2220
        %2222 = vrot.lane.b32.xlu0 %v1966, 24
        %v2223 = vpop.permute.xlu0 %2222
        %2224 = vrot.lane.b32.xlu0 %v1983, 24
        %v2225 = vpop.permute.xlu0 %2224
        %2226 = vrot.lane.b32.xlu0 %v2000, 24
        %v2227 = vpop.permute.xlu0 %2226
        %2228 = vrot.lane.b32.xlu0 %v2017, 24
        %v2229 = vpop.permute.xlu0 %2228
        %2230 = vrot.lane.b32.xlu0 %v2034, 24
        %v2231 = vpop.permute.xlu0 %2230
        %2232 = vrot.lane.b32.xlu0 %v2051, 24
        %v2233 = vpop.permute.xlu0 %2232
        %2234 = vrot.lane.b32.xlu0 %v2068, 24
        %v2235 = vpop.permute.xlu0 %2234
        %2236 = vrot.lane.b32.xlu0 %v2085, 24
        %v2237 = vpop.permute.xlu0 %2236
        %2238 = vrot.lane.b32.xlu0 %v2102, 24
        %v2239 = vpop.permute.xlu0 %2238
        %2240 = vrot.lane.b32.xlu0 %v2119, 24
        %v2241 = vpop.permute.xlu0 %2240
        %2242 = vrot.lane.b32.xlu0 %v2136, 24
        %v2243 = vpop.permute.xlu0 %2242
        %2244 = vrot.lane.b32.xlu0 %v2153, 24
        %v2245 = vpop.permute.xlu0 %2244
        %2246 = vrot.lane.b32.xlu0 %v2170, 24
        %v2247 = vpop.permute.xlu0 %2246
        %2248 = vrot.lane.b32.xlu0 %v2187, 24
        %v2249 = vpop.permute.xlu0 %2248
        %2250 = vrot.lane.b32.xlu0 %v2204, 24
        %v2251 = vpop.permute.xlu0 %2250
        %2252 = vrot.lane.b32.xlu0 %v2221, 24
        %v2253 = vpop.permute.xlu0 %2252
        %vm2270 = vcmask 261312
        %2271 = vst.msk [vmem:[#allocation3] sm:$0xff] %vm2270, %v2223
        %2272 = vst.msk [vmem:[#allocation3 + $0x8] sm:$0xff] %vm2270, %v2225
        %2273 = vst.msk [vmem:[#allocation3 + $0x10] sm:$0xff] %vm2270, %v2227
        %2274 = vst.msk [vmem:[#allocation3 + $0x18] sm:$0xff] %vm2270, %v2229
        %2275 = vst.msk [vmem:[#allocation3 + $0x20] sm:$0xff] %vm2270, %v2231
        %2276 = vst.msk [vmem:[#allocation3 + $0x28] sm:$0xff] %vm2270, %v2233
        %2277 = vst.msk [vmem:[#allocation3 + $0x30] sm:$0xff] %vm2270, %v2235
        %2278 = vst.msk [vmem:[#allocation3 + $0x38] sm:$0xff] %vm2270, %v2237
        %2279 = vst.msk [vmem:[#allocation3 + $0x40] sm:$0xff] %vm2270, %v2239
        %2280 = vst.msk [vmem:[#allocation3 + $0x48] sm:$0xff] %vm2270, %v2241
        %2281 = vst.msk [vmem:[#allocation3 + $0x50] sm:$0xff] %vm2270, %v2243
        %2282 = vst.msk [vmem:[#allocation3 + $0x58] sm:$0xff] %vm2270, %v2245
        %2283 = vst.msk [vmem:[#allocation3 + $0x60] sm:$0xff] %vm2270, %v2247
        %2284 = vst.msk [vmem:[#allocation3 + $0x68] sm:$0xff] %vm2270, %v2249
        %2285 = vst.msk [vmem:[#allocation3 + $0x70] sm:$0xff] %vm2270, %v2251
        %2286 = vst.msk [vmem:[#allocation3 + $0x78] sm:$0xff] %vm2270, %v2253
        %v2287 = vld [vmem:[%s833] sm:$0xf0]
        %v2288 = vld [vmem:[%s833 + $0x8] sm:$0xf]
        %v2289 = vld [vmem:[%s833 + $0x10] sm:$0xf0]
        %v2290 = vld [vmem:[%s833 + $0x18] sm:$0xf]
        %v2291 = vld [vmem:[%s833 + $0x20] sm:$0xf0]
        %v2292 = vld [vmem:[%s833 + $0x28] sm:$0xf]
        %v2293 = vld [vmem:[%s833 + $0x30] sm:$0xf0]
        %v2294 = vld [vmem:[%s833 + $0x38] sm:$0xf]
        %v2295 = vld [vmem:[%s833 + $0x40] sm:$0xf0]
        %v2296 = vld [vmem:[%s833 + $0x48] sm:$0xf]
        %v2297 = vld [vmem:[%s833 + $0x50] sm:$0xf0]
        %v2298 = vld [vmem:[%s833 + $0x58] sm:$0xf]
        %v2299 = vld [vmem:[%s833 + $0x60] sm:$0xf0]
        %v2300 = vld [vmem:[%s833 + $0x68] sm:$0xf]
        %v2301 = vld [vmem:[%s833 + $0x70] sm:$0xf0]
        %v2302 = vld [vmem:[%s833 + $0x78] sm:$0xf]
        %v2303 = vld [vmem:[%s833 + $0x80] sm:$0xf0]
        %v2304 = vld [vmem:[%s833 + $0x88] sm:$0xf]
        %v2305 = vld [vmem:[%s833 + $0x90] sm:$0xf0]
        %v2306 = vld [vmem:[%s833 + $0x98] sm:$0xf]
        %v2307 = vld [vmem:[%s833 + $0xa0] sm:$0xf0]
        %v2308 = vld [vmem:[%s833 + $0xa8] sm:$0xf]
        %v2309 = vld [vmem:[%s833 + $0xb0] sm:$0xf0]
        %v2310 = vld [vmem:[%s833 + $0xb8] sm:$0xf]
        %v2311 = vld [vmem:[%s833 + $0xc0] sm:$0xf0]
        %v2312 = vld [vmem:[%s833 + $0xc8] sm:$0xf]
        %v2313 = vld [vmem:[%s833 + $0xd0] sm:$0xf0]
        %v2314 = vld [vmem:[%s833 + $0xd8] sm:$0xf]
        %v2315 = vld [vmem:[%s833 + $0xe0] sm:$0xf0]
        %v2316 = vld [vmem:[%s833 + $0xe8] sm:$0xf]
        %v2317 = vld [vmem:[%s833 + $0xf0] sm:$0xf0]
        %v2318 = vld [vmem:[%s833 + $0xf8] sm:$0xf]
        %v2351 = vrot.slane %v2287, 4
        %v2352 = vrot.slane %v2288, 4
        %v2353 = vsel %vm1434, %v2351, %v2352
        %v2354 = vrot.slane %v2289, 4
        %v2355 = vrot.slane %v2290, 4
        %v2356 = vsel %vm1434, %v2354, %v2355
        %v2357 = vrot.slane %v2291, 4
        %v2358 = vrot.slane %v2292, 4
        %v2359 = vsel %vm1434, %v2357, %v2358
        %v2360 = vrot.slane %v2293, 4
        %v2361 = vrot.slane %v2294, 4
        %v2362 = vsel %vm1434, %v2360, %v2361
        %v2363 = vrot.slane %v2295, 4
        %v2364 = vrot.slane %v2296, 4
        %v2365 = vsel %vm1434, %v2363, %v2364
        %v2366 = vrot.slane %v2297, 4
        %v2367 = vrot.slane %v2298, 4
        %v2368 = vsel %vm1434, %v2366, %v2367
        %v2369 = vrot.slane %v2299, 4
        %v2370 = vrot.slane %v2300, 4
        %v2371 = vsel %vm1434, %v2369, %v2370
        %v2372 = vrot.slane %v2301, 4
        %v2373 = vrot.slane %v2302, 4
        %v2374 = vsel %vm1434, %v2372, %v2373
        %v2375 = vrot.slane %v2303, 4
        %v2376 = vrot.slane %v2304, 4
        %v2377 = vsel %vm1434, %v2375, %v2376
        %v2378 = vrot.slane %v2305, 4
        %v2379 = vrot.slane %v2306, 4
        %v2380 = vsel %vm1434, %v2378, %v2379
        %v2381 = vrot.slane %v2307, 4
        %v2382 = vrot.slane %v2308, 4
        %v2383 = vsel %vm1434, %v2381, %v2382
        %v2384 = vrot.slane %v2309, 4
        %v2385 = vrot.slane %v2310, 4
        %v2386 = vsel %vm1434, %v2384, %v2385
        %v2387 = vrot.slane %v2311, 4
        %v2388 = vrot.slane %v2312, 4
        %v2389 = vsel %vm1434, %v2387, %v2388
        %v2390 = vrot.slane %v2313, 4
        %v2391 = vrot.slane %v2314, 4
        %v2392 = vsel %vm1434, %v2390, %v2391
        %v2393 = vrot.slane %v2315, 4
        %v2394 = vrot.slane %v2316, 4
        %v2395 = vsel %vm1434, %v2393, %v2394
        %v2396 = vrot.slane %v2317, 4
        %v2397 = vrot.slane %v2318, 4
        %v2398 = vsel %vm1434, %v2396, %v2397
        %2399 = vrot.lane.b32.xlu0 %v2353, 32
        %v2400 = vpop.permute.xlu0 %2399
        %2401 = vrot.lane.b32.xlu0 %v2356, 32
        %v2402 = vpop.permute.xlu0 %2401
        %2403 = vrot.lane.b32.xlu0 %v2359, 32
        %v2404 = vpop.permute.xlu0 %2403
        %2405 = vrot.lane.b32.xlu0 %v2362, 32
        %v2406 = vpop.permute.xlu0 %2405
        %2407 = vrot.lane.b32.xlu0 %v2365, 32
        %v2408 = vpop.permute.xlu0 %2407
        %2409 = vrot.lane.b32.xlu0 %v2368, 32
        %v2410 = vpop.permute.xlu0 %2409
        %2411 = vrot.lane.b32.xlu0 %v2371, 32
        %v2412 = vpop.permute.xlu0 %2411
        %2413 = vrot.lane.b32.xlu0 %v2374, 32
        %v2414 = vpop.permute.xlu0 %2413
        %2415 = vrot.lane.b32.xlu0 %v2377, 32
        %v2416 = vpop.permute.xlu0 %2415
        %2417 = vrot.lane.b32.xlu0 %v2380, 32
        %v2418 = vpop.permute.xlu0 %2417
        %2419 = vrot.lane.b32.xlu0 %v2383, 32
        %v2420 = vpop.permute.xlu0 %2419
        %2421 = vrot.lane.b32.xlu0 %v2386, 32
        %v2422 = vpop.permute.xlu0 %2421
        %2423 = vrot.lane.b32.xlu0 %v2389, 32
        %v2424 = vpop.permute.xlu0 %2423
        %2425 = vrot.lane.b32.xlu0 %v2392, 32
        %v2426 = vpop.permute.xlu0 %2425
        %2427 = vrot.lane.b32.xlu0 %v2395, 32
        %v2428 = vpop.permute.xlu0 %2427
        %2429 = vrot.lane.b32.xlu0 %v2398, 32
        %v2430 = vpop.permute.xlu0 %2429
        %vm2447 = vcmask 326912
        %2448 = vst.msk [vmem:[#allocation3] sm:$0xff] %vm2447, %v2400
        %2449 = vst.msk [vmem:[#allocation3 + $0x8] sm:$0xff] %vm2447, %v2402
        %2450 = vst.msk [vmem:[#allocation3 + $0x10] sm:$0xff] %vm2447, %v2404
        %2451 = vst.msk [vmem:[#allocation3 + $0x18] sm:$0xff] %vm2447, %v2406
        %2452 = vst.msk [vmem:[#allocation3 + $0x20] sm:$0xff] %vm2447, %v2408
        %2453 = vst.msk [vmem:[#allocation3 + $0x28] sm:$0xff] %vm2447, %v2410
        %2454 = vst.msk [vmem:[#allocation3 + $0x30] sm:$0xff] %vm2447, %v2412
        %2455 = vst.msk [vmem:[#allocation3 + $0x38] sm:$0xff] %vm2447, %v2414
        %2456 = vst.msk [vmem:[#allocation3 + $0x40] sm:$0xff] %vm2447, %v2416
        %2457 = vst.msk [vmem:[#allocation3 + $0x48] sm:$0xff] %vm2447, %v2418
        %2458 = vst.msk [vmem:[#allocation3 + $0x50] sm:$0xff] %vm2447, %v2420
        %2459 = vst.msk [vmem:[#allocation3 + $0x58] sm:$0xff] %vm2447, %v2422
        %2460 = vst.msk [vmem:[#allocation3 + $0x60] sm:$0xff] %vm2447, %v2424
        %2461 = vst.msk [vmem:[#allocation3 + $0x68] sm:$0xff] %vm2447, %v2426
        %2462 = vst.msk [vmem:[#allocation3 + $0x70] sm:$0xff] %vm2447, %v2428
        %2463 = vst.msk [vmem:[#allocation3 + $0x78] sm:$0xff] %vm2447, %v2430
        %v2464 = vld [vmem:[%s833] sm:$0xf0]
        %v2465 = vld [vmem:[%s833 + $0x8] sm:$0x1f]
        %v2466 = vld [vmem:[%s833 + $0x10] sm:$0xf0]
        %v2467 = vld [vmem:[%s833 + $0x18] sm:$0x1f]
        %v2468 = vld [vmem:[%s833 + $0x20] sm:$0xf0]
        %v2469 = vld [vmem:[%s833 + $0x28] sm:$0x1f]
        %v2470 = vld [vmem:[%s833 + $0x30] sm:$0xf0]
        %v2471 = vld [vmem:[%s833 + $0x38] sm:$0x1f]
        %v2472 = vld [vmem:[%s833 + $0x40] sm:$0xf0]
        %v2473 = vld [vmem:[%s833 + $0x48] sm:$0x1f]
        %v2474 = vld [vmem:[%s833 + $0x50] sm:$0xf0]
        %v2475 = vld [vmem:[%s833 + $0x58] sm:$0x1f]
        %v2476 = vld [vmem:[%s833 + $0x60] sm:$0xf0]
        %v2477 = vld [vmem:[%s833 + $0x68] sm:$0x1f]
        %v2478 = vld [vmem:[%s833 + $0x70] sm:$0xf0]
        %v2479 = vld [vmem:[%s833 + $0x78] sm:$0x1f]
        %v2480 = vld [vmem:[%s833 + $0x80] sm:$0xf0]
        %v2481 = vld [vmem:[%s833 + $0x88] sm:$0x1f]
        %v2482 = vld [vmem:[%s833 + $0x90] sm:$0xf0]
        %v2483 = vld [vmem:[%s833 + $0x98] sm:$0x1f]
        %v2484 = vld [vmem:[%s833 + $0xa0] sm:$0xf0]
        %v2485 = vld [vmem:[%s833 + $0xa8] sm:$0x1f]
        %v2486 = vld [vmem:[%s833 + $0xb0] sm:$0xf0]
        %v2487 = vld [vmem:[%s833 + $0xb8] sm:$0x1f]
        %v2488 = vld [vmem:[%s833 + $0xc0] sm:$0xf0]
        %v2489 = vld [vmem:[%s833 + $0xc8] sm:$0x1f]
        %v2490 = vld [vmem:[%s833 + $0xd0] sm:$0xf0]
        %v2491 = vld [vmem:[%s833 + $0xd8] sm:$0x1f]
        %v2492 = vld [vmem:[%s833 + $0xe0] sm:$0xf0]
        %v2493 = vld [vmem:[%s833 + $0xe8] sm:$0x1f]
        %v2494 = vld [vmem:[%s833 + $0xf0] sm:$0xf0]
        %v2495 = vld [vmem:[%s833 + $0xf8] sm:$0x1f]
        %v2497 = vshrl.u32 %v2464, 16
        %v2499 = vrot.slane %v2497, 4
        %v2500 = vshll.u32 %v2464, 16
        %v2502 = vrot.slane %v2500, 5
        %v2503 = vor.u32 %v2499, %v2502
        %v2505 = vshrl.u32 %v2465, 16
        %v2507 = vrot.slane %v2505, 4
        %v2508 = vshll.u32 %v2465, 16
        %v2510 = vrot.slane %v2508, 5
        %v2511 = vor.u32 %v2507, %v2510
        %v2512 = vsel %vm1580, %v2503, %v2511
        %v2514 = vshrl.u32 %v2466, 16
        %v2516 = vrot.slane %v2514, 4
        %v2517 = vshll.u32 %v2466, 16
        %v2519 = vrot.slane %v2517, 5
        %v2520 = vor.u32 %v2516, %v2519
        %v2522 = vshrl.u32 %v2467, 16
        %v2524 = vrot.slane %v2522, 4
        %v2525 = vshll.u32 %v2467, 16
        %v2527 = vrot.slane %v2525, 5
        %v2528 = vor.u32 %v2524, %v2527
        %v2529 = vsel %vm1580, %v2520, %v2528
        %v2531 = vshrl.u32 %v2468, 16
        %v2533 = vrot.slane %v2531, 4
        %v2534 = vshll.u32 %v2468, 16
        %v2536 = vrot.slane %v2534, 5
        %v2537 = vor.u32 %v2533, %v2536
        %v2539 = vshrl.u32 %v2469, 16
        %v2541 = vrot.slane %v2539, 4
        %v2542 = vshll.u32 %v2469, 16
        %v2544 = vrot.slane %v2542, 5
        %v2545 = vor.u32 %v2541, %v2544
        %v2546 = vsel %vm1580, %v2537, %v2545
        %v2548 = vshrl.u32 %v2470, 16
        %v2550 = vrot.slane %v2548, 4
        %v2551 = vshll.u32 %v2470, 16
        %v2553 = vrot.slane %v2551, 5
        %v2554 = vor.u32 %v2550, %v2553
        %v2556 = vshrl.u32 %v2471, 16
        %v2558 = vrot.slane %v2556, 4
        %v2559 = vshll.u32 %v2471, 16
        %v2561 = vrot.slane %v2559, 5
        %v2562 = vor.u32 %v2558, %v2561
        %v2563 = vsel %vm1580, %v2554, %v2562
        %v2565 = vshrl.u32 %v2472, 16
        %v2567 = vrot.slane %v2565, 4
        %v2568 = vshll.u32 %v2472, 16
        %v2570 = vrot.slane %v2568, 5
        %v2571 = vor.u32 %v2567, %v2570
        %v2573 = vshrl.u32 %v2473, 16
        %v2575 = vrot.slane %v2573, 4
        %v2576 = vshll.u32 %v2473, 16
        %v2578 = vrot.slane %v2576, 5
        %v2579 = vor.u32 %v2575, %v2578
        %v2580 = vsel %vm1580, %v2571, %v2579
        %v2582 = vshrl.u32 %v2474, 16
        %v2584 = vrot.slane %v2582, 4
        %v2585 = vshll.u32 %v2474, 16
        %v2587 = vrot.slane %v2585, 5
        %v2588 = vor.u32 %v2584, %v2587
        %v2590 = vshrl.u32 %v2475, 16
        %v2592 = vrot.slane %v2590, 4
        %v2593 = vshll.u32 %v2475, 16
        %v2595 = vrot.slane %v2593, 5
        %v2596 = vor.u32 %v2592, %v2595
        %v2597 = vsel %vm1580, %v2588, %v2596
        %v2599 = vshrl.u32 %v2476, 16
        %v2601 = vrot.slane %v2599, 4
        %v2602 = vshll.u32 %v2476, 16
        %v2604 = vrot.slane %v2602, 5
        %v2605 = vor.u32 %v2601, %v2604
        %v2607 = vshrl.u32 %v2477, 16
        %v2609 = vrot.slane %v2607, 4
        %v2610 = vshll.u32 %v2477, 16
        %v2612 = vrot.slane %v2610, 5
        %v2613 = vor.u32 %v2609, %v2612
        %v2614 = vsel %vm1580, %v2605, %v2613
        %v2616 = vshrl.u32 %v2478, 16
        %v2618 = vrot.slane %v2616, 4
        %v2619 = vshll.u32 %v2478, 16
        %v2621 = vrot.slane %v2619, 5
        %v2622 = vor.u32 %v2618, %v2621
        %v2624 = vshrl.u32 %v2479, 16
        %v2626 = vrot.slane %v2624, 4
        %v2627 = vshll.u32 %v2479, 16
        %v2629 = vrot.slane %v2627, 5
        %v2630 = vor.u32 %v2626, %v2629
        %v2631 = vsel %vm1580, %v2622, %v2630
        %v2633 = vshrl.u32 %v2480, 16
        %v2635 = vrot.slane %v2633, 4
        %v2636 = vshll.u32 %v2480, 16
        %v2638 = vrot.slane %v2636, 5
        %v2639 = vor.u32 %v2635, %v2638
        %v2641 = vshrl.u32 %v2481, 16
        %v2643 = vrot.slane %v2641, 4
        %v2644 = vshll.u32 %v2481, 16
        %v2646 = vrot.slane %v2644, 5
        %v2647 = vor.u32 %v2643, %v2646
        %v2648 = vsel %vm1580, %v2639, %v2647
        %v2650 = vshrl.u32 %v2482, 16
        %v2652 = vrot.slane %v2650, 4
        %v2653 = vshll.u32 %v2482, 16
        %v2655 = vrot.slane %v2653, 5
        %v2656 = vor.u32 %v2652, %v2655
        %v2658 = vshrl.u32 %v2483, 16
        %v2660 = vrot.slane %v2658, 4
        %v2661 = vshll.u32 %v2483, 16
        %v2663 = vrot.slane %v2661, 5
        %v2664 = vor.u32 %v2660, %v2663
        %v2665 = vsel %vm1580, %v2656, %v2664
        %v2667 = vshrl.u32 %v2484, 16
        %v2669 = vrot.slane %v2667, 4
        %v2670 = vshll.u32 %v2484, 16
        %v2672 = vrot.slane %v2670, 5
        %v2673 = vor.u32 %v2669, %v2672
        %v2675 = vshrl.u32 %v2485, 16
        %v2677 = vrot.slane %v2675, 4
        %v2678 = vshll.u32 %v2485, 16
        %v2680 = vrot.slane %v2678, 5
        %v2681 = vor.u32 %v2677, %v2680
        %v2682 = vsel %vm1580, %v2673, %v2681
        %v2684 = vshrl.u32 %v2486, 16
        %v2686 = vrot.slane %v2684, 4
        %v2687 = vshll.u32 %v2486, 16
        %v2689 = vrot.slane %v2687, 5
        %v2690 = vor.u32 %v2686, %v2689
        %v2692 = vshrl.u32 %v2487, 16
        %v2694 = vrot.slane %v2692, 4
        %v2695 = vshll.u32 %v2487, 16
        %v2697 = vrot.slane %v2695, 5
        %v2698 = vor.u32 %v2694, %v2697
        %v2699 = vsel %vm1580, %v2690, %v2698
        %v2701 = vshrl.u32 %v2488, 16
        %v2703 = vrot.slane %v2701, 4
        %v2704 = vshll.u32 %v2488, 16
        %v2706 = vrot.slane %v2704, 5
        %v2707 = vor.u32 %v2703, %v2706
        %v2709 = vshrl.u32 %v2489, 16
        %v2711 = vrot.slane %v2709, 4
        %v2712 = vshll.u32 %v2489, 16
        %v2714 = vrot.slane %v2712, 5
        %v2715 = vor.u32 %v2711, %v2714
        %v2716 = vsel %vm1580, %v2707, %v2715
        %v2718 = vshrl.u32 %v2490, 16
        %v2720 = vrot.slane %v2718, 4
        %v2721 = vshll.u32 %v2490, 16
        %v2723 = vrot.slane %v2721, 5
        %v2724 = vor.u32 %v2720, %v2723
        %v2726 = vshrl.u32 %v2491, 16
        %v2728 = vrot.slane %v2726, 4
        %v2729 = vshll.u32 %v2491, 16
        %v2731 = vrot.slane %v2729, 5
        %v2732 = vor.u32 %v2728, %v2731
        %v2733 = vsel %vm1580, %v2724, %v2732
        %v2735 = vshrl.u32 %v2492, 16
        %v2737 = vrot.slane %v2735, 4
        %v2738 = vshll.u32 %v2492, 16
        %v2740 = vrot.slane %v2738, 5
        %v2741 = vor.u32 %v2737, %v2740
        %v2743 = vshrl.u32 %v2493, 16
        %v2745 = vrot.slane %v2743, 4
        %v2746 = vshll.u32 %v2493, 16
        %v2748 = vrot.slane %v2746, 5
        %v2749 = vor.u32 %v2745, %v2748
        %v2750 = vsel %vm1580, %v2741, %v2749
        %v2752 = vshrl.u32 %v2494, 16
        %v2754 = vrot.slane %v2752, 4
        %v2755 = vshll.u32 %v2494, 16
        %v2757 = vrot.slane %v2755, 5
        %v2758 = vor.u32 %v2754, %v2757
        %v2760 = vshrl.u32 %v2495, 16
        %v2762 = vrot.slane %v2760, 4
        %v2763 = vshll.u32 %v2495, 16
        %v2765 = vrot.slane %v2763, 5
        %v2766 = vor.u32 %v2762, %v2765
        %v2767 = vsel %vm1580, %v2758, %v2766
        %2768 = vrot.lane.b32.xlu0 %v2512, 40
        %v2769 = vpop.permute.xlu0 %2768
        %2770 = vrot.lane.b32.xlu0 %v2529, 40
        %v2771 = vpop.permute.xlu0 %2770
        %2772 = vrot.lane.b32.xlu0 %v2546, 40
        %v2773 = vpop.permute.xlu0 %2772
        %2774 = vrot.lane.b32.xlu0 %v2563, 40
        %v2775 = vpop.permute.xlu0 %2774
        %2776 = vrot.lane.b32.xlu0 %v2580, 40
        %v2777 = vpop.permute.xlu0 %2776
        %2778 = vrot.lane.b32.xlu0 %v2597, 40
        %v2779 = vpop.permute.xlu0 %2778
        %2780 = vrot.lane.b32.xlu0 %v2614, 40
        %v2781 = vpop.permute.xlu0 %2780
        %2782 = vrot.lane.b32.xlu0 %v2631, 40
        %v2783 = vpop.permute.xlu0 %2782
        %2784 = vrot.lane.b32.xlu0 %v2648, 40
        %v2785 = vpop.permute.xlu0 %2784
        %2786 = vrot.lane.b32.xlu0 %v2665, 40
        %v2787 = vpop.permute.xlu0 %2786
        %2788 = vrot.lane.b32.xlu0 %v2682, 40
        %v2789 = vpop.permute.xlu0 %2788
        %2790 = vrot.lane.b32.xlu0 %v2699, 40
        %v2791 = vpop.permute.xlu0 %2790
        %2792 = vrot.lane.b32.xlu0 %v2716, 40
        %v2793 = vpop.permute.xlu0 %2792
        %2794 = vrot.lane.b32.xlu0 %v2733, 40
        %v2795 = vpop.permute.xlu0 %2794
        %2796 = vrot.lane.b32.xlu0 %v2750, 40
        %v2797 = vpop.permute.xlu0 %2796
        %2798 = vrot.lane.b32.xlu0 %v2767, 40
        %v2799 = vpop.permute.xlu0 %2798
        %vm2816 = vcmask 392512
        %2817 = vst.msk [vmem:[#allocation3] sm:$0xff] %vm2816, %v2769
        %2818 = vst.msk [vmem:[#allocation3 + $0x8] sm:$0xff] %vm2816, %v2771
        %2819 = vst.msk [vmem:[#allocation3 + $0x10] sm:$0xff] %vm2816, %v2773
        %2820 = vst.msk [vmem:[#allocation3 + $0x18] sm:$0xff] %vm2816, %v2775
        %2821 = vst.msk [vmem:[#allocation3 + $0x20] sm:$0xff] %vm2816, %v2777
        %2822 = vst.msk [vmem:[#allocation3 + $0x28] sm:$0xff] %vm2816, %v2779
        %2823 = vst.msk [vmem:[#allocation3 + $0x30] sm:$0xff] %vm2816, %v2781
        %2824 = vst.msk [vmem:[#allocation3 + $0x38] sm:$0xff] %vm2816, %v2783
        %2825 = vst.msk [vmem:[#allocation3 + $0x40] sm:$0xff] %vm2816, %v2785
        %2826 = vst.msk [vmem:[#allocation3 + $0x48] sm:$0xff] %vm2816, %v2787
        %2827 = vst.msk [vmem:[#allocation3 + $0x50] sm:$0xff] %vm2816, %v2789
        %2828 = vst.msk [vmem:[#allocation3 + $0x58] sm:$0xff] %vm2816, %v2791
        %2829 = vst.msk [vmem:[#allocation3 + $0x60] sm:$0xff] %vm2816, %v2793
        %2830 = vst.msk [vmem:[#allocation3 + $0x68] sm:$0xff] %vm2816, %v2795
        %2831 = vst.msk [vmem:[#allocation3 + $0x70] sm:$0xff] %vm2816, %v2797
        %2832 = vst.msk [vmem:[#allocation3 + $0x78] sm:$0xff] %vm2816, %v2799
        %s2833 = scalar_lea.vmem [#allocation2], 32
        %v2834 = vld [vmem:[%s2833] sm:$0xf8]
        %v2835 = vld [vmem:[%s2833 + $0x8] sm:$0xf]
        %v2836 = vld [vmem:[%s2833 + $0x10] sm:$0xf8]
        %v2837 = vld [vmem:[%s2833 + $0x18] sm:$0xf]
        %v2838 = vld [vmem:[%s2833 + $0x20] sm:$0xf8]
        %v2839 = vld [vmem:[%s2833 + $0x28] sm:$0xf]
        %v2840 = vld [vmem:[%s2833 + $0x30] sm:$0xf8]
        %v2841 = vld [vmem:[%s2833 + $0x38] sm:$0xf]
        %v2842 = vld [vmem:[%s2833 + $0x40] sm:$0xf8]
        %v2843 = vld [vmem:[%s2833 + $0x48] sm:$0xf]
        %v2844 = vld [vmem:[%s2833 + $0x50] sm:$0xf8]
        %v2845 = vld [vmem:[%s2833 + $0x58] sm:$0xf]
        %v2846 = vld [vmem:[%s2833 + $0x60] sm:$0xf8]
        %v2847 = vld [vmem:[%s2833 + $0x68] sm:$0xf]
        %v2848 = vld [vmem:[%s2833 + $0x70] sm:$0xf8]
        %v2849 = vld [vmem:[%s2833 + $0x78] sm:$0xf]
        %v2850 = vld [vmem:[%s2833 + $0x80] sm:$0xf8]
        %v2851 = vld [vmem:[%s2833 + $0x88] sm:$0xf]
        %v2852 = vld [vmem:[%s2833 + $0x90] sm:$0xf8]
        %v2853 = vld [vmem:[%s2833 + $0x98] sm:$0xf]
        %v2854 = vld [vmem:[%s2833 + $0xa0] sm:$0xf8]
        %v2855 = vld [vmem:[%s2833 + $0xa8] sm:$0xf]
        %v2856 = vld [vmem:[%s2833 + $0xb0] sm:$0xf8]
        %v2857 = vld [vmem:[%s2833 + $0xb8] sm:$0xf]
        %v2858 = vld [vmem:[%s2833 + $0xc0] sm:$0xf8]
        %v2859 = vld [vmem:[%s2833 + $0xc8] sm:$0xf]
        %v2860 = vld [vmem:[%s2833 + $0xd0] sm:$0xf8]
        %v2861 = vld [vmem:[%s2833 + $0xd8] sm:$0xf]
        %v2862 = vld [vmem:[%s2833 + $0xe0] sm:$0xf8]
        %v2863 = vld [vmem:[%s2833 + $0xe8] sm:$0xf]
        %v2864 = vld [vmem:[%s2833 + $0xf0] sm:$0xf8]
        %v2865 = vld [vmem:[%s2833 + $0xf8] sm:$0xf]
        %v2867 = vshrl.u32 %v2834, 16
        %v2869 = vrot.slane %v2867, 3
        %v2870 = vshll.u32 %v2834, 16
        %v2872 = vrot.slane %v2870, 4
        %v2873 = vor.u32 %v2869, %v2872
        %v2875 = vshrl.u32 %v2835, 16
        %v2877 = vrot.slane %v2875, 3
        %v2878 = vshll.u32 %v2835, 16
        %v2880 = vrot.slane %v2878, 4
        %v2881 = vor.u32 %v2877, %v2880
        %v2882 = vsel %vm886, %v2873, %v2881
        %v2884 = vshrl.u32 %v2836, 16
        %v2886 = vrot.slane %v2884, 3
        %v2887 = vshll.u32 %v2836, 16
        %v2889 = vrot.slane %v2887, 4
        %v2890 = vor.u32 %v2886, %v2889
        %v2892 = vshrl.u32 %v2837, 16
        %v2894 = vrot.slane %v2892, 3
        %v2895 = vshll.u32 %v2837, 16
        %v2897 = vrot.slane %v2895, 4
        %v2898 = vor.u32 %v2894, %v2897
        %v2899 = vsel %vm886, %v2890, %v2898
        %v2901 = vshrl.u32 %v2838, 16
        %v2903 = vrot.slane %v2901, 3
        %v2904 = vshll.u32 %v2838, 16
        %v2906 = vrot.slane %v2904, 4
        %v2907 = vor.u32 %v2903, %v2906
        %v2909 = vshrl.u32 %v2839, 16
        %v2911 = vrot.slane %v2909, 3
        %v2912 = vshll.u32 %v2839, 16
        %v2914 = vrot.slane %v2912, 4
        %v2915 = vor.u32 %v2911, %v2914
        %v2916 = vsel %vm886, %v2907, %v2915
        %v2918 = vshrl.u32 %v2840, 16
        %v2920 = vrot.slane %v2918, 3
        %v2921 = vshll.u32 %v2840, 16
        %v2923 = vrot.slane %v2921, 4
        %v2924 = vor.u32 %v2920, %v2923
        %v2926 = vshrl.u32 %v2841, 16
        %v2928 = vrot.slane %v2926, 3
        %v2929 = vshll.u32 %v2841, 16
        %v2931 = vrot.slane %v2929, 4
        %v2932 = vor.u32 %v2928, %v2931
        %v2933 = vsel %vm886, %v2924, %v2932
        %v2935 = vshrl.u32 %v2842, 16
        %v2937 = vrot.slane %v2935, 3
        %v2938 = vshll.u32 %v2842, 16
        %v2940 = vrot.slane %v2938, 4
        %v2941 = vor.u32 %v2937, %v2940
        %v2943 = vshrl.u32 %v2843, 16
        %v2945 = vrot.slane %v2943, 3
        %v2946 = vshll.u32 %v2843, 16
        %v2948 = vrot.slane %v2946, 4
        %v2949 = vor.u32 %v2945, %v2948
        %v2950 = vsel %vm886, %v2941, %v2949
        %v2952 = vshrl.u32 %v2844, 16
        %v2954 = vrot.slane %v2952, 3
        %v2955 = vshll.u32 %v2844, 16
        %v2957 = vrot.slane %v2955, 4
        %v2958 = vor.u32 %v2954, %v2957
        %v2960 = vshrl.u32 %v2845, 16
        %v2962 = vrot.slane %v2960, 3
        %v2963 = vshll.u32 %v2845, 16
        %v2965 = vrot.slane %v2963, 4
        %v2966 = vor.u32 %v2962, %v2965
        %v2967 = vsel %vm886, %v2958, %v2966
        %v2969 = vshrl.u32 %v2846, 16
        %v2971 = vrot.slane %v2969, 3
        %v2972 = vshll.u32 %v2846, 16
        %v2974 = vrot.slane %v2972, 4
        %v2975 = vor.u32 %v2971, %v2974
        %v2977 = vshrl.u32 %v2847, 16
        %v2979 = vrot.slane %v2977, 3
        %v2980 = vshll.u32 %v2847, 16
        %v2982 = vrot.slane %v2980, 4
        %v2983 = vor.u32 %v2979, %v2982
        %v2984 = vsel %vm886, %v2975, %v2983
        %v2986 = vshrl.u32 %v2848, 16
        %v2988 = vrot.slane %v2986, 3
        %v2989 = vshll.u32 %v2848, 16
        %v2991 = vrot.slane %v2989, 4
        %v2992 = vor.u32 %v2988, %v2991
        %v2994 = vshrl.u32 %v2849, 16
        %v2996 = vrot.slane %v2994, 3
        %v2997 = vshll.u32 %v2849, 16
        %v2999 = vrot.slane %v2997, 4
        %v3000 = vor.u32 %v2996, %v2999
        %v3001 = vsel %vm886, %v2992, %v3000
        %v3003 = vshrl.u32 %v2850, 16
        %v3005 = vrot.slane %v3003, 3
        %v3006 = vshll.u32 %v2850, 16
        %v3008 = vrot.slane %v3006, 4
        %v3009 = vor.u32 %v3005, %v3008
        %v3011 = vshrl.u32 %v2851, 16
        %v3013 = vrot.slane %v3011, 3
        %v3014 = vshll.u32 %v2851, 16
        %v3016 = vrot.slane %v3014, 4
        %v3017 = vor.u32 %v3013, %v3016
        %v3018 = vsel %vm886, %v3009, %v3017
        %v3020 = vshrl.u32 %v2852, 16
        %v3022 = vrot.slane %v3020, 3
        %v3023 = vshll.u32 %v2852, 16
        %v3025 = vrot.slane %v3023, 4
        %v3026 = vor.u32 %v3022, %v3025
        %v3028 = vshrl.u32 %v2853, 16
        %v3030 = vrot.slane %v3028, 3
        %v3031 = vshll.u32 %v2853, 16
        %v3033 = vrot.slane %v3031, 4
        %v3034 = vor.u32 %v3030, %v3033
        %v3035 = vsel %vm886, %v3026, %v3034
        %v3037 = vshrl.u32 %v2854, 16
        %v3039 = vrot.slane %v3037, 3
        %v3040 = vshll.u32 %v2854, 16
        %v3042 = vrot.slane %v3040, 4
        %v3043 = vor.u32 %v3039, %v3042
        %v3045 = vshrl.u32 %v2855, 16
        %v3047 = vrot.slane %v3045, 3
        %v3048 = vshll.u32 %v2855, 16
        %v3050 = vrot.slane %v3048, 4
        %v3051 = vor.u32 %v3047, %v3050
        %v3052 = vsel %vm886, %v3043, %v3051
        %v3054 = vshrl.u32 %v2856, 16
        %v3056 = vrot.slane %v3054, 3
        %v3057 = vshll.u32 %v2856, 16
        %v3059 = vrot.slane %v3057, 4
        %v3060 = vor.u32 %v3056, %v3059
        %v3062 = vshrl.u32 %v2857, 16
        %v3064 = vrot.slane %v3062, 3
        %v3065 = vshll.u32 %v2857, 16
        %v3067 = vrot.slane %v3065, 4
        %v3068 = vor.u32 %v3064, %v3067
        %v3069 = vsel %vm886, %v3060, %v3068
        %v3071 = vshrl.u32 %v2858, 16
        %v3073 = vrot.slane %v3071, 3
        %v3074 = vshll.u32 %v2858, 16
        %v3076 = vrot.slane %v3074, 4
        %v3077 = vor.u32 %v3073, %v3076
        %v3079 = vshrl.u32 %v2859, 16
        %v3081 = vrot.slane %v3079, 3
        %v3082 = vshll.u32 %v2859, 16
        %v3084 = vrot.slane %v3082, 4
        %v3085 = vor.u32 %v3081, %v3084
        %v3086 = vsel %vm886, %v3077, %v3085
        %v3088 = vshrl.u32 %v2860, 16
        %v3090 = vrot.slane %v3088, 3
        %v3091 = vshll.u32 %v2860, 16
        %v3093 = vrot.slane %v3091, 4
        %v3094 = vor.u32 %v3090, %v3093
        %v3096 = vshrl.u32 %v2861, 16
        %v3098 = vrot.slane %v3096, 3
        %v3099 = vshll.u32 %v2861, 16
        %v3101 = vrot.slane %v3099, 4
        %v3102 = vor.u32 %v3098, %v3101
        %v3103 = vsel %vm886, %v3094, %v3102
        %v3105 = vshrl.u32 %v2862, 16
        %v3107 = vrot.slane %v3105, 3
        %v3108 = vshll.u32 %v2862, 16
        %v3110 = vrot.slane %v3108, 4
        %v3111 = vor.u32 %v3107, %v3110
        %v3113 = vshrl.u32 %v2863, 16
        %v3115 = vrot.slane %v3113, 3
        %v3116 = vshll.u32 %v2863, 16
        %v3118 = vrot.slane %v3116, 4
        %v3119 = vor.u32 %v3115, %v3118
        %v3120 = vsel %vm886, %v3111, %v3119
        %v3122 = vshrl.u32 %v2864, 16
        %v3124 = vrot.slane %v3122, 3
        %v3125 = vshll.u32 %v2864, 16
        %v3127 = vrot.slane %v3125, 4
        %v3128 = vor.u32 %v3124, %v3127
        %v3130 = vshrl.u32 %v2865, 16
        %v3132 = vrot.slane %v3130, 3
        %v3133 = vshll.u32 %v2865, 16
        %v3135 = vrot.slane %v3133, 4
        %v3136 = vor.u32 %v3132, %v3135
        %v3137 = vsel %vm886, %v3128, %v3136
        %3138 = vrot.lane.b32.xlu0 %v2882, 48
        %v3139 = vpop.permute.xlu0 %3138
        %3140 = vrot.lane.b32.xlu0 %v2899, 48
        %v3141 = vpop.permute.xlu0 %3140
        %3142 = vrot.lane.b32.xlu0 %v2916, 48
        %v3143 = vpop.permute.xlu0 %3142
        %3144 = vrot.lane.b32.xlu0 %v2933, 48
        %v3145 = vpop.permute.xlu0 %3144
        %3146 = vrot.lane.b32.xlu0 %v2950, 48
        %v3147 = vpop.permute.xlu0 %3146
        %3148 = vrot.lane.b32.xlu0 %v2967, 48
        %v3149 = vpop.permute.xlu0 %3148
        %3150 = vrot.lane.b32.xlu0 %v2984, 48
        %v3151 = vpop.permute.xlu0 %3150
        %3152 = vrot.lane.b32.xlu0 %v3001, 48
        %v3153 = vpop.permute.xlu0 %3152
        %3154 = vrot.lane.b32.xlu0 %v3018, 48
        %v3155 = vpop.permute.xlu0 %3154
        %3156 = vrot.lane.b32.xlu0 %v3035, 48
        %v3157 = vpop.permute.xlu0 %3156
        %3158 = vrot.lane.b32.xlu0 %v3052, 48
        %v3159 = vpop.permute.xlu0 %3158
        %3160 = vrot.lane.b32.xlu0 %v3069, 48
        %v3161 = vpop.permute.xlu0 %3160
        %3162 = vrot.lane.b32.xlu0 %v3086, 48
        %v3163 = vpop.permute.xlu0 %3162
        %3164 = vrot.lane.b32.xlu0 %v3103, 48
        %v3165 = vpop.permute.xlu0 %3164
        %3166 = vrot.lane.b32.xlu0 %v3120, 48
        %v3167 = vpop.permute.xlu0 %3166
        %3168 = vrot.lane.b32.xlu0 %v3137, 48
        %v3169 = vpop.permute.xlu0 %3168
        %vm3186 = vcmask 458112
        %3187 = vst.msk [vmem:[#allocation3] sm:$0xff] %vm3186, %v3139
        %3188 = vst.msk [vmem:[#allocation3 + $0x8] sm:$0xff] %vm3186, %v3141
        %3189 = vst.msk [vmem:[#allocation3 + $0x10] sm:$0xff] %vm3186, %v3143
        %3190 = vst.msk [vmem:[#allocation3 + $0x18] sm:$0xff] %vm3186, %v3145
        %3191 = vst.msk [vmem:[#allocation3 + $0x20] sm:$0xff] %vm3186, %v3147
        %3192 = vst.msk [vmem:[#allocation3 + $0x28] sm:$0xff] %vm3186, %v3149
        %3193 = vst.msk [vmem:[#allocation3 + $0x30] sm:$0xff] %vm3186, %v3151
        %3194 = vst.msk [vmem:[#allocation3 + $0x38] sm:$0xff] %vm3186, %v3153
        %3195 = vst.msk [vmem:[#allocation3 + $0x40] sm:$0xff] %vm3186, %v3155
        %3196 = vst.msk [vmem:[#allocation3 + $0x48] sm:$0xff] %vm3186, %v3157
        %3197 = vst.msk [vmem:[#allocation3 + $0x50] sm:$0xff] %vm3186, %v3159
        %3198 = vst.msk [vmem:[#allocation3 + $0x58] sm:$0xff] %vm3186, %v3161
        %3199 = vst.msk [vmem:[#allocation3 + $0x60] sm:$0xff] %vm3186, %v3163
        %3200 = vst.msk [vmem:[#allocation3 + $0x68] sm:$0xff] %vm3186, %v3165
        %3201 = vst.msk [vmem:[#allocation3 + $0x70] sm:$0xff] %vm3186, %v3167
        %3202 = vst.msk [vmem:[#allocation3 + $0x78] sm:$0xff] %vm3186, %v3169
        %v3203 = vld [vmem:[%s2833] sm:$0xf0]
        %v3204 = vld [vmem:[%s2833 + $0x8] sm:$0xf]
        %v3205 = vld [vmem:[%s2833 + $0x10] sm:$0xf0]
        %v3206 = vld [vmem:[%s2833 + $0x18] sm:$0xf]
        %v3207 = vld [vmem:[%s2833 + $0x20] sm:$0xf0]
        %v3208 = vld [vmem:[%s2833 + $0x28] sm:$0xf]
        %v3209 = vld [vmem:[%s2833 + $0x30] sm:$0xf0]
        %v3210 = vld [vmem:[%s2833 + $0x38] sm:$0xf]
        %v3211 = vld [vmem:[%s2833 + $0x40] sm:$0xf0]
        %v3212 = vld [vmem:[%s2833 + $0x48] sm:$0xf]
        %v3213 = vld [vmem:[%s2833 + $0x50] sm:$0xf0]
        %v3214 = vld [vmem:[%s2833 + $0x58] sm:$0xf]
        %v3215 = vld [vmem:[%s2833 + $0x60] sm:$0xf0]
        %v3216 = vld [vmem:[%s2833 + $0x68] sm:$0xf]
        %v3217 = vld [vmem:[%s2833 + $0x70] sm:$0xf0]
        %v3218 = vld [vmem:[%s2833 + $0x78] sm:$0xf]
        %v3219 = vld [vmem:[%s2833 + $0x80] sm:$0xf0]
        %v3220 = vld [vmem:[%s2833 + $0x88] sm:$0xf]
        %v3221 = vld [vmem:[%s2833 + $0x90] sm:$0xf0]
        %v3222 = vld [vmem:[%s2833 + $0x98] sm:$0xf]
        %v3223 = vld [vmem:[%s2833 + $0xa0] sm:$0xf0]
        %v3224 = vld [vmem:[%s2833 + $0xa8] sm:$0xf]
        %v3225 = vld [vmem:[%s2833 + $0xb0] sm:$0xf0]
        %v3226 = vld [vmem:[%s2833 + $0xb8] sm:$0xf]
        %v3227 = vld [vmem:[%s2833 + $0xc0] sm:$0xf0]
        %v3228 = vld [vmem:[%s2833 + $0xc8] sm:$0xf]
        %v3229 = vld [vmem:[%s2833 + $0xd0] sm:$0xf0]
        %v3230 = vld [vmem:[%s2833 + $0xd8] sm:$0xf]
        %v3231 = vld [vmem:[%s2833 + $0xe0] sm:$0xf0]
        %v3232 = vld [vmem:[%s2833 + $0xe8] sm:$0xf]
        %v3233 = vld [vmem:[%s2833 + $0xf0] sm:$0xf0]
        %v3234 = vld [vmem:[%s2833 + $0xf8] sm:$0xf]
        %v3267 = vrot.slane %v3203, 4
        %v3268 = vrot.slane %v3204, 4
        %v3269 = vsel %vm1434, %v3267, %v3268
        %v3270 = vrot.slane %v3205, 4
        %v3271 = vrot.slane %v3206, 4
        %v3272 = vsel %vm1434, %v3270, %v3271
        %v3273 = vrot.slane %v3207, 4
        %v3274 = vrot.slane %v3208, 4
        %v3275 = vsel %vm1434, %v3273, %v3274
        %v3276 = vrot.slane %v3209, 4
        %v3277 = vrot.slane %v3210, 4
        %v3278 = vsel %vm1434, %v3276, %v3277
        %v3279 = vrot.slane %v3211, 4
        %v3280 = vrot.slane %v3212, 4
        %v3281 = vsel %vm1434, %v3279, %v3280
        %v3282 = vrot.slane %v3213, 4
        %v3283 = vrot.slane %v3214, 4
        %v3284 = vsel %vm1434, %v3282, %v3283
        %v3285 = vrot.slane %v3215, 4
        %v3286 = vrot.slane %v3216, 4
        %v3287 = vsel %vm1434, %v3285, %v3286
        %v3288 = vrot.slane %v3217, 4
        %v3289 = vrot.slane %v3218, 4
        %v3290 = vsel %vm1434, %v3288, %v3289
        %v3291 = vrot.slane %v3219, 4
        %v3292 = vrot.slane %v3220, 4
        %v3293 = vsel %vm1434, %v3291, %v3292
        %v3294 = vrot.slane %v3221, 4
        %v3295 = vrot.slane %v3222, 4
        %v3296 = vsel %vm1434, %v3294, %v3295
        %v3297 = vrot.slane %v3223, 4
        %v3298 = vrot.slane %v3224, 4
        %v3299 = vsel %vm1434, %v3297, %v3298
        %v3300 = vrot.slane %v3225, 4
        %v3301 = vrot.slane %v3226, 4
        %v3302 = vsel %vm1434, %v3300, %v3301
        %v3303 = vrot.slane %v3227, 4
        %v3304 = vrot.slane %v3228, 4
        %v3305 = vsel %vm1434, %v3303, %v3304
        %v3306 = vrot.slane %v3229, 4
        %v3307 = vrot.slane %v3230, 4
        %v3308 = vsel %vm1434, %v3306, %v3307
        %v3309 = vrot.slane %v3231, 4
        %v3310 = vrot.slane %v3232, 4
        %v3311 = vsel %vm1434, %v3309, %v3310
        %v3312 = vrot.slane %v3233, 4
        %v3313 = vrot.slane %v3234, 4
        %v3314 = vsel %vm1434, %v3312, %v3313
        %3315 = vrot.lane.b32.xlu0 %v3269, 56
        %v3316 = vpop.permute.xlu0 %3315
        %3317 = vrot.lane.b32.xlu0 %v3272, 56
        %v3318 = vpop.permute.xlu0 %3317
        %3319 = vrot.lane.b32.xlu0 %v3275, 56
        %v3320 = vpop.permute.xlu0 %3319
        %3321 = vrot.lane.b32.xlu0 %v3278, 56
        %v3322 = vpop.permute.xlu0 %3321
        %3323 = vrot.lane.b32.xlu0 %v3281, 56
        %v3324 = vpop.permute.xlu0 %3323
        %3325 = vrot.lane.b32.xlu0 %v3284, 56
        %v3326 = vpop.permute.xlu0 %3325
        %3327 = vrot.lane.b32.xlu0 %v3287, 56
        %v3328 = vpop.permute.xlu0 %3327
        %3329 = vrot.lane.b32.xlu0 %v3290, 56
        %v3330 = vpop.permute.xlu0 %3329
        %3331 = vrot.lane.b32.xlu0 %v3293, 56
        %v3332 = vpop.permute.xlu0 %3331
        %3333 = vrot.lane.b32.xlu0 %v3296, 56
        %v3334 = vpop.permute.xlu0 %3333
        %3335 = vrot.lane.b32.xlu0 %v3299, 56
        %v3336 = vpop.permute.xlu0 %3335
        %3337 = vrot.lane.b32.xlu0 %v3302, 56
        %v3338 = vpop.permute.xlu0 %3337
        %3339 = vrot.lane.b32.xlu0 %v3305, 56
        %v3340 = vpop.permute.xlu0 %3339
        %3341 = vrot.lane.b32.xlu0 %v3308, 56
        %v3342 = vpop.permute.xlu0 %3341
        %3343 = vrot.lane.b32.xlu0 %v3311, 56
        %v3344 = vpop.permute.xlu0 %3343
        %3345 = vrot.lane.b32.xlu0 %v3314, 56
        %v3346 = vpop.permute.xlu0 %3345
        %vm3363 = vcmask 523712
        %3364 = vst.msk [vmem:[#allocation3] sm:$0xff] %vm3363, %v3316
        %3365 = vst.msk [vmem:[#allocation3 + $0x8] sm:$0xff] %vm3363, %v3318
        %3366 = vst.msk [vmem:[#allocation3 + $0x10] sm:$0xff] %vm3363, %v3320
        %3367 = vst.msk [vmem:[#allocation3 + $0x18] sm:$0xff] %vm3363, %v3322
        %3368 = vst.msk [vmem:[#allocation3 + $0x20] sm:$0xff] %vm3363, %v3324
        %3369 = vst.msk [vmem:[#allocation3 + $0x28] sm:$0xff] %vm3363, %v3326
        %3370 = vst.msk [vmem:[#allocation3 + $0x30] sm:$0xff] %vm3363, %v3328
        %3371 = vst.msk [vmem:[#allocation3 + $0x38] sm:$0xff] %vm3363, %v3330
        %3372 = vst.msk [vmem:[#allocation3 + $0x40] sm:$0xff] %vm3363, %v3332
        %3373 = vst.msk [vmem:[#allocation3 + $0x48] sm:$0xff] %vm3363, %v3334
        %3374 = vst.msk [vmem:[#allocation3 + $0x50] sm:$0xff] %vm3363, %v3336
        %3375 = vst.msk [vmem:[#allocation3 + $0x58] sm:$0xff] %vm3363, %v3338
        %3376 = vst.msk [vmem:[#allocation3 + $0x60] sm:$0xff] %vm3363, %v3340
        %3377 = vst.msk [vmem:[#allocation3 + $0x68] sm:$0xff] %vm3363, %v3342
        %3378 = vst.msk [vmem:[#allocation3 + $0x70] sm:$0xff] %vm3363, %v3344
        %3379 = vst.msk [vmem:[#allocation3 + $0x78] sm:$0xff] %vm3363, %v3346
        %v3380 = vld [vmem:[%s2833] sm:$0xf0]
        %v3381 = vld [vmem:[%s2833 + $0x8] sm:$0x1f]
        %v3382 = vld [vmem:[%s2833 + $0x10] sm:$0xf0]
        %v3383 = vld [vmem:[%s2833 + $0x18] sm:$0x1f]
        %v3384 = vld [vmem:[%s2833 + $0x20] sm:$0xf0]
        %v3385 = vld [vmem:[%s2833 + $0x28] sm:$0x1f]
        %v3386 = vld [vmem:[%s2833 + $0x30] sm:$0xf0]
        %v3387 = vld [vmem:[%s2833 + $0x38] sm:$0x1f]
        %v3388 = vld [vmem:[%s2833 + $0x40] sm:$0xf0]
        %v3389 = vld [vmem:[%s2833 + $0x48] sm:$0x1f]
        %v3390 = vld [vmem:[%s2833 + $0x50] sm:$0xf0]
        %v3391 = vld [vmem:[%s2833 + $0x58] sm:$0x1f]
        %v3392 = vld [vmem:[%s2833 + $0x60] sm:$0xf0]
        %v3393 = vld [vmem:[%s2833 + $0x68] sm:$0x1f]
        %v3394 = vld [vmem:[%s2833 + $0x70] sm:$0xf0]
        %v3395 = vld [vmem:[%s2833 + $0x78] sm:$0x1f]
        %v3396 = vld [vmem:[%s2833 + $0x80] sm:$0xf0]
        %v3397 = vld [vmem:[%s2833 + $0x88] sm:$0x1f]
        %v3398 = vld [vmem:[%s2833 + $0x90] sm:$0xf0]
        %v3399 = vld [vmem:[%s2833 + $0x98] sm:$0x1f]
        %v3400 = vld [vmem:[%s2833 + $0xa0] sm:$0xf0]
        %v3401 = vld [vmem:[%s2833 + $0xa8] sm:$0x1f]
        %v3402 = vld [vmem:[%s2833 + $0xb0] sm:$0xf0]
        %v3403 = vld [vmem:[%s2833 + $0xb8] sm:$0x1f]
        %v3404 = vld [vmem:[%s2833 + $0xc0] sm:$0xf0]
        %v3405 = vld [vmem:[%s2833 + $0xc8] sm:$0x1f]
        %v3406 = vld [vmem:[%s2833 + $0xd0] sm:$0xf0]
        %v3407 = vld [vmem:[%s2833 + $0xd8] sm:$0x1f]
        %v3408 = vld [vmem:[%s2833 + $0xe0] sm:$0xf0]
        %v3409 = vld [vmem:[%s2833 + $0xe8] sm:$0x1f]
        %v3410 = vld [vmem:[%s2833 + $0xf0] sm:$0xf0]
        %v3411 = vld [vmem:[%s2833 + $0xf8] sm:$0x1f]
        %v3413 = vshrl.u32 %v3380, 16
        %v3415 = vrot.slane %v3413, 4
        %v3416 = vshll.u32 %v3380, 16
        %v3418 = vrot.slane %v3416, 5
        %v3419 = vor.u32 %v3415, %v3418
        %v3421 = vshrl.u32 %v3381, 16
        %v3423 = vrot.slane %v3421, 4
        %v3424 = vshll.u32 %v3381, 16
        %v3426 = vrot.slane %v3424, 5
        %v3427 = vor.u32 %v3423, %v3426
        %v3428 = vsel %vm1580, %v3419, %v3427
        %v3430 = vshrl.u32 %v3382, 16
        %v3432 = vrot.slane %v3430, 4
        %v3433 = vshll.u32 %v3382, 16
        %v3435 = vrot.slane %v3433, 5
        %v3436 = vor.u32 %v3432, %v3435
        %v3438 = vshrl.u32 %v3383, 16
        %v3440 = vrot.slane %v3438, 4
        %v3441 = vshll.u32 %v3383, 16
        %v3443 = vrot.slane %v3441, 5
        %v3444 = vor.u32 %v3440, %v3443
        %v3445 = vsel %vm1580, %v3436, %v3444
        %v3447 = vshrl.u32 %v3384, 16
        %v3449 = vrot.slane %v3447, 4
        %v3450 = vshll.u32 %v3384, 16
        %v3452 = vrot.slane %v3450, 5
        %v3453 = vor.u32 %v3449, %v3452
        %v3455 = vshrl.u32 %v3385, 16
        %v3457 = vrot.slane %v3455, 4
        %v3458 = vshll.u32 %v3385, 16
        %v3460 = vrot.slane %v3458, 5
        %v3461 = vor.u32 %v3457, %v3460
        %v3462 = vsel %vm1580, %v3453, %v3461
        %v3464 = vshrl.u32 %v3386, 16
        %v3466 = vrot.slane %v3464, 4
        %v3467 = vshll.u32 %v3386, 16
        %v3469 = vrot.slane %v3467, 5
        %v3470 = vor.u32 %v3466, %v3469
        %v3472 = vshrl.u32 %v3387, 16
        %v3474 = vrot.slane %v3472, 4
        %v3475 = vshll.u32 %v3387, 16
        %v3477 = vrot.slane %v3475, 5
        %v3478 = vor.u32 %v3474, %v3477
        %v3479 = vsel %vm1580, %v3470, %v3478
        %v3481 = vshrl.u32 %v3388, 16
        %v3483 = vrot.slane %v3481, 4
        %v3484 = vshll.u32 %v3388, 16
        %v3486 = vrot.slane %v3484, 5
        %v3487 = vor.u32 %v3483, %v3486
        %v3489 = vshrl.u32 %v3389, 16
        %v3491 = vrot.slane %v3489, 4
        %v3492 = vshll.u32 %v3389, 16
        %v3494 = vrot.slane %v3492, 5
        %v3495 = vor.u32 %v3491, %v3494
        %v3496 = vsel %vm1580, %v3487, %v3495
        %v3498 = vshrl.u32 %v3390, 16
        %v3500 = vrot.slane %v3498, 4
        %v3501 = vshll.u32 %v3390, 16
        %v3503 = vrot.slane %v3501, 5
        %v3504 = vor.u32 %v3500, %v3503
        %v3506 = vshrl.u32 %v3391, 16
        %v3508 = vrot.slane %v3506, 4
        %v3509 = vshll.u32 %v3391, 16
        %v3511 = vrot.slane %v3509, 5
        %v3512 = vor.u32 %v3508, %v3511
        %v3513 = vsel %vm1580, %v3504, %v3512
        %v3515 = vshrl.u32 %v3392, 16
        %v3517 = vrot.slane %v3515, 4
        %v3518 = vshll.u32 %v3392, 16
        %v3520 = vrot.slane %v3518, 5
        %v3521 = vor.u32 %v3517, %v3520
        %v3523 = vshrl.u32 %v3393, 16
        %v3525 = vrot.slane %v3523, 4
        %v3526 = vshll.u32 %v3393, 16
        %v3528 = vrot.slane %v3526, 5
        %v3529 = vor.u32 %v3525, %v3528
        %v3530 = vsel %vm1580, %v3521, %v3529
        %v3532 = vshrl.u32 %v3394, 16
        %v3534 = vrot.slane %v3532, 4
        %v3535 = vshll.u32 %v3394, 16
        %v3537 = vrot.slane %v3535, 5
        %v3538 = vor.u32 %v3534, %v3537
        %v3540 = vshrl.u32 %v3395, 16
        %v3542 = vrot.slane %v3540, 4
        %v3543 = vshll.u32 %v3395, 16
        %v3545 = vrot.slane %v3543, 5
        %v3546 = vor.u32 %v3542, %v3545
        %v3547 = vsel %vm1580, %v3538, %v3546
        %v3549 = vshrl.u32 %v3396, 16
        %v3551 = vrot.slane %v3549, 4
        %v3552 = vshll.u32 %v3396, 16
        %v3554 = vrot.slane %v3552, 5
        %v3555 = vor.u32 %v3551, %v3554
        %v3557 = vshrl.u32 %v3397, 16
        %v3559 = vrot.slane %v3557, 4
        %v3560 = vshll.u32 %v3397, 16
        %v3562 = vrot.slane %v3560, 5
        %v3563 = vor.u32 %v3559, %v3562
        %v3564 = vsel %vm1580, %v3555, %v3563
        %v3566 = vshrl.u32 %v3398, 16
        %v3568 = vrot.slane %v3566, 4
        %v3569 = vshll.u32 %v3398, 16
        %v3571 = vrot.slane %v3569, 5
        %v3572 = vor.u32 %v3568, %v3571
        %v3574 = vshrl.u32 %v3399, 16
        %v3576 = vrot.slane %v3574, 4
        %v3577 = vshll.u32 %v3399, 16
        %v3579 = vrot.slane %v3577, 5
        %v3580 = vor.u32 %v3576, %v3579
        %v3581 = vsel %vm1580, %v3572, %v3580
        %v3583 = vshrl.u32 %v3400, 16
        %v3585 = vrot.slane %v3583, 4
        %v3586 = vshll.u32 %v3400, 16
        %v3588 = vrot.slane %v3586, 5
        %v3589 = vor.u32 %v3585, %v3588
        %v3591 = vshrl.u32 %v3401, 16
        %v3593 = vrot.slane %v3591, 4
        %v3594 = vshll.u32 %v3401, 16
        %v3596 = vrot.slane %v3594, 5
        %v3597 = vor.u32 %v3593, %v3596
        %v3598 = vsel %vm1580, %v3589, %v3597
        %v3600 = vshrl.u32 %v3402, 16
        %v3602 = vrot.slane %v3600, 4
        %v3603 = vshll.u32 %v3402, 16
        %v3605 = vrot.slane %v3603, 5
        %v3606 = vor.u32 %v3602, %v3605
        %v3608 = vshrl.u32 %v3403, 16
        %v3610 = vrot.slane %v3608, 4
        %v3611 = vshll.u32 %v3403, 16
        %v3613 = vrot.slane %v3611, 5
        %v3614 = vor.u32 %v3610, %v3613
        %v3615 = vsel %vm1580, %v3606, %v3614
        %v3617 = vshrl.u32 %v3404, 16
        %v3619 = vrot.slane %v3617, 4
        %v3620 = vshll.u32 %v3404, 16
        %v3622 = vrot.slane %v3620, 5
        %v3623 = vor.u32 %v3619, %v3622
        %v3625 = vshrl.u32 %v3405, 16
        %v3627 = vrot.slane %v3625, 4
        %v3628 = vshll.u32 %v3405, 16
        %v3630 = vrot.slane %v3628, 5
        %v3631 = vor.u32 %v3627, %v3630
        %v3632 = vsel %vm1580, %v3623, %v3631
        %v3634 = vshrl.u32 %v3406, 16
        %v3636 = vrot.slane %v3634, 4
        %v3637 = vshll.u32 %v3406, 16
        %v3639 = vrot.slane %v3637, 5
        %v3640 = vor.u32 %v3636, %v3639
        %v3642 = vshrl.u32 %v3407, 16
        %v3644 = vrot.slane %v3642, 4
        %v3645 = vshll.u32 %v3407, 16
        %v3647 = vrot.slane %v3645, 5
        %v3648 = vor.u32 %v3644, %v3647
        %v3649 = vsel %vm1580, %v3640, %v3648
        %v3651 = vshrl.u32 %v3408, 16
        %v3653 = vrot.slane %v3651, 4
        %v3654 = vshll.u32 %v3408, 16
        %v3656 = vrot.slane %v3654, 5
        %v3657 = vor.u32 %v3653, %v3656
        %v3659 = vshrl.u32 %v3409, 16
        %v3661 = vrot.slane %v3659, 4
        %v3662 = vshll.u32 %v3409, 16
        %v3664 = vrot.slane %v3662, 5
        %v3665 = vor.u32 %v3661, %v3664
        %v3666 = vsel %vm1580, %v3657, %v3665
        %v3668 = vshrl.u32 %v3410, 16
        %v3670 = vrot.slane %v3668, 4
        %v3671 = vshll.u32 %v3410, 16
        %v3673 = vrot.slane %v3671, 5
        %v3674 = vor.u32 %v3670, %v3673
        %v3676 = vshrl.u32 %v3411, 16
        %v3678 = vrot.slane %v3676, 4
        %v3679 = vshll.u32 %v3411, 16
        %v3681 = vrot.slane %v3679, 5
        %v3682 = vor.u32 %v3678, %v3681
        %v3683 = vsel %vm1580, %v3674, %v3682
        %3684 = vrot.lane.b32.xlu0 %v3428, 64
        %v3685 = vpop.permute.xlu0 %3684
        %3686 = vrot.lane.b32.xlu0 %v3445, 64
        %v3687 = vpop.permute.xlu0 %3686
        %3688 = vrot.lane.b32.xlu0 %v3462, 64
        %v3689 = vpop.permute.xlu0 %3688
        %3690 = vrot.lane.b32.xlu0 %v3479, 64
        %v3691 = vpop.permute.xlu0 %3690
        %3692 = vrot.lane.b32.xlu0 %v3496, 64
        %v3693 = vpop.permute.xlu0 %3692
        %3694 = vrot.lane.b32.xlu0 %v3513, 64
        %v3695 = vpop.permute.xlu0 %3694
        %3696 = vrot.lane.b32.xlu0 %v3530, 64
        %v3697 = vpop.permute.xlu0 %3696
        %3698 = vrot.lane.b32.xlu0 %v3547, 64
        %v3699 = vpop.permute.xlu0 %3698
        %3700 = vrot.lane.b32.xlu0 %v3564, 64
        %v3701 = vpop.permute.xlu0 %3700
        %3702 = vrot.lane.b32.xlu0 %v3581, 64
        %v3703 = vpop.permute.xlu0 %3702
        %3704 = vrot.lane.b32.xlu0 %v3598, 64
        %v3705 = vpop.permute.xlu0 %3704
        %3706 = vrot.lane.b32.xlu0 %v3615, 64
        %v3707 = vpop.permute.xlu0 %3706
        %3708 = vrot.lane.b32.xlu0 %v3632, 64
        %v3709 = vpop.permute.xlu0 %3708
        %3710 = vrot.lane.b32.xlu0 %v3649, 64
        %v3711 = vpop.permute.xlu0 %3710
        %3712 = vrot.lane.b32.xlu0 %v3666, 64
        %v3713 = vpop.permute.xlu0 %3712
        %3714 = vrot.lane.b32.xlu0 %v3683, 64
        %v3715 = vpop.permute.xlu0 %3714
        %vm3732 = vcmask 589312
        %3733 = vst.msk [vmem:[#allocation3] sm:$0xff] %vm3732, %v3685
        %3734 = vst.msk [vmem:[#allocation3 + $0x8] sm:$0xff] %vm3732, %v3687
        %3735 = vst.msk [vmem:[#allocation3 + $0x10] sm:$0xff] %vm3732, %v3689
        %3736 = vst.msk [vmem:[#allocation3 + $0x18] sm:$0xff] %vm3732, %v3691
        %3737 = vst.msk [vmem:[#allocation3 + $0x20] sm:$0xff] %vm3732, %v3693
        %3738 = vst.msk [vmem:[#allocation3 + $0x28] sm:$0xff] %vm3732, %v3695
        %3739 = vst.msk [vmem:[#allocation3 + $0x30] sm:$0xff] %vm3732, %v3697
        %3740 = vst.msk [vmem:[#allocation3 + $0x38] sm:$0xff] %vm3732, %v3699
        %3741 = vst.msk [vmem:[#allocation3 + $0x40] sm:$0xff] %vm3732, %v3701
        %3742 = vst.msk [vmem:[#allocation3 + $0x48] sm:$0xff] %vm3732, %v3703
        %3743 = vst.msk [vmem:[#allocation3 + $0x50] sm:$0xff] %vm3732, %v3705
        %3744 = vst.msk [vmem:[#allocation3 + $0x58] sm:$0xff] %vm3732, %v3707
        %3745 = vst.msk [vmem:[#allocation3 + $0x60] sm:$0xff] %vm3732, %v3709
        %3746 = vst.msk [vmem:[#allocation3 + $0x68] sm:$0xff] %vm3732, %v3711
        %3747 = vst.msk [vmem:[#allocation3 + $0x70] sm:$0xff] %vm3732, %v3713
        %3748 = vst.msk [vmem:[#allocation3 + $0x78] sm:$0xff] %vm3732, %v3715
        %v3749 = vld [vmem:[#allocation3] sm:$0xff]
        %v3750 = vld [vmem:[#allocation3 + $0x8] sm:$0xff]
        %v3751 = vld [vmem:[#allocation3 + $0x10] sm:$0xff]
        %v3752 = vld [vmem:[#allocation3 + $0x18] sm:$0xff]
        %v3753 = vld [vmem:[#allocation3 + $0x20] sm:$0xff]
        %v3754 = vld [vmem:[#allocation3 + $0x28] sm:$0xff]
        %v3755 = vld [vmem:[#allocation3 + $0x30] sm:$0xff]
        %v3756 = vld [vmem:[#allocation3 + $0x38] sm:$0xff]
        %v3757 = vld [vmem:[#allocation3 + $0x40] sm:$0xff]
        %v3758 = vld [vmem:[#allocation3 + $0x48] sm:$0xff]
        %v3759 = vld [vmem:[#allocation3 + $0x50] sm:$0xff]
        %v3760 = vld [vmem:[#allocation3 + $0x58] sm:$0xff]
        %v3761 = vld [vmem:[#allocation3 + $0x60] sm:$0xff]
        %v3762 = vld [vmem:[#allocation3 + $0x68] sm:$0xff]
        %v3763 = vld [vmem:[#allocation3 + $0x70] sm:$0xff]
        %v3764 = vld [vmem:[#allocation3 + $0x78] sm:$0xff]
        %v3765 = vld [vmem:[#allocation10] sm:$0xf]
        %v3766 = vld [vmem:[#allocation10 + $0x4] sm:$0xf]
        %v3767 = vld [vmem:[#allocation10 + $0x8] sm:$0xf]
        %v3768 = vld [vmem:[#allocation10 + $0xc] sm:$0xf]
        %v3769 = vld [vmem:[#allocation10 + $0x10] sm:$0xf]
        %v3770 = vld [vmem:[#allocation10 + $0x14] sm:$0xf]
        %v3771 = vld [vmem:[#allocation10 + $0x18] sm:$0xf]
        %v3772 = vld [vmem:[#allocation10 + $0x1c] sm:$0xf]
        %v3773 = vld [vmem:[#allocation10 + $0x20] sm:$0xf]
        %v3774 = vld [vmem:[#allocation12] sm:$0x1]
        %v3776 = vlaneseq
        %v3777 = vshrl.u32 %v3776, 7
        %v3778 = vsub.s32 0, %v3777
        %v3779 = vrot.slane %v3774, %v3778
        %v3790 = vunpack.c.l.b16 %v3765
        %v3791 = vunpack.c.l.b16 %v3766
        %v3792 = vunpack.c.l.b16 %v3767
        %v3793 = vunpack.c.l.b16 %v3768
        %v3794 = vunpack.c.l.b16 %v3769
        %v3795 = vunpack.c.l.b16 %v3770
        %v3796 = vunpack.c.l.b16 %v3771
        %v3797 = vunpack.c.l.b16 %v3772
        %v3798 = vunpack.c.l.b16 %v3773
        %v3799 = vpack.c.b16 %v3791, %v3790
        %v3800 = vpack.c.b16 %v3793, %v3792
        %v3801 = vpack.c.b16 %v3795, %v3794
        %v3802 = vpack.c.b16 %v3797, %v3796
        %v3803 = vpack.c.b16 %v3798, %v3798
        %vm3808 = vcmask 588800
        %v3810 = vsel %vm3808, %v3749, 0
        %v3813 = vsel %vm3808, %v3750, 0
        %v3816 = vsel %vm3808, %v3751, 0
        %v3819 = vsel %vm3808, %v3752, 0
        %v3822 = vsel %vm3808, %v3753, 0
        %v3825 = vsel %vm3808, %v3754, 0
        %v3828 = vsel %vm3808, %v3755, 0
        %v3831 = vsel %vm3808, %v3756, 0
        %v3834 = vsel %vm3808, %v3757, 0
        %v3837 = vsel %vm3808, %v3758, 0
        %v3840 = vsel %vm3808, %v3759, 0
        %v3843 = vsel %vm3808, %v3760, 0
        %v3846 = vsel %vm3808, %v3761, 0
        %v3849 = vsel %vm3808, %v3762, 0
        %v3852 = vsel %vm3808, %v3763, 0
        %v3855 = vsel %vm3808, %v3764, 0
        %vm3857 = vcmask 1043456
        %v3859 = vsel %vm3857, %v3803, 0
        %3861 = vmatprep.subr.bf16.mxu0 0
        %3862 = vmatpush1.bf16.msra.mxu0 %v3799
        %3863 = vmatprep.subr.bf16.mxu0 0
        %3864 = vmatpush1.bf16.msra.mxu0 %v3800
        %3865 = vmatprep.subr.bf16.mxu0 0
        %3866 = vmatpush1.bf16.msra.mxu0 %v3801
        %3867 = vmatprep.subr.bf16.mxu0 0
        %3868 = vmatpush1.bf16.msra.mxu0 %v3802
        %3869 = vmatprep.subr.bf16.mxu0 0
        %3870 = vmatpush1.bf16.msra.mxu0 %v3859
        %3871 = vmatprep.subr.bf16.mxu0 0
        %3872 = vmatpush1.bf16.msra.mxu0 0
        %3873 = vmatprep.subr.bf16.mxu0 0
        %3874 = vmatpush1.bf16.msra.mxu0 0
        %3875 = vmatprep.subr.bf16.mxu0 0
        %3876 = vmatpush1.bf16.msra.mxu0 0
        %3877 = vmatprep.subr.bf16.mxu0 0
        %3878 = vmatpush1.bf16.msra.mxu0 0
        %3879 = vmatprep.subr.bf16.mxu0 0
        %3880 = vmatpush1.bf16.msra.mxu0 0
        %3881 = vmatprep.subr.bf16.mxu0 0
        %3882 = vmatpush1.bf16.msra.mxu0 0
        %3883 = vmatprep.subr.bf16.mxu0 0
        %3884 = vmatpush1.bf16.msra.mxu0 0
        %3885 = vmatprep.subr.bf16.mxu0 0
        %3886 = vmatpush1.bf16.msra.mxu0 0
        %3887 = vmatprep.subr.bf16.mxu0 0
        %3888 = vmatpush1.bf16.msra.mxu0 0
        %3889 = vmatprep.subr.bf16.mxu0 0
        %3890 = vmatpush1.bf16.msra.mxu0 0
        %3891 = vmatprep.subr.bf16.mxu0 0
        %3892 = vmatpush1.bf16.msra.mxu0 0
        %3893 = vmatprep.mubr.bf16.mxu0 0
        %3894 = vmatmul.mubr.bf16.gmra.mrb[0].mxu0 %v3810
        %v3895 = vpop.f32.mrb[0].mxu0
        %v3896 = vadd.f32 %v3779, %v3895
        %v3897 = vpop.f32.mrb[0].mxu0
        %v3898 = vpop.f32.mrb[0].mxu0
        %v3899 = vadd.f32 %v3779, %v3898
        %v3900 = vpop.f32.mrb[0].mxu0
        %3901 = vmatprep.mubr.bf16.mxu0 0
        %3902 = vmatmul.mubr.bf16.gmra.mrb[0].mxu0 %v3813
        %v3903 = vpop.f32.mrb[0].mxu0
        %v3904 = vadd.f32 %v3779, %v3903
        %v3905 = vpop.f32.mrb[0].mxu0
        %v3906 = vpop.f32.mrb[0].mxu0
        %v3907 = vadd.f32 %v3779, %v3906
        %v3908 = vpop.f32.mrb[0].mxu0
        %3909 = vmatprep.mubr.bf16.mxu0 0
        %3910 = vmatmul.mubr.bf16.gmra.mrb[0].mxu0 %v3816
        %v3911 = vpop.f32.mrb[0].mxu0
        %v3912 = vadd.f32 %v3779, %v3911
        %v3913 = vpop.f32.mrb[0].mxu0
        %v3914 = vpop.f32.mrb[0].mxu0
        %v3915 = vadd.f32 %v3779, %v3914
        %v3916 = vpop.f32.mrb[0].mxu0
        %3917 = vmatprep.mubr.bf16.mxu0 0
        %3918 = vmatmul.mubr.bf16.gmra.mrb[0].mxu0 %v3819
        %v3919 = vpop.f32.mrb[0].mxu0
        %v3920 = vadd.f32 %v3779, %v3919
        %v3921 = vpop.f32.mrb[0].mxu0
        %v3922 = vpop.f32.mrb[0].mxu0
        %v3923 = vadd.f32 %v3779, %v3922
        %v3924 = vpop.f32.mrb[0].mxu0
        %3925 = vmatprep.mubr.bf16.mxu0 0
        %3926 = vmatmul.mubr.bf16.gmra.mrb[0].mxu0 %v3822
        %v3927 = vpop.f32.mrb[0].mxu0
        %v3928 = vadd.f32 %v3779, %v3927
        %v3929 = vpop.f32.mrb[0].mxu0
        %v3930 = vpop.f32.mrb[0].mxu0
        %v3931 = vadd.f32 %v3779, %v3930
        %v3932 = vpop.f32.mrb[0].mxu0
        %3933 = vmatprep.mubr.bf16.mxu0 0
        %3934 = vmatmul.mubr.bf16.gmra.mrb[0].mxu0 %v3825
        %v3935 = vpop.f32.mrb[0].mxu0
        %v3936 = vadd.f32 %v3779, %v3935
        %v3937 = vpop.f32.mrb[0].mxu0
        %v3938 = vpop.f32.mrb[0].mxu0
        %v3939 = vadd.f32 %v3779, %v3938
        %v3940 = vpop.f32.mrb[0].mxu0
        %3941 = vmatprep.mubr.bf16.mxu0 0
        %3942 = vmatmul.mubr.bf16.gmra.mrb[0].mxu0 %v3828
        %v3943 = vpop.f32.mrb[0].mxu0
        %v3944 = vadd.f32 %v3779, %v3943
        %v3945 = vpop.f32.mrb[0].mxu0
        %v3946 = vpop.f32.mrb[0].mxu0
        %v3947 = vadd.f32 %v3779, %v3946
        %v3948 = vpop.f32.mrb[0].mxu0
        %3949 = vmatprep.mubr.bf16.mxu0 0
        %3950 = vmatmul.mubr.bf16.gmra.mrb[0].mxu0 %v3831
        %v3951 = vpop.f32.mrb[0].mxu0
        %v3952 = vadd.f32 %v3779, %v3951
        %v3953 = vpop.f32.mrb[0].mxu0
        %v3954 = vpop.f32.mrb[0].mxu0
        %v3955 = vadd.f32 %v3779, %v3954
        %v3956 = vpop.f32.mrb[0].mxu0
        %3957 = vmatprep.mubr.bf16.mxu0 0
        %3958 = vmatmul.mubr.bf16.gmra.mrb[0].mxu0 %v3834
        %v3959 = vpop.f32.mrb[0].mxu0
        %v3960 = vadd.f32 %v3779, %v3959
        %v3961 = vpop.f32.mrb[0].mxu0
        %v3962 = vpop.f32.mrb[0].mxu0
        %v3963 = vadd.f32 %v3779, %v3962
        %v3964 = vpop.f32.mrb[0].mxu0
        %3965 = vmatprep.mubr.bf16.mxu0 0
        %3966 = vmatmul.mubr.bf16.gmra.mrb[0].mxu0 %v3837
        %v3967 = vpop.f32.mrb[0].mxu0
        %v3968 = vadd.f32 %v3779, %v3967
        %v3969 = vpop.f32.mrb[0].mxu0
        %v3970 = vpop.f32.mrb[0].mxu0
        %v3971 = vadd.f32 %v3779, %v3970
        %v3972 = vpop.f32.mrb[0].mxu0
        %3973 = vmatprep.mubr.bf16.mxu0 0
        %3974 = vmatmul.mubr.bf16.gmra.mrb[0].mxu0 %v3840
        %v3975 = vpop.f32.mrb[0].mxu0
        %v3976 = vadd.f32 %v3779, %v3975
        %v3977 = vpop.f32.mrb[0].mxu0
        %v3978 = vpop.f32.mrb[0].mxu0
        %v3979 = vadd.f32 %v3779, %v3978
        %v3980 = vpop.f32.mrb[0].mxu0
        %3981 = vmatprep.mubr.bf16.mxu0 0
        %3982 = vmatmul.mubr.bf16.gmra.mrb[0].mxu0 %v3843
        %v3983 = vpop.f32.mrb[0].mxu0
        %v3984 = vadd.f32 %v3779, %v3983
        %v3985 = vpop.f32.mrb[0].mxu0
        %v3986 = vpop.f32.mrb[0].mxu0
        %v3987 = vadd.f32 %v3779, %v3986
        %v3988 = vpop.f32.mrb[0].mxu0
        %3989 = vmatprep.mubr.bf16.mxu0 0
        %3990 = vmatmul.mubr.bf16.gmra.mrb[0].mxu0 %v3846
        %v3991 = vpop.f32.mrb[0].mxu0
        %v3992 = vadd.f32 %v3779, %v3991
        %v3993 = vpop.f32.mrb[0].mxu0
        %v3994 = vpop.f32.mrb[0].mxu0
        %v3995 = vadd.f32 %v3779, %v3994
        %v3996 = vpop.f32.mrb[0].mxu0
        %3997 = vmatprep.mubr.bf16.mxu0 0
        %3998 = vmatmul.mubr.bf16.gmra.mrb[0].mxu0 %v3849
        %v3999 = vpop.f32.mrb[0].mxu0
        %v4000 = vadd.f32 %v3779, %v3999
        %v4001 = vpop.f32.mrb[0].mxu0
        %v4002 = vpop.f32.mrb[0].mxu0
        %v4003 = vadd.f32 %v3779, %v4002
        %v4004 = vpop.f32.mrb[0].mxu0
        %4005 = vmatprep.mubr.bf16.mxu0 0
        %4006 = vmatmul.mubr.bf16.gmra.mrb[0].mxu0 %v3852
        %v4007 = vpop.f32.mrb[0].mxu0
        %v4008 = vadd.f32 %v3779, %v4007
        %v4009 = vpop.f32.mrb[0].mxu0
        %v4010 = vpop.f32.mrb[0].mxu0
        %v4011 = vadd.f32 %v3779, %v4010
        %v4012 = vpop.f32.mrb[0].mxu0
        %4013 = vmatprep.mubr.bf16.mxu0 0
        %4014 = vmatmul.mubr.bf16.gmra.mrb[0].mxu0 %v3855
        %v4015 = vpop.f32.mrb[0].mxu0
        %v4016 = vadd.f32 %v3779, %v4015
        %v4017 = vpop.f32.mrb[0].mxu0
        %v4018 = vpop.f32.mrb[0].mxu0
        %v4019 = vadd.f32 %v3779, %v4018
        %v4020 = vpop.f32.mrb[0].mxu0
        %4021 = vdwg.mxu0
        %v4022 = vmax.f32 %v3896, 0.0
        %v4023 = vmax.f32 %v3899, 0.0
        %v4024 = vmax.f32 %v3904, 0.0
        %v4025 = vmax.f32 %v3907, 0.0
        %v4026 = vmax.f32 %v3912, 0.0
        %v4027 = vmax.f32 %v3915, 0.0
        %v4028 = vmax.f32 %v3920, 0.0
        %v4029 = vmax.f32 %v3923, 0.0
        %v4030 = vmax.f32 %v3928, 0.0
        %v4031 = vmax.f32 %v3931, 0.0
        %v4032 = vmax.f32 %v3936, 0.0
        %v4033 = vmax.f32 %v3939, 0.0
        %v4034 = vmax.f32 %v3944, 0.0
        %v4035 = vmax.f32 %v3947, 0.0
        %v4036 = vmax.f32 %v3952, 0.0
        %v4037 = vmax.f32 %v3955, 0.0
        %v4038 = vmax.f32 %v3960, 0.0
        %v4039 = vmax.f32 %v3963, 0.0
        %v4040 = vmax.f32 %v3968, 0.0
        %v4041 = vmax.f32 %v3971, 0.0
        %v4042 = vmax.f32 %v3976, 0.0
        %v4043 = vmax.f32 %v3979, 0.0
        %v4044 = vmax.f32 %v3984, 0.0
        %v4045 = vmax.f32 %v3987, 0.0
        %v4046 = vmax.f32 %v3992, 0.0
        %v4047 = vmax.f32 %v3995, 0.0
        %v4048 = vmax.f32 %v4000, 0.0
        %v4049 = vmax.f32 %v4003, 0.0
        %v4050 = vmax.f32 %v4008, 0.0
        %v4051 = vmax.f32 %v4011, 0.0
        %v4052 = vmax.f32 %v4016, 0.0
        %v4053 = vmax.f32 %v4019, 0.0
        %v4054 = vpack.c.bf16 %v4023, %v4022
        %v4055 = vpack.c.bf16 %v4025, %v4024
        %v4056 = vpack.c.bf16 %v4027, %v4026
        %v4057 = vpack.c.bf16 %v4029, %v4028
        %v4058 = vpack.c.bf16 %v4031, %v4030
        %v4059 = vpack.c.bf16 %v4033, %v4032
        %v4060 = vpack.c.bf16 %v4035, %v4034
        %v4061 = vpack.c.bf16 %v4037, %v4036
        %v4062 = vpack.c.bf16 %v4039, %v4038
        %v4063 = vpack.c.bf16 %v4041, %v4040
        %v4064 = vpack.c.bf16 %v4043, %v4042
        %v4065 = vpack.c.bf16 %v4045, %v4044
        %v4066 = vpack.c.bf16 %v4047, %v4046
        %v4067 = vpack.c.bf16 %v4049, %v4048
        %v4068 = vpack.c.bf16 %v4051, %v4050
        %v4069 = vpack.c.bf16 %v4053, %v4052
        %v4070 = vld [vmem:[#allocation13] sm:$0xf]
        %v4071 = vld [vmem:[#allocation15] sm:$0x1]
        %v4073 = vlaneseq
        %v4074 = vshrl.u32 %v4073, 7
        %v4075 = vsub.s32 0, %v4074
        %v4076 = vrot.slane %v4071, %v4075
        %v4079 = vsel %vm827, %v4054, 0
        %v4082 = vsel %vm827, %v4055, 0
        %v4085 = vsel %vm827, %v4056, 0
        %v4088 = vsel %vm827, %v4057, 0
        %v4091 = vsel %vm827, %v4058, 0
        %v4094 = vsel %vm827, %v4059, 0
        %v4097 = vsel %vm827, %v4060, 0
        %v4100 = vsel %vm827, %v4061, 0
        %v4103 = vsel %vm827, %v4062, 0
        %v4106 = vsel %vm827, %v4063, 0
        %v4109 = vsel %vm827, %v4064, 0
        %v4112 = vsel %vm827, %v4065, 0
        %v4115 = vsel %vm827, %v4066, 0
        %v4118 = vsel %vm827, %v4067, 0
        %v4121 = vsel %vm827, %v4068, 0
        %v4124 = vsel %vm827, %v4069, 0
        %v4127 = vsel %vm3857, %v4070, 0
        %4129 = vmatprep.subr.bf16.mxu0 0
        %4130 = vmatpush1.bf16.msra.mxu0 %v4127
        %4131 = vmatprep.subr.bf16.mxu0 0
        %4132 = vmatpush1.bf16.msra.mxu0 0
        %4133 = vmatprep.subr.bf16.mxu0 0
        %4134 = vmatpush1.bf16.msra.mxu0 0
        %4135 = vmatprep.subr.bf16.mxu0 0
        %4136 = vmatpush1.bf16.msra.mxu0 0
        %4137 = vmatprep.subr.bf16.mxu0 0
        %4138 = vmatpush1.bf16.msra.mxu0 0
        %4139 = vmatprep.subr.bf16.mxu0 0
        %4140 = vmatpush1.bf16.msra.mxu0 0
        %4141 = vmatprep.subr.bf16.mxu0 0
        %4142 = vmatpush1.bf16.msra.mxu0 0
        %4143 = vmatprep.subr.bf16.mxu0 0
        %4144 = vmatpush1.bf16.msra.mxu0 0
        %4145 = vmatprep.subr.bf16.mxu0 0
        %4146 = vmatpush1.bf16.msra.mxu0 0
        %4147 = vmatprep.subr.bf16.mxu0 0
        %4148 = vmatpush1.bf16.msra.mxu0 0
        %4149 = vmatprep.subr.bf16.mxu0 0
        %4150 = vmatpush1.bf16.msra.mxu0 0
        %4151 = vmatprep.subr.bf16.mxu0 0
        %4152 = vmatpush1.bf16.msra.mxu0 0
        %4153 = vmatprep.subr.bf16.mxu0 0
        %4154 = vmatpush1.bf16.msra.mxu0 0
        %4155 = vmatprep.subr.bf16.mxu0 0
        %4156 = vmatpush1.bf16.msra.mxu0 0
        %4157 = vmatprep.subr.bf16.mxu0 0
        %4158 = vmatpush1.bf16.msra.mxu0 0
        %4159 = vmatprep.subr.bf16.mxu0 0
        %4160 = vmatpush1.bf16.msra.mxu0 0
        %4161 = vmatprep.mubr.bf16.mxu0 0
        %4162 = vmatmul.mubr.bf16.gmra.mrb[0].mxu0 %v4079
        %v4163 = vpop.f32.mrb[0].mxu0
        %v4164 = vadd.f32 %v4076, %v4163
        %v4165 = vpop.f32.mrb[0].mxu0
        %v4166 = vpop.f32.mrb[0].mxu0
        %v4167 = vadd.f32 %v4076, %v4166
        %v4168 = vpop.f32.mrb[0].mxu0
        %4169 = vmatprep.mubr.bf16.mxu0 0
        %4170 = vmatmul.mubr.bf16.gmra.mrb[0].mxu0 %v4082
        %v4171 = vpop.f32.mrb[0].mxu0
        %v4172 = vadd.f32 %v4076, %v4171
        %v4173 = vpop.f32.mrb[0].mxu0
        %v4174 = vpop.f32.mrb[0].mxu0
        %v4175 = vadd.f32 %v4076, %v4174
        %v4176 = vpop.f32.mrb[0].mxu0
        %4177 = vmatprep.mubr.bf16.mxu0 0
        %4178 = vmatmul.mubr.bf16.gmra.mrb[0].mxu0 %v4085
        %v4179 = vpop.f32.mrb[0].mxu0
        %v4180 = vadd.f32 %v4076, %v4179
        %v4181 = vpop.f32.mrb[0].mxu0
        %v4182 = vpop.f32.mrb[0].mxu0
        %v4183 = vadd.f32 %v4076, %v4182
        %v4184 = vpop.f32.mrb[0].mxu0
        %4185 = vmatprep.mubr.bf16.mxu0 0
        %4186 = vmatmul.mubr.bf16.gmra.mrb[0].mxu0 %v4088
        %v4187 = vpop.f32.mrb[0].mxu0
        %v4188 = vadd.f32 %v4076, %v4187
        %v4189 = vpop.f32.mrb[0].mxu0
        %v4190 = vpop.f32.mrb[0].mxu0
        %v4191 = vadd.f32 %v4076, %v4190
        %v4192 = vpop.f32.mrb[0].mxu0
        %4193 = vmatprep.mubr.bf16.mxu0 0
        %4194 = vmatmul.mubr.bf16.gmra.mrb[0].mxu0 %v4091
        %v4195 = vpop.f32.mrb[0].mxu0
        %v4196 = vadd.f32 %v4076, %v4195
        %v4197 = vpop.f32.mrb[0].mxu0
        %v4198 = vpop.f32.mrb[0].mxu0
        %v4199 = vadd.f32 %v4076, %v4198
        %v4200 = vpop.f32.mrb[0].mxu0
        %4201 = vmatprep.mubr.bf16.mxu0 0
        %4202 = vmatmul.mubr.bf16.gmra.mrb[0].mxu0 %v4094
        %v4203 = vpop.f32.mrb[0].mxu0
        %v4204 = vadd.f32 %v4076, %v4203
        %v4205 = vpop.f32.mrb[0].mxu0
        %v4206 = vpop.f32.mrb[0].mxu0
        %v4207 = vadd.f32 %v4076, %v4206
        %v4208 = vpop.f32.mrb[0].mxu0
        %4209 = vmatprep.mubr.bf16.mxu0 0
        %4210 = vmatmul.mubr.bf16.gmra.mrb[0].mxu0 %v4097
        %v4211 = vpop.f32.mrb[0].mxu0
        %v4212 = vadd.f32 %v4076, %v4211
        %v4213 = vpop.f32.mrb[0].mxu0
        %v4214 = vpop.f32.mrb[0].mxu0
        %v4215 = vadd.f32 %v4076, %v4214
        %v4216 = vpop.f32.mrb[0].mxu0
        %4217 = vmatprep.mubr.bf16.mxu0 0
        %4218 = vmatmul.mubr.bf16.gmra.mrb[0].mxu0 %v4100
        %v4219 = vpop.f32.mrb[0].mxu0
        %v4220 = vadd.f32 %v4076, %v4219
        %v4221 = vpop.f32.mrb[0].mxu0
        %v4222 = vpop.f32.mrb[0].mxu0
        %v4223 = vadd.f32 %v4076, %v4222
        %v4224 = vpop.f32.mrb[0].mxu0
        %4225 = vmatprep.mubr.bf16.mxu0 0
        %4226 = vmatmul.mubr.bf16.gmra.mrb[0].mxu0 %v4103
        %v4227 = vpop.f32.mrb[0].mxu0
        %v4228 = vadd.f32 %v4076, %v4227
        %v4229 = vpop.f32.mrb[0].mxu0
        %v4230 = vpop.f32.mrb[0].mxu0
        %v4231 = vadd.f32 %v4076, %v4230
        %v4232 = vpop.f32.mrb[0].mxu0
        %4233 = vmatprep.mubr.bf16.mxu0 0
        %4234 = vmatmul.mubr.bf16.gmra.mrb[0].mxu0 %v4106
        %v4235 = vpop.f32.mrb[0].mxu0
        %v4236 = vadd.f32 %v4076, %v4235
        %v4237 = vpop.f32.mrb[0].mxu0
        %v4238 = vpop.f32.mrb[0].mxu0
        %v4239 = vadd.f32 %v4076, %v4238
        %v4240 = vpop.f32.mrb[0].mxu0
        %4241 = vmatprep.mubr.bf16.mxu0 0
        %4242 = vmatmul.mubr.bf16.gmra.mrb[0].mxu0 %v4109
        %v4243 = vpop.f32.mrb[0].mxu0
        %v4244 = vadd.f32 %v4076, %v4243
        %v4245 = vpop.f32.mrb[0].mxu0
        %v4246 = vpop.f32.mrb[0].mxu0
        %v4247 = vadd.f32 %v4076, %v4246
        %v4248 = vpop.f32.mrb[0].mxu0
        %4249 = vmatprep.mubr.bf16.mxu0 0
        %4250 = vmatmul.mubr.bf16.gmra.mrb[0].mxu0 %v4112
        %v4251 = vpop.f32.mrb[0].mxu0
        %v4252 = vadd.f32 %v4076, %v4251
        %v4253 = vpop.f32.mrb[0].mxu0
        %v4254 = vpop.f32.mrb[0].mxu0
        %v4255 = vadd.f32 %v4076, %v4254
        %v4256 = vpop.f32.mrb[0].mxu0
        %4257 = vmatprep.mubr.bf16.mxu0 0
        %4258 = vmatmul.mubr.bf16.gmra.mrb[0].mxu0 %v4115
        %v4259 = vpop.f32.mrb[0].mxu0
        %v4260 = vadd.f32 %v4076, %v4259
        %v4261 = vpop.f32.mrb[0].mxu0
        %v4262 = vpop.f32.mrb[0].mxu0
        %v4263 = vadd.f32 %v4076, %v4262
        %v4264 = vpop.f32.mrb[0].mxu0
        %4265 = vmatprep.mubr.bf16.mxu0 0
        %4266 = vmatmul.mubr.bf16.gmra.mrb[0].mxu0 %v4118
        %v4267 = vpop.f32.mrb[0].mxu0
        %v4268 = vadd.f32 %v4076, %v4267
        %v4269 = vpop.f32.mrb[0].mxu0
        %v4270 = vpop.f32.mrb[0].mxu0
        %v4271 = vadd.f32 %v4076, %v4270
        %v4272 = vpop.f32.mrb[0].mxu0
        %4273 = vmatprep.mubr.bf16.mxu0 0
        %4274 = vmatmul.mubr.bf16.gmra.mrb[0].mxu0 %v4121
        %v4275 = vpop.f32.mrb[0].mxu0
        %v4276 = vadd.f32 %v4076, %v4275
        %v4277 = vpop.f32.mrb[0].mxu0
        %v4278 = vpop.f32.mrb[0].mxu0
        %v4279 = vadd.f32 %v4076, %v4278
        %v4280 = vpop.f32.mrb[0].mxu0
        %4281 = vmatprep.mubr.bf16.mxu0 0
        %4282 = vmatmul.mubr.bf16.gmra.mrb[0].mxu0 %v4124
        %v4283 = vpop.f32.mrb[0].mxu0
        %v4284 = vadd.f32 %v4076, %v4283
        %v4285 = vpop.f32.mrb[0].mxu0
        %v4286 = vpop.f32.mrb[0].mxu0
        %v4287 = vadd.f32 %v4076, %v4286
        %v4288 = vpop.f32.mrb[0].mxu0
        %4289 = vdwg.mxu0
        %v4290 = vld [vmem:[#allocation16] sm:$0xf]
        %v4291 = vld [vmem:[#allocation16 + $0x4] sm:$0xf]
        %v4292 = vld [vmem:[#allocation18] sm:$0x1]
        %v4294 = vlaneseq
        %v4295 = vshrl.u32 %v4294, 7
        %v4296 = vsub.s32 0, %v4295
        %v4297 = vrot.slane %v4292, %v4296
        %v4301 = vunpack.c.l.b16 %v4290
        %v4302 = vunpack.c.l.b16 %v4291
        %v4303 = vpack.c.b16 %v4302, %v4301
        %4305 = vmatprep.subr.bf16.mxu0 0
        %4306 = vmatpush1.bf16.msra.mxu0 %v4303
        %4307 = vmatprep.subr.bf16.mxu0 0
        %4308 = vmatpush1.bf16.msra.mxu0 0
        %4309 = vmatprep.subr.bf16.mxu0 0
        %4310 = vmatpush1.bf16.msra.mxu0 0
        %4311 = vmatprep.subr.bf16.mxu0 0
        %4312 = vmatpush1.bf16.msra.mxu0 0
        %4313 = vmatprep.subr.bf16.mxu0 0
        %4314 = vmatpush1.bf16.msra.mxu0 0
        %4315 = vmatprep.subr.bf16.mxu0 0
        %4316 = vmatpush1.bf16.msra.mxu0 0
        %4317 = vmatprep.subr.bf16.mxu0 0
        %4318 = vmatpush1.bf16.msra.mxu0 0
        %4319 = vmatprep.subr.bf16.mxu0 0
        %4320 = vmatpush1.bf16.msra.mxu0 0
        %4321 = vmatprep.subr.bf16.mxu0 0
        %4322 = vmatpush1.bf16.msra.mxu0 0
        %4323 = vmatprep.subr.bf16.mxu0 0
        %4324 = vmatpush1.bf16.msra.mxu0 0
        %4325 = vmatprep.subr.bf16.mxu0 0
        %4326 = vmatpush1.bf16.msra.mxu0 0
        %4327 = vmatprep.subr.bf16.mxu0 0
        %4328 = vmatpush1.bf16.msra.mxu0 0
        %4329 = vmatprep.subr.bf16.mxu0 0
        %4330 = vmatpush1.bf16.msra.mxu0 0
        %4331 = vmatprep.subr.bf16.mxu0 0
        %4332 = vmatpush1.bf16.msra.mxu0 0
        %4333 = vmatprep.subr.bf16.mxu0 0
        %4334 = vmatpush1.bf16.msra.mxu0 0
        %4335 = vmatprep.subr.bf16.mxu0 0
        %4336 = vmatpush1.bf16.msra.mxu0 0
        %4337 = vmatprep.mubr.bf16.mxu0 0
        %4338 = vmatmul.mubr.bf16.gmra.mrb[0].mxu0 %v587
        %v4339 = vpop.f32.mrb[0].mxu0
        %v4340 = vadd.f32 %v4297, %v4339
        %v4341 = vpop.f32.mrb[0].mxu0
        %v4342 = vpop.f32.mrb[0].mxu0
        %v4343 = vadd.f32 %v4297, %v4342
        %v4344 = vpop.f32.mrb[0].mxu0
        %4345 = vmatprep.mubr.bf16.mxu0 0
        %4346 = vmatmul.mubr.bf16.gmra.mrb[0].mxu0 %v590
        %v4347 = vpop.f32.mrb[0].mxu0
        %v4348 = vadd.f32 %v4297, %v4347
        %v4349 = vpop.f32.mrb[0].mxu0
        %v4350 = vpop.f32.mrb[0].mxu0
        %v4351 = vadd.f32 %v4297, %v4350
        %v4352 = vpop.f32.mrb[0].mxu0
        %4353 = vmatprep.mubr.bf16.mxu0 0
        %4354 = vmatmul.mubr.bf16.gmra.mrb[0].mxu0 %v593
        %v4355 = vpop.f32.mrb[0].mxu0
        %v4356 = vadd.f32 %v4297, %v4355
        %v4357 = vpop.f32.mrb[0].mxu0
        %v4358 = vpop.f32.mrb[0].mxu0
        %v4359 = vadd.f32 %v4297, %v4358
        %v4360 = vpop.f32.mrb[0].mxu0
        %4361 = vmatprep.mubr.bf16.mxu0 0
        %4362 = vmatmul.mubr.bf16.gmra.mrb[0].mxu0 %v596
        %v4363 = vpop.f32.mrb[0].mxu0
        %v4364 = vadd.f32 %v4297, %v4363
        %v4365 = vpop.f32.mrb[0].mxu0
        %v4366 = vpop.f32.mrb[0].mxu0
        %v4367 = vadd.f32 %v4297, %v4366
        %v4368 = vpop.f32.mrb[0].mxu0
        %4369 = vmatprep.mubr.bf16.mxu0 0
        %4370 = vmatmul.mubr.bf16.gmra.mrb[0].mxu0 %v599
        %v4371 = vpop.f32.mrb[0].mxu0
        %v4372 = vadd.f32 %v4297, %v4371
        %v4373 = vpop.f32.mrb[0].mxu0
        %v4374 = vpop.f32.mrb[0].mxu0
        %v4375 = vadd.f32 %v4297, %v4374
        %v4376 = vpop.f32.mrb[0].mxu0
        %4377 = vmatprep.mubr.bf16.mxu0 0
        %4378 = vmatmul.mubr.bf16.gmra.mrb[0].mxu0 %v602
        %v4379 = vpop.f32.mrb[0].mxu0
        %v4380 = vadd.f32 %v4297, %v4379
        %v4381 = vpop.f32.mrb[0].mxu0
        %v4382 = vpop.f32.mrb[0].mxu0
        %v4383 = vadd.f32 %v4297, %v4382
        %v4384 = vpop.f32.mrb[0].mxu0
        %4385 = vmatprep.mubr.bf16.mxu0 0
        %4386 = vmatmul.mubr.bf16.gmra.mrb[0].mxu0 %v605
        %v4387 = vpop.f32.mrb[0].mxu0
        %v4388 = vadd.f32 %v4297, %v4387
        %v4389 = vpop.f32.mrb[0].mxu0
        %v4390 = vpop.f32.mrb[0].mxu0
        %v4391 = vadd.f32 %v4297, %v4390
        %v4392 = vpop.f32.mrb[0].mxu0
        %4393 = vmatprep.mubr.bf16.mxu0 0
        %4394 = vmatmul.mubr.bf16.gmra.mrb[0].mxu0 %v608
        %v4395 = vpop.f32.mrb[0].mxu0
        %v4396 = vadd.f32 %v4297, %v4395
        %v4397 = vpop.f32.mrb[0].mxu0
        %v4398 = vpop.f32.mrb[0].mxu0
        %v4399 = vadd.f32 %v4297, %v4398
        %v4400 = vpop.f32.mrb[0].mxu0
        %4401 = vmatprep.mubr.bf16.mxu0 0
        %4402 = vmatmul.mubr.bf16.gmra.mrb[0].mxu0 %v611
        %v4403 = vpop.f32.mrb[0].mxu0
        %v4404 = vadd.f32 %v4297, %v4403
        %v4405 = vpop.f32.mrb[0].mxu0
        %v4406 = vpop.f32.mrb[0].mxu0
        %v4407 = vadd.f32 %v4297, %v4406
        %v4408 = vpop.f32.mrb[0].mxu0
        %4409 = vmatprep.mubr.bf16.mxu0 0
        %4410 = vmatmul.mubr.bf16.gmra.mrb[0].mxu0 %v614
        %v4411 = vpop.f32.mrb[0].mxu0
        %v4412 = vadd.f32 %v4297, %v4411
        %v4413 = vpop.f32.mrb[0].mxu0
        %v4414 = vpop.f32.mrb[0].mxu0
        %v4415 = vadd.f32 %v4297, %v4414
        %v4416 = vpop.f32.mrb[0].mxu0
        %4417 = vmatprep.mubr.bf16.mxu0 0
        %4418 = vmatmul.mubr.bf16.gmra.mrb[0].mxu0 %v617
        %v4419 = vpop.f32.mrb[0].mxu0
        %v4420 = vadd.f32 %v4297, %v4419
        %v4421 = vpop.f32.mrb[0].mxu0
        %v4422 = vpop.f32.mrb[0].mxu0
        %v4423 = vadd.f32 %v4297, %v4422
        %v4424 = vpop.f32.mrb[0].mxu0
        %4425 = vmatprep.mubr.bf16.mxu0 0
        %4426 = vmatmul.mubr.bf16.gmra.mrb[0].mxu0 %v620
        %v4427 = vpop.f32.mrb[0].mxu0
        %v4428 = vadd.f32 %v4297, %v4427
        %v4429 = vpop.f32.mrb[0].mxu0
        %v4430 = vpop.f32.mrb[0].mxu0
        %v4431 = vadd.f32 %v4297, %v4430
        %v4432 = vpop.f32.mrb[0].mxu0
        %4433 = vmatprep.mubr.bf16.mxu0 0
        %4434 = vmatmul.mubr.bf16.gmra.mrb[0].mxu0 %v623
        %v4435 = vpop.f32.mrb[0].mxu0
        %v4436 = vadd.f32 %v4297, %v4435
        %v4437 = vpop.f32.mrb[0].mxu0
        %v4438 = vpop.f32.mrb[0].mxu0
        %v4439 = vadd.f32 %v4297, %v4438
        %v4440 = vpop.f32.mrb[0].mxu0
        %4441 = vmatprep.mubr.bf16.mxu0 0
        %4442 = vmatmul.mubr.bf16.gmra.mrb[0].mxu0 %v626
        %v4443 = vpop.f32.mrb[0].mxu0
        %v4444 = vadd.f32 %v4297, %v4443
        %v4445 = vpop.f32.mrb[0].mxu0
        %v4446 = vpop.f32.mrb[0].mxu0
        %v4447 = vadd.f32 %v4297, %v4446
        %v4448 = vpop.f32.mrb[0].mxu0
        %4449 = vmatprep.mubr.bf16.mxu0 0
        %4450 = vmatmul.mubr.bf16.gmra.mrb[0].mxu0 %v629
        %v4451 = vpop.f32.mrb[0].mxu0
        %v4452 = vadd.f32 %v4297, %v4451
        %v4453 = vpop.f32.mrb[0].mxu0
        %v4454 = vpop.f32.mrb[0].mxu0
        %v4455 = vadd.f32 %v4297, %v4454
        %v4456 = vpop.f32.mrb[0].mxu0
        %4457 = vmatprep.mubr.bf16.mxu0 0
        %4458 = vmatmul.mubr.bf16.gmra.mrb[0].mxu0 %v632
        %v4459 = vpop.f32.mrb[0].mxu0
        %v4460 = vadd.f32 %v4297, %v4459
        %v4461 = vpop.f32.mrb[0].mxu0
        %v4462 = vpop.f32.mrb[0].mxu0
        %v4463 = vadd.f32 %v4297, %v4462
        %v4464 = vpop.f32.mrb[0].mxu0
        %4465 = vdwg.mxu0
        %v4466 = vadd.f32 %v4164, %v4340
        %v4467 = vadd.f32 %v4167, %v4343
        %v4468 = vadd.f32 %v4172, %v4348
        %v4469 = vadd.f32 %v4175, %v4351
        %v4470 = vadd.f32 %v4180, %v4356
        %v4471 = vadd.f32 %v4183, %v4359
        %v4472 = vadd.f32 %v4188, %v4364
        %v4473 = vadd.f32 %v4191, %v4367
        %v4474 = vadd.f32 %v4196, %v4372
        %v4475 = vadd.f32 %v4199, %v4375
        %v4476 = vadd.f32 %v4204, %v4380
        %v4477 = vadd.f32 %v4207, %v4383
        %v4478 = vadd.f32 %v4212, %v4388
        %v4479 = vadd.f32 %v4215, %v4391
        %v4480 = vadd.f32 %v4220, %v4396
        %v4481 = vadd.f32 %v4223, %v4399
        %v4482 = vadd.f32 %v4228, %v4404
        %v4483 = vadd.f32 %v4231, %v4407
        %v4484 = vadd.f32 %v4236, %v4412
        %v4485 = vadd.f32 %v4239, %v4415
        %v4486 = vadd.f32 %v4244, %v4420
        %v4487 = vadd.f32 %v4247, %v4423
        %v4488 = vadd.f32 %v4252, %v4428
        %v4489 = vadd.f32 %v4255, %v4431
        %v4490 = vadd.f32 %v4260, %v4436
        %v4491 = vadd.f32 %v4263, %v4439
        %v4492 = vadd.f32 %v4268, %v4444
        %v4493 = vadd.f32 %v4271, %v4447
        %v4494 = vadd.f32 %v4276, %v4452
        %v4495 = vadd.f32 %v4279, %v4455
        %v4496 = vadd.f32 %v4284, %v4460
        %v4497 = vadd.f32 %v4287, %v4463
        %v4498 = vmax.f32 %v4466, 0.0
        %v4499 = vmax.f32 %v4467, 0.0
        %v4500 = vmax.f32 %v4468, 0.0
        %v4501 = vmax.f32 %v4469, 0.0
        %v4502 = vmax.f32 %v4470, 0.0
        %v4503 = vmax.f32 %v4471, 0.0
        %v4504 = vmax.f32 %v4472, 0.0
        %v4505 = vmax.f32 %v4473, 0.0
        %v4506 = vmax.f32 %v4474, 0.0
        %v4507 = vmax.f32 %v4475, 0.0
        %v4508 = vmax.f32 %v4476, 0.0
        %v4509 = vmax.f32 %v4477, 0.0
        %v4510 = vmax.f32 %v4478, 0.0
        %v4511 = vmax.f32 %v4479, 0.0
        %v4512 = vmax.f32 %v4480, 0.0
        %v4513 = vmax.f32 %v4481, 0.0
        %v4514 = vmax.f32 %v4482, 0.0
        %v4515 = vmax.f32 %v4483, 0.0
        %v4516 = vmax.f32 %v4484, 0.0
        %v4517 = vmax.f32 %v4485, 0.0
        %v4518 = vmax.f32 %v4486, 0.0
        %v4519 = vmax.f32 %v4487, 0.0
        %v4520 = vmax.f32 %v4488, 0.0
        %v4521 = vmax.f32 %v4489, 0.0
        %v4522 = vmax.f32 %v4490, 0.0
        %v4523 = vmax.f32 %v4491, 0.0
        %v4524 = vmax.f32 %v4492, 0.0
        %v4525 = vmax.f32 %v4493, 0.0
        %v4526 = vmax.f32 %v4494, 0.0
        %v4527 = vmax.f32 %v4495, 0.0
        %v4528 = vmax.f32 %v4496, 0.0
        %v4529 = vmax.f32 %v4497, 0.0
        %v4530 = vpack.c.bf16 %v4499, %v4498
        %v4531 = vpack.c.bf16 %v4501, %v4500
        %v4532 = vpack.c.bf16 %v4503, %v4502
        %v4533 = vpack.c.bf16 %v4505, %v4504
        %v4534 = vpack.c.bf16 %v4507, %v4506
        %v4535 = vpack.c.bf16 %v4509, %v4508
        %v4536 = vpack.c.bf16 %v4511, %v4510
        %v4537 = vpack.c.bf16 %v4513, %v4512
        %v4538 = vpack.c.bf16 %v4515, %v4514
        %v4539 = vpack.c.bf16 %v4517, %v4516
        %v4540 = vpack.c.bf16 %v4519, %v4518
        %v4541 = vpack.c.bf16 %v4521, %v4520
        %v4542 = vpack.c.bf16 %v4523, %v4522
        %v4543 = vpack.c.bf16 %v4525, %v4524
        %v4544 = vpack.c.bf16 %v4527, %v4526
        %v4545 = vpack.c.bf16 %v4529, %v4528
        %v4562 = vunpack.c.l.b16 %v4530
        %v4563 = vunpack.c.h.b16 %v4530
        %v4564 = vunpack.c.l.b16 %v4531
        %v4565 = vunpack.c.h.b16 %v4531
        %v4566 = vunpack.c.l.b16 %v4532
        %v4567 = vunpack.c.h.b16 %v4532
        %v4568 = vunpack.c.l.b16 %v4533
        %v4569 = vunpack.c.h.b16 %v4533
        %v4570 = vunpack.c.l.b16 %v4534
        %v4571 = vunpack.c.h.b16 %v4534
        %v4572 = vunpack.c.l.b16 %v4535
        %v4573 = vunpack.c.h.b16 %v4535
        %v4574 = vunpack.c.l.b16 %v4536
        %v4575 = vunpack.c.h.b16 %v4536
        %v4576 = vunpack.c.l.b16 %v4537
        %v4577 = vunpack.c.h.b16 %v4537
        %v4578 = vunpack.c.l.b16 %v4538
        %v4579 = vunpack.c.h.b16 %v4538
        %v4580 = vunpack.c.l.b16 %v4539
        %v4581 = vunpack.c.h.b16 %v4539
        %v4582 = vunpack.c.l.b16 %v4540
        %v4583 = vunpack.c.h.b16 %v4540
        %v4584 = vunpack.c.l.b16 %v4541
        %v4585 = vunpack.c.h.b16 %v4541
        %v4586 = vunpack.c.l.b16 %v4542
        %v4587 = vunpack.c.h.b16 %v4542
        %v4588 = vunpack.c.l.b16 %v4543
        %v4589 = vunpack.c.h.b16 %v4543
        %v4590 = vunpack.c.l.b16 %v4544
        %v4591 = vunpack.c.h.b16 %v4544
        %v4592 = vunpack.c.l.b16 %v4545
        %v4593 = vunpack.c.h.b16 %v4545
        %v4594 = vpack.c.b16 %v4562, %v4562
        %v4595 = vpack.c.b16 %v4563, %v4563
        %v4596 = vpack.c.b16 %v4564, %v4564
        %v4597 = vpack.c.b16 %v4565, %v4565
        %v4598 = vpack.c.b16 %v4566, %v4566
        %v4599 = vpack.c.b16 %v4567, %v4567
        %v4600 = vpack.c.b16 %v4568, %v4568
        %v4601 = vpack.c.b16 %v4569, %v4569
        %v4602 = vpack.c.b16 %v4570, %v4570
        %v4603 = vpack.c.b16 %v4571, %v4571
        %v4604 = vpack.c.b16 %v4572, %v4572
        %v4605 = vpack.c.b16 %v4573, %v4573
        %v4606 = vpack.c.b16 %v4574, %v4574
        %v4607 = vpack.c.b16 %v4575, %v4575
        %v4608 = vpack.c.b16 %v4576, %v4576
        %v4609 = vpack.c.b16 %v4577, %v4577
        %v4610 = vpack.c.b16 %v4578, %v4578
        %v4611 = vpack.c.b16 %v4579, %v4579
        %v4612 = vpack.c.b16 %v4580, %v4580
        %v4613 = vpack.c.b16 %v4581, %v4581
        %v4614 = vpack.c.b16 %v4582, %v4582
        %v4615 = vpack.c.b16 %v4583, %v4583
        %v4616 = vpack.c.b16 %v4584, %v4584
        %v4617 = vpack.c.b16 %v4585, %v4585
        %v4618 = vpack.c.b16 %v4586, %v4586
        %v4619 = vpack.c.b16 %v4587, %v4587
        %v4620 = vpack.c.b16 %v4588, %v4588
        %v4621 = vpack.c.b16 %v4589, %v4589
        %v4622 = vpack.c.b16 %v4590, %v4590
        %v4623 = vpack.c.b16 %v4591, %v4591
        %v4624 = vpack.c.b16 %v4592, %v4592
        %v4625 = vpack.c.b16 %v4593, %v4593
        %vm4658 = vcmask 257024
        %4659 = vst.msk [vmem:[%s456] sm:$0xf] %vm4658, %v4594
        %4660 = vst.msk [vmem:[%s456 + $0x4] sm:$0xf] %vm4658, %v4595
        %4661 = vst.msk [vmem:[%s456 + $0x8] sm:$0xf] %vm4658, %v4596
        %4662 = vst.msk [vmem:[%s456 + $0xc] sm:$0xf] %vm4658, %v4597
        %4663 = vst.msk [vmem:[%s456 + $0x10] sm:$0xf] %vm4658, %v4598
        %4664 = vst.msk [vmem:[%s456 + $0x14] sm:$0xf] %vm4658, %v4599
        %4665 = vst.msk [vmem:[%s456 + $0x18] sm:$0xf] %vm4658, %v4600
        %4666 = vst.msk [vmem:[%s456 + $0x1c] sm:$0xf] %vm4658, %v4601
        %4667 = vst.msk [vmem:[%s456 + $0x20] sm:$0xf] %vm4658, %v4602
        %4668 = vst.msk [vmem:[%s456 + $0x24] sm:$0xf] %vm4658, %v4603
        %4669 = vst.msk [vmem:[%s456 + $0x28] sm:$0xf] %vm4658, %v4604
        %4670 = vst.msk [vmem:[%s456 + $0x2c] sm:$0xf] %vm4658, %v4605
        %4671 = vst.msk [vmem:[%s456 + $0x30] sm:$0xf] %vm4658, %v4606
        %4672 = vst.msk [vmem:[%s456 + $0x34] sm:$0xf] %vm4658, %v4607
        %4673 = vst.msk [vmem:[%s456 + $0x38] sm:$0xf] %vm4658, %v4608
        %4674 = vst.msk [vmem:[%s456 + $0x3c] sm:$0xf] %vm4658, %v4609
        %4675 = vst.msk [vmem:[%s456 + $0x40] sm:$0xf] %vm4658, %v4610
        %4676 = vst.msk [vmem:[%s456 + $0x44] sm:$0xf] %vm4658, %v4611
        %4677 = vst.msk [vmem:[%s456 + $0x48] sm:$0xf] %vm4658, %v4612
        %4678 = vst.msk [vmem:[%s456 + $0x4c] sm:$0xf] %vm4658, %v4613
        %4679 = vst.msk [vmem:[%s456 + $0x50] sm:$0xf] %vm4658, %v4614
        %4680 = vst.msk [vmem:[%s456 + $0x54] sm:$0xf] %vm4658, %v4615
        %4681 = vst.msk [vmem:[%s456 + $0x58] sm:$0xf] %vm4658, %v4616
        %4682 = vst.msk [vmem:[%s456 + $0x5c] sm:$0xf] %vm4658, %v4617
        %4683 = vst.msk [vmem:[%s456 + $0x60] sm:$0xf] %vm4658, %v4618
        %4684 = vst.msk [vmem:[%s456 + $0x64] sm:$0xf] %vm4658, %v4619
        %4685 = vst.msk [vmem:[%s456 + $0x68] sm:$0xf] %vm4658, %v4620
        %4686 = vst.msk [vmem:[%s456 + $0x6c] sm:$0xf] %vm4658, %v4621
        %4687 = vst.msk [vmem:[%s456 + $0x70] sm:$0xf] %vm4658, %v4622
        %4688 = vst.msk [vmem:[%s456 + $0x74] sm:$0xf] %vm4658, %v4623
        %4689 = vst.msk [vmem:[%s456 + $0x78] sm:$0xf] %vm4658, %v4624
        %4690 = vst.msk [vmem:[%s456 + $0x7c] sm:$0xf] %vm4658, %v4625
        %s4691 = sand.u32 %s232, 1
        %s4692 = scalar_lea.sflag [#allocation6], %s4691
        %s4693 = sand.u32 %s232, 1
        %s4694 = smul.addr %s4693, 128
        %s4695 = scalar_lea.vmem [#allocation19], %s4694
        // Predicated region
        $region93: #{tpu_custom_call.1} parent=55 // pred_check
          %p4696 = pneg %p242
        $region94: #{tpu_custom_call.1} parent=55 // pred_check_branch
          %4698 = sbr.rel (%p4696) target = $region96
        $region95: #{tpu_custom_call.1} parent=55 // pred_region
          %s4700 = ssub.s32 2048, 2048
          %4701 = vsyncadd %s4692, %s4700
          %s4702 = smul.addr %s30, 32
          %s4703 = smul.addr %s4702, 64
          %s4704 = scalar_lea.hbm %s9, %s4703
          %s4705 = sshll.u32 %s4695, 4
          %s4706 = int_to_ptr.vmem [resolvable:$true] %s4705
          %4711 = dma.vmem_to_hbm [thread:$0]  %s4706, 2048, %s4704, %s4692, 64, 64, 4
        $region96: #{tpu_custom_call.1} parent=55 // pred_fallthru
          _
      $region56: #{tpu_custom_call.1} parent=5 // pred_fallthru
        _
      %p4712 = scmp.le.s32.totalorder 2, %s25
      // Predicated region
      $region97: #{tpu_custom_call.1} parent=5 // pred_check
        %p4713 = pneg %p4712
      $region98: #{tpu_custom_call.1} parent=5 // pred_check_branch
        %4715 = sbr.rel (%p4713) target = $region100
      $region99: #{tpu_custom_call.1} parent=5 // pred_region
        %s4716 = ssub.s32 %s25, 2
        // Predicated region
        $region101: #{tpu_custom_call.1} parent=99 // pred_check
          %p4717 = pneg %p248
        $region102: #{tpu_custom_call.1} parent=99 // pred_check_branch
          %4719 = sbr.rel (%p4717) target = $region104
        $region103: #{tpu_custom_call.1} parent=99 // pred_region
          %s4720 = sand.u32 %s233, 1
          %s4721 = scalar_lea.sflag [#allocation6], %s4720
          %s4722 = sand.u32 %s233, 1
          %s4723 = smul.addr %s4722, 128
          %s4724 = scalar_lea.vmem [#allocation19], %s4723
          %4725 = dma.done %s4721, 2048
        $region104: #{tpu_custom_call.1} parent=99 // pred_fallthru
          _
      $region100: #{tpu_custom_call.1} parent=5 // pred_fallthru
        _
    $region6: #{tpu_custom_call.1} parent=1 // loop_footer
      %s29 = sadd.s32 1, %s25
    $region7: #{tpu_custom_call.1} parent=1 // loop_footer_branch
      %24 = sbr.rel target = $region3
    $region8: #{tpu_custom_call.1} parent=1 // loop_exit
      _
    %4726 = vsyncpa [#allocation5], 1
    %s4727 = scalar_lea.sflag [#allocation5], 1
    %4728 = vsyncpa %s4727, 1
    %4729 = vsyncpa [#allocation8], 1
    %4730 = vsyncpa [#allocation11], 1
    %4731 = vsyncpa [#allocation14], 1
    %4732 = vsyncpa [#allocation17], 1
    %4733 = vsyncpa [#allocation6], 1
    %s4734 = scalar_lea.sflag [#allocation6], 1
    %4735 = vsyncpa %s4734, 1

// kernel: tpu_custom_call.1
$region0: #{tpu_custom_call.1}
  #allocation0 [shape = 'u32[]', space=smem, size = 0x4, offset = 0x4, fixed_abs, tag = 'smem constant byte address 0x4 - core index']
  #allocation1 [shape = 'u32[144,128]{1,0:T(1,128)}', space=vmem, size = 0x12000, scoped, tag = 'internal scratch']
  #allocation2 [shape = 'bf16[18,32,8]{2,1,0:T(16,128)(2,1)}', space=vmem, size = 0x24000, scoped, tag = 'scratch operand']
  #allocation3 [shape = 'bf16[256,72]{1,0:T(16,128)(2,1)}', space=vmem, size = 0x10000, scoped, tag = 'scratch operand']
  %s0 = inlined_call_operand.hbm [shape: bf16[2,16,16,16], index: 0, kind: input, shape index: {}]
  %s1 = inlined_call_operand.hbm [shape: bf16[16,8], index: 1, kind: input, shape index: {}]
  %s2 = inlined_call_operand.hbm [shape: f32[1,8], index: 2, kind: input, shape index: {}]
  %s3 = inlined_call_operand.hbm [shape: bf16[72,8], index: 3, kind: input, shape index: {}]
  %s4 = inlined_call_operand.hbm [shape: f32[1,8], index: 4, kind: input, shape index: {}]
  %s5 = inlined_call_operand.hbm [shape: bf16[8,32], index: 5, kind: input, shape index: {}]
  %s6 = inlined_call_operand.hbm [shape: f32[1,32], index: 6, kind: input, shape index: {}]
  %s7 = inlined_call_operand.hbm [shape: bf16[16,32], index: 7, kind: input, shape index: {}]
  %s8 = inlined_call_operand.hbm [shape: f32[1,32], index: 8, kind: input, shape index: {}]
  %s9 = inlined_call_operand.hbm [shape: bf16[2,16,16,32], index: 9, kind: output, shape index: {}]
  %s10 = sld [smem:[#allocation0]]
  $region105: #{tpu_custom_call.1} parent=0
    _
  %s12 = ssub.s32 1, %s10
  %s13 = scalar_select 0, %s12, %s10
  $region1: #{tpu_custom_call.1} parent=0
    #allocation4 [shape = 'u8[131072]{0}', space=vmem, size = 0x20000, scoped, tag = 'input window, operand 0']
    #allocation5 [shape = 's32[2]{0}', space=sflag, size = 0x8, scoped, tag = 'scoped memory for tpu_custom_call.1']
    #allocation6 [shape = 's32[2]{0}', space=sflag, size = 0x8, scoped, tag = 'scoped memory for tpu_custom_call.1']
    #allocation7 [shape = 'u8[4096]{0}', space=vmem, size = 0x1000, scoped, tag = 'input window, operand 1, single buffered']
    #allocation8 [shape = 's32[1]{0}', space=sflag, size = 0x4, scoped, tag = 'scoped memory for tpu_custom_call.1']
    #allocation9 [shape = 'u8[512]{0}', space=vmem, size = 0x400, scoped, tag = 'input window, operand 2, single buffered']
    #allocation10 [shape = 'u8[18432]{0}', space=vmem, size = 0x4800, scoped, tag = 'input window, operand 3, single buffered']
    #allocation11 [shape = 's32[1]{0}', space=sflag, size = 0x4, scoped, tag = 'scoped memory for tpu_custom_call.1']
    #allocation12 [shape = 'u8[512]{0}', space=vmem, size = 0x400, scoped, tag = 'input window, operand 4, single buffered']
    #allocation13 [shape = 'u8[2048]{0}', space=vmem, size = 0x800, scoped, tag = 'input window, operand 5, single buffered']
    #allocation14 [shape = 's32[1]{0}', space=sflag, size = 0x4, scoped, tag = 'scoped memory for tpu_custom_call.1']
    #allocation15 [shape = 'u8[512]{0}', space=vmem, size = 0x400, scoped, tag = 'input window, operand 6, single buffered']
    #allocation16 [shape = 'u8[4096]{0}', space=vmem, size = 0x1000, scoped, tag = 'input window, operand 7, single buffered']
    #allocation17 [shape = 's32[1]{0}', space=sflag, size = 0x4, scoped, tag = 'scoped memory for tpu_custom_call.1']
    #allocation18 [shape = 'u8[512]{0}', space=vmem, size = 0x400, scoped, tag = 'input window, operand 8, single buffered']
    #allocation19 [shape = 'u8[131072]{0}', space=vmem, size = 0x20000, scoped, tag = 'output window, operand 0']
    %14 = vsyncpa [#allocation5], 0
    %s15 = scalar_lea.sflag [#allocation5], 1
    %16 = vsyncpa %s15, 0
    %17 = vsyncpa [#allocation8], 0
    %18 = vsyncpa [#allocation11], 0
    %19 = vsyncpa [#allocation14], 0
    %20 = vsyncpa [#allocation17], 0
    %21 = vsyncpa [#allocation6], 0
    %s22 = scalar_lea.sflag [#allocation6], 1
    %23 = vsyncpa %s22, 0
    loop: start=0, step=1, limit=4
    $region2: #{tpu_custom_call.1} parent=1 // loop_pre_header
      _
    $region3: #{tpu_custom_call.1} parent=1 // loop_header
      %s25 = sphi 0, %s29
      %p26 = scmp.ge.s32.totalorder %s25, 4
      %s35 = sphi 0, %s37
      %s38 = sphi 0, %s35
      %s39 = sphi 0, %s38
      %s55 = sphi 0, %s39
      %s59 = sphi 0, %s59
      %s61 = sphi 0, %s59
      %s62 = sphi 0, %s61
      %s76 = sphi 0, %s62
      %s80 = sphi 0, %s80
      %s82 = sphi 0, %s80
      %s83 = sphi 0, %s82
      %s97 = sphi 0, %s83
      %s101 = sphi 0, %s101
      %s103 = sphi 0, %s101
      %s104 = sphi 0, %s103
      %s118 = sphi 0, %s104
      %s122 = sphi 0, %s122
      %s124 = sphi 0, %s122
      %s125 = sphi 0, %s124
      %s139 = sphi 0, %s125
      %s143 = sphi 0, %s143
      %s145 = sphi 0, %s143
      %s146 = sphi 0, %s145
      %s160 = sphi 0, %s146
      %s164 = sphi 0, %s164
      %s166 = sphi 0, %s164
      %s167 = sphi 0, %s166
      %s181 = sphi 0, %s167
      %s185 = sphi 0, %s185
      %s187 = sphi 0, %s185
      %s188 = sphi 0, %s187
      %s202 = sphi 0, %s188
      %s206 = sphi 0, %s206
      %s208 = sphi 0, %s206
      %s209 = sphi 0, %s208
      %s223 = sphi 0, %s209
      %s229 = sphi 0, %s231
      %s232 = sphi 0, %s229
      %s233 = sphi 0, %s232
      %s249 = sphi 0, %s233
    $region4: #{tpu_custom_call.1} parent=1 // loop_header_branch
      %28 = sbr.rel (%p26) target = $region8
    $region5: #{tpu_custom_call.1} parent=1 // loop_body
      %s30 = ssub.s32 %s25, 1
      %s31 = ssub.s32 %s25, 2
      %s32 = sadd.s32 %s25, 1
      %s33 = ssub.s32 %s25, %s32
      %p34 = scmp.eq.s32.totalorder %s33, 0
      %s36 = sadd.s32 %s35, 1
      %s37 = scalar_select %p34, %s35, %s36
      %p40 = pneg %p34
      %p41 = scmp.eq.s32.totalorder %s25, 1
      %p42 = por %p40, %p41
      %p43 = scmp.ne.s32.totalorder %s35, %s38
      %p44 = scmp.eq.s32.totalorder %s25, 0
      %p45 = por %p43, %p44
      %p46 = scmp.ne.s32.totalorder %s35, %s38
      %p47 = scmp.eq.s32.totalorder %s30, 1
      %p48 = por %p46, %p47
      %p49 = scmp.ne.s32.totalorder %s38, %s39
      %p50 = scmp.eq.s32.totalorder %s30, 0
      %p51 = por %p49, %p50
      %p52 = scmp.ne.s32.totalorder %s38, %s39
      %p53 = scmp.eq.s32.totalorder %s31, 1
      %p54 = por %p52, %p53
      %p56 = scmp.ne.s32.totalorder %s39, %s55
      %p57 = scmp.eq.s32.totalorder %s31, 0
      %p58 = por %p56, %p57
      %s60 = sadd.s32 %s59, 1
      %p63 = scmp.eq.s32.totalorder %s25, 1
      %p64 = scmp.ne.s32.totalorder %s59, %s61
      %p65 = scmp.eq.s32.totalorder %s25, 0
      %p66 = por %p64, %p65
      %p67 = scmp.ne.s32.totalorder %s59, %s61
      %p68 = scmp.eq.s32.totalorder %s30, 1
      %p69 = por %p67, %p68
      %p70 = scmp.ne.s32.totalorder %s61, %s62
      %p71 = scmp.eq.s32.totalorder %s30, 0
      %p72 = por %p70, %p71
      %p73 = scmp.ne.s32.totalorder %s61, %s62
      %p74 = scmp.eq.s32.totalorder %s31, 1
      %p75 = por %p73, %p74
      %p77 = scmp.ne.s32.totalorder %s62, %s76
      %p78 = scmp.eq.s32.totalorder %s31, 0
      %p79 = por %p77, %p78
      %s81 = sadd.s32 %s80, 1
      %p84 = scmp.eq.s32.totalorder %s25, 1
      %p85 = scmp.ne.s32.totalorder %s80, %s82
      %p86 = scmp.eq.s32.totalorder %s25, 0
      %p87 = por %p85, %p86
      %p88 = scmp.ne.s32.totalorder %s80, %s82
      %p89 = scmp.eq.s32.totalorder %s30, 1
      %p90 = por %p88, %p89
      %p91 = scmp.ne.s32.totalorder %s82, %s83
      %p92 = scmp.eq.s32.totalorder %s30, 0
      %p93 = por %p91, %p92
      %p94 = scmp.ne.s32.totalorder %s82, %s83
      %p95 = scmp.eq.s32.totalorder %s31, 1
      %p96 = por %p94, %p95
      %p98 = scmp.ne.s32.totalorder %s83, %s97
      %p99 = scmp.eq.s32.totalorder %s31, 0
      %p100 = por %p98, %p99
      %s102 = sadd.s32 %s101, 1
      %p105 = scmp.eq.s32.totalorder %s25, 1
      %p106 = scmp.ne.s32.totalorder %s101, %s103
      %p107 = scmp.eq.s32.totalorder %s25, 0
      %p108 = por %p106, %p107
      %p109 = scmp.ne.s32.totalorder %s101, %s103
      %p110 = scmp.eq.s32.totalorder %s30, 1
      %p111 = por %p109, %p110
      %p112 = scmp.ne.s32.totalorder %s103, %s104
      %p113 = scmp.eq.s32.totalorder %s30, 0
      %p114 = por %p112, %p113
      %p115 = scmp.ne.s32.totalorder %s103, %s104
      %p116 = scmp.eq.s32.totalorder %s31, 1
      %p117 = por %p115, %p116
      %p119 = scmp.ne.s32.totalorder %s104, %s118
      %p120 = scmp.eq.s32.totalorder %s31, 0
      %p121 = por %p119, %p120
      %s123 = sadd.s32 %s122, 1
      %p126 = scmp.eq.s32.totalorder %s25, 1
      %p127 = scmp.ne.s32.totalorder %s122, %s124
      %p128 = scmp.eq.s32.totalorder %s25, 0
      %p129 = por %p127, %p128
      %p130 = scmp.ne.s32.totalorder %s122, %s124
      %p131 = scmp.eq.s32.totalorder %s30, 1
      %p132 = por %p130, %p131
      %p133 = scmp.ne.s32.totalorder %s124, %s125
      %p134 = scmp.eq.s32.totalorder %s30, 0
      %p135 = por %p133, %p134
      %p136 = scmp.ne.s32.totalorder %s124, %s125
      %p137 = scmp.eq.s32.totalorder %s31, 1
      %p138 = por %p136, %p137
      %p140 = scmp.ne.s32.totalorder %s125, %s139
      %p141 = scmp.eq.s32.totalorder %s31, 0
      %p142 = por %p140, %p141
      %s144 = sadd.s32 %s143, 1
      %p147 = scmp.eq.s32.totalorder %s25, 1
      %p148 = scmp.ne.s32.totalorder %s143, %s145
      %p149 = scmp.eq.s32.totalorder %s25, 0
      %p150 = por %p148, %p149
      %p151 = scmp.ne.s32.totalorder %s143, %s145
      %p152 = scmp.eq.s32.totalorder %s30, 1
      %p153 = por %p151, %p152
      %p154 = scmp.ne.s32.totalorder %s145, %s146
      %p155 = scmp.eq.s32.totalorder %s30, 0
      %p156 = por %p154, %p155
      %p157 = scmp.ne.s32.totalorder %s145, %s146
      %p158 = scmp.eq.s32.totalorder %s31, 1
      %p159 = por %p157, %p158
      %p161 = scmp.ne.s32.totalorder %s146, %s160
      %p162 = scmp.eq.s32.totalorder %s31, 0
      %p163 = por %p161, %p162
      %s165 = sadd.s32 %s164, 1
      %p168 = scmp.eq.s32.totalorder %s25, 1
      %p169 = scmp.ne.s32.totalorder %s164, %s166
      %p170 = scmp.eq.s32.totalorder %s25, 0
      %p171 = por %p169, %p170
      %p172 = scmp.ne.s32.totalorder %s164, %s166
      %p173 = scmp.eq.s32.totalorder %s30, 1
      %p174 = por %p172, %p173
      %p175 = scmp.ne.s32.totalorder %s166, %s167
      %p176 = scmp.eq.s32.totalorder %s30, 0
      %p177 = por %p175, %p176
      %p178 = scmp.ne.s32.totalorder %s166, %s167
      %p179 = scmp.eq.s32.totalorder %s31, 1
      %p180 = por %p178, %p179
      %p182 = scmp.ne.s32.totalorder %s167, %s181
      %p183 = scmp.eq.s32.totalorder %s31, 0
      %p184 = por %p182, %p183
      %s186 = sadd.s32 %s185, 1
      %p189 = scmp.eq.s32.totalorder %s25, 1
      %p190 = scmp.ne.s32.totalorder %s185, %s187
      %p191 = scmp.eq.s32.totalorder %s25, 0
      %p192 = por %p190, %p191
      %p193 = scmp.ne.s32.totalorder %s185, %s187
      %p194 = scmp.eq.s32.totalorder %s30, 1
      %p195 = por %p193, %p194
      %p196 = scmp.ne.s32.totalorder %s187, %s188
      %p197 = scmp.eq.s32.totalorder %s30, 0
      %p198 = por %p196, %p197
      %p199 = scmp.ne.s32.totalorder %s187, %s188
      %p200 = scmp.eq.s32.totalorder %s31, 1
      %p201 = por %p199, %p200
      %p203 = scmp.ne.s32.totalorder %s188, %s202
      %p204 = scmp.eq.s32.totalorder %s31, 0
      %p205 = por %p203, %p204
      %s207 = sadd.s32 %s206, 1
      %p210 = scmp.eq.s32.totalorder %s25, 1
      %p211 = scmp.ne.s32.totalorder %s206, %s208
      %p212 = scmp.eq.s32.totalorder %s25, 0
      %p213 = por %p211, %p212
      %p214 = scmp.ne.s32.totalorder %s206, %s208
      %p215 = scmp.eq.s32.totalorder %s30, 1
      %p216 = por %p214, %p215
      %p217 = scmp.ne.s32.totalorder %s208, %s209
      %p218 = scmp.eq.s32.totalorder %s30, 0
      %p219 = por %p217, %p218
      %p220 = scmp.ne.s32.totalorder %s208, %s209
      %p221 = scmp.eq.s32.totalorder %s31, 1
      %p222 = por %p220, %p221
      %p224 = scmp.ne.s32.totalorder %s209, %s223
      %p225 = scmp.eq.s32.totalorder %s31, 0
      %p226 = por %p224, %p225
      %s227 = ssub.s32 %s25, %s32
      %p228 = scmp.eq.s32.totalorder %s227, 0
      %s230 = sadd.s32 %s229, 1
      %s231 = scalar_select %p228, %s229, %s230
      %p234 = pneg %p228
      %p235 = scmp.eq.s32.totalorder %s25, 1
      %p236 = por %p234, %p235
      %p237 = scmp.ne.s32.totalorder %s229, %s232
      %p238 = scmp.eq.s32.totalorder %s25, 0
      %p239 = por %p237, %p238
      %p240 = scmp.ne.s32.totalorder %s229, %s232
      %p241 = scmp.eq.s32.totalorder %s30, 1
      %p242 = por %p240, %p241
      %p243 = scmp.ne.s32.totalorder %s232, %s233
      %p244 = scmp.eq.s32.totalorder %s30, 0
      %p245 = por %p243, %p244
      %p246 = scmp.ne.s32.totalorder %s232, %s233
      %p247 = scmp.eq.s32.totalorder %s31, 1
      %p248 = por %p246, %p247
      %p250 = scmp.ne.s32.totalorder %s233, %s249
      %p251 = scmp.eq.s32.totalorder %s31, 0
      %p252 = por %p250, %p251
      %p253 = scmp.le.s32.totalorder 1, %s25
      %p254 = scmp.lt.s32.totalorder %s25, 3
      %p255 = pnand %p253, %p254
      %p256 = pneg %p255
      // Predicated region
      $region9: #{tpu_custom_call.1} parent=5 // pred_check
        _
      $region10: #{tpu_custom_call.1} parent=5 // pred_check_branch
        %258 = sbr.rel (%p255) target = $region12
      $region11: #{tpu_custom_call.1} parent=5 // pred_region
        %s259 = ssub.s32 %s25, 1
        // Predicated region
        $region13: #{tpu_custom_call.1} parent=11 // pred_check
          %p260 = pneg %p72
        $region14: #{tpu_custom_call.1} parent=11 // pred_check_branch
          %262 = sbr.rel (%p260) target = $region16
        $region15: #{tpu_custom_call.1} parent=11 // pred_region
          %s264 = ssub.s32 128, 128
          %265 = vsyncadd [#allocation8], %s264
          %s266 = sshll.u32 [#allocation7], 4
          %s267 = int_to_ptr.vmem [resolvable:$true] %s266
          %272 = dma.hbm_to_vmem [thread:$0]  %s1, 128, %s267, [#allocation8], 64, 64, 4
        $region16: #{tpu_custom_call.1} parent=11 // pred_fallthru
          _
        // Predicated region
        $region17: #{tpu_custom_call.1} parent=11 // pred_check
          %p273 = pneg %p93
        $region18: #{tpu_custom_call.1} parent=11 // pred_check_branch
          %275 = sbr.rel (%p273) target = $region20
        $region19: #{tpu_custom_call.1} parent=11 // pred_region
          %s277 = ssub.s32 16, 16
          %278 = vsyncadd [#allocation8], %s277
          %s280 = sshll.u32 [#allocation9], 4
          %s281 = int_to_ptr.vmem [resolvable:$true] %s280
          %283 = dma.hbm_to_vmem [thread:$0]  %s2, 16, %s281, [#allocation8]
        $region20: #{tpu_custom_call.1} parent=11 // pred_fallthru
          _
        // Predicated region
        $region21: #{tpu_custom_call.1} parent=11 // pred_check
          %p284 = pneg %p114
        $region22: #{tpu_custom_call.1} parent=11 // pred_check_branch
          %286 = sbr.rel (%p284) target = $region24
        $region23: #{tpu_custom_call.1} parent=11 // pred_region
          %s288 = ssub.s32 576, 576
          %289 = vsyncadd [#allocation11], %s288
          %s290 = sshll.u32 [#allocation10], 4
          %s291 = int_to_ptr.vmem [resolvable:$true] %s290
          %296 = dma.hbm_to_vmem [thread:$0]  %s3, 576, %s291, [#allocation11], 64, 64, 4
        $region24: #{tpu_custom_call.1} parent=11 // pred_fallthru
          _
        // Predicated region
        $region25: #{tpu_custom_call.1} parent=11 // pred_check
          %p297 = pneg %p135
        $region26: #{tpu_custom_call.1} parent=11 // pred_check_branch
          %299 = sbr.rel (%p297) target = $region28
        $region27: #{tpu_custom_call.1} parent=11 // pred_region
          %s301 = ssub.s32 16, 16
          %302 = vsyncadd [#allocation11], %s301
          %s304 = sshll.u32 [#allocation12], 4
          %s305 = int_to_ptr.vmem [resolvable:$true] %s304
          %307 = dma.hbm_to_vmem [thread:$0]  %s4, 16, %s305, [#allocation11]
        $region28: #{tpu_custom_call.1} parent=11 // pred_fallthru
          _
        // Predicated region
        $region29: #{tpu_custom_call.1} parent=11 // pred_check
          %p308 = pneg %p156
        $region30: #{tpu_custom_call.1} parent=11 // pred_check_branch
          %310 = sbr.rel (%p308) target = $region32
        $region31: #{tpu_custom_call.1} parent=11 // pred_region
          %s312 = ssub.s32 64, 64
          %313 = vsyncadd [#allocation14], %s312
          %s315 = sshll.u32 [#allocation13], 4
          %s316 = int_to_ptr.vmem [resolvable:$true] %s315
          %318 = dma.hbm_to_vmem [thread:$0]  %s5, 64, %s316, [#allocation14]
        $region32: #{tpu_custom_call.1} parent=11 // pred_fallthru
          _
        // Predicated region
        $region33: #{tpu_custom_call.1} parent=11 // pred_check
          %p319 = pneg %p177
        $region34: #{tpu_custom_call.1} parent=11 // pred_check_branch
          %321 = sbr.rel (%p319) target = $region36
        $region35: #{tpu_custom_call.1} parent=11 // pred_region
          %s323 = ssub.s32 16, 16
          %324 = vsyncadd [#allocation14], %s323
          %s326 = sshll.u32 [#allocation15], 4
          %s327 = int_to_ptr.vmem [resolvable:$true] %s326
          %329 = dma.hbm_to_vmem [thread:$0]  %s6, 16, %s327, [#allocation14]
        $region36: #{tpu_custom_call.1} parent=11 // pred_fallthru
          _
        // Predicated region
        $region37: #{tpu_custom_call.1} parent=11 // pred_check
          %p330 = pneg %p198
        $region38: #{tpu_custom_call.1} parent=11 // pred_check_branch
          %332 = sbr.rel (%p330) target = $region40
        $region39: #{tpu_custom_call.1} parent=11 // pred_region
          %s334 = ssub.s32 128, 128
          %335 = vsyncadd [#allocation17], %s334
          %s336 = sshll.u32 [#allocation16], 4
          %s337 = int_to_ptr.vmem [resolvable:$true] %s336
          %342 = dma.hbm_to_vmem [thread:$0]  %s7, 128, %s337, [#allocation17], 64, 64, 4
        $region40: #{tpu_custom_call.1} parent=11 // pred_fallthru
          _
        // Predicated region
        $region41: #{tpu_custom_call.1} parent=11 // pred_check
          %p343 = pneg %p219
        $region42: #{tpu_custom_call.1} parent=11 // pred_check_branch
          %345 = sbr.rel (%p343) target = $region44
        $region43: #{tpu_custom_call.1} parent=11 // pred_region
          %s347 = ssub.s32 16, 16
          %348 = vsyncadd [#allocation17], %s347
          %s350 = sshll.u32 [#allocation18], 4
          %s351 = int_to_ptr.vmem [resolvable:$true] %s350
          %353 = dma.hbm_to_vmem [thread:$0]  %s8, 16, %s351, [#allocation17]
        $region44: #{tpu_custom_call.1} parent=11 // pred_fallthru
          _
      $region12: #{tpu_custom_call.1} parent=5 // pred_fallthru
        _
      %p354 = scmp.lt.s32.totalorder %s25, 2
      // Predicated region
      $region45: #{tpu_custom_call.1} parent=5 // pred_check
        %p355 = pneg %p354
      $region46: #{tpu_custom_call.1} parent=5 // pred_check_branch
        %357 = sbr.rel (%p355) target = $region48
      $region47: #{tpu_custom_call.1} parent=5 // pred_region
        // Predicated region
        $region49: #{tpu_custom_call.1} parent=47 // pred_check
          %p358 = pneg %p45
        $region50: #{tpu_custom_call.1} parent=47 // pred_check_branch
          %360 = sbr.rel (%p358) target = $region52
        $region51: #{tpu_custom_call.1} parent=47 // pred_region
          %s361 = sand.u32 %s35, 1
          %s362 = scalar_lea.sflag [#allocation5], %s361
          %s363 = sand.u32 %s35, 1
          %s364 = smul.addr %s363, 128
          %s365 = scalar_lea.vmem [#allocation4], %s364
          %s367 = ssub.s32 2048, 2048
          %368 = vsyncadd %s362, %s367
          %s369 = smul.addr %s25, 32
          %s370 = smul.addr %s369, 64
          %s371 = scalar_lea.hbm %s0, %s370
          %s372 = sshll.u32 %s365, 4
          %s373 = int_to_ptr.vmem [resolvable:$true] %s372
          %378 = dma.hbm_to_vmem [thread:$0]  %s371, 2048, %s373, %s362, 64, 64, 4
        $region52: #{tpu_custom_call.1} parent=47 // pred_fallthru
          _
      $region48: #{tpu_custom_call.1} parent=5 // pred_fallthru
        _
      %p379 = scmp.le.s32.totalorder 1, %s25
      %p380 = scmp.lt.s32.totalorder %s25, 3
      %p381 = pnand %p379, %p380
      %p382 = pneg %p381
      // Predicated region
      $region53: #{tpu_custom_call.1} parent=5 // pred_check
        _
      $region54: #{tpu_custom_call.1} parent=5 // pred_check_branch
        %384 = sbr.rel (%p381) target = $region56
      $region55: #{tpu_custom_call.1} parent=5 // pred_region
        %s385 = ssub.s32 %s25, 1
        %s386 = sand.u32 %s38, 1
        %s387 = scalar_lea.sflag [#allocation5], %s386
        %s388 = sand.u32 %s38, 1
        %s389 = smul.addr %s388, 128
        %s390 = scalar_lea.vmem [#allocation4], %s389
        // Predicated region
        $region57: #{tpu_custom_call.1} parent=55 // pred_check
          %p391 = pneg %p51
        $region58: #{tpu_custom_call.1} parent=55 // pred_check_branch
          %393 = sbr.rel (%p391) target = $region60
        $region59: #{tpu_custom_call.1} parent=55 // pred_region
          %394 = dma.done %s387, 2048
        $region60: #{tpu_custom_call.1} parent=55 // pred_fallthru
          _
        // Predicated region
        $region61: #{tpu_custom_call.1} parent=55 // pred_check
          %p395 = pneg %p72
        $region62: #{tpu_custom_call.1} parent=55 // pred_check_branch
          %397 = sbr.rel (%p395) target = $region64
        $region63: #{tpu_custom_call.1} parent=55 // pred_region
          %398 = dma.done [#allocation8], 128
        $region64: #{tpu_custom_call.1} parent=55 // pred_fallthru
          _
        // Predicated region
        $region65: #{tpu_custom_call.1} parent=55 // pred_check
          %p399 = pneg %p93
        $region66: #{tpu_custom_call.1} parent=55 // pred_check_branch
          %401 = sbr.rel (%p399) target = $region68
        $region67: #{tpu_custom_call.1} parent=55 // pred_region
          %402 = dma.done [#allocation8], 16
        $region68: #{tpu_custom_call.1} parent=55 // pred_fallthru
          _
        // Predicated region
        $region69: #{tpu_custom_call.1} parent=55 // pred_check
          %p403 = pneg %p114
        $region70: #{tpu_custom_call.1} parent=55 // pred_check_branch
          %405 = sbr.rel (%p403) target = $region72
        $region71: #{tpu_custom_call.1} parent=55 // pred_region
          %406 = dma.done [#allocation11], 576
        $region72: #{tpu_custom_call.1} parent=55 // pred_fallthru
          _
        // Predicated region
        $region73: #{tpu_custom_call.1} parent=55 // pred_check
          %p407 = pneg %p135
        $region74: #{tpu_custom_call.1} parent=55 // pred_check_branch
          %409 = sbr.rel (%p407) target = $region76
        $region75: #{tpu_custom_call.1} parent=55 // pred_region
          %410 = dma.done [#allocation11], 16
        $region76: #{tpu_custom_call.1} parent=55 // pred_fallthru
          _
        // Predicated region
        $region77: #{tpu_custom_call.1} parent=55 // pred_check
          %p411 = pneg %p156
        $region78: #{tpu_custom_call.1} parent=55 // pred_check_branch
          %413 = sbr.rel (%p411) target = $region80
        $region79: #{tpu_custom_call.1} parent=55 // pred_region
          %414 = dma.done [#allocation14], 64
        $region80: #{tpu_custom_call.1} parent=55 // pred_fallthru
          _
        // Predicated region
        $region81: #{tpu_custom_call.1} parent=55 // pred_check
          %p415 = pneg %p177
        $region82: #{tpu_custom_call.1} parent=55 // pred_check_branch
          %417 = sbr.rel (%p415) target = $region84
        $region83: #{tpu_custom_call.1} parent=55 // pred_region
          %418 = dma.done [#allocation14], 16
        $region84: #{tpu_custom_call.1} parent=55 // pred_fallthru
          _
        // Predicated region
        $region85: #{tpu_custom_call.1} parent=55 // pred_check
          %p419 = pneg %p198
        $region86: #{tpu_custom_call.1} parent=55 // pred_check_branch
          %421 = sbr.rel (%p419) target = $region88
        $region87: #{tpu_custom_call.1} parent=55 // pred_region
          %422 = dma.done [#allocation17], 128
        $region88: #{tpu_custom_call.1} parent=55 // pred_fallthru
          _
        // Predicated region
        $region89: #{tpu_custom_call.1} parent=55 // pred_check
          %p423 = pneg %p219
        $region90: #{tpu_custom_call.1} parent=55 // pred_check_branch
          %425 = sbr.rel (%p423) target = $region92
        $region91: #{tpu_custom_call.1} parent=55 // pred_region
          %426 = dma.done [#allocation17], 16
        $region92: #{tpu_custom_call.1} parent=55 // pred_fallthru
          _
        %s427 = sand.u32 %s38, 1
        %s428 = scalar_lea.sflag [#allocation5], %s427
        %s429 = sand.u32 %s38, 1
        %s430 = smul.addr %s429, 128
        %s431 = scalar_lea.vmem [#allocation4], %s430
        %p432 = pneg %p51
        %p433 = pneg %p48
        %p434 = pneg %p72
        %p435 = pneg %p69
        %p436 = pneg %p93
        %p437 = pneg %p90
        %p438 = pneg %p114
        %p439 = pneg %p111
        %p440 = pneg %p135
        %p441 = pneg %p132
        %p442 = pneg %p156
        %p443 = pneg %p153
        %p444 = pneg %p177
        %p445 = pneg %p174
        %p446 = pneg %p198
        %p447 = pneg %p195
        %p448 = pneg %p219
        %p449 = pneg %p216
        %p450 = pneg %p245
        %p451 = pneg %p242
        %s452 = sand.u32 %s232, 1
        %s453 = scalar_lea.sflag [#allocation6], %s452
        %s454 = sand.u32 %s232, 1
        %s455 = smul.addr %s454, 128
        %s456 = scalar_lea.vmem [#allocation19], %s455
        %v458 = vld [vmem:[%s390] sm:$0xf]
        %v459 = vld [vmem:[%s390 + $0x4] sm:$0xf]
        %v460 = vld [vmem:[%s390 + $0x8] sm:$0xf]
        %v461 = vld [vmem:[%s390 + $0xc] sm:$0xf]
        %v462 = vld [vmem:[%s390 + $0x10] sm:$0xf]
        %v463 = vld [vmem:[%s390 + $0x14] sm:$0xf]
        %v464 = vld [vmem:[%s390 + $0x18] sm:$0xf]
        %v465 = vld [vmem:[%s390 + $0x1c] sm:$0xf]
        %v466 = vld [vmem:[%s390 + $0x20] sm:$0xf]
        %v467 = vld [vmem:[%s390 + $0x24] sm:$0xf]
        %v468 = vld [vmem:[%s390 + $0x28] sm:$0xf]
        %v469 = vld [vmem:[%s390 + $0x2c] sm:$0xf]
        %v470 = vld [vmem:[%s390 + $0x30] sm:$0xf]
        %v471 = vld [vmem:[%s390 + $0x34] sm:$0xf]
        %v472 = vld [vmem:[%s390 + $0x38] sm:$0xf]
        %v473 = vld [vmem:[%s390 + $0x3c] sm:$0xf]
        %v474 = vld [vmem:[%s390 + $0x40] sm:$0xf]
        %v475 = vld [vmem:[%s390 + $0x44] sm:$0xf]
        %v476 = vld [vmem:[%s390 + $0x48] sm:$0xf]
        %v477 = vld [vmem:[%s390 + $0x4c] sm:$0xf]
        %v478 = vld [vmem:[%s390 + $0x50] sm:$0xf]
        %v479 = vld [vmem:[%s390 + $0x54] sm:$0xf]
        %v480 = vld [vmem:[%s390 + $0x58] sm:$0xf]
        %v481 = vld [vmem:[%s390 + $0x5c] sm:$0xf]
        %v482 = vld [vmem:[%s390 + $0x60] sm:$0xf]
        %v483 = vld [vmem:[%s390 + $0x64] sm:$0xf]
        %v484 = vld [vmem:[%s390 + $0x68] sm:$0xf]
        %v485 = vld [vmem:[%s390 + $0x6c] sm:$0xf]
        %v486 = vld [vmem:[%s390 + $0x70] sm:$0xf]
        %v487 = vld [vmem:[%s390 + $0x74] sm:$0xf]
        %v488 = vld [vmem:[%s390 + $0x78] sm:$0xf]
        %v489 = vld [vmem:[%s390 + $0x7c] sm:$0xf]
        %v490 = vld [vmem:[#allocation7] sm:$0xf]
        %v491 = vld [vmem:[#allocation7 + $0x4] sm:$0xf]
        %v492 = vld [vmem:[#allocation9] sm:$0x1]
        %v494 = vlaneseq
        %v495 = vshrl.u32 %v494, 7
        %v496 = vsub.s32 0, %v495
        %v497 = vrot.slane %v492, %v496
        %v531 = vunpack.c.l.b16 %v458
        %v532 = vunpack.c.l.b16 %v459
        %v533 = vunpack.c.l.b16 %v460
        %v534 = vunpack.c.l.b16 %v461
        %v535 = vunpack.c.l.b16 %v462
        %v536 = vunpack.c.l.b16 %v463
        %v537 = vunpack.c.l.b16 %v464
        %v538 = vunpack.c.l.b16 %v465
        %v539 = vunpack.c.l.b16 %v466
        %v540 = vunpack.c.l.b16 %v467
        %v541 = vunpack.c.l.b16 %v468
        %v542 = vunpack.c.l.b16 %v469
        %v543 = vunpack.c.l.b16 %v470
        %v544 = vunpack.c.l.b16 %v471
        %v545 = vunpack.c.l.b16 %v472
        %v546 = vunpack.c.l.b16 %v473
        %v547 = vunpack.c.l.b16 %v474
        %v548 = vunpack.c.l.b16 %v475
        %v549 = vunpack.c.l.b16 %v476
        %v550 = vunpack.c.l.b16 %v477
        %v551 = vunpack.c.l.b16 %v478
        %v552 = vunpack.c.l.b16 %v479
        %v553 = vunpack.c.l.b16 %v480
        %v554 = vunpack.c.l.b16 %v481
        %v555 = vunpack.c.l.b16 %v482
        %v556 = vunpack.c.l.b16 %v483
        %v557 = vunpack.c.l.b16 %v484
        %v558 = vunpack.c.l.b16 %v485
        %v559 = vunpack.c.l.b16 %v486
        %v560 = vunpack.c.l.b16 %v487
        %v561 = vunpack.c.l.b16 %v488
        %v562 = vunpack.c.l.b16 %v489
        %v563 = vpack.c.b16 %v532, %v531
        %v564 = vpack.c.b16 %v534, %v533
        %v565 = vpack.c.b16 %v536, %v535
        %v566 = vpack.c.b16 %v538, %v537
        %v567 = vpack.c.b16 %v540, %v539
        %v568 = vpack.c.b16 %v542, %v541
        %v569 = vpack.c.b16 %v544, %v543
        %v570 = vpack.c.b16 %v546, %v545
        %v571 = vpack.c.b16 %v548, %v547
        %v572 = vpack.c.b16 %v550, %v549
        %v573 = vpack.c.b16 %v552, %v551
        %v574 = vpack.c.b16 %v554, %v553
        %v575 = vpack.c.b16 %v556, %v555
        %v576 = vpack.c.b16 %v558, %v557
        %v577 = vpack.c.b16 %v560, %v559
        %v578 = vpack.c.b16 %v562, %v561
        %v581 = vunpack.c.l.b16 %v490
        %v582 = vunpack.c.l.b16 %v491
        %v583 = vpack.c.b16 %v582, %v581
        %vm585 = vcmask 130048
        %v587 = vsel %vm585, %v563, 0
        %v590 = vsel %vm585, %v564, 0
        %v593 = vsel %vm585, %v565, 0
        %v596 = vsel %vm585, %v566, 0
        %v599 = vsel %vm585, %v567, 0
        %v602 = vsel %vm585, %v568, 0
        %v605 = vsel %vm585, %v569, 0
        %v608 = vsel %vm585, %v570, 0
        %v611 = vsel %vm585, %v571, 0
        %v614 = vsel %vm585, %v572, 0
        %v617 = vsel %vm585, %v573, 0
        %v620 = vsel %vm585, %v574, 0
        %v623 = vsel %vm585, %v575, 0
        %v626 = vsel %vm585, %v576, 0
        %v629 = vsel %vm585, %v577, 0
        %v632 = vsel %vm585, %v578, 0
        %634 = vmatprep.subr.bf16.mxu0 0
        %635 = vmatpush1.bf16.msra.mxu0 %v583
        %636 = vmatprep.subr.bf16.mxu0 0
        %637 = vmatpush1.bf16.msra.mxu0 0
        %638 = vmatprep.subr.bf16.mxu0 0
        %639 = vmatpush1.bf16.msra.mxu0 0
        %640 = vmatprep.subr.bf16.mxu0 0
        %641 = vmatpush1.bf16.msra.mxu0 0
        %642 = vmatprep.subr.bf16.mxu0 0
        %643 = vmatpush1.bf16.msra.mxu0 0
        %644 = vmatprep.subr.bf16.mxu0 0
        %645 = vmatpush1.bf16.msra.mxu0 0
        %646 = vmatprep.subr.bf16.mxu0 0
        %647 = vmatpush1.bf16.msra.mxu0 0
        %648 = vmatprep.subr.bf16.mxu0 0
        %649 = vmatpush1.bf16.msra.mxu0 0
        %650 = vmatprep.subr.bf16.mxu0 0
        %651 = vmatpush1.bf16.msra.mxu0 0
        %652 = vmatprep.subr.bf16.mxu0 0
        %653 = vmatpush1.bf16.msra.mxu0 0
        %654 = vmatprep.subr.bf16.mxu0 0
        %655 = vmatpush1.bf16.msra.mxu0 0
        %656 = vmatprep.subr.bf16.mxu0 0
        %657 = vmatpush1.bf16.msra.mxu0 0
        %658 = vmatprep.subr.bf16.mxu0 0
        %659 = vmatpush1.bf16.msra.mxu0 0
        %660 = vmatprep.subr.bf16.mxu0 0
        %661 = vmatpush1.bf16.msra.mxu0 0
        %662 = vmatprep.subr.bf16.mxu0 0
        %663 = vmatpush1.bf16.msra.mxu0 0
        %664 = vmatprep.subr.bf16.mxu0 0
        %665 = vmatpush1.bf16.msra.mxu0 0
        %666 = vmatprep.mubr.bf16.mxu0 0
        %667 = vmatmul.mubr.bf16.gmra.mrb[0].mxu0 %v587
        %v668 = vpop.f32.mrb[0].mxu0
        %v669 = vadd.f32 %v497, %v668
        %v670 = vpop.f32.mrb[0].mxu0
        %v671 = vpop.f32.mrb[0].mxu0
        %v672 = vadd.f32 %v497, %v671
        %v673 = vpop.f32.mrb[0].mxu0
        %674 = vmatprep.mubr.bf16.mxu0 0
        %675 = vmatmul.mubr.bf16.gmra.mrb[0].mxu0 %v590
        %v676 = vpop.f32.mrb[0].mxu0
        %v677 = vadd.f32 %v497, %v676
        %v678 = vpop.f32.mrb[0].mxu0
        %v679 = vpop.f32.mrb[0].mxu0
        %v680 = vadd.f32 %v497, %v679
        %v681 = vpop.f32.mrb[0].mxu0
        %682 = vmatprep.mubr.bf16.mxu0 0
        %683 = vmatmul.mubr.bf16.gmra.mrb[0].mxu0 %v593
        %v684 = vpop.f32.mrb[0].mxu0
        %v685 = vadd.f32 %v497, %v684
        %v686 = vpop.f32.mrb[0].mxu0
        %v687 = vpop.f32.mrb[0].mxu0
        %v688 = vadd.f32 %v497, %v687
        %v689 = vpop.f32.mrb[0].mxu0
        %690 = vmatprep.mubr.bf16.mxu0 0
        %691 = vmatmul.mubr.bf16.gmra.mrb[0].mxu0 %v596
        %v692 = vpop.f32.mrb[0].mxu0
        %v693 = vadd.f32 %v497, %v692
        %v694 = vpop.f32.mrb[0].mxu0
        %v695 = vpop.f32.mrb[0].mxu0
        %v696 = vadd.f32 %v497, %v695
        %v697 = vpop.f32.mrb[0].mxu0
        %698 = vmatprep.mubr.bf16.mxu0 0
        %699 = vmatmul.mubr.bf16.gmra.mrb[0].mxu0 %v599
        %v700 = vpop.f32.mrb[0].mxu0
        %v701 = vadd.f32 %v497, %v700
        %v702 = vpop.f32.mrb[0].mxu0
        %v703 = vpop.f32.mrb[0].mxu0
        %v704 = vadd.f32 %v497, %v703
        %v705 = vpop.f32.mrb[0].mxu0
        %706 = vmatprep.mubr.bf16.mxu0 0
        %707 = vmatmul.mubr.bf16.gmra.mrb[0].mxu0 %v602
        %v708 = vpop.f32.mrb[0].mxu0
        %v709 = vadd.f32 %v497, %v708
        %v710 = vpop.f32.mrb[0].mxu0
        %v711 = vpop.f32.mrb[0].mxu0
        %v712 = vadd.f32 %v497, %v711
        %v713 = vpop.f32.mrb[0].mxu0
        %714 = vmatprep.mubr.bf16.mxu0 0
        %715 = vmatmul.mubr.bf16.gmra.mrb[0].mxu0 %v605
        %v716 = vpop.f32.mrb[0].mxu0
        %v717 = vadd.f32 %v497, %v716
        %v718 = vpop.f32.mrb[0].mxu0
        %v719 = vpop.f32.mrb[0].mxu0
        %v720 = vadd.f32 %v497, %v719
        %v721 = vpop.f32.mrb[0].mxu0
        %722 = vmatprep.mubr.bf16.mxu0 0
        %723 = vmatmul.mubr.bf16.gmra.mrb[0].mxu0 %v608
        %v724 = vpop.f32.mrb[0].mxu0
        %v725 = vadd.f32 %v497, %v724
        %v726 = vpop.f32.mrb[0].mxu0
        %v727 = vpop.f32.mrb[0].mxu0
        %v728 = vadd.f32 %v497, %v727
        %v729 = vpop.f32.mrb[0].mxu0
        %730 = vmatprep.mubr.bf16.mxu0 0
        %731 = vmatmul.mubr.bf16.gmra.mrb[0].mxu0 %v611
        %v732 = vpop.f32.mrb[0].mxu0
        %v733 = vadd.f32 %v497, %v732
        %v734 = vpop.f32.mrb[0].mxu0
        %v735 = vpop.f32.mrb[0].mxu0
        %v736 = vadd.f32 %v497, %v735
        %v737 = vpop.f32.mrb[0].mxu0
        %738 = vmatprep.mubr.bf16.mxu0 0
        %739 = vmatmul.mubr.bf16.gmra.mrb[0].mxu0 %v614
        %v740 = vpop.f32.mrb[0].mxu0
        %v741 = vadd.f32 %v497, %v740
        %v742 = vpop.f32.mrb[0].mxu0
        %v743 = vpop.f32.mrb[0].mxu0
        %v744 = vadd.f32 %v497, %v743
        %v745 = vpop.f32.mrb[0].mxu0
        %746 = vmatprep.mubr.bf16.mxu0 0
        %747 = vmatmul.mubr.bf16.gmra.mrb[0].mxu0 %v617
        %v748 = vpop.f32.mrb[0].mxu0
        %v749 = vadd.f32 %v497, %v748
        %v750 = vpop.f32.mrb[0].mxu0
        %v751 = vpop.f32.mrb[0].mxu0
        %v752 = vadd.f32 %v497, %v751
        %v753 = vpop.f32.mrb[0].mxu0
        %754 = vmatprep.mubr.bf16.mxu0 0
        %755 = vmatmul.mubr.bf16.gmra.mrb[0].mxu0 %v620
        %v756 = vpop.f32.mrb[0].mxu0
        %v757 = vadd.f32 %v497, %v756
        %v758 = vpop.f32.mrb[0].mxu0
        %v759 = vpop.f32.mrb[0].mxu0
        %v760 = vadd.f32 %v497, %v759
        %v761 = vpop.f32.mrb[0].mxu0
        %762 = vmatprep.mubr.bf16.mxu0 0
        %763 = vmatmul.mubr.bf16.gmra.mrb[0].mxu0 %v623
        %v764 = vpop.f32.mrb[0].mxu0
        %v765 = vadd.f32 %v497, %v764
        %v766 = vpop.f32.mrb[0].mxu0
        %v767 = vpop.f32.mrb[0].mxu0
        %v768 = vadd.f32 %v497, %v767
        %v769 = vpop.f32.mrb[0].mxu0
        %770 = vmatprep.mubr.bf16.mxu0 0
        %771 = vmatmul.mubr.bf16.gmra.mrb[0].mxu0 %v626
        %v772 = vpop.f32.mrb[0].mxu0
        %v773 = vadd.f32 %v497, %v772
        %v774 = vpop.f32.mrb[0].mxu0
        %v775 = vpop.f32.mrb[0].mxu0
        %v776 = vadd.f32 %v497, %v775
        %v777 = vpop.f32.mrb[0].mxu0
        %778 = vmatprep.mubr.bf16.mxu0 0
        %779 = vmatmul.mubr.bf16.gmra.mrb[0].mxu0 %v629
        %v780 = vpop.f32.mrb[0].mxu0
        %v781 = vadd.f32 %v497, %v780
        %v782 = vpop.f32.mrb[0].mxu0
        %v783 = vpop.f32.mrb[0].mxu0
        %v784 = vadd.f32 %v497, %v783
        %v785 = vpop.f32.mrb[0].mxu0
        %786 = vmatprep.mubr.bf16.mxu0 0
        %787 = vmatmul.mubr.bf16.gmra.mrb[0].mxu0 %v632
        %v788 = vpop.f32.mrb[0].mxu0
        %v789 = vadd.f32 %v497, %v788
        %v790 = vpop.f32.mrb[0].mxu0
        %v791 = vpop.f32.mrb[0].mxu0
        %v792 = vadd.f32 %v497, %v791
        %v793 = vpop.f32.mrb[0].mxu0
        %794 = vdwg.mxu0
        %v795 = vmax.f32 %v669, 0.0
        %v796 = vmax.f32 %v672, 0.0
        %v797 = vmax.f32 %v677, 0.0
        %v798 = vmax.f32 %v680, 0.0
        %v799 = vmax.f32 %v685, 0.0
        %v800 = vmax.f32 %v688, 0.0
        %v801 = vmax.f32 %v693, 0.0
        %v802 = vmax.f32 %v696, 0.0
        %v803 = vmax.f32 %v701, 0.0
        %v804 = vmax.f32 %v704, 0.0
        %v805 = vmax.f32 %v709, 0.0
        %v806 = vmax.f32 %v712, 0.0
        %v807 = vmax.f32 %v717, 0.0
        %v808 = vmax.f32 %v720, 0.0
        %v809 = vmax.f32 %v725, 0.0
        %v810 = vmax.f32 %v728, 0.0
        %v811 = vmax.f32 %v733, 0.0
        %v812 = vmax.f32 %v736, 0.0
        %v813 = vmax.f32 %v741, 0.0
        %v814 = vmax.f32 %v744, 0.0
        %v815 = vmax.f32 %v749, 0.0
        %v816 = vmax.f32 %v752, 0.0
        %v817 = vmax.f32 %v757, 0.0
        %v818 = vmax.f32 %v760, 0.0
        %v819 = vmax.f32 %v765, 0.0
        %v820 = vmax.f32 %v768, 0.0
        %v821 = vmax.f32 %v773, 0.0
        %v822 = vmax.f32 %v776, 0.0
        %v823 = vmax.f32 %v781, 0.0
        %v824 = vmax.f32 %v784, 0.0
        %v825 = vmax.f32 %v789, 0.0
        %v826 = vmax.f32 %v792, 0.0
        %vm827 = vcmask 64512
        %828 = vst.msk [vmem:[#allocation2] sm:$0xff] %vm827, 0
        %829 = vst.msk [vmem:[#allocation2 + $0x8] sm:$0xff] %vm827, 0
        %s830 = scalar_lea.vmem [#allocation2], 272
        %831 = vst.msk [vmem:[%s830] sm:$0xff] %vm827, 0
        %832 = vst.msk [vmem:[%s830 + $0x8] sm:$0xff] %vm827, 0
        %s833 = scalar_lea.vmem [#allocation2], 16
        %vm834 = vcmask 60419
        %vm835 = vsmask.f32 7950
        %vm836 = vmand %vm834, %vm835
        %v837 = vld [vmem:[%s833] sm:$0x8]
        %v838 = vsel %vm836, 0, %v837
        %839 = vst [vmem:[%s833] sm:$0x8] %v838
        %v840 = vld [vmem:[%s833 + $0x10] sm:$0x8]
        %v841 = vsel %vm836, 0, %v840
        %842 = vst [vmem:[%s833 + $0x10] sm:$0x8] %v841
        %v843 = vld [vmem:[%s833 + $0x20] sm:$0x8]
        %v844 = vsel %vm836, 0, %v843
        %845 = vst [vmem:[%s833 + $0x20] sm:$0x8] %v844
        %v846 = vld [vmem:[%s833 + $0x30] sm:$0x8]
        %v847 = vsel %vm836, 0, %v846
        %848 = vst [vmem:[%s833 + $0x30] sm:$0x8] %v847
        %v849 = vld [vmem:[%s833 + $0x40] sm:$0x8]
        %v850 = vsel %vm836, 0, %v849
        %851 = vst [vmem:[%s833 + $0x40] sm:$0x8] %v850
        %v852 = vld [vmem:[%s833 + $0x50] sm:$0x8]
        %v853 = vsel %vm836, 0, %v852
        %854 = vst [vmem:[%s833 + $0x50] sm:$0x8] %v853
        %v855 = vld [vmem:[%s833 + $0x60] sm:$0x8]
        %v856 = vsel %vm836, 0, %v855
        %857 = vst [vmem:[%s833 + $0x60] sm:$0x8] %v856
        %v858 = vld [vmem:[%s833 + $0x70] sm:$0x8]
        %v859 = vsel %vm836, 0, %v858
        %860 = vst [vmem:[%s833 + $0x70] sm:$0x8] %v859
        %v861 = vld [vmem:[%s833 + $0x80] sm:$0x8]
        %v862 = vsel %vm836, 0, %v861
        %863 = vst [vmem:[%s833 + $0x80] sm:$0x8] %v862
        %v864 = vld [vmem:[%s833 + $0x90] sm:$0x8]
        %v865 = vsel %vm836, 0, %v864
        %866 = vst [vmem:[%s833 + $0x90] sm:$0x8] %v865
        %v867 = vld [vmem:[%s833 + $0xa0] sm:$0x8]
        %v868 = vsel %vm836, 0, %v867
        %869 = vst [vmem:[%s833 + $0xa0] sm:$0x8] %v868
        %v870 = vld [vmem:[%s833 + $0xb0] sm:$0x8]
        %v871 = vsel %vm836, 0, %v870
        %872 = vst [vmem:[%s833 + $0xb0] sm:$0x8] %v871
        %v873 = vld [vmem:[%s833 + $0xc0] sm:$0x8]
        %v874 = vsel %vm836, 0, %v873
        %875 = vst [vmem:[%s833 + $0xc0] sm:$0x8] %v874
        %v876 = vld [vmem:[%s833 + $0xd0] sm:$0x8]
        %v877 = vsel %vm836, 0, %v876
        %878 = vst [vmem:[%s833 + $0xd0] sm:$0x8] %v877
        %v879 = vld [vmem:[%s833 + $0xe0] sm:$0x8]
        %v880 = vsel %vm836, 0, %v879
        %881 = vst [vmem:[%s833 + $0xe0] sm:$0x8] %v880
        %v882 = vld [vmem:[%s833 + $0xf0] sm:$0x8]
        %v883 = vsel %vm836, 0, %v882
        %884 = vst [vmem:[%s833 + $0xf0] sm:$0x8] %v883
        %vm885 = vcmask 61444
        %vm886 = vsmask.f32 4352
        %vm887 = vmand %vm885, %vm886
        %v888 = vld [vmem:[%s833 + $0x8] sm:$0x10]
        %v889 = vsel %vm887, 0, %v888
        %890 = vst [vmem:[%s833 + $0x8] sm:$0x10] %v889
        %v891 = vld [vmem:[%s833 + $0x18] sm:$0x10]
        %v892 = vsel %vm887, 0, %v891
        %893 = vst [vmem:[%s833 + $0x18] sm:$0x10] %v892
        %v894 = vld [vmem:[%s833 + $0x28] sm:$0x10]
        %v895 = vsel %vm887, 0, %v894
        %896 = vst [vmem:[%s833 + $0x28] sm:$0x10] %v895
        %v897 = vld [vmem:[%s833 + $0x38] sm:$0x10]
        %v898 = vsel %vm887, 0, %v897
        %899 = vst [vmem:[%s833 + $0x38] sm:$0x10] %v898
        %v900 = vld [vmem:[%s833 + $0x48] sm:$0x10]
        %v901 = vsel %vm887, 0, %v900
        %902 = vst [vmem:[%s833 + $0x48] sm:$0x10] %v901
        %v903 = vld [vmem:[%s833 + $0x58] sm:$0x10]
        %v904 = vsel %vm887, 0, %v903
        %905 = vst [vmem:[%s833 + $0x58] sm:$0x10] %v904
        %v906 = vld [vmem:[%s833 + $0x68] sm:$0x10]
        %v907 = vsel %vm887, 0, %v906
        %908 = vst [vmem:[%s833 + $0x68] sm:$0x10] %v907
        %v909 = vld [vmem:[%s833 + $0x78] sm:$0x10]
        %v910 = vsel %vm887, 0, %v909
        %911 = vst [vmem:[%s833 + $0x78] sm:$0x10] %v910
        %v912 = vld [vmem:[%s833 + $0x88] sm:$0x10]
        %v913 = vsel %vm887, 0, %v912
        %914 = vst [vmem:[%s833 + $0x88] sm:$0x10] %v913
        %v915 = vld [vmem:[%s833 + $0x98] sm:$0x10]
        %v916 = vsel %vm887, 0, %v915
        %917 = vst [vmem:[%s833 + $0x98] sm:$0x10] %v916
        %v918 = vld [vmem:[%s833 + $0xa8] sm:$0x10]
        %v919 = vsel %vm887, 0, %v918
        %920 = vst [vmem:[%s833 + $0xa8] sm:$0x10] %v919
        %v921 = vld [vmem:[%s833 + $0xb8] sm:$0x10]
        %v922 = vsel %vm887, 0, %v921
        %923 = vst [vmem:[%s833 + $0xb8] sm:$0x10] %v922
        %v924 = vld [vmem:[%s833 + $0xc8] sm:$0x10]
        %v925 = vsel %vm887, 0, %v924
        %926 = vst [vmem:[%s833 + $0xc8] sm:$0x10] %v925
        %v927 = vld [vmem:[%s833 + $0xd8] sm:$0x10]
        %v928 = vsel %vm887, 0, %v927
        %929 = vst [vmem:[%s833 + $0xd8] sm:$0x10] %v928
        %v930 = vld [vmem:[%s833 + $0xe8] sm:$0x10]
        %v931 = vsel %vm887, 0, %v930
        %932 = vst [vmem:[%s833 + $0xe8] sm:$0x10] %v931
        %v933 = vld [vmem:[%s833 + $0xf8] sm:$0x10]
        %v934 = vsel %vm887, 0, %v933
        %935 = vst [vmem:[%s833 + $0xf8] sm:$0x10] %v934
        %v936 = vpack.c.bf16 %v796, %v795
        %v937 = vpack.c.bf16 %v798, %v797
        %v938 = vpack.c.bf16 %v800, %v799
        %v939 = vpack.c.bf16 %v802, %v801
        %v940 = vpack.c.bf16 %v804, %v803
        %v941 = vpack.c.bf16 %v806, %v805
        %v942 = vpack.c.bf16 %v808, %v807
        %v943 = vpack.c.bf16 %v810, %v809
        %v944 = vpack.c.bf16 %v812, %v811
        %v945 = vpack.c.bf16 %v814, %v813
        %v946 = vpack.c.bf16 %v816, %v815
        %v947 = vpack.c.bf16 %v818, %v817
        %v948 = vpack.c.bf16 %v820, %v819
        %v949 = vpack.c.bf16 %v822, %v821
        %v950 = vpack.c.bf16 %v824, %v823
        %v951 = vpack.c.bf16 %v826, %v825
        %v968 = vrot.slane %v936, 4
        %v969 = vrot.slane %v937, 4
        %v970 = vrot.slane %v938, 4
        %v971 = vrot.slane %v939, 4
        %v972 = vrot.slane %v940, 4
        %v973 = vrot.slane %v941, 4
        %v974 = vrot.slane %v942, 4
        %v975 = vrot.slane %v943, 4
        %v976 = vrot.slane %v944, 4
        %v977 = vrot.slane %v945, 4
        %v978 = vrot.slane %v946, 4
        %v979 = vrot.slane %v947, 4
        %v980 = vrot.slane %v948, 4
        %v981 = vrot.slane %v949, 4
        %v982 = vrot.slane %v950, 4
        %v983 = vrot.slane %v951, 4
        %vm1000 = vcmask 64516
        %1001 = vst.msk [vmem:[%s833] sm:$0xf0] %vm1000, %v968
        %vm1002 = vcmask 60416
        %1003 = vst.msk [vmem:[%s833 + $0x8] sm:$0xf] %vm1002, %v968
        %1004 = vst.msk [vmem:[%s833 + $0x10] sm:$0xf0] %vm1000, %v969
        %1005 = vst.msk [vmem:[%s833 + $0x18] sm:$0xf] %vm1002, %v969
        %1006 = vst.msk [vmem:[%s833 + $0x20] sm:$0xf0] %vm1000, %v970
        %1007 = vst.msk [vmem:[%s833 + $0x28] sm:$0xf] %vm1002, %v970
        %1008 = vst.msk [vmem:[%s833 + $0x30] sm:$0xf0] %vm1000, %v971
        %1009 = vst.msk [vmem:[%s833 + $0x38] sm:$0xf] %vm1002, %v971
        %1010 = vst.msk [vmem:[%s833 + $0x40] sm:$0xf0] %vm1000, %v972
        %1011 = vst.msk [vmem:[%s833 + $0x48] sm:$0xf] %vm1002, %v972
        %1012 = vst.msk [vmem:[%s833 + $0x50] sm:$0xf0] %vm1000, %v973
        %1013 = vst.msk [vmem:[%s833 + $0x58] sm:$0xf] %vm1002, %v973
        %1014 = vst.msk [vmem:[%s833 + $0x60] sm:$0xf0] %vm1000, %v974
        %1015 = vst.msk [vmem:[%s833 + $0x68] sm:$0xf] %vm1002, %v974
        %1016 = vst.msk [vmem:[%s833 + $0x70] sm:$0xf0] %vm1000, %v975
        %1017 = vst.msk [vmem:[%s833 + $0x78] sm:$0xf] %vm1002, %v975
        %1018 = vst.msk [vmem:[%s833 + $0x80] sm:$0xf0] %vm1000, %v976
        %1019 = vst.msk [vmem:[%s833 + $0x88] sm:$0xf] %vm1002, %v976
        %1020 = vst.msk [vmem:[%s833 + $0x90] sm:$0xf0] %vm1000, %v977
        %1021 = vst.msk [vmem:[%s833 + $0x98] sm:$0xf] %vm1002, %v977
        %1022 = vst.msk [vmem:[%s833 + $0xa0] sm:$0xf0] %vm1000, %v978
        %1023 = vst.msk [vmem:[%s833 + $0xa8] sm:$0xf] %vm1002, %v978
        %1024 = vst.msk [vmem:[%s833 + $0xb0] sm:$0xf0] %vm1000, %v979
        %1025 = vst.msk [vmem:[%s833 + $0xb8] sm:$0xf] %vm1002, %v979
        %1026 = vst.msk [vmem:[%s833 + $0xc0] sm:$0xf0] %vm1000, %v980
        %1027 = vst.msk [vmem:[%s833 + $0xc8] sm:$0xf] %vm1002, %v980
        %1028 = vst.msk [vmem:[%s833 + $0xd0] sm:$0xf0] %vm1000, %v981
        %1029 = vst.msk [vmem:[%s833 + $0xd8] sm:$0xf] %vm1002, %v981
        %1030 = vst.msk [vmem:[%s833 + $0xe0] sm:$0xf0] %vm1000, %v982
        %1031 = vst.msk [vmem:[%s833 + $0xe8] sm:$0xf] %vm1002, %v982
        %1032 = vst.msk [vmem:[%s833 + $0xf0] sm:$0xf0] %vm1000, %v983
        %1033 = vst.msk [vmem:[%s833 + $0xf8] sm:$0xf] %vm1002, %v983
        %v1034 = vld [vmem:[#allocation2] sm:$0xf8]
        %v1035 = vld [vmem:[#allocation2 + $0x8] sm:$0xf]
        %v1036 = vld [vmem:[#allocation2 + $0x10] sm:$0xf8]
        %v1037 = vld [vmem:[#allocation2 + $0x18] sm:$0xf]
        %v1038 = vld [vmem:[#allocation2 + $0x20] sm:$0xf8]
        %v1039 = vld [vmem:[#allocation2 + $0x28] sm:$0xf]
        %v1040 = vld [vmem:[#allocation2 + $0x30] sm:$0xf8]
        %v1041 = vld [vmem:[#allocation2 + $0x38] sm:$0xf]
        %v1042 = vld [vmem:[#allocation2 + $0x40] sm:$0xf8]
        %v1043 = vld [vmem:[#allocation2 + $0x48] sm:$0xf]
        %v1044 = vld [vmem:[#allocation2 + $0x50] sm:$0xf8]
        %v1045 = vld [vmem:[#allocation2 + $0x58] sm:$0xf]
        %v1046 = vld [vmem:[#allocation2 + $0x60] sm:$0xf8]
        %v1047 = vld [vmem:[#allocation2 + $0x68] sm:$0xf]
        %v1048 = vld [vmem:[#allocation2 + $0x70] sm:$0xf8]
        %v1049 = vld [vmem:[#allocation2 + $0x78] sm:$0xf]
        %v1050 = vld [vmem:[#allocation2 + $0x80] sm:$0xf8]
        %v1051 = vld [vmem:[#allocation2 + $0x88] sm:$0xf]
        %v1052 = vld [vmem:[#allocation2 + $0x90] sm:$0xf8]
        %v1053 = vld [vmem:[#allocation2 + $0x98] sm:$0xf]
        %v1054 = vld [vmem:[#allocation2 + $0xa0] sm:$0xf8]
        %v1055 = vld [vmem:[#allocation2 + $0xa8] sm:$0xf]
        %v1056 = vld [vmem:[#allocation2 + $0xb0] sm:$0xf8]
        %v1057 = vld [vmem:[#allocation2 + $0xb8] sm:$0xf]
        %v1058 = vld [vmem:[#allocation2 + $0xc0] sm:$0xf8]
        %v1059 = vld [vmem:[#allocation2 + $0xc8] sm:$0xf]
        %v1060 = vld [vmem:[#allocation2 + $0xd0] sm:$0xf8]
        %v1061 = vld [vmem:[#allocation2 + $0xd8] sm:$0xf]
        %v1062 = vld [vmem:[#allocation2 + $0xe0] sm:$0xf8]
        %v1063 = vld [vmem:[#allocation2 + $0xe8] sm:$0xf]
        %v1064 = vld [vmem:[#allocation2 + $0xf0] sm:$0xf8]
        %v1065 = vld [vmem:[#allocation2 + $0xf8] sm:$0xf]
        %v1067 = vshrl.u32 %v1034, 16
        %v1069 = vrot.slane %v1067, 3
        %v1070 = vshll.u32 %v1034, 16
        %v1072 = vrot.slane %v1070, 4
        %v1073 = vor.u32 %v1069, %v1072
        %v1075 = vshrl.u32 %v1035, 16
        %v1077 = vrot.slane %v1075, 3
        %v1078 = vshll.u32 %v1035, 16
        %v1080 = vrot.slane %v1078, 4
        %v1081 = vor.u32 %v1077, %v1080
        %v1082 = vsel %vm886, %v1073, %v1081
        %v1084 = vshrl.u32 %v1036, 16
        %v1086 = vrot.slane %v1084, 3
        %v1087 = vshll.u32 %v1036, 16
        %v1089 = vrot.slane %v1087, 4
        %v1090 = vor.u32 %v1086, %v1089
        %v1092 = vshrl.u32 %v1037, 16
        %v1094 = vrot.slane %v1092, 3
        %v1095 = vshll.u32 %v1037, 16
        %v1097 = vrot.slane %v1095, 4
        %v1098 = vor.u32 %v1094, %v1097
        %v1099 = vsel %vm886, %v1090, %v1098
        %v1101 = vshrl.u32 %v1038, 16
        %v1103 = vrot.slane %v1101, 3
        %v1104 = vshll.u32 %v1038, 16
        %v1106 = vrot.slane %v1104, 4
        %v1107 = vor.u32 %v1103, %v1106
        %v1109 = vshrl.u32 %v1039, 16
        %v1111 = vrot.slane %v1109, 3
        %v1112 = vshll.u32 %v1039, 16
        %v1114 = vrot.slane %v1112, 4
        %v1115 = vor.u32 %v1111, %v1114
        %v1116 = vsel %vm886, %v1107, %v1115
        %v1118 = vshrl.u32 %v1040, 16
        %v1120 = vrot.slane %v1118, 3
        %v1121 = vshll.u32 %v1040, 16
        %v1123 = vrot.slane %v1121, 4
        %v1124 = vor.u32 %v1120, %v1123
        %v1126 = vshrl.u32 %v1041, 16
        %v1128 = vrot.slane %v1126, 3
        %v1129 = vshll.u32 %v1041, 16
        %v1131 = vrot.slane %v1129, 4
        %v1132 = vor.u32 %v1128, %v1131
        %v1133 = vsel %vm886, %v1124, %v1132
        %v1135 = vshrl.u32 %v1042, 16
        %v1137 = vrot.slane %v1135, 3
        %v1138 = vshll.u32 %v1042, 16
        %v1140 = vrot.slane %v1138, 4
        %v1141 = vor.u32 %v1137, %v1140
        %v1143 = vshrl.u32 %v1043, 16
        %v1145 = vrot.slane %v1143, 3
        %v1146 = vshll.u32 %v1043, 16
        %v1148 = vrot.slane %v1146, 4
        %v1149 = vor.u32 %v1145, %v1148
        %v1150 = vsel %vm886, %v1141, %v1149
        %v1152 = vshrl.u32 %v1044, 16
        %v1154 = vrot.slane %v1152, 3
        %v1155 = vshll.u32 %v1044, 16
        %v1157 = vrot.slane %v1155, 4
        %v1158 = vor.u32 %v1154, %v1157
        %v1160 = vshrl.u32 %v1045, 16
        %v1162 = vrot.slane %v1160, 3
        %v1163 = vshll.u32 %v1045, 16
        %v1165 = vrot.slane %v1163, 4
        %v1166 = vor.u32 %v1162, %v1165
        %v1167 = vsel %vm886, %v1158, %v1166
        %v1169 = vshrl.u32 %v1046, 16
        %v1171 = vrot.slane %v1169, 3
        %v1172 = vshll.u32 %v1046, 16
        %v1174 = vrot.slane %v1172, 4
        %v1175 = vor.u32 %v1171, %v1174
        %v1177 = vshrl.u32 %v1047, 16
        %v1179 = vrot.slane %v1177, 3
        %v1180 = vshll.u32 %v1047, 16
        %v1182 = vrot.slane %v1180, 4
        %v1183 = vor.u32 %v1179, %v1182
        %v1184 = vsel %vm886, %v1175, %v1183
        %v1186 = vshrl.u32 %v1048, 16
        %v1188 = vrot.slane %v1186, 3
        %v1189 = vshll.u32 %v1048, 16
        %v1191 = vrot.slane %v1189, 4
        %v1192 = vor.u32 %v1188, %v1191
        %v1194 = vshrl.u32 %v1049, 16
        %v1196 = vrot.slane %v1194, 3
        %v1197 = vshll.u32 %v1049, 16
        %v1199 = vrot.slane %v1197, 4
        %v1200 = vor.u32 %v1196, %v1199
        %v1201 = vsel %vm886, %v1192, %v1200
        %v1203 = vshrl.u32 %v1050, 16
        %v1205 = vrot.slane %v1203, 3
        %v1206 = vshll.u32 %v1050, 16
        %v1208 = vrot.slane %v1206, 4
        %v1209 = vor.u32 %v1205, %v1208
        %v1211 = vshrl.u32 %v1051, 16
        %v1213 = vrot.slane %v1211, 3
        %v1214 = vshll.u32 %v1051, 16
        %v1216 = vrot.slane %v1214, 4
        %v1217 = vor.u32 %v1213, %v1216
        %v1218 = vsel %vm886, %v1209, %v1217
        %v1220 = vshrl.u32 %v1052, 16
        %v1222 = vrot.slane %v1220, 3
        %v1223 = vshll.u32 %v1052, 16
        %v1225 = vrot.slane %v1223, 4
        %v1226 = vor.u32 %v1222, %v1225
        %v1228 = vshrl.u32 %v1053, 16
        %v1230 = vrot.slane %v1228, 3
        %v1231 = vshll.u32 %v1053, 16
        %v1233 = vrot.slane %v1231, 4
        %v1234 = vor.u32 %v1230, %v1233
        %v1235 = vsel %vm886, %v1226, %v1234
        %v1237 = vshrl.u32 %v1054, 16
        %v1239 = vrot.slane %v1237, 3
        %v1240 = vshll.u32 %v1054, 16
        %v1242 = vrot.slane %v1240, 4
        %v1243 = vor.u32 %v1239, %v1242
        %v1245 = vshrl.u32 %v1055, 16
        %v1247 = vrot.slane %v1245, 3
        %v1248 = vshll.u32 %v1055, 16
        %v1250 = vrot.slane %v1248, 4
        %v1251 = vor.u32 %v1247, %v1250
        %v1252 = vsel %vm886, %v1243, %v1251
        %v1254 = vshrl.u32 %v1056, 16
        %v1256 = vrot.slane %v1254, 3
        %v1257 = vshll.u32 %v1056, 16
        %v1259 = vrot.slane %v1257, 4
        %v1260 = vor.u32 %v1256, %v1259
        %v1262 = vshrl.u32 %v1057, 16
        %v1264 = vrot.slane %v1262, 3
        %v1265 = vshll.u32 %v1057, 16
        %v1267 = vrot.slane %v1265, 4
        %v1268 = vor.u32 %v1264, %v1267
        %v1269 = vsel %vm886, %v1260, %v1268
        %v1271 = vshrl.u32 %v1058, 16
        %v1273 = vrot.slane %v1271, 3
        %v1274 = vshll.u32 %v1058, 16
        %v1276 = vrot.slane %v1274, 4
        %v1277 = vor.u32 %v1273, %v1276
        %v1279 = vshrl.u32 %v1059, 16
        %v1281 = vrot.slane %v1279, 3
        %v1282 = vshll.u32 %v1059, 16
        %v1284 = vrot.slane %v1282, 4
        %v1285 = vor.u32 %v1281, %v1284
        %v1286 = vsel %vm886, %v1277, %v1285
        %v1288 = vshrl.u32 %v1060, 16
        %v1290 = vrot.slane %v1288, 3
        %v1291 = vshll.u32 %v1060, 16
        %v1293 = vrot.slane %v1291, 4
        %v1294 = vor.u32 %v1290, %v1293
        %v1296 = vshrl.u32 %v1061, 16
        %v1298 = vrot.slane %v1296, 3
        %v1299 = vshll.u32 %v1061, 16
        %v1301 = vrot.slane %v1299, 4
        %v1302 = vor.u32 %v1298, %v1301
        %v1303 = vsel %vm886, %v1294, %v1302
        %v1305 = vshrl.u32 %v1062, 16
        %v1307 = vrot.slane %v1305, 3
        %v1308 = vshll.u32 %v1062, 16
        %v1310 = vrot.slane %v1308, 4
        %v1311 = vor.u32 %v1307, %v1310
        %v1313 = vshrl.u32 %v1063, 16
        %v1315 = vrot.slane %v1313, 3
        %v1316 = vshll.u32 %v1063, 16
        %v1318 = vrot.slane %v1316, 4
        %v1319 = vor.u32 %v1315, %v1318
        %v1320 = vsel %vm886, %v1311, %v1319
        %v1322 = vshrl.u32 %v1064, 16
        %v1324 = vrot.slane %v1322, 3
        %v1325 = vshll.u32 %v1064, 16
        %v1327 = vrot.slane %v1325, 4
        %v1328 = vor.u32 %v1324, %v1327
        %v1330 = vshrl.u32 %v1065, 16
        %v1332 = vrot.slane %v1330, 3
        %v1333 = vshll.u32 %v1065, 16
        %v1335 = vrot.slane %v1333, 4
        %v1336 = vor.u32 %v1332, %v1335
        %v1337 = vsel %vm886, %v1328, %v1336
        %1354 = vst.msk [vmem:[#allocation3] sm:$0xff] %vm827, %v1082
        %1355 = vst.msk [vmem:[#allocation3 + $0x8] sm:$0xff] %vm827, %v1099
        %1356 = vst.msk [vmem:[#allocation3 + $0x10] sm:$0xff] %vm827, %v1116
        %1357 = vst.msk [vmem:[#allocation3 + $0x18] sm:$0xff] %vm827, %v1133
        %1358 = vst.msk [vmem:[#allocation3 + $0x20] sm:$0xff] %vm827, %v1150
        %1359 = vst.msk [vmem:[#allocation3 + $0x28] sm:$0xff] %vm827, %v1167
        %1360 = vst.msk [vmem:[#allocation3 + $0x30] sm:$0xff] %vm827, %v1184
        %1361 = vst.msk [vmem:[#allocation3 + $0x38] sm:$0xff] %vm827, %v1201
        %1362 = vst.msk [vmem:[#allocation3 + $0x40] sm:$0xff] %vm827, %v1218
        %1363 = vst.msk [vmem:[#allocation3 + $0x48] sm:$0xff] %vm827, %v1235
        %1364 = vst.msk [vmem:[#allocation3 + $0x50] sm:$0xff] %vm827, %v1252
        %1365 = vst.msk [vmem:[#allocation3 + $0x58] sm:$0xff] %vm827, %v1269
        %1366 = vst.msk [vmem:[#allocation3 + $0x60] sm:$0xff] %vm827, %v1286
        %1367 = vst.msk [vmem:[#allocation3 + $0x68] sm:$0xff] %vm827, %v1303
        %1368 = vst.msk [vmem:[#allocation3 + $0x70] sm:$0xff] %vm827, %v1320
        %1369 = vst.msk [vmem:[#allocation3 + $0x78] sm:$0xff] %vm827, %v1337
        %v1370 = vld [vmem:[#allocation2] sm:$0xf0]
        %v1371 = vld [vmem:[#allocation2 + $0x8] sm:$0xf]
        %v1372 = vld [vmem:[#allocation2 + $0x10] sm:$0xf0]
        %v1373 = vld [vmem:[#allocation2 + $0x18] sm:$0xf]
        %v1374 = vld [vmem:[#allocation2 + $0x20] sm:$0xf0]
        %v1375 = vld [vmem:[#allocation2 + $0x28] sm:$0xf]
        %v1376 = vld [vmem:[#allocation2 + $0x30] sm:$0xf0]
        %v1377 = vld [vmem:[#allocation2 + $0x38] sm:$0xf]
        %v1378 = vld [vmem:[#allocation2 + $0x40] sm:$0xf0]
        %v1379 = vld [vmem:[#allocation2 + $0x48] sm:$0xf]
        %v1380 = vld [vmem:[#allocation2 + $0x50] sm:$0xf0]
        %v1381 = vld [vmem:[#allocation2 + $0x58] sm:$0xf]
        %v1382 = vld [vmem:[#allocation2 + $0x60] sm:$0xf0]
        %v1383 = vld [vmem:[#allocation2 + $0x68] sm:$0xf]
        %v1384 = vld [vmem:[#allocation2 + $0x70] sm:$0xf0]
        %v1385 = vld [vmem:[#allocation2 + $0x78] sm:$0xf]
        %v1386 = vld [vmem:[#allocation2 + $0x80] sm:$0xf0]
        %v1387 = vld [vmem:[#allocation2 + $0x88] sm:$0xf]
        %v1388 = vld [vmem:[#allocation2 + $0x90] sm:$0xf0]
        %v1389 = vld [vmem:[#allocation2 + $0x98] sm:$0xf]
        %v1390 = vld [vmem:[#allocation2 + $0xa0] sm:$0xf0]
        %v1391 = vld [vmem:[#allocation2 + $0xa8] sm:$0xf]
        %v1392 = vld [vmem:[#allocation2 + $0xb0] sm:$0xf0]
        %v1393 = vld [vmem:[#allocation2 + $0xb8] sm:$0xf]
        %v1394 = vld [vmem:[#allocation2 + $0xc0] sm:$0xf0]
        %v1395 = vld [vmem:[#allocation2 + $0xc8] sm:$0xf]
        %v1396 = vld [vmem:[#allocation2 + $0xd0] sm:$0xf0]
        %v1397 = vld [vmem:[#allocation2 + $0xd8] sm:$0xf]
        %v1398 = vld [vmem:[#allocation2 + $0xe0] sm:$0xf0]
        %v1399 = vld [vmem:[#allocation2 + $0xe8] sm:$0xf]
        %v1400 = vld [vmem:[#allocation2 + $0xf0] sm:$0xf0]
        %v1401 = vld [vmem:[#allocation2 + $0xf8] sm:$0xf]
        %vm1434 = vcmask 1043456
        %v1435 = vrot.slane %v1370, 4
        %v1436 = vrot.slane %v1371, 4
        %v1437 = vsel %vm1434, %v1435, %v1436
        %v1438 = vrot.slane %v1372, 4
        %v1439 = vrot.slane %v1373, 4
        %v1440 = vsel %vm1434, %v1438, %v1439
        %v1441 = vrot.slane %v1374, 4
        %v1442 = vrot.slane %v1375, 4
        %v1443 = vsel %vm1434, %v1441, %v1442
        %v1444 = vrot.slane %v1376, 4
        %v1445 = vrot.slane %v1377, 4
        %v1446 = vsel %vm1434, %v1444, %v1445
        %v1447 = vrot.slane %v1378, 4
        %v1448 = vrot.slane %v1379, 4
        %v1449 = vsel %vm1434, %v1447, %v1448
        %v1450 = vrot.slane %v1380, 4
        %v1451 = vrot.slane %v1381, 4
        %v1452 = vsel %vm1434, %v1450, %v1451
        %v1453 = vrot.slane %v1382, 4
        %v1454 = vrot.slane %v1383, 4
        %v1455 = vsel %vm1434, %v1453, %v1454
        %v1456 = vrot.slane %v1384, 4
        %v1457 = vrot.slane %v1385, 4
        %v1458 = vsel %vm1434, %v1456, %v1457
        %v1459 = vrot.slane %v1386, 4
        %v1460 = vrot.slane %v1387, 4
        %v1461 = vsel %vm1434, %v1459, %v1460
        %v1462 = vrot.slane %v1388, 4
        %v1463 = vrot.slane %v1389, 4
        %v1464 = vsel %vm1434, %v1462, %v1463
        %v1465 = vrot.slane %v1390, 4
        %v1466 = vrot.slane %v1391, 4
        %v1467 = vsel %vm1434, %v1465, %v1466
        %v1468 = vrot.slane %v1392, 4
        %v1469 = vrot.slane %v1393, 4
        %v1470 = vsel %vm1434, %v1468, %v1469
        %v1471 = vrot.slane %v1394, 4
        %v1472 = vrot.slane %v1395, 4
        %v1473 = vsel %vm1434, %v1471, %v1472
        %v1474 = vrot.slane %v1396, 4
        %v1475 = vrot.slane %v1397, 4
        %v1476 = vsel %vm1434, %v1474, %v1475
        %v1477 = vrot.slane %v1398, 4
        %v1478 = vrot.slane %v1399, 4
        %v1479 = vsel %vm1434, %v1477, %v1478
        %v1480 = vrot.slane %v1400, 4
        %v1481 = vrot.slane %v1401, 4
        %v1482 = vsel %vm1434, %v1480, %v1481
        %1483 = vrot.lane.b32.xlu0 %v1437, 8
        %v1484 = vpop.permute.xlu0 %1483
        %1485 = vrot.lane.b32.xlu0 %v1440, 8
        %v1486 = vpop.permute.xlu0 %1485
        %1487 = vrot.lane.b32.xlu0 %v1443, 8
        %v1488 = vpop.permute.xlu0 %1487
        %1489 = vrot.lane.b32.xlu0 %v1446, 8
        %v1490 = vpop.permute.xlu0 %1489
        %1491 = vrot.lane.b32.xlu0 %v1449, 8
        %v1492 = vpop.permute.xlu0 %1491
        %1493 = vrot.lane.b32.xlu0 %v1452, 8
        %v1494 = vpop.permute.xlu0 %1493
        %1495 = vrot.lane.b32.xlu0 %v1455, 8
        %v1496 = vpop.permute.xlu0 %1495
        %1497 = vrot.lane.b32.xlu0 %v1458, 8
        %v1498 = vpop.permute.xlu0 %1497
        %1499 = vrot.lane.b32.xlu0 %v1461, 8
        %v1500 = vpop.permute.xlu0 %1499
        %1501 = vrot.lane.b32.xlu0 %v1464, 8
        %v1502 = vpop.permute.xlu0 %1501
        %1503 = vrot.lane.b32.xlu0 %v1467, 8
        %v1504 = vpop.permute.xlu0 %1503
        %1505 = vrot.lane.b32.xlu0 %v1470, 8
        %v1506 = vpop.permute.xlu0 %1505
        %1507 = vrot.lane.b32.xlu0 %v1473, 8
        %v1508 = vpop.permute.xlu0 %1507
        %1509 = vrot.lane.b32.xlu0 %v1476, 8
        %v1510 = vpop.permute.xlu0 %1509
        %1511 = vrot.lane.b32.xlu0 %v1479, 8
        %v1512 = vpop.permute.xlu0 %1511
        %1513 = vrot.lane.b32.xlu0 %v1482, 8
        %v1514 = vpop.permute.xlu0 %1513
        %vm1531 = vcmask 130112
        %1532 = vst.msk [vmem:[#allocation3] sm:$0xff] %vm1531, %v1484
        %1533 = vst.msk [vmem:[#allocation3 + $0x8] sm:$0xff] %vm1531, %v1486
        %1534 = vst.msk [vmem:[#allocation3 + $0x10] sm:$0xff] %vm1531, %v1488
        %1535 = vst.msk [vmem:[#allocation3 + $0x18] sm:$0xff] %vm1531, %v1490
        %1536 = vst.msk [vmem:[#allocation3 + $0x20] sm:$0xff] %vm1531, %v1492
        %1537 = vst.msk [vmem:[#allocation3 + $0x28] sm:$0xff] %vm1531, %v1494
        %1538 = vst.msk [vmem:[#allocation3 + $0x30] sm:$0xff] %vm1531, %v1496
        %1539 = vst.msk [vmem:[#allocation3 + $0x38] sm:$0xff] %vm1531, %v1498
        %1540 = vst.msk [vmem:[#allocation3 + $0x40] sm:$0xff] %vm1531, %v1500
        %1541 = vst.msk [vmem:[#allocation3 + $0x48] sm:$0xff] %vm1531, %v1502
        %1542 = vst.msk [vmem:[#allocation3 + $0x50] sm:$0xff] %vm1531, %v1504
        %1543 = vst.msk [vmem:[#allocation3 + $0x58] sm:$0xff] %vm1531, %v1506
        %1544 = vst.msk [vmem:[#allocation3 + $0x60] sm:$0xff] %vm1531, %v1508
        %1545 = vst.msk [vmem:[#allocation3 + $0x68] sm:$0xff] %vm1531, %v1510
        %1546 = vst.msk [vmem:[#allocation3 + $0x70] sm:$0xff] %vm1531, %v1512
        %1547 = vst.msk [vmem:[#allocation3 + $0x78] sm:$0xff] %vm1531, %v1514
        %v1548 = vld [vmem:[#allocation2] sm:$0xf0]
        %v1549 = vld [vmem:[#allocation2 + $0x8] sm:$0x1f]
        %v1550 = vld [vmem:[#allocation2 + $0x10] sm:$0xf0]
        %v1551 = vld [vmem:[#allocation2 + $0x18] sm:$0x1f]
        %v1552 = vld [vmem:[#allocation2 + $0x20] sm:$0xf0]
        %v1553 = vld [vmem:[#allocation2 + $0x28] sm:$0x1f]
        %v1554 = vld [vmem:[#allocation2 + $0x30] sm:$0xf0]
        %v1555 = vld [vmem:[#allocation2 + $0x38] sm:$0x1f]
        %v1556 = vld [vmem:[#allocation2 + $0x40] sm:$0xf0]
        %v1557 = vld [vmem:[#allocation2 + $0x48] sm:$0x1f]
        %v1558 = vld [vmem:[#allocation2 + $0x50] sm:$0xf0]
        %v1559 = vld [vmem:[#allocation2 + $0x58] sm:$0x1f]
        %v1560 = vld [vmem:[#allocation2 + $0x60] sm:$0xf0]
        %v1561 = vld [vmem:[#allocation2 + $0x68] sm:$0x1f]
        %v1562 = vld [vmem:[#allocation2 + $0x70] sm:$0xf0]
        %v1563 = vld [vmem:[#allocation2 + $0x78] sm:$0x1f]
        %v1564 = vld [vmem:[#allocation2 + $0x80] sm:$0xf0]
        %v1565 = vld [vmem:[#allocation2 + $0x88] sm:$0x1f]
        %v1566 = vld [vmem:[#allocation2 + $0x90] sm:$0xf0]
        %v1567 = vld [vmem:[#allocation2 + $0x98] sm:$0x1f]
        %v1568 = vld [vmem:[#allocation2 + $0xa0] sm:$0xf0]
        %v1569 = vld [vmem:[#allocation2 + $0xa8] sm:$0x1f]
        %v1570 = vld [vmem:[#allocation2 + $0xb0] sm:$0xf0]
        %v1571 = vld [vmem:[#allocation2 + $0xb8] sm:$0x1f]
        %v1572 = vld [vmem:[#allocation2 + $0xc0] sm:$0xf0]
        %v1573 = vld [vmem:[#allocation2 + $0xc8] sm:$0x1f]
        %v1574 = vld [vmem:[#allocation2 + $0xd0] sm:$0xf0]
        %v1575 = vld [vmem:[#allocation2 + $0xd8] sm:$0x1f]
        %v1576 = vld [vmem:[#allocation2 + $0xe0] sm:$0xf0]
        %v1577 = vld [vmem:[#allocation2 + $0xe8] sm:$0x1f]
        %v1578 = vld [vmem:[#allocation2 + $0xf0] sm:$0xf0]
        %v1579 = vld [vmem:[#allocation2 + $0xf8] sm:$0x1f]
        %vm1580 = vsmask.f32 3328
        %v1582 = vshrl.u32 %v1548, 16
        %v1584 = vrot.slane %v1582, 4
        %v1585 = vshll.u32 %v1548, 16
        %v1587 = vrot.slane %v1585, 5
        %v1588 = vor.u32 %v1584, %v1587
        %v1590 = vshrl.u32 %v1549, 16
        %v1592 = vrot.slane %v1590, 4
        %v1593 = vshll.u32 %v1549, 16
        %v1595 = vrot.slane %v1593, 5
        %v1596 = vor.u32 %v1592, %v1595
        %v1597 = vsel %vm1580, %v1588, %v1596
        %v1599 = vshrl.u32 %v1550, 16
        %v1601 = vrot.slane %v1599, 4
        %v1602 = vshll.u32 %v1550, 16
        %v1604 = vrot.slane %v1602, 5
        %v1605 = vor.u32 %v1601, %v1604
        %v1607 = vshrl.u32 %v1551, 16
        %v1609 = vrot.slane %v1607, 4
        %v1610 = vshll.u32 %v1551, 16
        %v1612 = vrot.slane %v1610, 5
        %v1613 = vor.u32 %v1609, %v1612
        %v1614 = vsel %vm1580, %v1605, %v1613
        %v1616 = vshrl.u32 %v1552, 16
        %v1618 = vrot.slane %v1616, 4
        %v1619 = vshll.u32 %v1552, 16
        %v1621 = vrot.slane %v1619, 5
        %v1622 = vor.u32 %v1618, %v1621
        %v1624 = vshrl.u32 %v1553, 16
        %v1626 = vrot.slane %v1624, 4
        %v1627 = vshll.u32 %v1553, 16
        %v1629 = vrot.slane %v1627, 5
        %v1630 = vor.u32 %v1626, %v1629
        %v1631 = vsel %vm1580, %v1622, %v1630
        %v1633 = vshrl.u32 %v1554, 16
        %v1635 = vrot.slane %v1633, 4
        %v1636 = vshll.u32 %v1554, 16
        %v1638 = vrot.slane %v1636, 5
        %v1639 = vor.u32 %v1635, %v1638
        %v1641 = vshrl.u32 %v1555, 16
        %v1643 = vrot.slane %v1641, 4
        %v1644 = vshll.u32 %v1555, 16
        %v1646 = vrot.slane %v1644, 5
        %v1647 = vor.u32 %v1643, %v1646
        %v1648 = vsel %vm1580, %v1639, %v1647
        %v1650 = vshrl.u32 %v1556, 16
        %v1652 = vrot.slane %v1650, 4
        %v1653 = vshll.u32 %v1556, 16
        %v1655 = vrot.slane %v1653, 5
        %v1656 = vor.u32 %v1652, %v1655
        %v1658 = vshrl.u32 %v1557, 16
        %v1660 = vrot.slane %v1658, 4
        %v1661 = vshll.u32 %v1557, 16
        %v1663 = vrot.slane %v1661, 5
        %v1664 = vor.u32 %v1660, %v1663
        %v1665 = vsel %vm1580, %v1656, %v1664
        %v1667 = vshrl.u32 %v1558, 16
        %v1669 = vrot.slane %v1667, 4
        %v1670 = vshll.u32 %v1558, 16
        %v1672 = vrot.slane %v1670, 5
        %v1673 = vor.u32 %v1669, %v1672
        %v1675 = vshrl.u32 %v1559, 16
        %v1677 = vrot.slane %v1675, 4
        %v1678 = vshll.u32 %v1559, 16
        %v1680 = vrot.slane %v1678, 5
        %v1681 = vor.u32 %v1677, %v1680
        %v1682 = vsel %vm1580, %v1673, %v1681
        %v1684 = vshrl.u32 %v1560, 16
        %v1686 = vrot.slane %v1684, 4
        %v1687 = vshll.u32 %v1560, 16
        %v1689 = vrot.slane %v1687, 5
        %v1690 = vor.u32 %v1686, %v1689
        %v1692 = vshrl.u32 %v1561, 16
        %v1694 = vrot.slane %v1692, 4
        %v1695 = vshll.u32 %v1561, 16
        %v1697 = vrot.slane %v1695, 5
        %v1698 = vor.u32 %v1694, %v1697
        %v1699 = vsel %vm1580, %v1690, %v1698
        %v1701 = vshrl.u32 %v1562, 16
        %v1703 = vrot.slane %v1701, 4
        %v1704 = vshll.u32 %v1562, 16
        %v1706 = vrot.slane %v1704, 5
        %v1707 = vor.u32 %v1703, %v1706
        %v1709 = vshrl.u32 %v1563, 16
        %v1711 = vrot.slane %v1709, 4
        %v1712 = vshll.u32 %v1563, 16
        %v1714 = vrot.slane %v1712, 5
        %v1715 = vor.u32 %v1711, %v1714
        %v1716 = vsel %vm1580, %v1707, %v1715
        %v1718 = vshrl.u32 %v1564, 16
        %v1720 = vrot.slane %v1718, 4
        %v1721 = vshll.u32 %v1564, 16
        %v1723 = vrot.slane %v1721, 5
        %v1724 = vor.u32 %v1720, %v1723
        %v1726 = vshrl.u32 %v1565, 16
        %v1728 = vrot.slane %v1726, 4
        %v1729 = vshll.u32 %v1565, 16
        %v1731 = vrot.slane %v1729, 5
        %v1732 = vor.u32 %v1728, %v1731
        %v1733 = vsel %vm1580, %v1724, %v1732
        %v1735 = vshrl.u32 %v1566, 16
        %v1737 = vrot.slane %v1735, 4
        %v1738 = vshll.u32 %v1566, 16
        %v1740 = vrot.slane %v1738, 5
        %v1741 = vor.u32 %v1737, %v1740
        %v1743 = vshrl.u32 %v1567, 16
        %v1745 = vrot.slane %v1743, 4
        %v1746 = vshll.u32 %v1567, 16
        %v1748 = vrot.slane %v1746, 5
        %v1749 = vor.u32 %v1745, %v1748
        %v1750 = vsel %vm1580, %v1741, %v1749
        %v1752 = vshrl.u32 %v1568, 16
        %v1754 = vrot.slane %v1752, 4
        %v1755 = vshll.u32 %v1568, 16
        %v1757 = vrot.slane %v1755, 5
        %v1758 = vor.u32 %v1754, %v1757
        %v1760 = vshrl.u32 %v1569, 16
        %v1762 = vrot.slane %v1760, 4
        %v1763 = vshll.u32 %v1569, 16
        %v1765 = vrot.slane %v1763, 5
        %v1766 = vor.u32 %v1762, %v1765
        %v1767 = vsel %vm1580, %v1758, %v1766
        %v1769 = vshrl.u32 %v1570, 16
        %v1771 = vrot.slane %v1769, 4
        %v1772 = vshll.u32 %v1570, 16
        %v1774 = vrot.slane %v1772, 5
        %v1775 = vor.u32 %v1771, %v1774
        %v1777 = vshrl.u32 %v1571, 16
        %v1779 = vrot.slane %v1777, 4
        %v1780 = vshll.u32 %v1571, 16
        %v1782 = vrot.slane %v1780, 5
        %v1783 = vor.u32 %v1779, %v1782
        %v1784 = vsel %vm1580, %v1775, %v1783
        %v1786 = vshrl.u32 %v1572, 16
        %v1788 = vrot.slane %v1786, 4
        %v1789 = vshll.u32 %v1572, 16
        %v1791 = vrot.slane %v1789, 5
        %v1792 = vor.u32 %v1788, %v1791
        %v1794 = vshrl.u32 %v1573, 16
        %v1796 = vrot.slane %v1794, 4
        %v1797 = vshll.u32 %v1573, 16
        %v1799 = vrot.slane %v1797, 5
        %v1800 = vor.u32 %v1796, %v1799
        %v1801 = vsel %vm1580, %v1792, %v1800
        %v1803 = vshrl.u32 %v1574, 16
        %v1805 = vrot.slane %v1803, 4
        %v1806 = vshll.u32 %v1574, 16
        %v1808 = vrot.slane %v1806, 5
        %v1809 = vor.u32 %v1805, %v1808
        %v1811 = vshrl.u32 %v1575, 16
        %v1813 = vrot.slane %v1811, 4
        %v1814 = vshll.u32 %v1575, 16
        %v1816 = vrot.slane %v1814, 5
        %v1817 = vor.u32 %v1813, %v1816
        %v1818 = vsel %vm1580, %v1809, %v1817
        %v1820 = vshrl.u32 %v1576, 16
        %v1822 = vrot.slane %v1820, 4
        %v1823 = vshll.u32 %v1576, 16
        %v1825 = vrot.slane %v1823, 5
        %v1826 = vor.u32 %v1822, %v1825
        %v1828 = vshrl.u32 %v1577, 16
        %v1830 = vrot.slane %v1828, 4
        %v1831 = vshll.u32 %v1577, 16
        %v1833 = vrot.slane %v1831, 5
        %v1834 = vor.u32 %v1830, %v1833
        %v1835 = vsel %vm1580, %v1826, %v1834
        %v1837 = vshrl.u32 %v1578, 16
        %v1839 = vrot.slane %v1837, 4
        %v1840 = vshll.u32 %v1578, 16
        %v1842 = vrot.slane %v1840, 5
        %v1843 = vor.u32 %v1839, %v1842
        %v1845 = vshrl.u32 %v1579, 16
        %v1847 = vrot.slane %v1845, 4
        %v1848 = vshll.u32 %v1579, 16
        %v1850 = vrot.slane %v1848, 5
        %v1851 = vor.u32 %v1847, %v1850
        %v1852 = vsel %vm1580, %v1843, %v1851
        %1853 = vrot.lane.b32.xlu0 %v1597, 16
        %v1854 = vpop.permute.xlu0 %1853
        %1855 = vrot.lane.b32.xlu0 %v1614, 16
        %v1856 = vpop.permute.xlu0 %1855
        %1857 = vrot.lane.b32.xlu0 %v1631, 16
        %v1858 = vpop.permute.xlu0 %1857
        %1859 = vrot.lane.b32.xlu0 %v1648, 16
        %v1860 = vpop.permute.xlu0 %1859
        %1861 = vrot.lane.b32.xlu0 %v1665, 16
        %v1862 = vpop.permute.xlu0 %1861
        %1863 = vrot.lane.b32.xlu0 %v1682, 16
        %v1864 = vpop.permute.xlu0 %1863
        %1865 = vrot.lane.b32.xlu0 %v1699, 16
        %v1866 = vpop.permute.xlu0 %1865
        %1867 = vrot.lane.b32.xlu0 %v1716, 16
        %v1868 = vpop.permute.xlu0 %1867
        %1869 = vrot.lane.b32.xlu0 %v1733, 16
        %v1870 = vpop.permute.xlu0 %1869
        %1871 = vrot.lane.b32.xlu0 %v1750, 16
        %v1872 = vpop.permute.xlu0 %1871
        %1873 = vrot.lane.b32.xlu0 %v1767, 16
        %v1874 = vpop.permute.xlu0 %1873
        %1875 = vrot.lane.b32.xlu0 %v1784, 16
        %v1876 = vpop.permute.xlu0 %1875
        %1877 = vrot.lane.b32.xlu0 %v1801, 16
        %v1878 = vpop.permute.xlu0 %1877
        %1879 = vrot.lane.b32.xlu0 %v1818, 16
        %v1880 = vpop.permute.xlu0 %1879
        %1881 = vrot.lane.b32.xlu0 %v1835, 16
        %v1882 = vpop.permute.xlu0 %1881
        %1883 = vrot.lane.b32.xlu0 %v1852, 16
        %v1884 = vpop.permute.xlu0 %1883
        %vm1901 = vcmask 195712
        %1902 = vst.msk [vmem:[#allocation3] sm:$0xff] %vm1901, %v1854
        %1903 = vst.msk [vmem:[#allocation3 + $0x8] sm:$0xff] %vm1901, %v1856
        %1904 = vst.msk [vmem:[#allocation3 + $0x10] sm:$0xff] %vm1901, %v1858
        %1905 = vst.msk [vmem:[#allocation3 + $0x18] sm:$0xff] %vm1901, %v1860
        %1906 = vst.msk [vmem:[#allocation3 + $0x20] sm:$0xff] %vm1901, %v1862
        %1907 = vst.msk [vmem:[#allocation3 + $0x28] sm:$0xff] %vm1901, %v1864
        %1908 = vst.msk [vmem:[#allocation3 + $0x30] sm:$0xff] %vm1901, %v1866
        %1909 = vst.msk [vmem:[#allocation3 + $0x38] sm:$0xff] %vm1901, %v1868
        %1910 = vst.msk [vmem:[#allocation3 + $0x40] sm:$0xff] %vm1901, %v1870
        %1911 = vst.msk [vmem:[#allocation3 + $0x48] sm:$0xff] %vm1901, %v1872
        %1912 = vst.msk [vmem:[#allocation3 + $0x50] sm:$0xff] %vm1901, %v1874
        %1913 = vst.msk [vmem:[#allocation3 + $0x58] sm:$0xff] %vm1901, %v1876
        %1914 = vst.msk [vmem:[#allocation3 + $0x60] sm:$0xff] %vm1901, %v1878
        %1915 = vst.msk [vmem:[#allocation3 + $0x68] sm:$0xff] %vm1901, %v1880
        %1916 = vst.msk [vmem:[#allocation3 + $0x70] sm:$0xff] %vm1901, %v1882
        %1917 = vst.msk [vmem:[#allocation3 + $0x78] sm:$0xff] %vm1901, %v1884
        %v1918 = vld [vmem:[%s833] sm:$0xf8]
        %v1919 = vld [vmem:[%s833 + $0x8] sm:$0xf]
        %v1920 = vld [vmem:[%s833 + $0x10] sm:$0xf8]
        %v1921 = vld [vmem:[%s833 + $0x18] sm:$0xf]
        %v1922 = vld [vmem:[%s833 + $0x20] sm:$0xf8]
        %v1923 = vld [vmem:[%s833 + $0x28] sm:$0xf]
        %v1924 = vld [vmem:[%s833 + $0x30] sm:$0xf8]
        %v1925 = vld [vmem:[%s833 + $0x38] sm:$0xf]
        %v1926 = vld [vmem:[%s833 + $0x40] sm:$0xf8]
        %v1927 = vld [vmem:[%s833 + $0x48] sm:$0xf]
        %v1928 = vld [vmem:[%s833 + $0x50] sm:$0xf8]
        %v1929 = vld [vmem:[%s833 + $0x58] sm:$0xf]
        %v1930 = vld [vmem:[%s833 + $0x60] sm:$0xf8]
        %v1931 = vld [vmem:[%s833 + $0x68] sm:$0xf]
        %v1932 = vld [vmem:[%s833 + $0x70] sm:$0xf8]
        %v1933 = vld [vmem:[%s833 + $0x78] sm:$0xf]
        %v1934 = vld [vmem:[%s833 + $0x80] sm:$0xf8]
        %v1935 = vld [vmem:[%s833 + $0x88] sm:$0xf]
        %v1936 = vld [vmem:[%s833 + $0x90] sm:$0xf8]
        %v1937 = vld [vmem:[%s833 + $0x98] sm:$0xf]
        %v1938 = vld [vmem:[%s833 + $0xa0] sm:$0xf8]
        %v1939 = vld [vmem:[%s833 + $0xa8] sm:$0xf]
        %v1940 = vld [vmem:[%s833 + $0xb0] sm:$0xf8]
        %v1941 = vld [vmem:[%s833 + $0xb8] sm:$0xf]
        %v1942 = vld [vmem:[%s833 + $0xc0] sm:$0xf8]
        %v1943 = vld [vmem:[%s833 + $0xc8] sm:$0xf]
        %v1944 = vld [vmem:[%s833 + $0xd0] sm:$0xf8]
        %v1945 = vld [vmem:[%s833 + $0xd8] sm:$0xf]
        %v1946 = vld [vmem:[%s833 + $0xe0] sm:$0xf8]
        %v1947 = vld [vmem:[%s833 + $0xe8] sm:$0xf]
        %v1948 = vld [vmem:[%s833 + $0xf0] sm:$0xf8]
        %v1949 = vld [vmem:[%s833 + $0xf8] sm:$0xf]
        %v1951 = vshrl.u32 %v1918, 16
        %v1953 = vrot.slane %v1951, 3
        %v1954 = vshll.u32 %v1918, 16
        %v1956 = vrot.slane %v1954, 4
        %v1957 = vor.u32 %v1953, %v1956
        %v1959 = vshrl.u32 %v1919, 16
        %v1961 = vrot.slane %v1959, 3
        %v1962 = vshll.u32 %v1919, 16
        %v1964 = vrot.slane %v1962, 4
        %v1965 = vor.u32 %v1961, %v1964
        %v1966 = vsel %vm886, %v1957, %v1965
        %v1968 = vshrl.u32 %v1920, 16
        %v1970 = vrot.slane %v1968, 3
        %v1971 = vshll.u32 %v1920, 16
        %v1973 = vrot.slane %v1971, 4
        %v1974 = vor.u32 %v1970, %v1973
        %v1976 = vshrl.u32 %v1921, 16
        %v1978 = vrot.slane %v1976, 3
        %v1979 = vshll.u32 %v1921, 16
        %v1981 = vrot.slane %v1979, 4
        %v1982 = vor.u32 %v1978, %v1981
        %v1983 = vsel %vm886, %v1974, %v1982
        %v1985 = vshrl.u32 %v1922, 16
        %v1987 = vrot.slane %v1985, 3
        %v1988 = vshll.u32 %v1922, 16
        %v1990 = vrot.slane %v1988, 4
        %v1991 = vor.u32 %v1987, %v1990
        %v1993 = vshrl.u32 %v1923, 16
        %v1995 = vrot.slane %v1993, 3
        %v1996 = vshll.u32 %v1923, 16
        %v1998 = vrot.slane %v1996, 4
        %v1999 = vor.u32 %v1995, %v1998
        %v2000 = vsel %vm886, %v1991, %v1999
        %v2002 = vshrl.u32 %v1924, 16
        %v2004 = vrot.slane %v2002, 3
        %v2005 = vshll.u32 %v1924, 16
        %v2007 = vrot.slane %v2005, 4
        %v2008 = vor.u32 %v2004, %v2007
        %v2010 = vshrl.u32 %v1925, 16
        %v2012 = vrot.slane %v2010, 3
        %v2013 = vshll.u32 %v1925, 16
        %v2015 = vrot.slane %v2013, 4
        %v2016 = vor.u32 %v2012, %v2015
        %v2017 = vsel %vm886, %v2008, %v2016
        %v2019 = vshrl.u32 %v1926, 16
        %v2021 = vrot.slane %v2019, 3
        %v2022 = vshll.u32 %v1926, 16
        %v2024 = vrot.slane %v2022, 4
        %v2025 = vor.u32 %v2021, %v2024
        %v2027 = vshrl.u32 %v1927, 16
        %v2029 = vrot.slane %v2027, 3
        %v2030 = vshll.u32 %v1927, 16
        %v2032 = vrot.slane %v2030, 4
        %v2033 = vor.u32 %v2029, %v2032
        %v2034 = vsel %vm886, %v2025, %v2033
        %v2036 = vshrl.u32 %v1928, 16
        %v2038 = vrot.slane %v2036, 3
        %v2039 = vshll.u32 %v1928, 16
        %v2041 = vrot.slane %v2039, 4
        %v2042 = vor.u32 %v2038, %v2041
        %v2044 = vshrl.u32 %v1929, 16
        %v2046 = vrot.slane %v2044, 3
        %v2047 = vshll.u32 %v1929, 16
        %v2049 = vrot.slane %v2047, 4
        %v2050 = vor.u32 %v2046, %v2049
        %v2051 = vsel %vm886, %v2042, %v2050
        %v2053 = vshrl.u32 %v1930, 16
        %v2055 = vrot.slane %v2053, 3
        %v2056 = vshll.u32 %v1930, 16
        %v2058 = vrot.slane %v2056, 4
        %v2059 = vor.u32 %v2055, %v2058
        %v2061 = vshrl.u32 %v1931, 16
        %v2063 = vrot.slane %v2061, 3
        %v2064 = vshll.u32 %v1931, 16
        %v2066 = vrot.slane %v2064, 4
        %v2067 = vor.u32 %v2063, %v2066
        %v2068 = vsel %vm886, %v2059, %v2067
        %v2070 = vshrl.u32 %v1932, 16
        %v2072 = vrot.slane %v2070, 3
        %v2073 = vshll.u32 %v1932, 16
        %v2075 = vrot.slane %v2073, 4
        %v2076 = vor.u32 %v2072, %v2075
        %v2078 = vshrl.u32 %v1933, 16
        %v2080 = vrot.slane %v2078, 3
        %v2081 = vshll.u32 %v1933, 16
        %v2083 = vrot.slane %v2081, 4
        %v2084 = vor.u32 %v2080, %v2083
        %v2085 = vsel %vm886, %v2076, %v2084
        %v2087 = vshrl.u32 %v1934, 16
        %v2089 = vrot.slane %v2087, 3
        %v2090 = vshll.u32 %v1934, 16
        %v2092 = vrot.slane %v2090, 4
        %v2093 = vor.u32 %v2089, %v2092
        %v2095 = vshrl.u32 %v1935, 16
        %v2097 = vrot.slane %v2095, 3
        %v2098 = vshll.u32 %v1935, 16
        %v2100 = vrot.slane %v2098, 4
        %v2101 = vor.u32 %v2097, %v2100
        %v2102 = vsel %vm886, %v2093, %v2101
        %v2104 = vshrl.u32 %v1936, 16
        %v2106 = vrot.slane %v2104, 3
        %v2107 = vshll.u32 %v1936, 16
        %v2109 = vrot.slane %v2107, 4
        %v2110 = vor.u32 %v2106, %v2109
        %v2112 = vshrl.u32 %v1937, 16
        %v2114 = vrot.slane %v2112, 3
        %v2115 = vshll.u32 %v1937, 16
        %v2117 = vrot.slane %v2115, 4
        %v2118 = vor.u32 %v2114, %v2117
        %v2119 = vsel %vm886, %v2110, %v2118
        %v2121 = vshrl.u32 %v1938, 16
        %v2123 = vrot.slane %v2121, 3
        %v2124 = vshll.u32 %v1938, 16
        %v2126 = vrot.slane %v2124, 4
        %v2127 = vor.u32 %v2123, %v2126
        %v2129 = vshrl.u32 %v1939, 16
        %v2131 = vrot.slane %v2129, 3
        %v2132 = vshll.u32 %v1939, 16
        %v2134 = vrot.slane %v2132, 4
        %v2135 = vor.u32 %v2131, %v2134
        %v2136 = vsel %vm886, %v2127, %v2135
        %v2138 = vshrl.u32 %v1940, 16
        %v2140 = vrot.slane %v2138, 3
        %v2141 = vshll.u32 %v1940, 16
        %v2143 = vrot.slane %v2141, 4
        %v2144 = vor.u32 %v2140, %v2143
        %v2146 = vshrl.u32 %v1941, 16
        %v2148 = vrot.slane %v2146, 3
        %v2149 = vshll.u32 %v1941, 16
        %v2151 = vrot.slane %v2149, 4
        %v2152 = vor.u32 %v2148, %v2151
        %v2153 = vsel %vm886, %v2144, %v2152
        %v2155 = vshrl.u32 %v1942, 16
        %v2157 = vrot.slane %v2155, 3
        %v2158 = vshll.u32 %v1942, 16
        %v2160 = vrot.slane %v2158, 4
        %v2161 = vor.u32 %v2157, %v2160
        %v2163 = vshrl.u32 %v1943, 16
        %v2165 = vrot.slane %v2163, 3
        %v2166 = vshll.u32 %v1943, 16
        %v2168 = vrot.slane %v2166, 4
        %v2169 = vor.u32 %v2165, %v2168
        %v2170 = vsel %vm886, %v2161, %v2169
        %v2172 = vshrl.u32 %v1944, 16
        %v2174 = vrot.slane %v2172, 3
        %v2175 = vshll.u32 %v1944, 16
        %v2177 = vrot.slane %v2175, 4
        %v2178 = vor.u32 %v2174, %v2177
        %v2180 = vshrl.u32 %v1945, 16
        %v2182 = vrot.slane %v2180, 3
        %v2183 = vshll.u32 %v1945, 16
        %v2185 = vrot.slane %v2183, 4
        %v2186 = vor.u32 %v2182, %v2185
        %v2187 = vsel %vm886, %v2178, %v2186
        %v2189 = vshrl.u32 %v1946, 16
        %v2191 = vrot.slane %v2189, 3
        %v2192 = vshll.u32 %v1946, 16
        %v2194 = vrot.slane %v2192, 4
        %v2195 = vor.u32 %v2191, %v2194
        %v2197 = vshrl.u32 %v1947, 16
        %v2199 = vrot.slane %v2197, 3
        %v2200 = vshll.u32 %v1947, 16
        %v2202 = vrot.slane %v2200, 4
        %v2203 = vor.u32 %v2199, %v2202
        %v2204 = vsel %vm886, %v2195, %v2203
        %v2206 = vshrl.u32 %v1948, 16
        %v2208 = vrot.slane %v2206, 3
        %v2209 = vshll.u32 %v1948, 16
        %v2211 = vrot.slane %v2209, 4
        %v2212 = vor.u32 %v2208, %v2211
        %v2214 = vshrl.u32 %v1949, 16
        %v2216 = vrot.slane %v2214, 3
        %v2217 = vshll.u32 %v1949, 16
        %v2219 = vrot.slane %v2217, 4
        %v2220 = vor.u32 %v2216, %v2219
        %v2221 = vsel %vm886, %v2212, %v2220
        %2222 = vrot.lane.b32.xlu0 %v1966, 24
        %v2223 = vpop.permute.xlu0 %2222
        %2224 = vrot.lane.b32.xlu0 %v1983, 24
        %v2225 = vpop.permute.xlu0 %2224
        %2226 = vrot.lane.b32.xlu0 %v2000, 24
        %v2227 = vpop.permute.xlu0 %2226
        %2228 = vrot.lane.b32.xlu0 %v2017, 24
        %v2229 = vpop.permute.xlu0 %2228
        %2230 = vrot.lane.b32.xlu0 %v2034, 24
        %v2231 = vpop.permute.xlu0 %2230
        %2232 = vrot.lane.b32.xlu0 %v2051, 24
        %v2233 = vpop.permute.xlu0 %2232
        %2234 = vrot.lane.b32.xlu0 %v2068, 24
        %v2235 = vpop.permute.xlu0 %2234
        %2236 = vrot.lane.b32.xlu0 %v2085, 24
        %v2237 = vpop.permute.xlu0 %2236
        %2238 = vrot.lane.b32.xlu0 %v2102, 24
        %v2239 = vpop.permute.xlu0 %2238
        %2240 = vrot.lane.b32.xlu0 %v2119, 24
        %v2241 = vpop.permute.xlu0 %2240
        %2242 = vrot.lane.b32.xlu0 %v2136, 24
        %v2243 = vpop.permute.xlu0 %2242
        %2244 = vrot.lane.b32.xlu0 %v2153, 24
        %v2245 = vpop.permute.xlu0 %2244
        %2246 = vrot.lane.b32.xlu0 %v2170, 24
        %v2247 = vpop.permute.xlu0 %2246
        %2248 = vrot.lane.b32.xlu0 %v2187, 24
        %v2249 = vpop.permute.xlu0 %2248
        %2250 = vrot.lane.b32.xlu0 %v2204, 24
        %v2251 = vpop.permute.xlu0 %2250
        %2252 = vrot.lane.b32.xlu0 %v2221, 24
        %v2253 = vpop.permute.xlu0 %2252
        %vm2270 = vcmask 261312
        %2271 = vst.msk [vmem:[#allocation3] sm:$0xff] %vm2270, %v2223
        %2272 = vst.msk [vmem:[#allocation3 + $0x8] sm:$0xff] %vm2270, %v2225
        %2273 = vst.msk [vmem:[#allocation3 + $0x10] sm:$0xff] %vm2270, %v2227
        %2274 = vst.msk [vmem:[#allocation3 + $0x18] sm:$0xff] %vm2270, %v2229
        %2275 = vst.msk [vmem:[#allocation3 + $0x20] sm:$0xff] %vm2270, %v2231
        %2276 = vst.msk [vmem:[#allocation3 + $0x28] sm:$0xff] %vm2270, %v2233
        %2277 = vst.msk [vmem:[#allocation3 + $0x30] sm:$0xff] %vm2270, %v2235
        %2278 = vst.msk [vmem:[#allocation3 + $0x38] sm:$0xff] %vm2270, %v2237
        %2279 = vst.msk [vmem:[#allocation3 + $0x40] sm:$0xff] %vm2270, %v2239
        %2280 = vst.msk [vmem:[#allocation3 + $0x48] sm:$0xff] %vm2270, %v2241
        %2281 = vst.msk [vmem:[#allocation3 + $0x50] sm:$0xff] %vm2270, %v2243
        %2282 = vst.msk [vmem:[#allocation3 + $0x58] sm:$0xff] %vm2270, %v2245
        %2283 = vst.msk [vmem:[#allocation3 + $0x60] sm:$0xff] %vm2270, %v2247
        %2284 = vst.msk [vmem:[#allocation3 + $0x68] sm:$0xff] %vm2270, %v2249
        %2285 = vst.msk [vmem:[#allocation3 + $0x70] sm:$0xff] %vm2270, %v2251
        %2286 = vst.msk [vmem:[#allocation3 + $0x78] sm:$0xff] %vm2270, %v2253
        %v2287 = vld [vmem:[%s833] sm:$0xf0]
        %v2288 = vld [vmem:[%s833 + $0x8] sm:$0xf]
        %v2289 = vld [vmem:[%s833 + $0x10] sm:$0xf0]
        %v2290 = vld [vmem:[%s833 + $0x18] sm:$0xf]
        %v2291 = vld [vmem:[%s833 + $0x20] sm:$0xf0]
        %v2292 = vld [vmem:[%s833 + $0x28] sm:$0xf]
        %v2293 = vld [vmem:[%s833 + $0x30] sm:$0xf0]
        %v2294 = vld [vmem:[%s833 + $0x38] sm:$0xf]
        %v2295 = vld [vmem:[%s833 + $0x40] sm:$0xf0]
        %v2296 = vld [vmem:[%s833 + $0x48] sm:$0xf]
        %v2297 = vld [vmem:[%s833 + $0x50] sm:$0xf0]
        %v2298 = vld [vmem:[%s833 + $0x58] sm:$0xf]
        %v2299 = vld [vmem:[%s833 + $0x60] sm:$0xf0]
        %v2300 = vld [vmem:[%s833 + $0x68] sm:$0xf]
        %v2301 = vld [vmem:[%s833 + $0x70] sm:$0xf0]
        %v2302 = vld [vmem:[%s833 + $0x78] sm:$0xf]
        %v2303 = vld [vmem:[%s833 + $0x80] sm:$0xf0]
        %v2304 = vld [vmem:[%s833 + $0x88] sm:$0xf]
        %v2305 = vld [vmem:[%s833 + $0x90] sm:$0xf0]
        %v2306 = vld [vmem:[%s833 + $0x98] sm:$0xf]
        %v2307 = vld [vmem:[%s833 + $0xa0] sm:$0xf0]
        %v2308 = vld [vmem:[%s833 + $0xa8] sm:$0xf]
        %v2309 = vld [vmem:[%s833 + $0xb0] sm:$0xf0]
        %v2310 = vld [vmem:[%s833 + $0xb8] sm:$0xf]
        %v2311 = vld [vmem:[%s833 + $0xc0] sm:$0xf0]
        %v2312 = vld [vmem:[%s833 + $0xc8] sm:$0xf]
        %v2313 = vld [vmem:[%s833 + $0xd0] sm:$0xf0]
        %v2314 = vld [vmem:[%s833 + $0xd8] sm:$0xf]
        %v2315 = vld [vmem:[%s833 + $0xe0] sm:$0xf0]
        %v2316 = vld [vmem:[%s833 + $0xe8] sm:$0xf]
        %v2317 = vld [vmem:[%s833 + $0xf0] sm:$0xf0]
        %v2318 = vld [vmem:[%s833 + $0xf8] sm:$0xf]
        %v2351 = vrot.slane %v2287, 4
        %v2352 = vrot.slane %v2288, 4
        %v2353 = vsel %vm1434, %v2351, %v2352
        %v2354 = vrot.slane %v2289, 4
        %v2355 = vrot.slane %v2290, 4
        %v2356 = vsel %vm1434, %v2354, %v2355
        %v2357 = vrot.slane %v2291, 4
        %v2358 = vrot.slane %v2292, 4
        %v2359 = vsel %vm1434, %v2357, %v2358
        %v2360 = vrot.slane %v2293, 4
        %v2361 = vrot.slane %v2294, 4
        %v2362 = vsel %vm1434, %v2360, %v2361
        %v2363 = vrot.slane %v2295, 4
        %v2364 = vrot.slane %v2296, 4
        %v2365 = vsel %vm1434, %v2363, %v2364
        %v2366 = vrot.slane %v2297, 4
        %v2367 = vrot.slane %v2298, 4
        %v2368 = vsel %vm1434, %v2366, %v2367
        %v2369 = vrot.slane %v2299, 4
        %v2370 = vrot.slane %v2300, 4
        %v2371 = vsel %vm1434, %v2369, %v2370
        %v2372 = vrot.slane %v2301, 4
        %v2373 = vrot.slane %v2302, 4
        %v2374 = vsel %vm1434, %v2372, %v2373
        %v2375 = vrot.slane %v2303, 4
        %v2376 = vrot.slane %v2304, 4
        %v2377 = vsel %vm1434, %v2375, %v2376
        %v2378 = vrot.slane %v2305, 4
        %v2379 = vrot.slane %v2306, 4
        %v2380 = vsel %vm1434, %v2378, %v2379
        %v2381 = vrot.slane %v2307, 4
        %v2382 = vrot.slane %v2308, 4
        %v2383 = vsel %vm1434, %v2381, %v2382
        %v2384 = vrot.slane %v2309, 4
        %v2385 = vrot.slane %v2310, 4
        %v2386 = vsel %vm1434, %v2384, %v2385
        %v2387 = vrot.slane %v2311, 4
        %v2388 = vrot.slane %v2312, 4
        %v2389 = vsel %vm1434, %v2387, %v2388
        %v2390 = vrot.slane %v2313, 4
        %v2391 = vrot.slane %v2314, 4
        %v2392 = vsel %vm1434, %v2390, %v2391
        %v2393 = vrot.slane %v2315, 4
        %v2394 = vrot.slane %v2316, 4
        %v2395 = vsel %vm1434, %v2393, %v2394
        %v2396 = vrot.slane %v2317, 4
        %v2397 = vrot.slane %v2318, 4
        %v2398 = vsel %vm1434, %v2396, %v2397
        %2399 = vrot.lane.b32.xlu0 %v2353, 32
        %v2400 = vpop.permute.xlu0 %2399
        %2401 = vrot.lane.b32.xlu0 %v2356, 32
        %v2402 = vpop.permute.xlu0 %2401
        %2403 = vrot.lane.b32.xlu0 %v2359, 32
        %v2404 = vpop.permute.xlu0 %2403
        %2405 = vrot.lane.b32.xlu0 %v2362, 32
        %v2406 = vpop.permute.xlu0 %2405
        %2407 = vrot.lane.b32.xlu0 %v2365, 32
        %v2408 = vpop.permute.xlu0 %2407
        %2409 = vrot.lane.b32.xlu0 %v2368, 32
        %v2410 = vpop.permute.xlu0 %2409
        %2411 = vrot.lane.b32.xlu0 %v2371, 32
        %v2412 = vpop.permute.xlu0 %2411
        %2413 = vrot.lane.b32.xlu0 %v2374, 32
        %v2414 = vpop.permute.xlu0 %2413
        %2415 = vrot.lane.b32.xlu0 %v2377, 32
        %v2416 = vpop.permute.xlu0 %2415
        %2417 = vrot.lane.b32.xlu0 %v2380, 32
        %v2418 = vpop.permute.xlu0 %2417
        %2419 = vrot.lane.b32.xlu0 %v2383, 32
        %v2420 = vpop.permute.xlu0 %2419
        %2421 = vrot.lane.b32.xlu0 %v2386, 32
        %v2422 = vpop.permute.xlu0 %2421
        %2423 = vrot.lane.b32.xlu0 %v2389, 32
        %v2424 = vpop.permute.xlu0 %2423
        %2425 = vrot.lane.b32.xlu0 %v2392, 32
        %v2426 = vpop.permute.xlu0 %2425
        %2427 = vrot.lane.b32.xlu0 %v2395, 32
        %v2428 = vpop.permute.xlu0 %2427
        %2429 = vrot.lane.b32.xlu0 %v2398, 32
        %v2430 = vpop.permute.xlu0 %2429
        %vm2447 = vcmask 326912
        %2448 = vst.msk [vmem:[#allocation3] sm:$0xff] %vm2447, %v2400
        %2449 = vst.msk [vmem:[#allocation3 + $0x8] sm:$0xff] %vm2447, %v2402
        %2450 = vst.msk [vmem:[#allocation3 + $0x10] sm:$0xff] %vm2447, %v2404
        %2451 = vst.msk [vmem:[#allocation3 + $0x18] sm:$0xff] %vm2447, %v2406
        %2452 = vst.msk [vmem:[#allocation3 + $0x20] sm:$0xff] %vm2447, %v2408
        %2453 = vst.msk [vmem:[#allocation3 + $0x28] sm:$0xff] %vm2447, %v2410
        %2454 = vst.msk [vmem:[#allocation3 + $0x30] sm:$0xff] %vm2447, %v2412
        %2455 = vst.msk [vmem:[#allocation3 + $0x38] sm:$0xff] %vm2447, %v2414
        %2456 = vst.msk [vmem:[#allocation3 + $0x40] sm:$0xff] %vm2447, %v2416
        %2457 = vst.msk [vmem:[#allocation3 + $0x48] sm:$0xff] %vm2447, %v2418
        %2458 = vst.msk [vmem:[#allocation3 + $0x50] sm:$0xff] %vm2447, %v2420
        %2459 = vst.msk [vmem:[#allocation3 + $0x58] sm:$0xff] %vm2447, %v2422
        %2460 = vst.msk [vmem:[#allocation3 + $0x60] sm:$0xff] %vm2447, %v2424
        %2461 = vst.msk [vmem:[#allocation3 + $0x68] sm:$0xff] %vm2447, %v2426
        %2462 = vst.msk [vmem:[#allocation3 + $0x70] sm:$0xff] %vm2447, %v2428
        %2463 = vst.msk [vmem:[#allocation3 + $0x78] sm:$0xff] %vm2447, %v2430
        %v2464 = vld [vmem:[%s833] sm:$0xf0]
        %v2465 = vld [vmem:[%s833 + $0x8] sm:$0x1f]
        %v2466 = vld [vmem:[%s833 + $0x10] sm:$0xf0]
        %v2467 = vld [vmem:[%s833 + $0x18] sm:$0x1f]
        %v2468 = vld [vmem:[%s833 + $0x20] sm:$0xf0]
        %v2469 = vld [vmem:[%s833 + $0x28] sm:$0x1f]
        %v2470 = vld [vmem:[%s833 + $0x30] sm:$0xf0]
        %v2471 = vld [vmem:[%s833 + $0x38] sm:$0x1f]
        %v2472 = vld [vmem:[%s833 + $0x40] sm:$0xf0]
        %v2473 = vld [vmem:[%s833 + $0x48] sm:$0x1f]
        %v2474 = vld [vmem:[%s833 + $0x50] sm:$0xf0]
        %v2475 = vld [vmem:[%s833 + $0x58] sm:$0x1f]
        %v2476 = vld [vmem:[%s833 + $0x60] sm:$0xf0]
        %v2477 = vld [vmem:[%s833 + $0x68] sm:$0x1f]
        %v2478 = vld [vmem:[%s833 + $0x70] sm:$0xf0]
        %v2479 = vld [vmem:[%s833 + $0x78] sm:$0x1f]
        %v2480 = vld [vmem:[%s833 + $0x80] sm:$0xf0]
        %v2481 = vld [vmem:[%s833 + $0x88] sm:$0x1f]
        %v2482 = vld [vmem:[%s833 + $0x90] sm:$0xf0]
        %v2483 = vld [vmem:[%s833 + $0x98] sm:$0x1f]
        %v2484 = vld [vmem:[%s833 + $0xa0] sm:$0xf0]
        %v2485 = vld [vmem:[%s833 + $0xa8] sm:$0x1f]
        %v2486 = vld [vmem:[%s833 + $0xb0] sm:$0xf0]
        %v2487 = vld [vmem:[%s833 + $0xb8] sm:$0x1f]
        %v2488 = vld [vmem:[%s833 + $0xc0] sm:$0xf0]
        %v2489 = vld [vmem:[%s833 + $0xc8] sm:$0x1f]
        %v2490 = vld [vmem:[%s833 + $0xd0] sm:$0xf0]
        %v2491 = vld [vmem:[%s833 + $0xd8] sm:$0x1f]
        %v2492 = vld [vmem:[%s833 + $0xe0] sm:$0xf0]
        %v2493 = vld [vmem:[%s833 + $0xe8] sm:$0x1f]
        %v2494 = vld [vmem:[%s833 + $0xf0] sm:$0xf0]
        %v2495 = vld [vmem:[%s833 + $0xf8] sm:$0x1f]
        %v2497 = vshrl.u32 %v2464, 16
        %v2499 = vrot.slane %v2497, 4
        %v2500 = vshll.u32 %v2464, 16
        %v2502 = vrot.slane %v2500, 5
        %v2503 = vor.u32 %v2499, %v2502
        %v2505 = vshrl.u32 %v2465, 16
        %v2507 = vrot.slane %v2505, 4
        %v2508 = vshll.u32 %v2465, 16
        %v2510 = vrot.slane %v2508, 5
        %v2511 = vor.u32 %v2507, %v2510
        %v2512 = vsel %vm1580, %v2503, %v2511
        %v2514 = vshrl.u32 %v2466, 16
        %v2516 = vrot.slane %v2514, 4
        %v2517 = vshll.u32 %v2466, 16
        %v2519 = vrot.slane %v2517, 5
        %v2520 = vor.u32 %v2516, %v2519
        %v2522 = vshrl.u32 %v2467, 16
        %v2524 = vrot.slane %v2522, 4
        %v2525 = vshll.u32 %v2467, 16
        %v2527 = vrot.slane %v2525, 5
        %v2528 = vor.u32 %v2524, %v2527
        %v2529 = vsel %vm1580, %v2520, %v2528
        %v2531 = vshrl.u32 %v2468, 16
        %v2533 = vrot.slane %v2531, 4
        %v2534 = vshll.u32 %v2468, 16
        %v2536 = vrot.slane %v2534, 5
        %v2537 = vor.u32 %v2533, %v2536
        %v2539 = vshrl.u32 %v2469, 16
        %v2541 = vrot.slane %v2539, 4
        %v2542 = vshll.u32 %v2469, 16
        %v2544 = vrot.slane %v2542, 5
        %v2545 = vor.u32 %v2541, %v2544
        %v2546 = vsel %vm1580, %v2537, %v2545
        %v2548 = vshrl.u32 %v2470, 16
        %v2550 = vrot.slane %v2548, 4
        %v2551 = vshll.u32 %v2470, 16
        %v2553 = vrot.slane %v2551, 5
        %v2554 = vor.u32 %v2550, %v2553
        %v2556 = vshrl.u32 %v2471, 16
        %v2558 = vrot.slane %v2556, 4
        %v2559 = vshll.u32 %v2471, 16
        %v2561 = vrot.slane %v2559, 5
        %v2562 = vor.u32 %v2558, %v2561
        %v2563 = vsel %vm1580, %v2554, %v2562
        %v2565 = vshrl.u32 %v2472, 16
        %v2567 = vrot.slane %v2565, 4
        %v2568 = vshll.u32 %v2472, 16
        %v2570 = vrot.slane %v2568, 5
        %v2571 = vor.u32 %v2567, %v2570
        %v2573 = vshrl.u32 %v2473, 16
        %v2575 = vrot.slane %v2573, 4
        %v2576 = vshll.u32 %v2473, 16
        %v2578 = vrot.slane %v2576, 5
        %v2579 = vor.u32 %v2575, %v2578
        %v2580 = vsel %vm1580, %v2571, %v2579
        %v2582 = vshrl.u32 %v2474, 16
        %v2584 = vrot.slane %v2582, 4
        %v2585 = vshll.u32 %v2474, 16
        %v2587 = vrot.slane %v2585, 5
        %v2588 = vor.u32 %v2584, %v2587
        %v2590 = vshrl.u32 %v2475, 16
        %v2592 = vrot.slane %v2590, 4
        %v2593 = vshll.u32 %v2475, 16
        %v2595 = vrot.slane %v2593, 5
        %v2596 = vor.u32 %v2592, %v2595
        %v2597 = vsel %vm1580, %v2588, %v2596
        %v2599 = vshrl.u32 %v2476, 16
        %v2601 = vrot.slane %v2599, 4
        %v2602 = vshll.u32 %v2476, 16
        %v2604 = vrot.slane %v2602, 5
        %v2605 = vor.u32 %v2601, %v2604
        %v2607 = vshrl.u32 %v2477, 16
        %v2609 = vrot.slane %v2607, 4
        %v2610 = vshll.u32 %v2477, 16
        %v2612 = vrot.slane %v2610, 5
        %v2613 = vor.u32 %v2609, %v2612
        %v2614 = vsel %vm1580, %v2605, %v2613
        %v2616 = vshrl.u32 %v2478, 16
        %v2618 = vrot.slane %v2616, 4
        %v2619 = vshll.u32 %v2478, 16
        %v2621 = vrot.slane %v2619, 5
        %v2622 = vor.u32 %v2618, %v2621
        %v2624 = vshrl.u32 %v2479, 16
        %v2626 = vrot.slane %v2624, 4
        %v2627 = vshll.u32 %v2479, 16
        %v2629 = vrot.slane %v2627, 5
        %v2630 = vor.u32 %v2626, %v2629
        %v2631 = vsel %vm1580, %v2622, %v2630
        %v2633 = vshrl.u32 %v2480, 16
        %v2635 = vrot.slane %v2633, 4
        %v2636 = vshll.u32 %v2480, 16
        %v2638 = vrot.slane %v2636, 5
        %v2639 = vor.u32 %v2635, %v2638
        %v2641 = vshrl.u32 %v2481, 16
        %v2643 = vrot.slane %v2641, 4
        %v2644 = vshll.u32 %v2481, 16
        %v2646 = vrot.slane %v2644, 5
        %v2647 = vor.u32 %v2643, %v2646
        %v2648 = vsel %vm1580, %v2639, %v2647
        %v2650 = vshrl.u32 %v2482, 16
        %v2652 = vrot.slane %v2650, 4
        %v2653 = vshll.u32 %v2482, 16
        %v2655 = vrot.slane %v2653, 5
        %v2656 = vor.u32 %v2652, %v2655
        %v2658 = vshrl.u32 %v2483, 16
        %v2660 = vrot.slane %v2658, 4
        %v2661 = vshll.u32 %v2483, 16
        %v2663 = vrot.slane %v2661, 5
        %v2664 = vor.u32 %v2660, %v2663
        %v2665 = vsel %vm1580, %v2656, %v2664
        %v2667 = vshrl.u32 %v2484, 16
        %v2669 = vrot.slane %v2667, 4
        %v2670 = vshll.u32 %v2484, 16
        %v2672 = vrot.slane %v2670, 5
        %v2673 = vor.u32 %v2669, %v2672
        %v2675 = vshrl.u32 %v2485, 16
        %v2677 = vrot.slane %v2675, 4
        %v2678 = vshll.u32 %v2485, 16
        %v2680 = vrot.slane %v2678, 5
        %v2681 = vor.u32 %v2677, %v2680
        %v2682 = vsel %vm1580, %v2673, %v2681
        %v2684 = vshrl.u32 %v2486, 16
        %v2686 = vrot.slane %v2684, 4
        %v2687 = vshll.u32 %v2486, 16
        %v2689 = vrot.slane %v2687, 5
        %v2690 = vor.u32 %v2686, %v2689
        %v2692 = vshrl.u32 %v2487, 16
        %v2694 = vrot.slane %v2692, 4
        %v2695 = vshll.u32 %v2487, 16
        %v2697 = vrot.slane %v2695, 5
        %v2698 = vor.u32 %v2694, %v2697
        %v2699 = vsel %vm1580, %v2690, %v2698
        %v2701 = vshrl.u32 %v2488, 16
        %v2703 = vrot.slane %v2701, 4
        %v2704 = vshll.u32 %v2488, 16
        %v2706 = vrot.slane %v2704, 5
        %v2707 = vor.u32 %v2703, %v2706
        %v2709 = vshrl.u32 %v2489, 16
        %v2711 = vrot.slane %v2709, 4
        %v2712 = vshll.u32 %v2489, 16
        %v2714 = vrot.slane %v2712, 5
        %v2715 = vor.u32 %v2711, %v2714
        %v2716 = vsel %vm1580, %v2707, %v2715
        %v2718 = vshrl.u32 %v2490, 16
        %v2720 = vrot.slane %v2718, 4
        %v2721 = vshll.u32 %v2490, 16
        %v2723 = vrot.slane %v2721, 5
        %v2724 = vor.u32 %v2720, %v2723
        %v2726 = vshrl.u32 %v2491, 16
        %v2728 = vrot.slane %v2726, 4
        %v2729 = vshll.u32 %v2491, 16
        %v2731 = vrot.slane %v2729, 5
        %v2732 = vor.u32 %v2728, %v2731
        %v2733 = vsel %vm1580, %v2724, %v2732
        %v2735 = vshrl.u32 %v2492, 16
        %v2737 = vrot.slane %v2735, 4
        %v2738 = vshll.u32 %v2492, 16
        %v2740 = vrot.slane %v2738, 5
        %v2741 = vor.u32 %v2737, %v2740
        %v2743 = vshrl.u32 %v2493, 16
        %v2745 = vrot.slane %v2743, 4
        %v2746 = vshll.u32 %v2493, 16
        %v2748 = vrot.slane %v2746, 5
        %v2749 = vor.u32 %v2745, %v2748
        %v2750 = vsel %vm1580, %v2741, %v2749
        %v2752 = vshrl.u32 %v2494, 16
        %v2754 = vrot.slane %v2752, 4
        %v2755 = vshll.u32 %v2494, 16
        %v2757 = vrot.slane %v2755, 5
        %v2758 = vor.u32 %v2754, %v2757
        %v2760 = vshrl.u32 %v2495, 16
        %v2762 = vrot.slane %v2760, 4
        %v2763 = vshll.u32 %v2495, 16
        %v2765 = vrot.slane %v2763, 5
        %v2766 = vor.u32 %v2762, %v2765
        %v2767 = vsel %vm1580, %v2758, %v2766
        %2768 = vrot.lane.b32.xlu0 %v2512, 40
        %v2769 = vpop.permute.xlu0 %2768
        %2770 = vrot.lane.b32.xlu0 %v2529, 40
        %v2771 = vpop.permute.xlu0 %2770
        %2772 = vrot.lane.b32.xlu0 %v2546, 40
        %v2773 = vpop.permute.xlu0 %2772
        %2774 = vrot.lane.b32.xlu0 %v2563, 40
        %v2775 = vpop.permute.xlu0 %2774
        %2776 = vrot.lane.b32.xlu0 %v2580, 40
        %v2777 = vpop.permute.xlu0 %2776
        %2778 = vrot.lane.b32.xlu0 %v2597, 40
        %v2779 = vpop.permute.xlu0 %2778
        %2780 = vrot.lane.b32.xlu0 %v2614, 40
        %v2781 = vpop.permute.xlu0 %2780
        %2782 = vrot.lane.b32.xlu0 %v2631, 40
        %v2783 = vpop.permute.xlu0 %2782
        %2784 = vrot.lane.b32.xlu0 %v2648, 40
        %v2785 = vpop.permute.xlu0 %2784
        %2786 = vrot.lane.b32.xlu0 %v2665, 40
        %v2787 = vpop.permute.xlu0 %2786
        %2788 = vrot.lane.b32.xlu0 %v2682, 40
        %v2789 = vpop.permute.xlu0 %2788
        %2790 = vrot.lane.b32.xlu0 %v2699, 40
        %v2791 = vpop.permute.xlu0 %2790
        %2792 = vrot.lane.b32.xlu0 %v2716, 40
        %v2793 = vpop.permute.xlu0 %2792
        %2794 = vrot.lane.b32.xlu0 %v2733, 40
        %v2795 = vpop.permute.xlu0 %2794
        %2796 = vrot.lane.b32.xlu0 %v2750, 40
        %v2797 = vpop.permute.xlu0 %2796
        %2798 = vrot.lane.b32.xlu0 %v2767, 40
        %v2799 = vpop.permute.xlu0 %2798
        %vm2816 = vcmask 392512
        %2817 = vst.msk [vmem:[#allocation3] sm:$0xff] %vm2816, %v2769
        %2818 = vst.msk [vmem:[#allocation3 + $0x8] sm:$0xff] %vm2816, %v2771
        %2819 = vst.msk [vmem:[#allocation3 + $0x10] sm:$0xff] %vm2816, %v2773
        %2820 = vst.msk [vmem:[#allocation3 + $0x18] sm:$0xff] %vm2816, %v2775
        %2821 = vst.msk [vmem:[#allocation3 + $0x20] sm:$0xff] %vm2816, %v2777
        %2822 = vst.msk [vmem:[#allocation3 + $0x28] sm:$0xff] %vm2816, %v2779
        %2823 = vst.msk [vmem:[#allocation3 + $0x30] sm:$0xff] %vm2816, %v2781
        %2824 = vst.msk [vmem:[#allocation3 + $0x38] sm:$0xff] %vm2816, %v2783
        %2825 = vst.msk [vmem:[#allocation3 + $0x40] sm:$0xff] %vm2816, %v2785
        %2826 = vst.msk [vmem:[#allocation3 + $0x48] sm:$0xff] %vm2816, %v2787
        %2827 = vst.msk [vmem:[#allocation3 + $0x50] sm:$0xff] %vm2816, %v2789
        %2828 = vst.msk [vmem:[#allocation3 + $0x58] sm:$0xff] %vm2816, %v2791
        %2829 = vst.msk [vmem:[#allocation3 + $0x60] sm:$0xff] %vm2816, %v2793
        %2830 = vst.msk [vmem:[#allocation3 + $0x68] sm:$0xff] %vm2816, %v2795
        %2831 = vst.msk [vmem:[#allocation3 + $0x70] sm:$0xff] %vm2816, %v2797
        %2832 = vst.msk [vmem:[#allocation3 + $0x78] sm:$0xff] %vm2816, %v2799
        %s2833 = scalar_lea.vmem [#allocation2], 32
        %v2834 = vld [vmem:[%s2833] sm:$0xf8]
        %v2835 = vld [vmem:[%s2833 + $0x8] sm:$0xf]
        %v2836 = vld [vmem:[%s2833 + $0x10] sm:$0xf8]
        %v2837 = vld [vmem:[%s2833 + $0x18] sm:$0xf]
        %v2838 = vld [vmem:[%s2833 + $0x20] sm:$0xf8]
        %v2839 = vld [vmem:[%s2833 + $0x28] sm:$0xf]
        %v2840 = vld [vmem:[%s2833 + $0x30] sm:$0xf8]
        %v2841 = vld [vmem:[%s2833 + $0x38] sm:$0xf]
        %v2842 = vld [vmem:[%s2833 + $0x40] sm:$0xf8]
        %v2843 = vld [vmem:[%s2833 + $0x48] sm:$0xf]
        %v2844 = vld [vmem:[%s2833 + $0x50] sm:$0xf8]
        %v2845 = vld [vmem:[%s2833 + $0x58] sm:$0xf]
        %v2846 = vld [vmem:[%s2833 + $0x60] sm:$0xf8]
        %v2847 = vld [vmem:[%s2833 + $0x68] sm:$0xf]
        %v2848 = vld [vmem:[%s2833 + $0x70] sm:$0xf8]
        %v2849 = vld [vmem:[%s2833 + $0x78] sm:$0xf]
        %v2850 = vld [vmem:[%s2833 + $0x80] sm:$0xf8]
        %v2851 = vld [vmem:[%s2833 + $0x88] sm:$0xf]
        %v2852 = vld [vmem:[%s2833 + $0x90] sm:$0xf8]
        %v2853 = vld [vmem:[%s2833 + $0x98] sm:$0xf]
        %v2854 = vld [vmem:[%s2833 + $0xa0] sm:$0xf8]
        %v2855 = vld [vmem:[%s2833 + $0xa8] sm:$0xf]
        %v2856 = vld [vmem:[%s2833 + $0xb0] sm:$0xf8]
        %v2857 = vld [vmem:[%s2833 + $0xb8] sm:$0xf]
        %v2858 = vld [vmem:[%s2833 + $0xc0] sm:$0xf8]
        %v2859 = vld [vmem:[%s2833 + $0xc8] sm:$0xf]
        %v2860 = vld [vmem:[%s2833 + $0xd0] sm:$0xf8]
        %v2861 = vld [vmem:[%s2833 + $0xd8] sm:$0xf]
        %v2862 = vld [vmem:[%s2833 + $0xe0] sm:$0xf8]
        %v2863 = vld [vmem:[%s2833 + $0xe8] sm:$0xf]
        %v2864 = vld [vmem:[%s2833 + $0xf0] sm:$0xf8]
        %v2865 = vld [vmem:[%s2833 + $0xf8] sm:$0xf]
        %v2867 = vshrl.u32 %v2834, 16
        %v2869 = vrot.slane %v2867, 3
        %v2870 = vshll.u32 %v2834, 16
        %v2872 = vrot.slane %v2870, 4
        %v2873 = vor.u32 %v2869, %v2872
        %v2875 = vshrl.u32 %v2835, 16
        %v2877 = vrot.slane %v2875, 3
        %v2878 = vshll.u32 %v2835, 16
        %v2880 = vrot.slane %v2878, 4
        %v2881 = vor.u32 %v2877, %v2880
        %v2882 = vsel %vm886, %v2873, %v2881
        %v2884 = vshrl.u32 %v2836, 16
        %v2886 = vrot.slane %v2884, 3
        %v2887 = vshll.u32 %v2836, 16
        %v2889 = vrot.slane %v2887, 4
        %v2890 = vor.u32 %v2886, %v2889
        %v2892 = vshrl.u32 %v2837, 16
        %v2894 = vrot.slane %v2892, 3
        %v2895 = vshll.u32 %v2837, 16
        %v2897 = vrot.slane %v2895, 4
        %v2898 = vor.u32 %v2894, %v2897
        %v2899 = vsel %vm886, %v2890, %v2898
        %v2901 = vshrl.u32 %v2838, 16
        %v2903 = vrot.slane %v2901, 3
        %v2904 = vshll.u32 %v2838, 16
        %v2906 = vrot.slane %v2904, 4
        %v2907 = vor.u32 %v2903, %v2906
        %v2909 = vshrl.u32 %v2839, 16
        %v2911 = vrot.slane %v2909, 3
        %v2912 = vshll.u32 %v2839, 16
        %v2914 = vrot.slane %v2912, 4
        %v2915 = vor.u32 %v2911, %v2914
        %v2916 = vsel %vm886, %v2907, %v2915
        %v2918 = vshrl.u32 %v2840, 16
        %v2920 = vrot.slane %v2918, 3
        %v2921 = vshll.u32 %v2840, 16
        %v2923 = vrot.slane %v2921, 4
        %v2924 = vor.u32 %v2920, %v2923
        %v2926 = vshrl.u32 %v2841, 16
        %v2928 = vrot.slane %v2926, 3
        %v2929 = vshll.u32 %v2841, 16
        %v2931 = vrot.slane %v2929, 4
        %v2932 = vor.u32 %v2928, %v2931
        %v2933 = vsel %vm886, %v2924, %v2932
        %v2935 = vshrl.u32 %v2842, 16
        %v2937 = vrot.slane %v2935, 3
        %v2938 = vshll.u32 %v2842, 16
        %v2940 = vrot.slane %v2938, 4
        %v2941 = vor.u32 %v2937, %v2940
        %v2943 = vshrl.u32 %v2843, 16
        %v2945 = vrot.slane %v2943, 3
        %v2946 = vshll.u32 %v2843, 16
        %v2948 = vrot.slane %v2946, 4
        %v2949 = vor.u32 %v2945, %v2948
        %v2950 = vsel %vm886, %v2941, %v2949
        %v2952 = vshrl.u32 %v2844, 16
        %v2954 = vrot.slane %v2952, 3
        %v2955 = vshll.u32 %v2844, 16
        %v2957 = vrot.slane %v2955, 4
        %v2958 = vor.u32 %v2954, %v2957
        %v2960 = vshrl.u32 %v2845, 16
        %v2962 = vrot.slane %v2960, 3
        %v2963 = vshll.u32 %v2845, 16
        %v2965 = vrot.slane %v2963, 4
        %v2966 = vor.u32 %v2962, %v2965
        %v2967 = vsel %vm886, %v2958, %v2966
        %v2969 = vshrl.u32 %v2846, 16
        %v2971 = vrot.slane %v2969, 3
        %v2972 = vshll.u32 %v2846, 16
        %v2974 = vrot.slane %v2972, 4
        %v2975 = vor.u32 %v2971, %v2974
        %v2977 = vshrl.u32 %v2847, 16
        %v2979 = vrot.slane %v2977, 3
        %v2980 = vshll.u32 %v2847, 16
        %v2982 = vrot.slane %v2980, 4
        %v2983 = vor.u32 %v2979, %v2982
        %v2984 = vsel %vm886, %v2975, %v2983
        %v2986 = vshrl.u32 %v2848, 16
        %v2988 = vrot.slane %v2986, 3
        %v2989 = vshll.u32 %v2848, 16
        %v2991 = vrot.slane %v2989, 4
        %v2992 = vor.u32 %v2988, %v2991
        %v2994 = vshrl.u32 %v2849, 16
        %v2996 = vrot.slane %v2994, 3
        %v2997 = vshll.u32 %v2849, 16
        %v2999 = vrot.slane %v2997, 4
        %v3000 = vor.u32 %v2996, %v2999
        %v3001 = vsel %vm886, %v2992, %v3000
        %v3003 = vshrl.u32 %v2850, 16
        %v3005 = vrot.slane %v3003, 3
        %v3006 = vshll.u32 %v2850, 16
        %v3008 = vrot.slane %v3006, 4
        %v3009 = vor.u32 %v3005, %v3008
        %v3011 = vshrl.u32 %v2851, 16
        %v3013 = vrot.slane %v3011, 3
        %v3014 = vshll.u32 %v2851, 16
        %v3016 = vrot.slane %v3014, 4
        %v3017 = vor.u32 %v3013, %v3016
        %v3018 = vsel %vm886, %v3009, %v3017
        %v3020 = vshrl.u32 %v2852, 16
        %v3022 = vrot.slane %v3020, 3
        %v3023 = vshll.u32 %v2852, 16
        %v3025 = vrot.slane %v3023, 4
        %v3026 = vor.u32 %v3022, %v3025
        %v3028 = vshrl.u32 %v2853, 16
        %v3030 = vrot.slane %v3028, 3
        %v3031 = vshll.u32 %v2853, 16
        %v3033 = vrot.slane %v3031, 4
        %v3034 = vor.u32 %v3030, %v3033
        %v3035 = vsel %vm886, %v3026, %v3034
        %v3037 = vshrl.u32 %v2854, 16
        %v3039 = vrot.slane %v3037, 3
        %v3040 = vshll.u32 %v2854, 16
        %v3042 = vrot.slane %v3040, 4
        %v3043 = vor.u32 %v3039, %v3042
        %v3045 = vshrl.u32 %v2855, 16
        %v3047 = vrot.slane %v3045, 3
        %v3048 = vshll.u32 %v2855, 16
        %v3050 = vrot.slane %v3048, 4
        %v3051 = vor.u32 %v3047, %v3050
        %v3052 = vsel %vm886, %v3043, %v3051
        %v3054 = vshrl.u32 %v2856, 16
        %v3056 = vrot.slane %v3054, 3
        %v3057 = vshll.u32 %v2856, 16
        %v3059 = vrot.slane %v3057, 4
        %v3060 = vor.u32 %v3056, %v3059
        %v3062 = vshrl.u32 %v2857, 16
        %v3064 = vrot.slane %v3062, 3
        %v3065 = vshll.u32 %v2857, 16
        %v3067 = vrot.slane %v3065, 4
        %v3068 = vor.u32 %v3064, %v3067
        %v3069 = vsel %vm886, %v3060, %v3068
        %v3071 = vshrl.u32 %v2858, 16
        %v3073 = vrot.slane %v3071, 3
        %v3074 = vshll.u32 %v2858, 16
        %v3076 = vrot.slane %v3074, 4
        %v3077 = vor.u32 %v3073, %v3076
        %v3079 = vshrl.u32 %v2859, 16
        %v3081 = vrot.slane %v3079, 3
        %v3082 = vshll.u32 %v2859, 16
        %v3084 = vrot.slane %v3082, 4
        %v3085 = vor.u32 %v3081, %v3084
        %v3086 = vsel %vm886, %v3077, %v3085
        %v3088 = vshrl.u32 %v2860, 16
        %v3090 = vrot.slane %v3088, 3
        %v3091 = vshll.u32 %v2860, 16
        %v3093 = vrot.slane %v3091, 4
        %v3094 = vor.u32 %v3090, %v3093
        %v3096 = vshrl.u32 %v2861, 16
        %v3098 = vrot.slane %v3096, 3
        %v3099 = vshll.u32 %v2861, 16
        %v3101 = vrot.slane %v3099, 4
        %v3102 = vor.u32 %v3098, %v3101
        %v3103 = vsel %vm886, %v3094, %v3102
        %v3105 = vshrl.u32 %v2862, 16
        %v3107 = vrot.slane %v3105, 3
        %v3108 = vshll.u32 %v2862, 16
        %v3110 = vrot.slane %v3108, 4
        %v3111 = vor.u32 %v3107, %v3110
        %v3113 = vshrl.u32 %v2863, 16
        %v3115 = vrot.slane %v3113, 3
        %v3116 = vshll.u32 %v2863, 16
        %v3118 = vrot.slane %v3116, 4
        %v3119 = vor.u32 %v3115, %v3118
        %v3120 = vsel %vm886, %v3111, %v3119
        %v3122 = vshrl.u32 %v2864, 16
        %v3124 = vrot.slane %v3122, 3
        %v3125 = vshll.u32 %v2864, 16
        %v3127 = vrot.slane %v3125, 4
        %v3128 = vor.u32 %v3124, %v3127
        %v3130 = vshrl.u32 %v2865, 16
        %v3132 = vrot.slane %v3130, 3
        %v3133 = vshll.u32 %v2865, 16
        %v3135 = vrot.slane %v3133, 4
        %v3136 = vor.u32 %v3132, %v3135
        %v3137 = vsel %vm886, %v3128, %v3136
        %3138 = vrot.lane.b32.xlu0 %v2882, 48
        %v3139 = vpop.permute.xlu0 %3138
        %3140 = vrot.lane.b32.xlu0 %v2899, 48
        %v3141 = vpop.permute.xlu0 %3140
        %3142 = vrot.lane.b32.xlu0 %v2916, 48
        %v3143 = vpop.permute.xlu0 %3142
        %3144 = vrot.lane.b32.xlu0 %v2933, 48
        %v3145 = vpop.permute.xlu0 %3144
        %3146 = vrot.lane.b32.xlu0 %v2950, 48
        %v3147 = vpop.permute.xlu0 %3146
        %3148 = vrot.lane.b32.xlu0 %v2967, 48
        %v3149 = vpop.permute.xlu0 %3148
        %3150 = vrot.lane.b32.xlu0 %v2984, 48
        %v3151 = vpop.permute.xlu0 %3150
        %3152 = vrot.lane.b32.xlu0 %v3001, 48
        %v3153 = vpop.permute.xlu0 %3152
        %3154 = vrot.lane.b32.xlu0 %v3018, 48
        %v3155 = vpop.permute.xlu0 %3154
        %3156 = vrot.lane.b32.xlu0 %v3035, 48
        %v3157 = vpop.permute.xlu0 %3156
        %3158 = vrot.lane.b32.xlu0 %v3052, 48
        %v3159 = vpop.permute.xlu0 %3158
        %3160 = vrot.lane.b32.xlu0 %v3069, 48
        %v3161 = vpop.permute.xlu0 %3160
        %3162 = vrot.lane.b32.xlu0 %v3086, 48
        %v3163 = vpop.permute.xlu0 %3162
        %3164 = vrot.lane.b32.xlu0 %v3103, 48
        %v3165 = vpop.permute.xlu0 %3164
        %3166 = vrot.lane.b32.xlu0 %v3120, 48
        %v3167 = vpop.permute.xlu0 %3166
        %3168 = vrot.lane.b32.xlu0 %v3137, 48
        %v3169 = vpop.permute.xlu0 %3168
        %vm3186 = vcmask 458112
        %3187 = vst.msk [vmem:[#allocation3] sm:$0xff] %vm3186, %v3139
        %3188 = vst.msk [vmem:[#allocation3 + $0x8] sm:$0xff] %vm3186, %v3141
        %3189 = vst.msk [vmem:[#allocation3 + $0x10] sm:$0xff] %vm3186, %v3143
        %3190 = vst.msk [vmem:[#allocation3 + $0x18] sm:$0xff] %vm3186, %v3145
        %3191 = vst.msk [vmem:[#allocation3 + $0x20] sm:$0xff] %vm3186, %v3147
        %3192 = vst.msk [vmem:[#allocation3 + $0x28] sm:$0xff] %vm3186, %v3149
        %3193 = vst.msk [vmem:[#allocation3 + $0x30] sm:$0xff] %vm3186, %v3151
        %3194 = vst.msk [vmem:[#allocation3 + $0x38] sm:$0xff] %vm3186, %v3153
        %3195 = vst.msk [vmem:[#allocation3 + $0x40] sm:$0xff] %vm3186, %v3155
        %3196 = vst.msk [vmem:[#allocation3 + $0x48] sm:$0xff] %vm3186, %v3157
        %3197 = vst.msk [vmem:[#allocation3 + $0x50] sm:$0xff] %vm3186, %v3159
        %3198 = vst.msk [vmem:[#allocation3 + $0x58] sm:$0xff] %vm3186, %v3161
        %3199 = vst.msk [vmem:[#allocation3 + $0x60] sm:$0xff] %vm3186, %v3163
        %3200 = vst.msk [vmem:[#allocation3 + $0x68] sm:$0xff] %vm3186, %v3165
        %3201 = vst.msk [vmem:[#allocation3 + $0x70] sm:$0xff] %vm3186, %v3167
        %3202 = vst.msk [vmem:[#allocation3 + $0x78] sm:$0xff] %vm3186, %v3169
        %v3203 = vld [vmem:[%s2833] sm:$0xf0]
        %v3204 = vld [vmem:[%s2833 + $0x8] sm:$0xf]
        %v3205 = vld [vmem:[%s2833 + $0x10] sm:$0xf0]
        %v3206 = vld [vmem:[%s2833 + $0x18] sm:$0xf]
        %v3207 = vld [vmem:[%s2833 + $0x20] sm:$0xf0]
        %v3208 = vld [vmem:[%s2833 + $0x28] sm:$0xf]
        %v3209 = vld [vmem:[%s2833 + $0x30] sm:$0xf0]
        %v3210 = vld [vmem:[%s2833 + $0x38] sm:$0xf]
        %v3211 = vld [vmem:[%s2833 + $0x40] sm:$0xf0]
        %v3212 = vld [vmem:[%s2833 + $0x48] sm:$0xf]
        %v3213 = vld [vmem:[%s2833 + $0x50] sm:$0xf0]
        %v3214 = vld [vmem:[%s2833 + $0x58] sm:$0xf]
        %v3215 = vld [vmem:[%s2833 + $0x60] sm:$0xf0]
        %v3216 = vld [vmem:[%s2833 + $0x68] sm:$0xf]
        %v3217 = vld [vmem:[%s2833 + $0x70] sm:$0xf0]
        %v3218 = vld [vmem:[%s2833 + $0x78] sm:$0xf]
        %v3219 = vld [vmem:[%s2833 + $0x80] sm:$0xf0]
        %v3220 = vld [vmem:[%s2833 + $0x88] sm:$0xf]
        %v3221 = vld [vmem:[%s2833 + $0x90] sm:$0xf0]
        %v3222 = vld [vmem:[%s2833 + $0x98] sm:$0xf]
        %v3223 = vld [vmem:[%s2833 + $0xa0] sm:$0xf0]
        %v3224 = vld [vmem:[%s2833 + $0xa8] sm:$0xf]
        %v3225 = vld [vmem:[%s2833 + $0xb0] sm:$0xf0]
        %v3226 = vld [vmem:[%s2833 + $0xb8] sm:$0xf]
        %v3227 = vld [vmem:[%s2833 + $0xc0] sm:$0xf0]
        %v3228 = vld [vmem:[%s2833 + $0xc8] sm:$0xf]
        %v3229 = vld [vmem:[%s2833 + $0xd0] sm:$0xf0]
        %v3230 = vld [vmem:[%s2833 + $0xd8] sm:$0xf]
        %v3231 = vld [vmem:[%s2833 + $0xe0] sm:$0xf0]
        %v3232 = vld [vmem:[%s2833 + $0xe8] sm:$0xf]
        %v3233 = vld [vmem:[%s2833 + $0xf0] sm:$0xf0]
        %v3234 = vld [vmem:[%s2833 + $0xf8] sm:$0xf]
        %v3267 = vrot.slane %v3203, 4
        %v3268 = vrot.slane %v3204, 4
        %v3269 = vsel %vm1434, %v3267, %v3268
        %v3270 = vrot.slane %v3205, 4
        %v3271 = vrot.slane %v3206, 4
        %v3272 = vsel %vm1434, %v3270, %v3271
        %v3273 = vrot.slane %v3207, 4
        %v3274 = vrot.slane %v3208, 4
        %v3275 = vsel %vm1434, %v3273, %v3274
        %v3276 = vrot.slane %v3209, 4
        %v3277 = vrot.slane %v3210, 4
        %v3278 = vsel %vm1434, %v3276, %v3277
        %v3279 = vrot.slane %v3211, 4
        %v3280 = vrot.slane %v3212, 4
        %v3281 = vsel %vm1434, %v3279, %v3280
        %v3282 = vrot.slane %v3213, 4
        %v3283 = vrot.slane %v3214, 4
        %v3284 = vsel %vm1434, %v3282, %v3283
        %v3285 = vrot.slane %v3215, 4
        %v3286 = vrot.slane %v3216, 4
        %v3287 = vsel %vm1434, %v3285, %v3286
        %v3288 = vrot.slane %v3217, 4
        %v3289 = vrot.slane %v3218, 4
        %v3290 = vsel %vm1434, %v3288, %v3289
        %v3291 = vrot.slane %v3219, 4
        %v3292 = vrot.slane %v3220, 4
        %v3293 = vsel %vm1434, %v3291, %v3292
        %v3294 = vrot.slane %v3221, 4
        %v3295 = vrot.slane %v3222, 4
        %v3296 = vsel %vm1434, %v3294, %v3295
        %v3297 = vrot.slane %v3223, 4
        %v3298 = vrot.slane %v3224, 4
        %v3299 = vsel %vm1434, %v3297, %v3298
        %v3300 = vrot.slane %v3225, 4
        %v3301 = vrot.slane %v3226, 4
        %v3302 = vsel %vm1434, %v3300, %v3301
        %v3303 = vrot.slane %v3227, 4
        %v3304 = vrot.slane %v3228, 4
        %v3305 = vsel %vm1434, %v3303, %v3304
        %v3306 = vrot.slane %v3229, 4
        %v3307 = vrot.slane %v3230, 4
        %v3308 = vsel %vm1434, %v3306, %v3307
        %v3309 = vrot.slane %v3231, 4
        %v3310 = vrot.slane %v3232, 4
        %v3311 = vsel %vm1434, %v3309, %v3310
        %v3312 = vrot.slane %v3233, 4
        %v3313 = vrot.slane %v3234, 4
        %v3314 = vsel %vm1434, %v3312, %v3313
        %3315 = vrot.lane.b32.xlu0 %v3269, 56
        %v3316 = vpop.permute.xlu0 %3315
        %3317 = vrot.lane.b32.xlu0 %v3272, 56
        %v3318 = vpop.permute.xlu0 %3317
        %3319 = vrot.lane.b32.xlu0 %v3275, 56
        %v3320 = vpop.permute.xlu0 %3319
        %3321 = vrot.lane.b32.xlu0 %v3278, 56
        %v3322 = vpop.permute.xlu0 %3321
        %3323 = vrot.lane.b32.xlu0 %v3281, 56
        %v3324 = vpop.permute.xlu0 %3323
        %3325 = vrot.lane.b32.xlu0 %v3284, 56
        %v3326 = vpop.permute.xlu0 %3325
        %3327 = vrot.lane.b32.xlu0 %v3287, 56
        %v3328 = vpop.permute.xlu0 %3327
        %3329 = vrot.lane.b32.xlu0 %v3290, 56
        %v3330 = vpop.permute.xlu0 %3329
        %3331 = vrot.lane.b32.xlu0 %v3293, 56
        %v3332 = vpop.permute.xlu0 %3331
        %3333 = vrot.lane.b32.xlu0 %v3296, 56
        %v3334 = vpop.permute.xlu0 %3333
        %3335 = vrot.lane.b32.xlu0 %v3299, 56
        %v3336 = vpop.permute.xlu0 %3335
        %3337 = vrot.lane.b32.xlu0 %v3302, 56
        %v3338 = vpop.permute.xlu0 %3337
        %3339 = vrot.lane.b32.xlu0 %v3305, 56
        %v3340 = vpop.permute.xlu0 %3339
        %3341 = vrot.lane.b32.xlu0 %v3308, 56
        %v3342 = vpop.permute.xlu0 %3341
        %3343 = vrot.lane.b32.xlu0 %v3311, 56
        %v3344 = vpop.permute.xlu0 %3343
        %3345 = vrot.lane.b32.xlu0 %v3314, 56
        %v3346 = vpop.permute.xlu0 %3345
        %vm3363 = vcmask 523712
        %3364 = vst.msk [vmem:[#allocation3] sm:$0xff] %vm3363, %v3316
        %3365 = vst.msk [vmem:[#allocation3 + $0x8] sm:$0xff] %vm3363, %v3318
        %3366 = vst.msk [vmem:[#allocation3 + $0x10] sm:$0xff] %vm3363, %v3320
        %3367 = vst.msk [vmem:[#allocation3 + $0x18] sm:$0xff] %vm3363, %v3322
        %3368 = vst.msk [vmem:[#allocation3 + $0x20] sm:$0xff] %vm3363, %v3324
        %3369 = vst.msk [vmem:[#allocation3 + $0x28] sm:$0xff] %vm3363, %v3326
        %3370 = vst.msk [vmem:[#allocation3 + $0x30] sm:$0xff] %vm3363, %v3328
        %3371 = vst.msk [vmem:[#allocation3 + $0x38] sm:$0xff] %vm3363, %v3330
        %3372 = vst.msk [vmem:[#allocation3 + $0x40] sm:$0xff] %vm3363, %v3332
        %3373 = vst.msk [vmem:[#allocation3 + $0x48] sm:$0xff] %vm3363, %v3334
        %3374 = vst.msk [vmem:[#allocation3 + $0x50] sm:$0xff] %vm3363, %v3336
        %3375 = vst.msk [vmem:[#allocation3 + $0x58] sm:$0xff] %vm3363, %v3338
        %3376 = vst.msk [vmem:[#allocation3 + $0x60] sm:$0xff] %vm3363, %v3340
        %3377 = vst.msk [vmem:[#allocation3 + $0x68] sm:$0xff] %vm3363, %v3342
        %3378 = vst.msk [vmem:[#allocation3 + $0x70] sm:$0xff] %vm3363, %v3344
        %3379 = vst.msk [vmem:[#allocation3 + $0x78] sm:$0xff] %vm3363, %v3346
        %v3380 = vld [vmem:[%s2833] sm:$0xf0]
        %v3381 = vld [vmem:[%s2833 + $0x8] sm:$0x1f]
        %v3382 = vld [vmem:[%s2833 + $0x10] sm:$0xf0]
        %v3383 = vld [vmem:[%s2833 + $0x18] sm:$0x1f]
        %v3384 = vld [vmem:[%s2833 + $0x20] sm:$0xf0]
        %v3385 = vld [vmem:[%s2833 + $0x28] sm:$0x1f]
        %v3386 = vld [vmem:[%s2833 + $0x30] sm:$0xf0]
        %v3387 = vld [vmem:[%s2833 + $0x38] sm:$0x1f]
        %v3388 = vld [vmem:[%s2833 + $0x40] sm:$0xf0]
        %v3389 = vld [vmem:[%s2833 + $0x48] sm:$0x1f]
        %v3390 = vld [vmem:[%s2833 + $0x50] sm:$0xf0]
        %v3391 = vld [vmem:[%s2833 + $0x58] sm:$0x1f]
        %v3392 = vld [vmem:[%s2833 + $0x60] sm:$0xf0]
        %v3393 = vld [vmem:[%s2833 + $0x68] sm:$0x1f]
        %v3394 = vld [vmem:[%s2833 + $0x70] sm:$0xf0]
        %v3395 = vld [vmem:[%s2833 + $0x78] sm:$0x1f]
        %v3396 = vld [vmem:[%s2833 + $0x80] sm:$0xf0]
        %v3397 = vld [vmem:[%s2833 + $0x88] sm:$0x1f]
        %v3398 = vld [vmem:[%s2833 + $0x90] sm:$0xf0]
        %v3399 = vld [vmem:[%s2833 + $0x98] sm:$0x1f]
        %v3400 = vld [vmem:[%s2833 + $0xa0] sm:$0xf0]
        %v3401 = vld [vmem:[%s2833 + $0xa8] sm:$0x1f]
        %v3402 = vld [vmem:[%s2833 + $0xb0] sm:$0xf0]
        %v3403 = vld [vmem:[%s2833 + $0xb8] sm:$0x1f]
        %v3404 = vld [vmem:[%s2833 + $0xc0] sm:$0xf0]
        %v3405 = vld [vmem:[%s2833 + $0xc8] sm:$0x1f]
        %v3406 = vld [vmem:[%s2833 + $0xd0] sm:$0xf0]
        %v3407 = vld [vmem:[%s2833 + $0xd8] sm:$0x1f]
        %v3408 = vld [vmem:[%s2833 + $0xe0] sm:$0xf0]
        %v3409 = vld [vmem:[%s2833 + $0xe8] sm:$0x1f]
        %v3410 = vld [vmem:[%s2833 + $0xf0] sm:$0xf0]
        %v3411 = vld [vmem:[%s2833 + $0xf8] sm:$0x1f]
        %v3413 = vshrl.u32 %v3380, 16
        %v3415 = vrot.slane %v3413, 4
        %v3416 = vshll.u32 %v3380, 16
        %v3418 = vrot.slane %v3416, 5
        %v3419 = vor.u32 %v3415, %v3418
        %v3421 = vshrl.u32 %v3381, 16
        %v3423 = vrot.slane %v3421, 4
        %v3424 = vshll.u32 %v3381, 16
        %v3426 = vrot.slane %v3424, 5
        %v3427 = vor.u32 %v3423, %v3426
        %v3428 = vsel %vm1580, %v3419, %v3427
        %v3430 = vshrl.u32 %v3382, 16
        %v3432 = vrot.slane %v3430, 4
        %v3433 = vshll.u32 %v3382, 16
        %v3435 = vrot.slane %v3433, 5
        %v3436 = vor.u32 %v3432, %v3435
        %v3438 = vshrl.u32 %v3383, 16
        %v3440 = vrot.slane %v3438, 4
        %v3441 = vshll.u32 %v3383, 16
        %v3443 = vrot.slane %v3441, 5
        %v3444 = vor.u32 %v3440, %v3443
        %v3445 = vsel %vm1580, %v3436, %v3444
        %v3447 = vshrl.u32 %v3384, 16
        %v3449 = vrot.slane %v3447, 4
        %v3450 = vshll.u32 %v3384, 16
        %v3452 = vrot.slane %v3450, 5
        %v3453 = vor.u32 %v3449, %v3452
        %v3455 = vshrl.u32 %v3385, 16
        %v3457 = vrot.slane %v3455, 4
        %v3458 = vshll.u32 %v3385, 16
        %v3460 = vrot.slane %v3458, 5
        %v3461 = vor.u32 %v3457, %v3460
        %v3462 = vsel %vm1580, %v3453, %v3461
        %v3464 = vshrl.u32 %v3386, 16
        %v3466 = vrot.slane %v3464, 4
        %v3467 = vshll.u32 %v3386, 16
        %v3469 = vrot.slane %v3467, 5
        %v3470 = vor.u32 %v3466, %v3469
        %v3472 = vshrl.u32 %v3387, 16
        %v3474 = vrot.slane %v3472, 4
        %v3475 = vshll.u32 %v3387, 16
        %v3477 = vrot.slane %v3475, 5
        %v3478 = vor.u32 %v3474, %v3477
        %v3479 = vsel %vm1580, %v3470, %v3478
        %v3481 = vshrl.u32 %v3388, 16
        %v3483 = vrot.slane %v3481, 4
        %v3484 = vshll.u32 %v3388, 16
        %v3486 = vrot.slane %v3484, 5
        %v3487 = vor.u32 %v3483, %v3486
        %v3489 = vshrl.u32 %v3389, 16
        %v3491 = vrot.slane %v3489, 4
        %v3492 = vshll.u32 %v3389, 16
        %v3494 = vrot.slane %v3492, 5
        %v3495 = vor.u32 %v3491, %v3494
        %v3496 = vsel %vm1580, %v3487, %v3495
        %v3498 = vshrl.u32 %v3390, 16
        %v3500 = vrot.slane %v3498, 4
        %v3501 = vshll.u32 %v3390, 16
        %v3503 = vrot.slane %v3501, 5
        %v3504 = vor.u32 %v3500, %v3503
        %v3506 = vshrl.u32 %v3391, 16
        %v3508 = vrot.slane %v3506, 4
        %v3509 = vshll.u32 %v3391, 16
        %v3511 = vrot.slane %v3509, 5
        %v3512 = vor.u32 %v3508, %v3511
        %v3513 = vsel %vm1580, %v3504, %v3512
        %v3515 = vshrl.u32 %v3392, 16
        %v3517 = vrot.slane %v3515, 4
        %v3518 = vshll.u32 %v3392, 16
        %v3520 = vrot.slane %v3518, 5
        %v3521 = vor.u32 %v3517, %v3520
        %v3523 = vshrl.u32 %v3393, 16
        %v3525 = vrot.slane %v3523, 4
        %v3526 = vshll.u32 %v3393, 16
        %v3528 = vrot.slane %v3526, 5
        %v3529 = vor.u32 %v3525, %v3528
        %v3530 = vsel %vm1580, %v3521, %v3529
        %v3532 = vshrl.u32 %v3394, 16
        %v3534 = vrot.slane %v3532, 4
        %v3535 = vshll.u32 %v3394, 16
        %v3537 = vrot.slane %v3535, 5
        %v3538 = vor.u32 %v3534, %v3537
        %v3540 = vshrl.u32 %v3395, 16
        %v3542 = vrot.slane %v3540, 4
        %v3543 = vshll.u32 %v3395, 16
        %v3545 = vrot.slane %v3543, 5
        %v3546 = vor.u32 %v3542, %v3545
        %v3547 = vsel %vm1580, %v3538, %v3546
        %v3549 = vshrl.u32 %v3396, 16
        %v3551 = vrot.slane %v3549, 4
        %v3552 = vshll.u32 %v3396, 16
        %v3554 = vrot.slane %v3552, 5
        %v3555 = vor.u32 %v3551, %v3554
        %v3557 = vshrl.u32 %v3397, 16
        %v3559 = vrot.slane %v3557, 4
        %v3560 = vshll.u32 %v3397, 16
        %v3562 = vrot.slane %v3560, 5
        %v3563 = vor.u32 %v3559, %v3562
        %v3564 = vsel %vm1580, %v3555, %v3563
        %v3566 = vshrl.u32 %v3398, 16
        %v3568 = vrot.slane %v3566, 4
        %v3569 = vshll.u32 %v3398, 16
        %v3571 = vrot.slane %v3569, 5
        %v3572 = vor.u32 %v3568, %v3571
        %v3574 = vshrl.u32 %v3399, 16
        %v3576 = vrot.slane %v3574, 4
        %v3577 = vshll.u32 %v3399, 16
        %v3579 = vrot.slane %v3577, 5
        %v3580 = vor.u32 %v3576, %v3579
        %v3581 = vsel %vm1580, %v3572, %v3580
        %v3583 = vshrl.u32 %v3400, 16
        %v3585 = vrot.slane %v3583, 4
        %v3586 = vshll.u32 %v3400, 16
        %v3588 = vrot.slane %v3586, 5
        %v3589 = vor.u32 %v3585, %v3588
        %v3591 = vshrl.u32 %v3401, 16
        %v3593 = vrot.slane %v3591, 4
        %v3594 = vshll.u32 %v3401, 16
        %v3596 = vrot.slane %v3594, 5
        %v3597 = vor.u32 %v3593, %v3596
        %v3598 = vsel %vm1580, %v3589, %v3597
        %v3600 = vshrl.u32 %v3402, 16
        %v3602 = vrot.slane %v3600, 4
        %v3603 = vshll.u32 %v3402, 16
        %v3605 = vrot.slane %v3603, 5
        %v3606 = vor.u32 %v3602, %v3605
        %v3608 = vshrl.u32 %v3403, 16
        %v3610 = vrot.slane %v3608, 4
        %v3611 = vshll.u32 %v3403, 16
        %v3613 = vrot.slane %v3611, 5
        %v3614 = vor.u32 %v3610, %v3613
        %v3615 = vsel %vm1580, %v3606, %v3614
        %v3617 = vshrl.u32 %v3404, 16
        %v3619 = vrot.slane %v3617, 4
        %v3620 = vshll.u32 %v3404, 16
        %v3622 = vrot.slane %v3620, 5
        %v3623 = vor.u32 %v3619, %v3622
        %v3625 = vshrl.u32 %v3405, 16
        %v3627 = vrot.slane %v3625, 4
        %v3628 = vshll.u32 %v3405, 16
        %v3630 = vrot.slane %v3628, 5
        %v3631 = vor.u32 %v3627, %v3630
        %v3632 = vsel %vm1580, %v3623, %v3631
        %v3634 = vshrl.u32 %v3406, 16
        %v3636 = vrot.slane %v3634, 4
        %v3637 = vshll.u32 %v3406, 16
        %v3639 = vrot.slane %v3637, 5
        %v3640 = vor.u32 %v3636, %v3639
        %v3642 = vshrl.u32 %v3407, 16
        %v3644 = vrot.slane %v3642, 4
        %v3645 = vshll.u32 %v3407, 16
        %v3647 = vrot.slane %v3645, 5
        %v3648 = vor.u32 %v3644, %v3647
        %v3649 = vsel %vm1580, %v3640, %v3648
        %v3651 = vshrl.u32 %v3408, 16
        %v3653 = vrot.slane %v3651, 4
        %v3654 = vshll.u32 %v3408, 16
        %v3656 = vrot.slane %v3654, 5
        %v3657 = vor.u32 %v3653, %v3656
        %v3659 = vshrl.u32 %v3409, 16
        %v3661 = vrot.slane %v3659, 4
        %v3662 = vshll.u32 %v3409, 16
        %v3664 = vrot.slane %v3662, 5
        %v3665 = vor.u32 %v3661, %v3664
        %v3666 = vsel %vm1580, %v3657, %v3665
        %v3668 = vshrl.u32 %v3410, 16
        %v3670 = vrot.slane %v3668, 4
        %v3671 = vshll.u32 %v3410, 16
        %v3673 = vrot.slane %v3671, 5
        %v3674 = vor.u32 %v3670, %v3673
        %v3676 = vshrl.u32 %v3411, 16
        %v3678 = vrot.slane %v3676, 4
        %v3679 = vshll.u32 %v3411, 16
        %v3681 = vrot.slane %v3679, 5
        %v3682 = vor.u32 %v3678, %v3681
        %v3683 = vsel %vm1580, %v3674, %v3682
        %3684 = vrot.lane.b32.xlu0 %v3428, 64
        %v3685 = vpop.permute.xlu0 %3684
        %3686 = vrot.lane.b32.xlu0 %v3445, 64
        %v3687 = vpop.permute.xlu0 %3686
        %3688 = vrot.lane.b32.xlu0 %v3462, 64
        %v3689 = vpop.permute.xlu0 %3688
        %3690 = vrot.lane.b32.xlu0 %v3479, 64
        %v3691 = vpop.permute.xlu0 %3690
        %3692 = vrot.lane.b32.xlu0 %v3496, 64
        %v3693 = vpop.permute.xlu0 %3692
        %3694 = vrot.lane.b32.xlu0 %v3513, 64
        %v3695 = vpop.permute.xlu0 %3694
        %3696 = vrot.lane.b32.xlu0 %v3530, 64
        %v3697 = vpop.permute.xlu0 %3696
        %3698 = vrot.lane.b32.xlu0 %v3547, 64
        %v3699 = vpop.permute.xlu0 %3698
        %3700 = vrot.lane.b32.xlu0 %v3564, 64
        %v3701 = vpop.permute.xlu0 %3700
        %3702 = vrot.lane.b32.xlu0 %v3581, 64
        %v3703 = vpop.permute.xlu0 %3702
        %3704 = vrot.lane.b32.xlu0 %v3598, 64
        %v3705 = vpop.permute.xlu0 %3704
        %3706 = vrot.lane.b32.xlu0 %v3615, 64
        %v3707 = vpop.permute.xlu0 %3706
        %3708 = vrot.lane.b32.xlu0 %v3632, 64
        %v3709 = vpop.permute.xlu0 %3708
        %3710 = vrot.lane.b32.xlu0 %v3649, 64
        %v3711 = vpop.permute.xlu0 %3710
        %3712 = vrot.lane.b32.xlu0 %v3666, 64
        %v3713 = vpop.permute.xlu0 %3712
        %3714 = vrot.lane.b32.xlu0 %v3683, 64
        %v3715 = vpop.permute.xlu0 %3714
        %vm3732 = vcmask 589312
        %3733 = vst.msk [vmem:[#allocation3] sm:$0xff] %vm3732, %v3685
        %3734 = vst.msk [vmem:[#allocation3 + $0x8] sm:$0xff] %vm3732, %v3687
        %3735 = vst.msk [vmem:[#allocation3 + $0x10] sm:$0xff] %vm3732, %v3689
        %3736 = vst.msk [vmem:[#allocation3 + $0x18] sm:$0xff] %vm3732, %v3691
        %3737 = vst.msk [vmem:[#allocation3 + $0x20] sm:$0xff] %vm3732, %v3693
        %3738 = vst.msk [vmem:[#allocation3 + $0x28] sm:$0xff] %vm3732, %v3695
        %3739 = vst.msk [vmem:[#allocation3 + $0x30] sm:$0xff] %vm3732, %v3697
        %3740 = vst.msk [vmem:[#allocation3 + $0x38] sm:$0xff] %vm3732, %v3699
        %3741 = vst.msk [vmem:[#allocation3 + $0x40] sm:$0xff] %vm3732, %v3701
        %3742 = vst.msk [vmem:[#allocation3 + $0x48] sm:$0xff] %vm3732, %v3703
        %3743 = vst.msk [vmem:[#allocation3 + $0x50] sm:$0xff] %vm3732, %v3705
        %3744 = vst.msk [vmem:[#allocation3 + $0x58] sm:$0xff] %vm3732, %v3707
        %3745 = vst.msk [vmem:[#allocation3 + $0x60] sm:$0xff] %vm3732, %v3709
        %3746 = vst.msk [vmem:[#allocation3 + $0x68] sm:$0xff] %vm3732, %v3711
        %3747 = vst.msk [vmem:[#allocation3 + $0x70] sm:$0xff] %vm3732, %v3713
        %3748 = vst.msk [vmem:[#allocation3 + $0x78] sm:$0xff] %vm3732, %v3715
        %v3749 = vld [vmem:[#allocation3] sm:$0xff]
        %v3750 = vld [vmem:[#allocation3 + $0x8] sm:$0xff]
        %v3751 = vld [vmem:[#allocation3 + $0x10] sm:$0xff]
        %v3752 = vld [vmem:[#allocation3 + $0x18] sm:$0xff]
        %v3753 = vld [vmem:[#allocation3 + $0x20] sm:$0xff]
        %v3754 = vld [vmem:[#allocation3 + $0x28] sm:$0xff]
        %v3755 = vld [vmem:[#allocation3 + $0x30] sm:$0xff]
        %v3756 = vld [vmem:[#allocation3 + $0x38] sm:$0xff]
        %v3757 = vld [vmem:[#allocation3 + $0x40] sm:$0xff]
        %v3758 = vld [vmem:[#allocation3 + $0x48] sm:$0xff]
        %v3759 = vld [vmem:[#allocation3 + $0x50] sm:$0xff]
        %v3760 = vld [vmem:[#allocation3 + $0x58] sm:$0xff]
        %v3761 = vld [vmem:[#allocation3 + $0x60] sm:$0xff]
        %v3762 = vld [vmem:[#allocation3 + $0x68] sm:$0xff]
        %v3763 = vld [vmem:[#allocation3 + $0x70] sm:$0xff]
        %v3764 = vld [vmem:[#allocation3 + $0x78] sm:$0xff]
        %v3765 = vld [vmem:[#allocation10] sm:$0xf]
        %v3766 = vld [vmem:[#allocation10 + $0x4] sm:$0xf]
        %v3767 = vld [vmem:[#allocation10 + $0x8] sm:$0xf]
        %v3768 = vld [vmem:[#allocation10 + $0xc] sm:$0xf]
        %v3769 = vld [vmem:[#allocation10 + $0x10] sm:$0xf]
        %v3770 = vld [vmem:[#allocation10 + $0x14] sm:$0xf]
        %v3771 = vld [vmem:[#allocation10 + $0x18] sm:$0xf]
        %v3772 = vld [vmem:[#allocation10 + $0x1c] sm:$0xf]
        %v3773 = vld [vmem:[#allocation10 + $0x20] sm:$0xf]
        %v3774 = vld [vmem:[#allocation12] sm:$0x1]
        %v3776 = vlaneseq
        %v3777 = vshrl.u32 %v3776, 7
        %v3778 = vsub.s32 0, %v3777
        %v3779 = vrot.slane %v3774, %v3778
        %v3790 = vunpack.c.l.b16 %v3765
        %v3791 = vunpack.c.l.b16 %v3766
        %v3792 = vunpack.c.l.b16 %v3767
        %v3793 = vunpack.c.l.b16 %v3768
        %v3794 = vunpack.c.l.b16 %v3769
        %v3795 = vunpack.c.l.b16 %v3770
        %v3796 = vunpack.c.l.b16 %v3771
        %v3797 = vunpack.c.l.b16 %v3772
        %v3798 = vunpack.c.l.b16 %v3773
        %v3799 = vpack.c.b16 %v3791, %v3790
        %v3800 = vpack.c.b16 %v3793, %v3792
        %v3801 = vpack.c.b16 %v3795, %v3794
        %v3802 = vpack.c.b16 %v3797, %v3796
        %v3803 = vpack.c.b16 %v3798, %v3798
        %vm3808 = vcmask 588800
        %v3810 = vsel %vm3808, %v3749, 0
        %v3813 = vsel %vm3808, %v3750, 0
        %v3816 = vsel %vm3808, %v3751, 0
        %v3819 = vsel %vm3808, %v3752, 0
        %v3822 = vsel %vm3808, %v3753, 0
        %v3825 = vsel %vm3808, %v3754, 0
        %v3828 = vsel %vm3808, %v3755, 0
        %v3831 = vsel %vm3808, %v3756, 0
        %v3834 = vsel %vm3808, %v3757, 0
        %v3837 = vsel %vm3808, %v3758, 0
        %v3840 = vsel %vm3808, %v3759, 0
        %v3843 = vsel %vm3808, %v3760, 0
        %v3846 = vsel %vm3808, %v3761, 0
        %v3849 = vsel %vm3808, %v3762, 0
        %v3852 = vsel %vm3808, %v3763, 0
        %v3855 = vsel %vm3808, %v3764, 0
        %vm3857 = vcmask 1043456
        %v3859 = vsel %vm3857, %v3803, 0
        %3861 = vmatprep.subr.bf16.mxu0 0
        %3862 = vmatpush1.bf16.msra.mxu0 %v3799
        %3863 = vmatprep.subr.bf16.mxu0 0
        %3864 = vmatpush1.bf16.msra.mxu0 %v3800
        %3865 = vmatprep.subr.bf16.mxu0 0
        %3866 = vmatpush1.bf16.msra.mxu0 %v3801
        %3867 = vmatprep.subr.bf16.mxu0 0
        %3868 = vmatpush1.bf16.msra.mxu0 %v3802
        %3869 = vmatprep.subr.bf16.mxu0 0
        %3870 = vmatpush1.bf16.msra.mxu0 %v3859
        %3871 = vmatprep.subr.bf16.mxu0 0
        %3872 = vmatpush1.bf16.msra.mxu0 0
        %3873 = vmatprep.subr.bf16.mxu0 0
        %3874 = vmatpush1.bf16.msra.mxu0 0
        %3875 = vmatprep.subr.bf16.mxu0 0
        %3876 = vmatpush1.bf16.msra.mxu0 0
        %3877 = vmatprep.subr.bf16.mxu0 0
        %3878 = vmatpush1.bf16.msra.mxu0 0
        %3879 = vmatprep.subr.bf16.mxu0 0
        %3880 = vmatpush1.bf16.msra.mxu0 0
        %3881 = vmatprep.subr.bf16.mxu0 0
        %3882 = vmatpush1.bf16.msra.mxu0 0
        %3883 = vmatprep.subr.bf16.mxu0 0
        %3884 = vmatpush1.bf16.msra.mxu0 0
        %3885 = vmatprep.subr.bf16.mxu0 0
        %3886 = vmatpush1.bf16.msra.mxu0 0
        %3887 = vmatprep.subr.bf16.mxu0 0
        %3888 = vmatpush1.bf16.msra.mxu0 0
        %3889 = vmatprep.subr.bf16.mxu0 0
        %3890 = vmatpush1.bf16.msra.mxu0 0
        %3891 = vmatprep.subr.bf16.mxu0 0
        %3892 = vmatpush1.bf16.msra.mxu0 0
        %3893 = vmatprep.mubr.bf16.mxu0 0
        %3894 = vmatmul.mubr.bf16.gmra.mrb[0].mxu0 %v3810
        %v3895 = vpop.f32.mrb[0].mxu0
        %v3896 = vadd.f32 %v3779, %v3895
        %v3897 = vpop.f32.mrb[0].mxu0
        %v3898 = vpop.f32.mrb[0].mxu0
        %v3899 = vadd.f32 %v3779, %v3898
        %v3900 = vpop.f32.mrb[0].mxu0
        %3901 = vmatprep.mubr.bf16.mxu0 0
        %3902 = vmatmul.mubr.bf16.gmra.mrb[0].mxu0 %v3813
        %v3903 = vpop.f32.mrb[0].mxu0
        %v3904 = vadd.f32 %v3779, %v3903
        %v3905 = vpop.f32.mrb[0].mxu0
        %v3906 = vpop.f32.mrb[0].mxu0
        %v3907 = vadd.f32 %v3779, %v3906
        %v3908 = vpop.f32.mrb[0].mxu0
        %3909 = vmatprep.mubr.bf16.mxu0 0
        %3910 = vmatmul.mubr.bf16.gmra.mrb[0].mxu0 %v3816
        %v3911 = vpop.f32.mrb[0].mxu0
        %v3912 = vadd.f32 %v3779, %v3911
        %v3913 = vpop.f32.mrb[0].mxu0
        %v3914 = vpop.f32.mrb[0].mxu0
        %v3915 = vadd.f32 %v3779, %v3914
        %v3916 = vpop.f32.mrb[0].mxu0
        %3917 = vmatprep.mubr.bf16.mxu0 0
        %3918 = vmatmul.mubr.bf16.gmra.mrb[0].mxu0 %v3819
        %v3919 = vpop.f32.mrb[0].mxu0
        %v3920 = vadd.f32 %v3779, %v3919
        %v3921 = vpop.f32.mrb[0].mxu0
        %v3922 = vpop.f32.mrb[0].mxu0
        %v3923 = vadd.f32 %v3779, %v3922
        %v3924 = vpop.f32.mrb[0].mxu0
        %3925 = vmatprep.mubr.bf16.mxu0 0
        %3926 = vmatmul.mubr.bf16.gmra.mrb[0].mxu0 %v3822
        %v3927 = vpop.f32.mrb[0].mxu0
        %v3928 = vadd.f32 %v3779, %v3927
        %v3929 = vpop.f32.mrb[0].mxu0
        %v3930 = vpop.f32.mrb[0].mxu0
        %v3931 = vadd.f32 %v3779, %v3930
        %v3932 = vpop.f32.mrb[0].mxu0
        %3933 = vmatprep.mubr.bf16.mxu0 0
        %3934 = vmatmul.mubr.bf16.gmra.mrb[0].mxu0 %v3825
        %v3935 = vpop.f32.mrb[0].mxu0
        %v3936 = vadd.f32 %v3779, %v3935
        %v3937 = vpop.f32.mrb[0].mxu0
        %v3938 = vpop.f32.mrb[0].mxu0
        %v3939 = vadd.f32 %v3779, %v3938
        %v3940 = vpop.f32.mrb[0].mxu0
        %3941 = vmatprep.mubr.bf16.mxu0 0
        %3942 = vmatmul.mubr.bf16.gmra.mrb[0].mxu0 %v3828
        %v3943 = vpop.f32.mrb[0].mxu0
        %v3944 = vadd.f32 %v3779, %v3943
        %v3945 = vpop.f32.mrb[0].mxu0
        %v3946 = vpop.f32.mrb[0].mxu0
        %v3947 = vadd.f32 %v3779, %v3946
        %v3948 = vpop.f32.mrb[0].mxu0
        %3949 = vmatprep.mubr.bf16.mxu0 0
        %3950 = vmatmul.mubr.bf16.gmra.mrb[0].mxu0 %v3831
        %v3951 = vpop.f32.mrb[0].mxu0
        %v3952 = vadd.f32 %v3779, %v3951
        %v3953 = vpop.f32.mrb[0].mxu0
        %v3954 = vpop.f32.mrb[0].mxu0
        %v3955 = vadd.f32 %v3779, %v3954
        %v3956 = vpop.f32.mrb[0].mxu0
        %3957 = vmatprep.mubr.bf16.mxu0 0
        %3958 = vmatmul.mubr.bf16.gmra.mrb[0].mxu0 %v3834
        %v3959 = vpop.f32.mrb[0].mxu0
        %v3960 = vadd.f32 %v3779, %v3959
        %v3961 = vpop.f32.mrb[0].mxu0
        %v3962 = vpop.f32.mrb[0].mxu0
        %v3963 = vadd.f32 %v3779, %v3962
        %v3964 = vpop.f32.mrb[0].mxu0
        %3965 = vmatprep.mubr.bf16.mxu0 0
        %3966 = vmatmul.mubr.bf16.gmra.mrb[0].mxu0 %v3837
        %v3967 = vpop.f32.mrb[0].mxu0
        %v3968 = vadd.f32 %v3779, %v3967
        %v3969 = vpop.f32.mrb[0].mxu0
        %v3970 = vpop.f32.mrb[0].mxu0
        %v3971 = vadd.f32 %v3779, %v3970
        %v3972 = vpop.f32.mrb[0].mxu0
        %3973 = vmatprep.mubr.bf16.mxu0 0
        %3974 = vmatmul.mubr.bf16.gmra.mrb[0].mxu0 %v3840
        %v3975 = vpop.f32.mrb[0].mxu0
        %v3976 = vadd.f32 %v3779, %v3975
        %v3977 = vpop.f32.mrb[0].mxu0
        %v3978 = vpop.f32.mrb[0].mxu0
        %v3979 = vadd.f32 %v3779, %v3978
        %v3980 = vpop.f32.mrb[0].mxu0
        %3981 = vmatprep.mubr.bf16.mxu0 0
        %3982 = vmatmul.mubr.bf16.gmra.mrb[0].mxu0 %v3843
        %v3983 = vpop.f32.mrb[0].mxu0
        %v3984 = vadd.f32 %v3779, %v3983
        %v3985 = vpop.f32.mrb[0].mxu0
        %v3986 = vpop.f32.mrb[0].mxu0
        %v3987 = vadd.f32 %v3779, %v3986
        %v3988 = vpop.f32.mrb[0].mxu0
        %3989 = vmatprep.mubr.bf16.mxu0 0
        %3990 = vmatmul.mubr.bf16.gmra.mrb[0].mxu0 %v3846
        %v3991 = vpop.f32.mrb[0].mxu0
        %v3992 = vadd.f32 %v3779, %v3991
        %v3993 = vpop.f32.mrb[0].mxu0
        %v3994 = vpop.f32.mrb[0].mxu0
        %v3995 = vadd.f32 %v3779, %v3994
        %v3996 = vpop.f32.mrb[0].mxu0
        %3997 = vmatprep.mubr.bf16.mxu0 0
        %3998 = vmatmul.mubr.bf16.gmra.mrb[0].mxu0 %v3849
        %v3999 = vpop.f32.mrb[0].mxu0
        %v4000 = vadd.f32 %v3779, %v3999
        %v4001 = vpop.f32.mrb[0].mxu0
        %v4002 = vpop.f32.mrb[0].mxu0
        %v4003 = vadd.f32 %v3779, %v4002
        %v4004 = vpop.f32.mrb[0].mxu0
        %4005 = vmatprep.mubr.bf16.mxu0 0
        %4006 = vmatmul.mubr.bf16.gmra.mrb[0].mxu0 %v3852
        %v4007 = vpop.f32.mrb[0].mxu0
        %v4008 = vadd.f32 %v3779, %v4007
        %v4009 = vpop.f32.mrb[0].mxu0
        %v4010 = vpop.f32.mrb[0].mxu0
        %v4011 = vadd.f32 %v3779, %v4010
        %v4012 = vpop.f32.mrb[0].mxu0
        %4013 = vmatprep.mubr.bf16.mxu0 0
        %4014 = vmatmul.mubr.bf16.gmra.mrb[0].mxu0 %v3855
        %v4015 = vpop.f32.mrb[0].mxu0
        %v4016 = vadd.f32 %v3779, %v4015
        %v4017 = vpop.f32.mrb[0].mxu0
        %v4018 = vpop.f32.mrb[0].mxu0
        %v4019 = vadd.f32 %v3779, %v4018
        %v4020 = vpop.f32.mrb[0].mxu0
        %4021 = vdwg.mxu0
        %v4022 = vmax.f32 %v3896, 0.0
        %v4023 = vmax.f32 %v3899, 0.0
        %v4024 = vmax.f32 %v3904, 0.0
        %v4025 = vmax.f32 %v3907, 0.0
        %v4026 = vmax.f32 %v3912, 0.0
        %v4027 = vmax.f32 %v3915, 0.0
        %v4028 = vmax.f32 %v3920, 0.0
        %v4029 = vmax.f32 %v3923, 0.0
        %v4030 = vmax.f32 %v3928, 0.0
        %v4031 = vmax.f32 %v3931, 0.0
        %v4032 = vmax.f32 %v3936, 0.0
        %v4033 = vmax.f32 %v3939, 0.0
        %v4034 = vmax.f32 %v3944, 0.0
        %v4035 = vmax.f32 %v3947, 0.0
        %v4036 = vmax.f32 %v3952, 0.0
        %v4037 = vmax.f32 %v3955, 0.0
        %v4038 = vmax.f32 %v3960, 0.0
        %v4039 = vmax.f32 %v3963, 0.0
        %v4040 = vmax.f32 %v3968, 0.0
        %v4041 = vmax.f32 %v3971, 0.0
        %v4042 = vmax.f32 %v3976, 0.0
        %v4043 = vmax.f32 %v3979, 0.0
        %v4044 = vmax.f32 %v3984, 0.0
        %v4045 = vmax.f32 %v3987, 0.0
        %v4046 = vmax.f32 %v3992, 0.0
        %v4047 = vmax.f32 %v3995, 0.0
        %v4048 = vmax.f32 %v4000, 0.0
        %v4049 = vmax.f32 %v4003, 0.0
        %v4050 = vmax.f32 %v4008, 0.0
        %v4051 = vmax.f32 %v4011, 0.0
        %v4052 = vmax.f32 %v4016, 0.0
        %v4053 = vmax.f32 %v4019, 0.0
        %v4054 = vpack.c.bf16 %v4023, %v4022
        %v4055 = vpack.c.bf16 %v4025, %v4024
        %v4056 = vpack.c.bf16 %v4027, %v4026
        %v4057 = vpack.c.bf16 %v4029, %v4028
        %v4058 = vpack.c.bf16 %v4031, %v4030
        %v4059 = vpack.c.bf16 %v4033, %v4032
        %v4060 = vpack.c.bf16 %v4035, %v4034
        %v4061 = vpack.c.bf16 %v4037, %v4036
        %v4062 = vpack.c.bf16 %v4039, %v4038
        %v4063 = vpack.c.bf16 %v4041, %v4040
        %v4064 = vpack.c.bf16 %v4043, %v4042
        %v4065 = vpack.c.bf16 %v4045, %v4044
        %v4066 = vpack.c.bf16 %v4047, %v4046
        %v4067 = vpack.c.bf16 %v4049, %v4048
        %v4068 = vpack.c.bf16 %v4051, %v4050
        %v4069 = vpack.c.bf16 %v4053, %v4052
        %v4070 = vld [vmem:[#allocation13] sm:$0xf]
        %v4071 = vld [vmem:[#allocation15] sm:$0x1]
        %v4073 = vlaneseq
        %v4074 = vshrl.u32 %v4073, 7
        %v4075 = vsub.s32 0, %v4074
        %v4076 = vrot.slane %v4071, %v4075
        %v4079 = vsel %vm827, %v4054, 0
        %v4082 = vsel %vm827, %v4055, 0
        %v4085 = vsel %vm827, %v4056, 0
        %v4088 = vsel %vm827, %v4057, 0
        %v4091 = vsel %vm827, %v4058, 0
        %v4094 = vsel %vm827, %v4059, 0
        %v4097 = vsel %vm827, %v4060, 0
        %v4100 = vsel %vm827, %v4061, 0
        %v4103 = vsel %vm827, %v4062, 0
        %v4106 = vsel %vm827, %v4063, 0
        %v4109 = vsel %vm827, %v4064, 0
        %v4112 = vsel %vm827, %v4065, 0
        %v4115 = vsel %vm827, %v4066, 0
        %v4118 = vsel %vm827, %v4067, 0
        %v4121 = vsel %vm827, %v4068, 0
        %v4124 = vsel %vm827, %v4069, 0
        %v4127 = vsel %vm3857, %v4070, 0
        %4129 = vmatprep.subr.bf16.mxu0 0
        %4130 = vmatpush1.bf16.msra.mxu0 %v4127
        %4131 = vmatprep.subr.bf16.mxu0 0
        %4132 = vmatpush1.bf16.msra.mxu0 0
        %4133 = vmatprep.subr.bf16.mxu0 0
        %4134 = vmatpush1.bf16.msra.mxu0 0
        %4135 = vmatprep.subr.bf16.mxu0 0
        %4136 = vmatpush1.bf16.msra.mxu0 0
        %4137 = vmatprep.subr.bf16.mxu0 0
        %4138 = vmatpush1.bf16.msra.mxu0 0
        %4139 = vmatprep.subr.bf16.mxu0 0
        %4140 = vmatpush1.bf16.msra.mxu0 0
        %4141 = vmatprep.subr.bf16.mxu0 0
        %4142 = vmatpush1.bf16.msra.mxu0 0
        %4143 = vmatprep.subr.bf16.mxu0 0
        %4144 = vmatpush1.bf16.msra.mxu0 0
        %4145 = vmatprep.subr.bf16.mxu0 0
        %4146 = vmatpush1.bf16.msra.mxu0 0
        %4147 = vmatprep.subr.bf16.mxu0 0
        %4148 = vmatpush1.bf16.msra.mxu0 0
        %4149 = vmatprep.subr.bf16.mxu0 0
        %4150 = vmatpush1.bf16.msra.mxu0 0
        %4151 = vmatprep.subr.bf16.mxu0 0
        %4152 = vmatpush1.bf16.msra.mxu0 0
        %4153 = vmatprep.subr.bf16.mxu0 0
        %4154 = vmatpush1.bf16.msra.mxu0 0
        %4155 = vmatprep.subr.bf16.mxu0 0
        %4156 = vmatpush1.bf16.msra.mxu0 0
        %4157 = vmatprep.subr.bf16.mxu0 0
        %4158 = vmatpush1.bf16.msra.mxu0 0
        %4159 = vmatprep.subr.bf16.mxu0 0
        %4160 = vmatpush1.bf16.msra.mxu0 0
        %4161 = vmatprep.mubr.bf16.mxu0 0
        %4162 = vmatmul.mubr.bf16.gmra.mrb[0].mxu0 %v4079
        %v4163 = vpop.f32.mrb[0].mxu0
        %v4164 = vadd.f32 %v4076, %v4163
        %v4165 = vpop.f32.mrb[0].mxu0
        %v4166 = vpop.f32.mrb[0].mxu0
        %v4167 = vadd.f32 %v4076, %v4166
        %v4168 = vpop.f32.mrb[0].mxu0
        %4169 = vmatprep.mubr.bf16.mxu0 0
        %4170 = vmatmul.mubr.bf16.gmra.mrb[0].mxu0 %v4082
        %v4171 = vpop.f32.mrb[0].mxu0
        %v4172 = vadd.f32 %v4076, %v4171
        %v4173 = vpop.f32.mrb[0].mxu0
        %v4174 = vpop.f32.mrb[0].mxu0
        %v4175 = vadd.f32 %v4076, %v4174
        %v4176 = vpop.f32.mrb[0].mxu0
        %4177 = vmatprep.mubr.bf16.mxu0 0
        %4178 = vmatmul.mubr.bf16.gmra.mrb[0].mxu0 %v4085
        %v4179 = vpop.f32.mrb[0].mxu0
        %v4180 = vadd.f32 %v4076, %v4179
        %v4181 = vpop.f32.mrb[0].mxu0
        %v4182 = vpop.f32.mrb[0].mxu0
        %v4183 = vadd.f32 %v4076, %v4182
        %v4184 = vpop.f32.mrb[0].mxu0
        %4185 = vmatprep.mubr.bf16.mxu0 0
        %4186 = vmatmul.mubr.bf16.gmra.mrb[0].mxu0 %v4088
        %v4187 = vpop.f32.mrb[0].mxu0
        %v4188 = vadd.f32 %v4076, %v4187
        %v4189 = vpop.f32.mrb[0].mxu0
        %v4190 = vpop.f32.mrb[0].mxu0
        %v4191 = vadd.f32 %v4076, %v4190
        %v4192 = vpop.f32.mrb[0].mxu0
        %4193 = vmatprep.mubr.bf16.mxu0 0
        %4194 = vmatmul.mubr.bf16.gmra.mrb[0].mxu0 %v4091
        %v4195 = vpop.f32.mrb[0].mxu0
        %v4196 = vadd.f32 %v4076, %v4195
        %v4197 = vpop.f32.mrb[0].mxu0
        %v4198 = vpop.f32.mrb[0].mxu0
        %v4199 = vadd.f32 %v4076, %v4198
        %v4200 = vpop.f32.mrb[0].mxu0
        %4201 = vmatprep.mubr.bf16.mxu0 0
        %4202 = vmatmul.mubr.bf16.gmra.mrb[0].mxu0 %v4094
        %v4203 = vpop.f32.mrb[0].mxu0
        %v4204 = vadd.f32 %v4076, %v4203
        %v4205 = vpop.f32.mrb[0].mxu0
        %v4206 = vpop.f32.mrb[0].mxu0
        %v4207 = vadd.f32 %v4076, %v4206
        %v4208 = vpop.f32.mrb[0].mxu0
        %4209 = vmatprep.mubr.bf16.mxu0 0
        %4210 = vmatmul.mubr.bf16.gmra.mrb[0].mxu0 %v4097
        %v4211 = vpop.f32.mrb[0].mxu0
        %v4212 = vadd.f32 %v4076, %v4211
        %v4213 = vpop.f32.mrb[0].mxu0
        %v4214 = vpop.f32.mrb[0].mxu0
        %v4215 = vadd.f32 %v4076, %v4214
        %v4216 = vpop.f32.mrb[0].mxu0
        %4217 = vmatprep.mubr.bf16.mxu0 0
        %4218 = vmatmul.mubr.bf16.gmra.mrb[0].mxu0 %v4100
        %v4219 = vpop.f32.mrb[0].mxu0
        %v4220 = vadd.f32 %v4076, %v4219
        %v4221 = vpop.f32.mrb[0].mxu0
        %v4222 = vpop.f32.mrb[0].mxu0
        %v4223 = vadd.f32 %v4076, %v4222
        %v4224 = vpop.f32.mrb[0].mxu0
        %4225 = vmatprep.mubr.bf16.mxu0 0
        %4226 = vmatmul.mubr.bf16.gmra.mrb[0].mxu0 %v4103
        %v4227 = vpop.f32.mrb[0].mxu0
        %v4228 = vadd.f32 %v4076, %v4227
        %v4229 = vpop.f32.mrb[0].mxu0
        %v4230 = vpop.f32.mrb[0].mxu0
        %v4231 = vadd.f32 %v4076, %v4230
        %v4232 = vpop.f32.mrb[0].mxu0
        %4233 = vmatprep.mubr.bf16.mxu0 0
        %4234 = vmatmul.mubr.bf16.gmra.mrb[0].mxu0 %v4106
        %v4235 = vpop.f32.mrb[0].mxu0
        %v4236 = vadd.f32 %v4076, %v4235
        %v4237 = vpop.f32.mrb[0].mxu0
        %v4238 = vpop.f32.mrb[0].mxu0
        %v4239 = vadd.f32 %v4076, %v4238
        %v4240 = vpop.f32.mrb[0].mxu0
        %4241 = vmatprep.mubr.bf16.mxu0 0
        %4242 = vmatmul.mubr.bf16.gmra.mrb[0].mxu0 %v4109
        %v4243 = vpop.f32.mrb[0].mxu0
        %v4244 = vadd.f32 %v4076, %v4243
        %v4245 = vpop.f32.mrb[0].mxu0
        %v4246 = vpop.f32.mrb[0].mxu0
        %v4247 = vadd.f32 %v4076, %v4246
        %v4248 = vpop.f32.mrb[0].mxu0
        %4249 = vmatprep.mubr.bf16.mxu0 0
        %4250 = vmatmul.mubr.bf16.gmra.mrb[0].mxu0 %v4112
        %v4251 = vpop.f32.mrb[0].mxu0
        %v4252 = vadd.f32 %v4076, %v4251
        %v4253 = vpop.f32.mrb[0].mxu0
        %v4254 = vpop.f32.mrb[0].mxu0
        %v4255 = vadd.f32 %v4076, %v4254
        %v4256 = vpop.f32.mrb[0].mxu0
        %4257 = vmatprep.mubr.bf16.mxu0 0
        %4258 = vmatmul.mubr.bf16.gmra.mrb[0].mxu0 %v4115
        %v4259 = vpop.f32.mrb[0].mxu0
        %v4260 = vadd.f32 %v4076, %v4259
        %v4261 = vpop.f32.mrb[0].mxu0
        %v4262 = vpop.f32.mrb[0].mxu0
        %v4263 = vadd.f32 %v4076, %v4262
        %v4264 = vpop.f32.mrb[0].mxu0
        %4265 = vmatprep.mubr.bf16.mxu0 0
        %4266 = vmatmul.mubr.bf16.gmra.mrb[0].mxu0 %v4118
        %v4267 = vpop.f32.mrb[0].mxu0
        %v4268 = vadd.f32 %v4076, %v4267
        %v4269 = vpop.f32.mrb[0].mxu0
        %v4270 = vpop.f32.mrb[0].mxu0
        %v4271 = vadd.f32 %v4076, %v4270
        %v4272 = vpop.f32.mrb[0].mxu0
        %4273 = vmatprep.mubr.bf16.mxu0 0
        %4274 = vmatmul.mubr.bf16.gmra.mrb[0].mxu0 %v4121
        %v4275 = vpop.f32.mrb[0].mxu0
        %v4276 = vadd.f32 %v4076, %v4275
        %v4277 = vpop.f32.mrb[0].mxu0
        %v4278 = vpop.f32.mrb[0].mxu0
        %v4279 = vadd.f32 %v4076, %v4278
        %v4280 = vpop.f32.mrb[0].mxu0
        %4281 = vmatprep.mubr.bf16.mxu0 0
        %4282 = vmatmul.mubr.bf16.gmra.mrb[0].mxu0 %v4124
        %v4283 = vpop.f32.mrb[0].mxu0
        %v4284 = vadd.f32 %v4076, %v4283
        %v4285 = vpop.f32.mrb[0].mxu0
        %v4286 = vpop.f32.mrb[0].mxu0
        %v4287 = vadd.f32 %v4076, %v4286
        %v4288 = vpop.f32.mrb[0].mxu0
        %4289 = vdwg.mxu0
        %v4290 = vld [vmem:[#allocation16] sm:$0xf]
        %v4291 = vld [vmem:[#allocation16 + $0x4] sm:$0xf]
        %v4292 = vld [vmem:[#allocation18] sm:$0x1]
        %v4294 = vlaneseq
        %v4295 = vshrl.u32 %v4294, 7
        %v4296 = vsub.s32 0, %v4295
        %v4297 = vrot.slane %v4292, %v4296
        %v4301 = vunpack.c.l.b16 %v4290
        %v4302 = vunpack.c.l.b16 %v4291
        %v4303 = vpack.c.b16 %v4302, %v4301
        %4305 = vmatprep.subr.bf16.mxu0 0
        %4306 = vmatpush1.bf16.msra.mxu0 %v4303
        %4307 = vmatprep.subr.bf16.mxu0 0
        %4308 = vmatpush1.bf16.msra.mxu0 0
        %4309 = vmatprep.subr.bf16.mxu0 0
        %4310 = vmatpush1.bf16.msra.mxu0 0
        %4311 = vmatprep.subr.bf16.mxu0 0
        %4312 = vmatpush1.bf16.msra.mxu0 0
        %4313 = vmatprep.subr.bf16.mxu0 0
        %4314 = vmatpush1.bf16.msra.mxu0 0
        %4315 = vmatprep.subr.bf16.mxu0 0
        %4316 = vmatpush1.bf16.msra.mxu0 0
        %4317 = vmatprep.subr.bf16.mxu0 0
        %4318 = vmatpush1.bf16.msra.mxu0 0
        %4319 = vmatprep.subr.bf16.mxu0 0
        %4320 = vmatpush1.bf16.msra.mxu0 0
        %4321 = vmatprep.subr.bf16.mxu0 0
        %4322 = vmatpush1.bf16.msra.mxu0 0
        %4323 = vmatprep.subr.bf16.mxu0 0
        %4324 = vmatpush1.bf16.msra.mxu0 0
        %4325 = vmatprep.subr.bf16.mxu0 0
        %4326 = vmatpush1.bf16.msra.mxu0 0
        %4327 = vmatprep.subr.bf16.mxu0 0
        %4328 = vmatpush1.bf16.msra.mxu0 0
        %4329 = vmatprep.subr.bf16.mxu0 0
        %4330 = vmatpush1.bf16.msra.mxu0 0
        %4331 = vmatprep.subr.bf16.mxu0 0
        %4332 = vmatpush1.bf16.msra.mxu0 0
        %4333 = vmatprep.subr.bf16.mxu0 0
        %4334 = vmatpush1.bf16.msra.mxu0 0
        %4335 = vmatprep.subr.bf16.mxu0 0
        %4336 = vmatpush1.bf16.msra.mxu0 0
        %4337 = vmatprep.mubr.bf16.mxu0 0
        %4338 = vmatmul.mubr.bf16.gmra.mrb[0].mxu0 %v587
        %v4339 = vpop.f32.mrb[0].mxu0
        %v4340 = vadd.f32 %v4297, %v4339
        %v4341 = vpop.f32.mrb[0].mxu0
        %v4342 = vpop.f32.mrb[0].mxu0
        %v4343 = vadd.f32 %v4297, %v4342
        %v4344 = vpop.f32.mrb[0].mxu0
        %4345 = vmatprep.mubr.bf16.mxu0 0
        %4346 = vmatmul.mubr.bf16.gmra.mrb[0].mxu0 %v590
        %v4347 = vpop.f32.mrb[0].mxu0
        %v4348 = vadd.f32 %v4297, %v4347
        %v4349 = vpop.f32.mrb[0].mxu0
        %v4350 = vpop.f32.mrb[0].mxu0
        %v4351 = vadd.f32 %v4297, %v4350
        %v4352 = vpop.f32.mrb[0].mxu0
        %4353 = vmatprep.mubr.bf16.mxu0 0
        %4354 = vmatmul.mubr.bf16.gmra.mrb[0].mxu0 %v593
        %v4355 = vpop.f32.mrb[0].mxu0
        %v4356 = vadd.f32 %v4297, %v4355
        %v4357 = vpop.f32.mrb[0].mxu0
        %v4358 = vpop.f32.mrb[0].mxu0
        %v4359 = vadd.f32 %v4297, %v4358
        %v4360 = vpop.f32.mrb[0].mxu0
        %4361 = vmatprep.mubr.bf16.mxu0 0
        %4362 = vmatmul.mubr.bf16.gmra.mrb[0].mxu0 %v596
        %v4363 = vpop.f32.mrb[0].mxu0
        %v4364 = vadd.f32 %v4297, %v4363
        %v4365 = vpop.f32.mrb[0].mxu0
        %v4366 = vpop.f32.mrb[0].mxu0
        %v4367 = vadd.f32 %v4297, %v4366
        %v4368 = vpop.f32.mrb[0].mxu0
        %4369 = vmatprep.mubr.bf16.mxu0 0
        %4370 = vmatmul.mubr.bf16.gmra.mrb[0].mxu0 %v599
        %v4371 = vpop.f32.mrb[0].mxu0
        %v4372 = vadd.f32 %v4297, %v4371
        %v4373 = vpop.f32.mrb[0].mxu0
        %v4374 = vpop.f32.mrb[0].mxu0
        %v4375 = vadd.f32 %v4297, %v4374
        %v4376 = vpop.f32.mrb[0].mxu0
        %4377 = vmatprep.mubr.bf16.mxu0 0
        %4378 = vmatmul.mubr.bf16.gmra.mrb[0].mxu0 %v602
        %v4379 = vpop.f32.mrb[0].mxu0
        %v4380 = vadd.f32 %v4297, %v4379
        %v4381 = vpop.f32.mrb[0].mxu0
        %v4382 = vpop.f32.mrb[0].mxu0
        %v4383 = vadd.f32 %v4297, %v4382
        %v4384 = vpop.f32.mrb[0].mxu0
        %4385 = vmatprep.mubr.bf16.mxu0 0
        %4386 = vmatmul.mubr.bf16.gmra.mrb[0].mxu0 %v605
        %v4387 = vpop.f32.mrb[0].mxu0
        %v4388 = vadd.f32 %v4297, %v4387
        %v4389 = vpop.f32.mrb[0].mxu0
        %v4390 = vpop.f32.mrb[0].mxu0
        %v4391 = vadd.f32 %v4297, %v4390
        %v4392 = vpop.f32.mrb[0].mxu0
        %4393 = vmatprep.mubr.bf16.mxu0 0
        %4394 = vmatmul.mubr.bf16.gmra.mrb[0].mxu0 %v608
        %v4395 = vpop.f32.mrb[0].mxu0
        %v4396 = vadd.f32 %v4297, %v4395
        %v4397 = vpop.f32.mrb[0].mxu0
        %v4398 = vpop.f32.mrb[0].mxu0
        %v4399 = vadd.f32 %v4297, %v4398
        %v4400 = vpop.f32.mrb[0].mxu0
        %4401 = vmatprep.mubr.bf16.mxu0 0
        %4402 = vmatmul.mubr.bf16.gmra.mrb[0].mxu0 %v611
        %v4403 = vpop.f32.mrb[0].mxu0
        %v4404 = vadd.f32 %v4297, %v4403
        %v4405 = vpop.f32.mrb[0].mxu0
        %v4406 = vpop.f32.mrb[0].mxu0
        %v4407 = vadd.f32 %v4297, %v4406
        %v4408 = vpop.f32.mrb[0].mxu0
        %4409 = vmatprep.mubr.bf16.mxu0 0
        %4410 = vmatmul.mubr.bf16.gmra.mrb[0].mxu0 %v614
        %v4411 = vpop.f32.mrb[0].mxu0
        %v4412 = vadd.f32 %v4297, %v4411
        %v4413 = vpop.f32.mrb[0].mxu0
        %v4414 = vpop.f32.mrb[0].mxu0
        %v4415 = vadd.f32 %v4297, %v4414
        %v4416 = vpop.f32.mrb[0].mxu0
        %4417 = vmatprep.mubr.bf16.mxu0 0
        %4418 = vmatmul.mubr.bf16.gmra.mrb[0].mxu0 %v617
        %v4419 = vpop.f32.mrb[0].mxu0
        %v4420 = vadd.f32 %v4297, %v4419
        %v4421 = vpop.f32.mrb[0].mxu0
        %v4422 = vpop.f32.mrb[0].mxu0
        %v4423 = vadd.f32 %v4297, %v4422
        %v4424 = vpop.f32.mrb[0].mxu0
        %4425 = vmatprep.mubr.bf16.mxu0 0
        %4426 = vmatmul.mubr.bf16.gmra.mrb[0].mxu0 %v620
        %v4427 = vpop.f32.mrb[0].mxu0
        %v4428 = vadd.f32 %v4297, %v4427
        %v4429 = vpop.f32.mrb[0].mxu0
        %v4430 = vpop.f32.mrb[0].mxu0
        %v4431 = vadd.f32 %v4297, %v4430
        %v4432 = vpop.f32.mrb[0].mxu0
        %4433 = vmatprep.mubr.bf16.mxu0 0
        %4434 = vmatmul.mubr.bf16.gmra.mrb[0].mxu0 %v623
        %v4435 = vpop.f32.mrb[0].mxu0
        %v4436 = vadd.f32 %v4297, %v4435
        %v4437 = vpop.f32.mrb[0].mxu0
        %v4438 = vpop.f32.mrb[0].mxu0
        %v4439 = vadd.f32 %v4297, %v4438
        %v4440 = vpop.f32.mrb[0].mxu0
        %4441 = vmatprep.mubr.bf16.mxu0 0
        %4442 = vmatmul.mubr.bf16.gmra.mrb[0].mxu0 %v626
        %v4443 = vpop.f32.mrb[0].mxu0
        %v4444 = vadd.f32 %v4297, %v4443
        %v4445 = vpop.f32.mrb[0].mxu0
        %v4446 = vpop.f32.mrb[0].mxu0
        %v4447 = vadd.f32 %v4297, %v4446
        %v4448 = vpop.f32.mrb[0].mxu0
        %4449 = vmatprep.mubr.bf16.mxu0 0
        %4450 = vmatmul.mubr.bf16.gmra.mrb[0].mxu0 %v629
        %v4451 = vpop.f32.mrb[0].mxu0
        %v4452 = vadd.f32 %v4297, %v4451
        %v4453 = vpop.f32.mrb[0].mxu0
        %v4454 = vpop.f32.mrb[0].mxu0
        %v4455 = vadd.f32 %v4297, %v4454
        %v4456 = vpop.f32.mrb[0].mxu0
        %4457 = vmatprep.mubr.bf16.mxu0 0
        %4458 = vmatmul.mubr.bf16.gmra.mrb[0].mxu0 %v632
        %v4459 = vpop.f32.mrb[0].mxu0
        %v4460 = vadd.f32 %v4297, %v4459
        %v4461 = vpop.f32.mrb[0].mxu0
        %v4462 = vpop.f32.mrb[0].mxu0
        %v4463 = vadd.f32 %v4297, %v4462
        %v4464 = vpop.f32.mrb[0].mxu0
        %4465 = vdwg.mxu0
        %v4466 = vadd.f32 %v4164, %v4340
        %v4467 = vadd.f32 %v4167, %v4343
        %v4468 = vadd.f32 %v4172, %v4348
        %v4469 = vadd.f32 %v4175, %v4351
        %v4470 = vadd.f32 %v4180, %v4356
        %v4471 = vadd.f32 %v4183, %v4359
        %v4472 = vadd.f32 %v4188, %v4364
        %v4473 = vadd.f32 %v4191, %v4367
        %v4474 = vadd.f32 %v4196, %v4372
        %v4475 = vadd.f32 %v4199, %v4375
        %v4476 = vadd.f32 %v4204, %v4380
        %v4477 = vadd.f32 %v4207, %v4383
        %v4478 = vadd.f32 %v4212, %v4388
        %v4479 = vadd.f32 %v4215, %v4391
        %v4480 = vadd.f32 %v4220, %v4396
        %v4481 = vadd.f32 %v4223, %v4399
        %v4482 = vadd.f32 %v4228, %v4404
        %v4483 = vadd.f32 %v4231, %v4407
        %v4484 = vadd.f32 %v4236, %v4412
        %v4485 = vadd.f32 %v4239, %v4415
        %v4486 = vadd.f32 %v4244, %v4420
        %v4487 = vadd.f32 %v4247, %v4423
        %v4488 = vadd.f32 %v4252, %v4428
        %v4489 = vadd.f32 %v4255, %v4431
        %v4490 = vadd.f32 %v4260, %v4436
        %v4491 = vadd.f32 %v4263, %v4439
        %v4492 = vadd.f32 %v4268, %v4444
        %v4493 = vadd.f32 %v4271, %v4447
        %v4494 = vadd.f32 %v4276, %v4452
        %v4495 = vadd.f32 %v4279, %v4455
        %v4496 = vadd.f32 %v4284, %v4460
        %v4497 = vadd.f32 %v4287, %v4463
        %v4498 = vmax.f32 %v4466, 0.0
        %v4499 = vmax.f32 %v4467, 0.0
        %v4500 = vmax.f32 %v4468, 0.0
        %v4501 = vmax.f32 %v4469, 0.0
        %v4502 = vmax.f32 %v4470, 0.0
        %v4503 = vmax.f32 %v4471, 0.0
        %v4504 = vmax.f32 %v4472, 0.0
        %v4505 = vmax.f32 %v4473, 0.0
        %v4506 = vmax.f32 %v4474, 0.0
        %v4507 = vmax.f32 %v4475, 0.0
        %v4508 = vmax.f32 %v4476, 0.0
        %v4509 = vmax.f32 %v4477, 0.0
        %v4510 = vmax.f32 %v4478, 0.0
        %v4511 = vmax.f32 %v4479, 0.0
        %v4512 = vmax.f32 %v4480, 0.0
        %v4513 = vmax.f32 %v4481, 0.0
        %v4514 = vmax.f32 %v4482, 0.0
        %v4515 = vmax.f32 %v4483, 0.0
        %v4516 = vmax.f32 %v4484, 0.0
        %v4517 = vmax.f32 %v4485, 0.0
        %v4518 = vmax.f32 %v4486, 0.0
        %v4519 = vmax.f32 %v4487, 0.0
        %v4520 = vmax.f32 %v4488, 0.0
        %v4521 = vmax.f32 %v4489, 0.0
        %v4522 = vmax.f32 %v4490, 0.0
        %v4523 = vmax.f32 %v4491, 0.0
        %v4524 = vmax.f32 %v4492, 0.0
        %v4525 = vmax.f32 %v4493, 0.0
        %v4526 = vmax.f32 %v4494, 0.0
        %v4527 = vmax.f32 %v4495, 0.0
        %v4528 = vmax.f32 %v4496, 0.0
        %v4529 = vmax.f32 %v4497, 0.0
        %v4530 = vpack.c.bf16 %v4499, %v4498
        %v4531 = vpack.c.bf16 %v4501, %v4500
        %v4532 = vpack.c.bf16 %v4503, %v4502
        %v4533 = vpack.c.bf16 %v4505, %v4504
        %v4534 = vpack.c.bf16 %v4507, %v4506
        %v4535 = vpack.c.bf16 %v4509, %v4508
        %v4536 = vpack.c.bf16 %v4511, %v4510
        %v4537 = vpack.c.bf16 %v4513, %v4512
        %v4538 = vpack.c.bf16 %v4515, %v4514
        %v4539 = vpack.c.bf16 %v4517, %v4516
        %v4540 = vpack.c.bf16 %v4519, %v4518
        %v4541 = vpack.c.bf16 %v4521, %v4520
        %v4542 = vpack.c.bf16 %v4523, %v4522
        %v4543 = vpack.c.bf16 %v4525, %v4524
        %v4544 = vpack.c.bf16 %v4527, %v4526
        %v4545 = vpack.c.bf16 %v4529, %v4528
        %v4562 = vunpack.c.l.b16 %v4530
        %v4563 = vunpack.c.h.b16 %v4530
        %v4564 = vunpack.c.l.b16 %v4531
        %v4565 = vunpack.c.h.b16 %v4531
        %v4566 = vunpack.c.l.b16 %v4532
        %v4567 = vunpack.c.h.b16 %v4532
        %v4568 = vunpack.c.l.b16 %v4533
        %v4569 = vunpack.c.h.b16 %v4533
        %v4570 = vunpack.c.l.b16 %v4534
        %v4571 = vunpack.c.h.b16 %v4534
        %v4572 = vunpack.c.l.b16 %v4535
        %v4573 = vunpack.c.h.b16 %v4535
        %v4574 = vunpack.c.l.b16 %v4536
        %v4575 = vunpack.c.h.b16 %v4536
        %v4576 = vunpack.c.l.b16 %v4537
        %v4577 = vunpack.c.h.b16 %v4537
        %v4578 = vunpack.c.l.b16 %v4538
        %v4579 = vunpack.c.h.b16 %v4538
        %v4580 = vunpack.c.l.b16 %v4539
        %v4581 = vunpack.c.h.b16 %v4539
        %v4582 = vunpack.c.l.b16 %v4540
        %v4583 = vunpack.c.h.b16 %v4540
        %v4584 = vunpack.c.l.b16 %v4541
        %v4585 = vunpack.c.h.b16 %v4541
        %v4586 = vunpack.c.l.b16 %v4542
        %v4587 = vunpack.c.h.b16 %v4542
        %v4588 = vunpack.c.l.b16 %v4543
        %v4589 = vunpack.c.h.b16 %v4543
        %v4590 = vunpack.c.l.b16 %v4544
        %v4591 = vunpack.c.h.b16 %v4544
        %v4592 = vunpack.c.l.b16 %v4545
        %v4593 = vunpack.c.h.b16 %v4545
        %v4594 = vpack.c.b16 %v4562, %v4562
        %v4595 = vpack.c.b16 %v4563, %v4563
        %v4596 = vpack.c.b16 %v4564, %v4564
        %v4597 = vpack.c.b16 %v4565, %v4565
        %v4598 = vpack.c.b16 %v4566, %v4566
        %v4599 = vpack.c.b16 %v4567, %v4567
        %v4600 = vpack.c.b16 %v4568, %v4568
        %v4601 = vpack.c.b16 %v4569, %v4569
        %v4602 = vpack.c.b16 %v4570, %v4570
        %v4603 = vpack.c.b16 %v4571, %v4571
        %v4604 = vpack.c.b16 %v4572, %v4572
        %v4605 = vpack.c.b16 %v4573, %v4573
        %v4606 = vpack.c.b16 %v4574, %v4574
        %v4607 = vpack.c.b16 %v4575, %v4575
        %v4608 = vpack.c.b16 %v4576, %v4576
        %v4609 = vpack.c.b16 %v4577, %v4577
        %v4610 = vpack.c.b16 %v4578, %v4578
        %v4611 = vpack.c.b16 %v4579, %v4579
        %v4612 = vpack.c.b16 %v4580, %v4580
        %v4613 = vpack.c.b16 %v4581, %v4581
        %v4614 = vpack.c.b16 %v4582, %v4582
        %v4615 = vpack.c.b16 %v4583, %v4583
        %v4616 = vpack.c.b16 %v4584, %v4584
        %v4617 = vpack.c.b16 %v4585, %v4585
        %v4618 = vpack.c.b16 %v4586, %v4586
        %v4619 = vpack.c.b16 %v4587, %v4587
        %v4620 = vpack.c.b16 %v4588, %v4588
        %v4621 = vpack.c.b16 %v4589, %v4589
        %v4622 = vpack.c.b16 %v4590, %v4590
        %v4623 = vpack.c.b16 %v4591, %v4591
        %v4624 = vpack.c.b16 %v4592, %v4592
        %v4625 = vpack.c.b16 %v4593, %v4593
        %vm4658 = vcmask 257024
        %4659 = vst.msk [vmem:[%s456] sm:$0xf] %vm4658, %v4594
        %4660 = vst.msk [vmem:[%s456 + $0x4] sm:$0xf] %vm4658, %v4595
        %4661 = vst.msk [vmem:[%s456 + $0x8] sm:$0xf] %vm4658, %v4596
        %4662 = vst.msk [vmem:[%s456 + $0xc] sm:$0xf] %vm4658, %v4597
        %4663 = vst.msk [vmem:[%s456 + $0x10] sm:$0xf] %vm4658, %v4598
        %4664 = vst.msk [vmem:[%s456 + $0x14] sm:$0xf] %vm4658, %v4599
        %4665 = vst.msk [vmem:[%s456 + $0x18] sm:$0xf] %vm4658, %v4600
        %4666 = vst.msk [vmem:[%s456 + $0x1c] sm:$0xf] %vm4658, %v4601
        %4667 = vst.msk [vmem:[%s456 + $0x20] sm:$0xf] %vm4658, %v4602
        %4668 = vst.msk [vmem:[%s456 + $0x24] sm:$0xf] %vm4658, %v4603
        %4669 = vst.msk [vmem:[%s456 + $0x28] sm:$0xf] %vm4658, %v4604
        %4670 = vst.msk [vmem:[%s456 + $0x2c] sm:$0xf] %vm4658, %v4605
        %4671 = vst.msk [vmem:[%s456 + $0x30] sm:$0xf] %vm4658, %v4606
        %4672 = vst.msk [vmem:[%s456 + $0x34] sm:$0xf] %vm4658, %v4607
        %4673 = vst.msk [vmem:[%s456 + $0x38] sm:$0xf] %vm4658, %v4608
        %4674 = vst.msk [vmem:[%s456 + $0x3c] sm:$0xf] %vm4658, %v4609
        %4675 = vst.msk [vmem:[%s456 + $0x40] sm:$0xf] %vm4658, %v4610
        %4676 = vst.msk [vmem:[%s456 + $0x44] sm:$0xf] %vm4658, %v4611
        %4677 = vst.msk [vmem:[%s456 + $0x48] sm:$0xf] %vm4658, %v4612
        %4678 = vst.msk [vmem:[%s456 + $0x4c] sm:$0xf] %vm4658, %v4613
        %4679 = vst.msk [vmem:[%s456 + $0x50] sm:$0xf] %vm4658, %v4614
        %4680 = vst.msk [vmem:[%s456 + $0x54] sm:$0xf] %vm4658, %v4615
        %4681 = vst.msk [vmem:[%s456 + $0x58] sm:$0xf] %vm4658, %v4616
        %4682 = vst.msk [vmem:[%s456 + $0x5c] sm:$0xf] %vm4658, %v4617
        %4683 = vst.msk [vmem:[%s456 + $0x60] sm:$0xf] %vm4658, %v4618
        %4684 = vst.msk [vmem:[%s456 + $0x64] sm:$0xf] %vm4658, %v4619
        %4685 = vst.msk [vmem:[%s456 + $0x68] sm:$0xf] %vm4658, %v4620
        %4686 = vst.msk [vmem:[%s456 + $0x6c] sm:$0xf] %vm4658, %v4621
        %4687 = vst.msk [vmem:[%s456 + $0x70] sm:$0xf] %vm4658, %v4622
        %4688 = vst.msk [vmem:[%s456 + $0x74] sm:$0xf] %vm4658, %v4623
        %4689 = vst.msk [vmem:[%s456 + $0x78] sm:$0xf] %vm4658, %v4624
        %4690 = vst.msk [vmem:[%s456 + $0x7c] sm:$0xf] %vm4658, %v4625
        %s4691 = sand.u32 %s232, 1
        %s4692 = scalar_lea.sflag [#allocation6], %s4691
        %s4693 = sand.u32 %s232, 1
        %s4694 = smul.addr %s4693, 128
        %s4695 = scalar_lea.vmem [#allocation19], %s4694
        // Predicated region
        $region93: #{tpu_custom_call.1} parent=55 // pred_check
          %p4696 = pneg %p242
        $region94: #{tpu_custom_call.1} parent=55 // pred_check_branch
          %4698 = sbr.rel (%p4696) target = $region96
        $region95: #{tpu_custom_call.1} parent=55 // pred_region
          %s4700 = ssub.s32 2048, 2048
          %4701 = vsyncadd %s4692, %s4700
          %s4702 = smul.addr %s30, 32
          %s4703 = smul.addr %s4702, 64
          %s4704 = scalar_lea.hbm %s9, %s4703
          %s4705 = sshll.u32 %s4695, 4
          %s4706 = int_to_ptr.vmem [resolvable:$true] %s4705
          %4711 = dma.vmem_to_hbm [thread:$0]  %s4706, 2048, %s4704, %s4692, 64, 64, 4
        $region96: #{tpu_custom_call.1} parent=55 // pred_fallthru
          _
      $region56: #{tpu_custom_call.1} parent=5 // pred_fallthru
        _
      %p4712 = scmp.le.s32.totalorder 2, %s25
      // Predicated region
      $region97: #{tpu_custom_call.1} parent=5 // pred_check
        %p4713 = pneg %p4712
      $region98: #{tpu_custom_call.1} parent=5 // pred_check_branch
        %4715 = sbr.rel (%p4713) target = $region100
      $region99: #{tpu_custom_call.1} parent=5 // pred_region
        %s4716 = ssub.s32 %s25, 2
        // Predicated region
        $region101: #{tpu_custom_call.1} parent=99 // pred_check
          %p4717 = pneg %p248
        $region102: #{tpu_custom_call.1} parent=99 // pred_check_branch
          %4719 = sbr.rel (%p4717) target = $region104
        $region103: #{tpu_custom_call.1} parent=99 // pred_region
          %s4720 = sand.u32 %s233, 1
          %s4721 = scalar_lea.sflag [#allocation6], %s4720
          %s4722 = sand.u32 %s233, 1
          %s4723 = smul.addr %s4722, 128
          %s4724 = scalar_lea.vmem [#allocation19], %s4723
          %4725 = dma.done %s4721, 2048
        $region104: #{tpu_custom_call.1} parent=99 // pred_fallthru
          _
      $region100: #{tpu_custom_call.1} parent=5 // pred_fallthru
        _
    $region6: #{tpu_custom_call.1} parent=1 // loop_footer
      %s29 = sadd.s32 1, %s25
    $region7: #{tpu_custom_call.1} parent=1 // loop_footer_branch
      %24 = sbr.rel target = $region3
    $region8: #{tpu_custom_call.1} parent=1 // loop_exit
      _
    %4726 = vsyncpa [#allocation5], 1
    %s4727 = scalar_lea.sflag [#allocation5], 1
    %4728 = vsyncpa %s4727, 1
    %4729 = vsyncpa [#allocation8], 1
    %4730 = vsyncpa [#allocation11], 1
    %4731 = vsyncpa [#allocation14], 1
    %4732 = vsyncpa [#allocation17], 1
    %4733 = vsyncpa [#allocation6], 1
    %s4734 = scalar_lea.sflag [#allocation6], 1
    %4735 = vsyncpa %s4734, 1

</llo_original>
